<compile_context>
chip_gen: v5e
topology: v5e:2x2
jax: 0.10.0
libtpu: 0.0.40
codegen_flags: <defaults>
</compile_context>

<pallas_src>
import jax
import jax.numpy as jnp
import numpy as np
from jax import lax
from jax.experimental import pallas as pl
from jax.experimental.pallas import tpu as pltpu

# ---- static architecture sizes ------------------------------------------------
H_IN = 4
W_IN = 6000
C1 = 8                               # layer1 conv1 out channels
C2 = 16                              # layer1 conv2 out channels
W2OUT = (W_IN + 2 - 3) // 2 + 1      # conv2: k=(1,3), s=2, pad (0,1) -> 3000
FLAT = C2 * 1 * W2OUT                # 48000 (must match Linear(48000, 1024))
HID1, HID2 = 1024, 256
TK = 9600                            # fc1 K tile per grid step (divides 48000)
SUB = 1920                           # in-kernel dequant/matmul sub-chunk (divides TK)
NSPLIT = 2                           # fc1 output-column split ("parallel" grid axis)
NOUT = HID1 // NSPLIT                # 512
NK = FLAT // TK                      # 5
assert FLAT == 48000 and FLAT % TK == 0 and TK % SUB == 0 and HID1 % NSPLIT == 0
assert SUB % 128 == 0 and NOUT % 128 == 0


# ---- kernel 1: conv1 + BN + ReLU + conv2(stride 2) + BN + ReLU + SE ------------
def feature_kernel(xq_ref, w1_ref, w2_ref, sh1_ref, sh2_ref, wse1_ref, wse2_ref,
                   mask_ref, o_ref):
    # five pre-de-interleaved column phases of the width-padded input, each (4, 3000):
    #   p0[j]=xp[2j], p1[j]=xp[2j+1], p2[j]=xp[2j+2], p3[j]=xp[2j+3], p4[j]=xp[2j-1]
    p0 = xq_ref[0, 0]
    p1 = xq_ref[0, 1]
    p2 = xq_ref[0, 2]
    p3 = xq_ref[0, 3]
    p4 = xq_ref[0, 4]

    sh1 = sh1_ref[...]               # (8, 1)  conv1 bias+BN shift (scale folded in w1)
    sh2 = sh2_ref[...]               # (16, 1) conv2 bias+BN shift (scale folded in w2)

    def dotf(a, b):
        return jnp.dot(a, b, preferred_element_type=jnp.float32)

    # conv1 (k=(4,3), s=1, pad (0,1)), evaluated at three column phases:
    #   a1e[j] = conv1 output at col 2j, a1o[j] at col 2j+1, a1m[j] at col 2j-1
    a1e = dotf(w1_ref[0], p0) + dotf(w1_ref[1], p1) + dotf(w1_ref[2], p2)   # (8, 3000)
    a1o = dotf(w1_ref[0], p1) + dotf(w1_ref[1], p2) + dotf(w1_ref[2], p3)   # (8, 3000)
    a1m = dotf(w1_ref[0], p4) + dotf(w1_ref[1], p0) + dotf(w1_ref[2], p1)   # (8, 3000)

    a1e = jnp.maximum(a1e + sh1, 0.0)
    a1o = jnp.maximum(a1o + sh1, 0.0)
    # conv2 pad position: col index -1 of a1 must contribute exactly zero -> mask col 0
    left = mask_ref[...] * jnp.maximum(a1m + sh1, 0.0)                      # (8, 3000)

    # conv2 (k=(1,3), s=2, pad (0,1)): out[:, j] uses a1[2j-1], a1[2j], a1[2j+1]
    a2 = dotf(w2_ref[0], left) + dotf(w2_ref[1], a1e) + dotf(w2_ref[2], a1o)  # (16,3000)
    a2 = jnp.maximum(a2 + sh2, 0.0)

    # SE block: ch_in=16, reduction=16 -> hidden size 1
    pooled = jnp.mean(a2, axis=1, keepdims=True)                            # (16, 1)
    h = jnp.maximum(jnp.sum(wse1_ref[...] * pooled, axis=0, keepdims=True), 0.0)  # (1,1)
    gate = jax.nn.sigmoid(wse2_ref[...] * h)                                # (16, 1)

    # write bf16 directly (halves feature writeback + fc1 activation DMA)
    o_ref[0] = (a2 * gate).astype(jnp.bfloat16)


def run_features(xq, w1r, w2r, sh1v, sh2v, wse1v, wse2v, mask):
    B = xq.shape[0]
    grid_spec = pltpu.PrefetchScalarGridSpec(
        num_scalar_prefetch=0,
        grid=(B,),
        in_specs=[
            pl.BlockSpec((1, 5, H_IN, W2OUT), lambda b: (b, 0, 0, 0)),
            pl.BlockSpec((3, C1, H_IN), lambda b: (0, 0, 0)),
            pl.BlockSpec((3, C2, C1), lambda b: (0, 0, 0)),
            pl.BlockSpec((C1, 1), lambda b: (0, 0)),
            pl.BlockSpec((C2, 1), lambda b: (0, 0)),
            pl.BlockSpec((C2, 1), lambda b: (0, 0)),
            pl.BlockSpec((C2, 1), lambda b: (0, 0)),
            pl.BlockSpec((1, W2OUT), lambda b: (0, 0)),
        ],
        out_specs=pl.BlockSpec((1, C2, W2OUT), lambda b: (b, 0, 0)),
    )
    return pl.pallas_call(
        feature_kernel,
        out_shape=jax.ShapeDtypeStruct((B, C2, W2OUT), jnp.bfloat16),
        grid_spec=grid_spec,
        compiler_params=pltpu.CompilerParams(dimension_semantics=("parallel",)),
    )(xq, w1r, w2r, sh1v, sh2v, wse1v, wse2v, mask)


# ---- kernel 2: fc1 (48000 -> 1024), int8 weight stream, K-tiled, split over HID1 ---
def fc1_kernel(x_ref, w_ref, scale_ref, b_ref, h1_ref, acc_ref):
    k = pl.program_id(1)

    @pl.when(k == 0)
    def _():
        acc_ref[...] = jnp.zeros_like(acc_ref)

    base = pl.multiple_of(k * TK, TK)

    def body(i, acc):
        xoff = pl.multiple_of(base + i * SUB, SUB)
        woff = pl.multiple_of(i * SUB, SUB)
        xs = x_ref[:, pl.ds(xoff, SUB)]                       # (B, SUB) bf16
        ws = w_ref[pl.ds(woff, SUB), :]                       # (SUB, NOUT) int8
        # int8 -> bf16 upcast is exact (|q| <= 127); VPU cast hides under tile DMA
        wb = ws.astype(jnp.float32).astype(jnp.bfloat16)
        return acc + jnp.dot(xs, wb, preferred_element_type=jnp.float32)

    acc_ref[...] += lax.fori_loop(0, TK // SUB, body,
                                  jnp.zeros(acc_ref.shape, jnp.float32))

    @pl.when(k == pl.num_programs(1) - 1)
    def _():
        # per-output-column dequant scale applied once to the f32 accumulator
        h1_ref[...] = jnp.maximum(acc_ref[...] * scale_ref[...] + b_ref[...], 0.0)


def _fc1_weight_spec():
    # Buffered(3): keep two weight-tile DMAs in flight (perf review).  Fall back
    # gracefully if this jax version lacks pipeline_mode / pl.Buffered.
    idx = lambda s, k: (s, k, 0)
    if hasattr(pl, "Buffered"):
        try:
            return pl.BlockSpec((None, TK, NOUT), idx, pipeline_mode=pl.Buffered(3))
        except TypeError:
            pass
    return pl.BlockSpec((None, TK, NOUT), idx)


def run_fc1(xf_bf16, w_q, w_scale, b1):
    B = xf_bf16.shape[0]
    grid_spec = pltpu.PrefetchScalarGridSpec(
        num_scalar_prefetch=0,
        grid=(NSPLIT, NK),
        in_specs=[
            pl.BlockSpec((B, FLAT), lambda s, k: (0, 0)),     # resident bf16 activations
            _fc1_weight_spec(),                               # contiguous int8 tiles
            pl.BlockSpec((1, NOUT), lambda s, k: (0, s)),     # per-column dequant scale
            pl.BlockSpec((1, NOUT), lambda s, k: (0, s)),     # bias
        ],
        out_specs=pl.BlockSpec((B, NOUT), lambda s, k: (0, s)),
        scratch_shapes=[pltpu.VMEM((B, NOUT), jnp.float32)],
    )
    return pl.pallas_call(
        fc1_kernel,
        out_shape=jax.ShapeDtypeStruct((B, HID1), jnp.float32),
        grid_spec=grid_spec,
        compiler_params=pltpu.CompilerParams(
            dimension_semantics=("parallel", "arbitrary"),
            vmem_limit_bytes=40 * 1024 * 1024),
    )(xf_bf16, w_q, w_scale, b1)


# ---- kernel 3: fc2 + fc3 epilogue (1024 -> 256 -> 1), single shot ---------------
def fc23_kernel(h1_ref, w2_ref, b2_ref, w3_ref, b3_ref, o_ref):
    h2 = jnp.maximum(
        jnp.dot(h1_ref[...], w2_ref[...], preferred_element_type=jnp.float32)
        + b2_ref[...], 0.0)
    o_ref[...] = jnp.sum(h2 * w3_ref[...], axis=1, keepdims=True) + b3_ref[...]


def run_fc23(h1, w2, b2, w3, b3):
    B = h1.shape[0]
    return pl.pallas_call(
        fc23_kernel,
        out_shape=jax.ShapeDtypeStruct((B, 1), jnp.float32),
    )(h1, w2, b2, w3, b3)


# ---- end-to-end ----------------------------------------------------------------
if __name__ == "__main__":
    f32 = jnp.float32
    key = jax.random.PRNGKey(0)
    ks = jax.random.split(key, 24)

    B = 2
    x = jax.random.normal(ks[0], (B, 1, H_IN, W_IN), f32)
    z = jax.random.normal(ks[1], (B, 8), f32)   # second forward arg; unused by the model

    # ---- deterministic parameter init (PyTorch shape conventions) ----
    w_conv1 = 0.2 * jax.random.normal(ks[2], (C1, 1, 4, 3), f32)
    b_conv1 = 0.1 * jax.random.normal(ks[3], (C1,), f32)
    bn1_g = 1.0 + 0.1 * jax.random.normal(ks[4], (C1,), f32)
    bn1_b = 0.1 * jax.random.normal(ks[5], (C1,), f32)
    bn1_m = 0.1 * jax.random.normal(ks[6], (C1,), f32)
    bn1_v = jax.random.uniform(ks[7], (C1,), f32, 0.5, 1.5)

    w_conv2 = 0.15 * jax.random.normal(ks[8], (C2, C1, 1, 3), f32)
    b_conv2 = 0.1 * jax.random.normal(ks[9], (C2,), f32)
    bn2_g = 1.0 + 0.1 * jax.random.normal(ks[10], (C2,), f32)
    bn2_b = 0.1 * jax.random.normal(ks[11], (C2,), f32)
    bn2_m = 0.1 * jax.random.normal(ks[12], (C2,), f32)
    bn2_v = jax.random.uniform(ks[13], (C2,), f32, 0.5, 1.5)

    w_se1 = 0.3 * jax.random.normal(ks[14], (1, C2), f32)    # Linear(16, 1, bias=False)
    w_se2 = 0.3 * jax.random.normal(ks[15], (C2, 1), f32)    # Linear(1, 16, bias=False)

    w_fc1 = 0.01 * jax.random.normal(ks[16], (FLAT, HID1), f32)
    b_fc1 = 0.1 * jax.random.normal(ks[17], (HID1,), f32)
    w_fc2 = 0.05 * jax.random.normal(ks[18], (HID1, HID2), f32)
    b_fc2 = 0.1 * jax.random.normal(ks[19], (HID2,), f32)
    w_fc3 = 0.1 * jax.random.normal(ks[20], (HID2, 1), f32)
    b_fc3 = 0.1 * jax.random.normal(ks[21], (1,), f32)

    eps = 1e-5
    # fold conv bias + inference-mode BatchNorm into per-channel scale/shift
    scale1 = bn1_g / jnp.sqrt(bn1_v + eps)
    shift1 = bn1_b + scale1 * (b_conv1 - bn1_m)
    scale2 = bn2_g / jnp.sqrt(bn2_v + eps)
    shift2 = bn2_b + scale2 * (b_conv2 - bn2_m)

    # conv weights laid out per-tap: (kw, out_ch, in)  with BN scale folded in
    w1r = jnp.transpose(w_conv1[:, 0], (2, 0, 1)) * scale1[None, :, None]       # (3,8,4)
    w2r = jnp.transpose(w_conv2[:, :, 0, :], (2, 0, 1)) * scale2[None, :, None]  # (3,16,8)
    sh1v = shift1.reshape(C1, 1)
    sh2v = shift2.reshape(C2, 1)
    wse1v = w_se1.reshape(C2, 1)
    wse2v = w_se2.reshape(C2, 1)

    # zero-first-column mask for the stride-2 left neighbor (conv2 pad position)
    mask = jnp.ones((1, W2OUT), f32).at[0, 0].set(0.0)

    # input layout prep (glue): pad width by 1 each side, build 5 column phases
    xp = jnp.pad(x[:, 0], ((0, 0), (0, 0), (1, 1)))          # (B, 4, 6002), xp[m]=x[m-1]
    p0 = xp[:, :, 0:6000:2]                                  # xp[2j]
    p1 = xp[:, :, 1:6001:2]                                  # xp[2j+1]
    p2 = xp[:, :, 2:6002:2]                                  # xp[2j+2]
    p3 = xp[:, :, 3:6003:2]                                  # xp[2j+3] (last = right pad)
    p4 = jnp.pad(xp[:, :, 1:5998:2], ((0, 0), (0, 0), (1, 0)))  # xp[2j-1], zero at j=0
    xq = jnp.stack([p0, p1, p2, p3, p4], axis=1)             # (B, 5, 4, 3000)

    feats = run_features(xq, w1r, w2r, sh1v, sh2v, wse1v, wse2v, mask)  # (B,16,3000) bf16
    xf = feats.reshape(B, FLAT)                              # == torch .view(b, -1), bf16

    # ---- fc1 weight: int8 per-output-column quantization + contiguous tile layout ----
    absmax = jnp.max(jnp.abs(w_fc1), axis=0)                              # (HID1,)
    w_scale = (jnp.maximum(absmax, 1e-8) / 127.0).astype(f32)             # dequant scale
    w_fc1_q = jnp.clip(jnp.round(w_fc1 / w_scale[None, :]), -127, 127).astype(jnp.int8)
    # (NSPLIT, FLAT, NOUT): every (TK, NOUT) tile is one contiguous HBM region
    w_fc1_qt = jnp.transpose(w_fc1_q.reshape(FLAT, NSPLIT, NOUT), (1, 0, 2))

    h1 = run_fc1(xf, w_fc1_qt, w_scale.reshape(1, HID1), b_fc1.reshape(1, HID1))
    out = run_fc23(h1, w_fc2, b_fc2.reshape(1, HID2),
                   w_fc3.reshape(1, HID2), b_fc3.reshape(1, 1))           # (B, 1)
    out = jax.block_until_ready(out)

    # ---- references ---------------------------------------------------------------
    prec = lax.Precision.HIGHEST
    dn = ("NCHW", "OIHW", "NCHW")

    def features_ref(xin):
        y = lax.conv_general_dilated(xin, w_conv1, (1, 1), ((0, 0), (1, 1)),
                                     dimension_numbers=dn, precision=prec)
        y = y + b_conv1[None, :, None, None]
        y = (y - bn1_m[None, :, None, None]) * scale1[None, :, None, None] \
            + bn1_b[None, :, None, None]
        y = jnp.maximum(y, 0.0)
        y = lax.conv_general_dilated(y, w_conv2, (2, 2), ((0, 0), (1, 1)),
                                     dimension_numbers=dn, precision=prec)
        y = y + b_conv2[None, :, None, None]
        y = (y - bn2_m[None, :, None, None]) * scale2[None, :, None, None] \
            + bn2_b[None, :, None, None]
        y = jnp.maximum(y, 0.0)
        p = jnp.mean(y, axis=(2, 3))                         # (B, 16)
        h = jnp.maximum(p @ w_se1.T, 0.0)                    # (B, 1)
        g = jax.nn.sigmoid(h @ w_se2.T)                      # (B, 16)
        return (y * g[:, :, None, None]).reshape(xin.shape[0], -1)

    f_ref = features_ref(x)                                  # (B, 48000) f32

    # (a) true f32 forward (eval-mode BN): tracks total quantization error explicitly
    h1_f = jnp.maximum(jnp.dot(f_ref, w_fc1, precision=prec) + b_fc1, 0.0)
    h2_f = jnp.maximum(jnp.dot(h1_f, w_fc2, precision=prec) + b_fc2, 0.0)
    ref_f32 = jnp.dot(h2_f, w_fc3, precision=prec) + b_fc3

    # (b) quantization-matched reference: same bf16 activations / int8 weights + scale
    f_bf = f_ref.astype(jnp.bfloat16)
    wq_bf = w_fc1_q.astype(jnp.bfloat16)
    h1_q = jnp.maximum(
        jnp.dot(f_bf, wq_bf, preferred_element_type=jnp.float32) * w_scale[None, :]
        + b_fc1, 0.0)
    h2_q = jnp.maximum(jnp.dot(h1_q, w_fc2, precision=prec) + b_fc2, 0.0)
    ref_q = jnp.dot(h2_q, w_fc3, precision=prec) + b_fc3

    ref_f32, ref_q = jax.block_until_ready((ref_f32, ref_q))

    # kernel vs quantization-matched reference (tight)
    np.testing.assert_allclose(np.asarray(out), np.asarray(ref_q), rtol=2e-2, atol=2e-2)
    # kernel vs exact f32 forward: documented looser tolerance for int8/bf16 fc1 quant
    np.testing.assert_allclose(np.asarray(out), np.asarray(ref_f32), rtol=1e-1, atol=1e-1)
    print("KERNEL_OK")
</pallas_src>

<mosaic_0001>
module attributes {stable_mosaic.version = 11 : i64} {
  func.func @feature_kernel(%arg0: i32, %arg1: memref<1x5x4x3000xf32, #tpu.memory_space<vmem>>, %arg2: memref<3x8x4xf32, #tpu.memory_space<vmem>>, %arg3: memref<3x16x8xf32, #tpu.memory_space<vmem>>, %arg4: memref<8x1xf32, #tpu.memory_space<vmem>>, %arg5: memref<16x1xf32, #tpu.memory_space<vmem>>, %arg6: memref<16x1xf32, #tpu.memory_space<vmem>>, %arg7: memref<16x1xf32, #tpu.memory_space<vmem>>, %arg8: memref<1x3000xf32, #tpu.memory_space<vmem>>, %arg9: memref<1x16x3000xbf16, #tpu.memory_space<vmem>>) attributes {dimension_semantics = [#tpu.dimension_semantics<parallel>], iteration_bounds = array<i64: 2>, scalar_prefetch = 0 : i64, scratch_operands = 0 : i64, tpu.core_type = #tpu.core_type<tc>, window_params = [{transform_indices = @transform_0, window_bounds = array<i64: 1, 5, 4, 3000>}, {pipeline_mode = #tpu.pipeline_mode<synchronous>, transform_indices = @transform_1, window_bounds = array<i64: 3, 8, 4>}, {pipeline_mode = #tpu.pipeline_mode<synchronous>, transform_indices = @transform_2, window_bounds = array<i64: 3, 16, 8>}, {pipeline_mode = #tpu.pipeline_mode<synchronous>, transform_indices = @transform_3, window_bounds = array<i64: 8, 1>}, {pipeline_mode = #tpu.pipeline_mode<synchronous>, transform_indices = @transform_4, window_bounds = array<i64: 16, 1>}, {pipeline_mode = #tpu.pipeline_mode<synchronous>, transform_indices = @transform_5, window_bounds = array<i64: 16, 1>}, {pipeline_mode = #tpu.pipeline_mode<synchronous>, transform_indices = @transform_6, window_bounds = array<i64: 16, 1>}, {pipeline_mode = #tpu.pipeline_mode<synchronous>, transform_indices = @transform_7, window_bounds = array<i64: 1, 3000>}, {transform_indices = @transform_8, window_bounds = array<i64: 1, 16, 3000>}]} {
    %c0 = arith.constant 0 : index
    %c0_0 = arith.constant 0 : index
    %c0_1 = arith.constant 0 : index
    %c0_2 = arith.constant 0 : index
    %0 = vector.load %arg1[%c0, %c0_0, %c0_1, %c0_2] : memref<1x5x4x3000xf32, #tpu.memory_space<vmem>>, vector<1x1x4x3000xf32>
    %1 = vector.shape_cast %0 : vector<1x1x4x3000xf32> to vector<4x3000xf32>
    %c0_3 = arith.constant 0 : index
    %c1 = arith.constant 1 : index
    %c0_4 = arith.constant 0 : index
    %c0_5 = arith.constant 0 : index
    %2 = vector.load %arg1[%c0_3, %c1, %c0_4, %c0_5] : memref<1x5x4x3000xf32, #tpu.memory_space<vmem>>, vector<1x1x4x3000xf32>
    %3 = vector.shape_cast %2 : vector<1x1x4x3000xf32> to vector<4x3000xf32>
    %c0_6 = arith.constant 0 : index
    %c2 = arith.constant 2 : index
    %c0_7 = arith.constant 0 : index
    %c0_8 = arith.constant 0 : index
    %4 = vector.load %arg1[%c0_6, %c2, %c0_7, %c0_8] : memref<1x5x4x3000xf32, #tpu.memory_space<vmem>>, vector<1x1x4x3000xf32>
    %5 = vector.shape_cast %4 : vector<1x1x4x3000xf32> to vector<4x3000xf32>
    %c0_9 = arith.constant 0 : index
    %c3 = arith.constant 3 : index
    %c0_10 = arith.constant 0 : index
    %c0_11 = arith.constant 0 : index
    %6 = vector.load %arg1[%c0_9, %c3, %c0_10, %c0_11] : memref<1x5x4x3000xf32, #tpu.memory_space<vmem>>, vector<1x1x4x3000xf32>
    %7 = vector.shape_cast %6 : vector<1x1x4x3000xf32> to vector<4x3000xf32>
    %c0_12 = arith.constant 0 : index
    %c4 = arith.constant 4 : index
    %c0_13 = arith.constant 0 : index
    %c0_14 = arith.constant 0 : index
    %8 = vector.load %arg1[%c0_12, %c4, %c0_13, %c0_14] : memref<1x5x4x3000xf32, #tpu.memory_space<vmem>>, vector<1x1x4x3000xf32>
    %9 = vector.shape_cast %8 : vector<1x1x4x3000xf32> to vector<4x3000xf32>
    %c0_15 = arith.constant 0 : index
    %c0_16 = arith.constant 0 : index
    %10 = vector.load %arg4[%c0_15, %c0_16] : memref<8x1xf32, #tpu.memory_space<vmem>>, vector<8x1xf32>
    %c0_17 = arith.constant 0 : index
    %c0_18 = arith.constant 0 : index
    %11 = vector.load %arg5[%c0_17, %c0_18] : memref<16x1xf32, #tpu.memory_space<vmem>>, vector<16x1xf32>
    %c0_19 = arith.constant 0 : index
    %c0_20 = arith.constant 0 : index
    %c0_21 = arith.constant 0 : index
    %12 = vector.load %arg2[%c0_19, %c0_20, %c0_21] : memref<3x8x4xf32, #tpu.memory_space<vmem>>, vector<1x8x4xf32>
    %13 = vector.shape_cast %12 : vector<1x8x4xf32> to vector<8x4xf32>
    %cst = arith.constant dense<0.000000e+00> : vector<8x3000xf32>
    %14 = tpu.matmul %13, %1, %cst {dimension_numbers = #tpu.dot_dimension_numbers<[1], [0], [0], [1], [0, 0, 1, 1], [], []>} : vector<8x4xf32>, vector<4x3000xf32>, vector<8x3000xf32> -> vector<8x3000xf32>
    %c1_22 = arith.constant 1 : index
    %c0_23 = arith.constant 0 : index
    %c0_24 = arith.constant 0 : index
    %15 = vector.load %arg2[%c1_22, %c0_23, %c0_24] : memref<3x8x4xf32, #tpu.memory_space<vmem>>, vector<1x8x4xf32>
    %16 = vector.shape_cast %15 : vector<1x8x4xf32> to vector<8x4xf32>
    %cst_25 = arith.constant dense<0.000000e+00> : vector<8x3000xf32>
    %17 = tpu.matmul %16, %3, %cst_25 {dimension_numbers = #tpu.dot_dimension_numbers<[1], [0], [0], [1], [0, 0, 1, 1], [], []>} : vector<8x4xf32>, vector<4x3000xf32>, vector<8x3000xf32> -> vector<8x3000xf32>
    %18 = arith.addf %14, %17 : vector<8x3000xf32>
    %c2_26 = arith.constant 2 : index
    %c0_27 = arith.constant 0 : index
    %c0_28 = arith.constant 0 : index
    %19 = vector.load %arg2[%c2_26, %c0_27, %c0_28] : memref<3x8x4xf32, #tpu.memory_space<vmem>>, vector<1x8x4xf32>
    %20 = vector.shape_cast %19 : vector<1x8x4xf32> to vector<8x4xf32>
    %cst_29 = arith.constant dense<0.000000e+00> : vector<8x3000xf32>
    %21 = tpu.matmul %20, %5, %cst_29 {dimension_numbers = #tpu.dot_dimension_numbers<[1], [0], [0], [1], [0, 0, 1, 1], [], []>} : vector<8x4xf32>, vector<4x3000xf32>, vector<8x3000xf32> -> vector<8x3000xf32>
    %22 = arith.addf %18, %21 : vector<8x3000xf32>
    %c0_30 = arith.constant 0 : index
    %c0_31 = arith.constant 0 : index
    %c0_32 = arith.constant 0 : index
    %23 = vector.load %arg2[%c0_30, %c0_31, %c0_32] : memref<3x8x4xf32, #tpu.memory_space<vmem>>, vector<1x8x4xf32>
    %24 = vector.shape_cast %23 : vector<1x8x4xf32> to vector<8x4xf32>
    %cst_33 = arith.constant dense<0.000000e+00> : vector<8x3000xf32>
    %25 = tpu.matmul %24, %3, %cst_33 {dimension_numbers = #tpu.dot_dimension_numbers<[1], [0], [0], [1], [0, 0, 1, 1], [], []>} : vector<8x4xf32>, vector<4x3000xf32>, vector<8x3000xf32> -> vector<8x3000xf32>
    %c1_34 = arith.constant 1 : index
    %c0_35 = arith.constant 0 : index
    %c0_36 = arith.constant 0 : index
    %26 = vector.load %arg2[%c1_34, %c0_35, %c0_36] : memref<3x8x4xf32, #tpu.memory_space<vmem>>, vector<1x8x4xf32>
    %27 = vector.shape_cast %26 : vector<1x8x4xf32> to vector<8x4xf32>
    %cst_37 = arith.constant dense<0.000000e+00> : vector<8x3000xf32>
    %28 = tpu.matmul %27, %5, %cst_37 {dimension_numbers = #tpu.dot_dimension_numbers<[1], [0], [0], [1], [0, 0, 1, 1], [], []>} : vector<8x4xf32>, vector<4x3000xf32>, vector<8x3000xf32> -> vector<8x3000xf32>
    %29 = arith.addf %25, %28 : vector<8x3000xf32>
    %c2_38 = arith.constant 2 : index
    %c0_39 = arith.constant 0 : index
    %c0_40 = arith.constant 0 : index
    %30 = vector.load %arg2[%c2_38, %c0_39, %c0_40] : memref<3x8x4xf32, #tpu.memory_space<vmem>>, vector<1x8x4xf32>
    %31 = vector.shape_cast %30 : vector<1x8x4xf32> to vector<8x4xf32>
    %cst_41 = arith.constant dense<0.000000e+00> : vector<8x3000xf32>
    %32 = tpu.matmul %31, %7, %cst_41 {dimension_numbers = #tpu.dot_dimension_numbers<[1], [0], [0], [1], [0, 0, 1, 1], [], []>} : vector<8x4xf32>, vector<4x3000xf32>, vector<8x3000xf32> -> vector<8x3000xf32>
    %33 = arith.addf %29, %32 : vector<8x3000xf32>
    %c0_42 = arith.constant 0 : index
    %c0_43 = arith.constant 0 : index
    %c0_44 = arith.constant 0 : index
    %34 = vector.load %arg2[%c0_42, %c0_43, %c0_44] : memref<3x8x4xf32, #tpu.memory_space<vmem>>, vector<1x8x4xf32>
    %35 = vector.shape_cast %34 : vector<1x8x4xf32> to vector<8x4xf32>
    %cst_45 = arith.constant dense<0.000000e+00> : vector<8x3000xf32>
    %36 = tpu.matmul %35, %9, %cst_45 {dimension_numbers = #tpu.dot_dimension_numbers<[1], [0], [0], [1], [0, 0, 1, 1], [], []>} : vector<8x4xf32>, vector<4x3000xf32>, vector<8x3000xf32> -> vector<8x3000xf32>
    %c1_46 = arith.constant 1 : index
    %c0_47 = arith.constant 0 : index
    %c0_48 = arith.constant 0 : index
    %37 = vector.load %arg2[%c1_46, %c0_47, %c0_48] : memref<3x8x4xf32, #tpu.memory_space<vmem>>, vector<1x8x4xf32>
    %38 = vector.shape_cast %37 : vector<1x8x4xf32> to vector<8x4xf32>
    %cst_49 = arith.constant dense<0.000000e+00> : vector<8x3000xf32>
    %39 = tpu.matmul %38, %1, %cst_49 {dimension_numbers = #tpu.dot_dimension_numbers<[1], [0], [0], [1], [0, 0, 1, 1], [], []>} : vector<8x4xf32>, vector<4x3000xf32>, vector<8x3000xf32> -> vector<8x3000xf32>
    %40 = arith.addf %36, %39 : vector<8x3000xf32>
    %c2_50 = arith.constant 2 : index
    %c0_51 = arith.constant 0 : index
    %c0_52 = arith.constant 0 : index
    %41 = vector.load %arg2[%c2_50, %c0_51, %c0_52] : memref<3x8x4xf32, #tpu.memory_space<vmem>>, vector<1x8x4xf32>
    %42 = vector.shape_cast %41 : vector<1x8x4xf32> to vector<8x4xf32>
    %cst_53 = arith.constant dense<0.000000e+00> : vector<8x3000xf32>
    %43 = tpu.matmul %42, %3, %cst_53 {dimension_numbers = #tpu.dot_dimension_numbers<[1], [0], [0], [1], [0, 0, 1, 1], [], []>} : vector<8x4xf32>, vector<4x3000xf32>, vector<8x3000xf32> -> vector<8x3000xf32>
    %44 = arith.addf %40, %43 : vector<8x3000xf32>
    %45 = vector.broadcast %10 : vector<8x1xf32> to vector<8x3000xf32>
    %46 = arith.addf %22, %45 : vector<8x3000xf32>
    %cst_54 = arith.constant 0.000000e+00 : f32
    %47 = vector.broadcast %cst_54 : f32 to vector<8x3000xf32>
    %48 = arith.maximumf %46, %47 : vector<8x3000xf32>
    %49 = vector.broadcast %10 : vector<8x1xf32> to vector<8x3000xf32>
    %50 = arith.addf %33, %49 : vector<8x3000xf32>
    %cst_55 = arith.constant 0.000000e+00 : f32
    %51 = vector.broadcast %cst_55 : f32 to vector<8x3000xf32>
    %52 = arith.maximumf %50, %51 : vector<8x3000xf32>
    %c0_56 = arith.constant 0 : index
    %c0_57 = arith.constant 0 : index
    %53 = vector.load %arg8[%c0_56, %c0_57] : memref<1x3000xf32, #tpu.memory_space<vmem>>, vector<1x3000xf32>
    %54 = vector.broadcast %10 : vector<8x1xf32> to vector<8x3000xf32>
    %55 = arith.addf %44, %54 : vector<8x3000xf32>
    %cst_58 = arith.constant 0.000000e+00 : f32
    %56 = vector.broadcast %cst_58 : f32 to vector<8x3000xf32>
    %57 = arith.maximumf %55, %56 : vector<8x3000xf32>
    %58 = vector.broadcast %53 : vector<1x3000xf32> to vector<8x3000xf32>
    %59 = arith.mulf %58, %57 : vector<8x3000xf32>
    %c0_59 = arith.constant 0 : index
    %c0_60 = arith.constant 0 : index
    %c0_61 = arith.constant 0 : index
    %60 = vector.load %arg3[%c0_59, %c0_60, %c0_61] : memref<3x16x8xf32, #tpu.memory_space<vmem>>, vector<1x16x8xf32>
    %61 = vector.shape_cast %60 : vector<1x16x8xf32> to vector<16x8xf32>
    %cst_62 = arith.constant dense<0.000000e+00> : vector<16x3000xf32>
    %62 = tpu.matmul %61, %59, %cst_62 {dimension_numbers = #tpu.dot_dimension_numbers<[1], [0], [0], [1], [0, 0, 1, 1], [], []>} : vector<16x8xf32>, vector<8x3000xf32>, vector<16x3000xf32> -> vector<16x3000xf32>
    %c1_63 = arith.constant 1 : index
    %c0_64 = arith.constant 0 : index
    %c0_65 = arith.constant 0 : index
    %63 = vector.load %arg3[%c1_63, %c0_64, %c0_65] : memref<3x16x8xf32, #tpu.memory_space<vmem>>, vector<1x16x8xf32>
    %64 = vector.shape_cast %63 : vector<1x16x8xf32> to vector<16x8xf32>
    %cst_66 = arith.constant dense<0.000000e+00> : vector<16x3000xf32>
    %65 = tpu.matmul %64, %48, %cst_66 {dimension_numbers = #tpu.dot_dimension_numbers<[1], [0], [0], [1], [0, 0, 1, 1], [], []>} : vector<16x8xf32>, vector<8x3000xf32>, vector<16x3000xf32> -> vector<16x3000xf32>
    %66 = arith.addf %62, %65 : vector<16x3000xf32>
    %c2_67 = arith.constant 2 : index
    %c0_68 = arith.constant 0 : index
    %c0_69 = arith.constant 0 : index
    %67 = vector.load %arg3[%c2_67, %c0_68, %c0_69] : memref<3x16x8xf32, #tpu.memory_space<vmem>>, vector<1x16x8xf32>
    %68 = vector.shape_cast %67 : vector<1x16x8xf32> to vector<16x8xf32>
    %cst_70 = arith.constant dense<0.000000e+00> : vector<16x3000xf32>
    %69 = tpu.matmul %68, %52, %cst_70 {dimension_numbers = #tpu.dot_dimension_numbers<[1], [0], [0], [1], [0, 0, 1, 1], [], []>} : vector<16x8xf32>, vector<8x3000xf32>, vector<16x3000xf32> -> vector<16x3000xf32>
    %70 = arith.addf %66, %69 : vector<16x3000xf32>
    %71 = vector.broadcast %11 : vector<16x1xf32> to vector<16x3000xf32>
    %72 = arith.addf %70, %71 : vector<16x3000xf32>
    %cst_71 = arith.constant 0.000000e+00 : f32
    %73 = vector.broadcast %cst_71 : f32 to vector<16x3000xf32>
    %74 = arith.maximumf %72, %73 : vector<16x3000xf32>
    %cst_72 = arith.constant dense<0.000000e+00> : vector<16xf32>
    %75 = vector.multi_reduction <add>, %74, %cst_72 [1] : vector<16x3000xf32> to vector<16xf32>
    %76 = vector.shape_cast %75 : vector<16xf32> to vector<16x1xf32>
    %cst_73 = arith.constant 3.000000e+03 : f32
    %77 = vector.broadcast %cst_73 : f32 to vector<16x1xf32>
    %78 = arith.divf %76, %77 : vector<16x1xf32>
    %c0_74 = arith.constant 0 : index
    %c0_75 = arith.constant 0 : index
    %79 = vector.load %arg6[%c0_74, %c0_75] : memref<16x1xf32, #tpu.memory_space<vmem>>, vector<16x1xf32>
    %80 = arith.mulf %79, %78 : vector<16x1xf32>
    %cst_76 = arith.constant dense<0.000000e+00> : vector<1xf32>
    %81 = vector.multi_reduction <add>, %80, %cst_76 [0] : vector<16x1xf32> to vector<1xf32>
    %82 = vector.shape_cast %81 : vector<1xf32> to vector<1x1xf32>
    %cst_77 = arith.constant 0.000000e+00 : f32
    %83 = vector.broadcast %cst_77 : f32 to vector<1x1xf32>
    %84 = arith.maximumf %82, %83 : vector<1x1xf32>
    %c0_78 = arith.constant 0 : index
    %c0_79 = arith.constant 0 : index
    %85 = vector.load %arg7[%c0_78, %c0_79] : memref<16x1xf32, #tpu.memory_space<vmem>>, vector<16x1xf32>
    %86 = vector.broadcast %84 : vector<1x1xf32> to vector<16x1xf32>
    %87 = arith.mulf %85, %86 : vector<16x1xf32>
    %88 = arith.negf %87 : vector<16x1xf32>
    %89 = math.exp %88 : vector<16x1xf32>
    %cst_80 = arith.constant 1.000000e+00 : f32
    %90 = vector.broadcast %cst_80 : f32 to vector<16x1xf32>
    %91 = arith.addf %90, %89 : vector<16x1xf32>
    %92 = arith.divf %90, %91 : vector<16x1xf32>
    %93 = vector.broadcast %92 : vector<16x1xf32> to vector<16x3000xf32>
    %94 = arith.mulf %74, %93 : vector<16x3000xf32>
    %95 = arith.truncf %94 : vector<16x3000xf32> to vector<16x3000xbf16>
    %c0_81 = arith.constant 0 : index
    %c0_82 = arith.constant 0 : index
    %c0_83 = arith.constant 0 : index
    %96 = vector.load %arg9[%c0_81, %c0_82, %c0_83] : memref<1x16x3000xbf16, #tpu.memory_space<vmem>>, vector<1x16x3000xbf16>
    %97 = vector.shape_cast %96 : vector<1x16x3000xbf16> to vector<16x3000xbf16>
    %98 = vector.shape_cast %95 : vector<16x3000xbf16> to vector<1x16x3000xbf16>
    tpu.vector_store %arg9[%c0_81, %c0_82, %c0_83], %98 {strides = array<i32>} : memref<1x16x3000xbf16, #tpu.memory_space<vmem>>, vector<1x16x3000xbf16>,
    return
  }
  func.func @transform_0(%arg0: i32) -> (i32, i32, i32, i32) {
    %c0_i32 = arith.constant 0 : i32
    %c0_i32_0 = arith.constant 0 : i32
    %c0_i32_1 = arith.constant 0 : i32
    %c0_i32_2 = arith.constant 0 : i32
    return %arg0, %c0_i32, %c0_i32_0, %c0_i32_1 : i32, i32, i32, i32
  }
  func.func @transform_1(%arg0: i32) -> (i32, i32, i32) {
    %c0_i32 = arith.constant 0 : i32
    %c0_i32_0 = arith.constant 0 : i32
    %c0_i32_1 = arith.constant 0 : i32
    %c0_i32_2 = arith.constant 0 : i32
    return %c0_i32, %c0_i32_0, %c0_i32_1 : i32, i32, i32
  }
  func.func @transform_2(%arg0: i32) -> (i32, i32, i32) {
    %c0_i32 = arith.constant 0 : i32
    %c0_i32_0 = arith.constant 0 : i32
    %c0_i32_1 = arith.constant 0 : i32
    %c0_i32_2 = arith.constant 0 : i32
    return %c0_i32, %c0_i32_0, %c0_i32_1 : i32, i32, i32
  }
  func.func @transform_3(%arg0: i32) -> (i32, i32) {
    %c0_i32 = arith.constant 0 : i32
    %c0_i32_0 = arith.constant 0 : i32
    %c0_i32_1 = arith.constant 0 : i32
    return %c0_i32, %c0_i32_0 : i32, i32
  }
  func.func @transform_4(%arg0: i32) -> (i32, i32) {
    %c0_i32 = arith.constant 0 : i32
    %c0_i32_0 = arith.constant 0 : i32
    %c0_i32_1 = arith.constant 0 : i32
    return %c0_i32, %c0_i32_0 : i32, i32
  }
  func.func @transform_5(%arg0: i32) -> (i32, i32) {
    %c0_i32 = arith.constant 0 : i32
    %c0_i32_0 = arith.constant 0 : i32
    %c0_i32_1 = arith.constant 0 : i32
    return %c0_i32, %c0_i32_0 : i32, i32
  }
  func.func @transform_6(%arg0: i32) -> (i32, i32) {
    %c0_i32 = arith.constant 0 : i32
    %c0_i32_0 = arith.constant 0 : i32
    %c0_i32_1 = arith.constant 0 : i32
    return %c0_i32, %c0_i32_0 : i32, i32
  }
  func.func @transform_7(%arg0: i32) -> (i32, i32) {
    %c0_i32 = arith.constant 0 : i32
    %c0_i32_0 = arith.constant 0 : i32
    %c0_i32_1 = arith.constant 0 : i32
    return %c0_i32, %c0_i32_0 : i32, i32
  }
  func.func @transform_8(%arg0: i32) -> (i32, i32, i32) {
    %c0_i32 = arith.constant 0 : i32
    %c0_i32_0 = arith.constant 0 : i32
    %c0_i32_1 = arith.constant 0 : i32
    return %arg0, %c0_i32, %c0_i32_0 : i32, i32, i32
  }
}

</mosaic_0001>

<llo_original>
// kernel: tpu_custom_call.1
$region0: #{tpu_custom_call.1}
  #allocation0 [shape = 'u32[]', space=smem, size = 0x4, offset = 0x4, fixed_abs, tag = 'smem constant byte address 0x4 - core index']
  #allocation1 [shape = 'u32[72,128]{1,0:T(1,128)}', space=vmem, size = 0x9000, scoped, tag = 'internal scratch']
  %s0 = inlined_call_operand.hbm [shape: f32[2,5,4,3000], index: 0, kind: input, shape index: {}]
  %s1 = inlined_call_operand.vmem [shape: f32[3,8,4], index: 1, kind: input, shape index: {}]
  %s2 = inlined_call_operand.vmem [shape: f32[3,16,8], index: 2, kind: input, shape index: {}]
  %s3 = inlined_call_operand.vmem [shape: f32[8,1], index: 3, kind: input, shape index: {}]
  %s4 = inlined_call_operand.vmem [shape: f32[16,1], index: 4, kind: input, shape index: {}]
  %s5 = inlined_call_operand.vmem [shape: f32[16,1], index: 5, kind: input, shape index: {}]
  %s6 = inlined_call_operand.vmem [shape: f32[16,1], index: 6, kind: input, shape index: {}]
  %s7 = inlined_call_operand.vmem [shape: f32[1,3000], index: 7, kind: input, shape index: {}]
  %s8 = inlined_call_operand.hbm [shape: bf16[2,16,3000], index: 8, kind: output, shape index: {}]
  %s9 = sld [smem:[#allocation0]]
  $region69: #{tpu_custom_call.1} parent=0
    _
  %s11 = ssub.s32 1, %s9
  %s12 = scalar_select 0, %s11, %s9
  $region1: #{tpu_custom_call.1} parent=0
    #allocation2 [shape = 'u8[491520]{0}', space=vmem, size = 0x78000, scoped, tag = 'input window, operand 0']
    #allocation3 [shape = 's32[2]{0}', space=sflag, size = 0x8, scoped, tag = 'scoped memory for tpu_custom_call.1']
    #allocation4 [shape = 's32[2]{0}', space=sflag, size = 0x8, scoped, tag = 'scoped memory for tpu_custom_call.1']
    #allocation5 [shape = 'u8[196608]{0}', space=vmem, size = 0x30000, scoped, tag = 'output window, operand 0']
    %13 = vsyncpa [#allocation3], 0
    %s14 = scalar_lea.sflag [#allocation3], 1
    %15 = vsyncpa %s14, 0
    %16 = vsyncpa [#allocation4], 0
    %s17 = scalar_lea.sflag [#allocation4], 1
    %18 = vsyncpa %s17, 0
    loop: start=0, step=1, limit=4
    $region2: #{tpu_custom_call.1} parent=1 // loop_pre_header
      _
    $region3: #{tpu_custom_call.1} parent=1 // loop_header
      %s20 = sphi 0, %s24
      %p21 = scmp.ge.s32.totalorder %s20, 4
      %s30 = sphi 0, %s32
      %s33 = sphi 0, %s30
      %s34 = sphi 0, %s33
      %s50 = sphi 0, %s34
      %s54 = sphi 0, %s54
      %s56 = sphi 0, %s54
      %s57 = sphi 0, %s56
      %s71 = sphi 0, %s57
      %s75 = sphi 0, %s75
      %s77 = sphi 0, %s75
      %s78 = sphi 0, %s77
      %s92 = sphi 0, %s78
      %s96 = sphi 0, %s96
      %s98 = sphi 0, %s96
      %s99 = sphi 0, %s98
      %s113 = sphi 0, %s99
      %s117 = sphi 0, %s117
      %s119 = sphi 0, %s117
      %s120 = sphi 0, %s119
      %s134 = sphi 0, %s120
      %s138 = sphi 0, %s138
      %s140 = sphi 0, %s138
      %s141 = sphi 0, %s140
      %s155 = sphi 0, %s141
      %s159 = sphi 0, %s159
      %s161 = sphi 0, %s159
      %s162 = sphi 0, %s161
      %s176 = sphi 0, %s162
      %s180 = sphi 0, %s180
      %s182 = sphi 0, %s180
      %s183 = sphi 0, %s182
      %s197 = sphi 0, %s183
      %s203 = sphi 0, %s205
      %s206 = sphi 0, %s203
      %s207 = sphi 0, %s206
      %s223 = sphi 0, %s207
    $region4: #{tpu_custom_call.1} parent=1 // loop_header_branch
      %23 = sbr.rel (%p21) target = $region8
    $region5: #{tpu_custom_call.1} parent=1 // loop_body
      %s25 = ssub.s32 %s20, 1
      %s26 = ssub.s32 %s20, 2
      %s27 = sadd.s32 %s20, 1
      %s28 = ssub.s32 %s20, %s27
      %p29 = scmp.eq.s32.totalorder %s28, 0
      %s31 = sadd.s32 %s30, 1
      %s32 = scalar_select %p29, %s30, %s31
      %p35 = pneg %p29
      %p36 = scmp.eq.s32.totalorder %s20, 1
      %p37 = por %p35, %p36
      %p38 = scmp.ne.s32.totalorder %s30, %s33
      %p39 = scmp.eq.s32.totalorder %s20, 0
      %p40 = por %p38, %p39
      %p41 = scmp.ne.s32.totalorder %s30, %s33
      %p42 = scmp.eq.s32.totalorder %s25, 1
      %p43 = por %p41, %p42
      %p44 = scmp.ne.s32.totalorder %s33, %s34
      %p45 = scmp.eq.s32.totalorder %s25, 0
      %p46 = por %p44, %p45
      %p47 = scmp.ne.s32.totalorder %s33, %s34
      %p48 = scmp.eq.s32.totalorder %s26, 1
      %p49 = por %p47, %p48
      %p51 = scmp.ne.s32.totalorder %s34, %s50
      %p52 = scmp.eq.s32.totalorder %s26, 0
      %p53 = por %p51, %p52
      %s55 = sadd.s32 %s54, 1
      %p58 = scmp.eq.s32.totalorder %s20, 1
      %p59 = scmp.ne.s32.totalorder %s54, %s56
      %p60 = scmp.eq.s32.totalorder %s20, 0
      %p61 = por %p59, %p60
      %p62 = scmp.ne.s32.totalorder %s54, %s56
      %p63 = scmp.eq.s32.totalorder %s25, 1
      %p64 = por %p62, %p63
      %p65 = scmp.ne.s32.totalorder %s56, %s57
      %p66 = scmp.eq.s32.totalorder %s25, 0
      %p67 = por %p65, %p66
      %p68 = scmp.ne.s32.totalorder %s56, %s57
      %p69 = scmp.eq.s32.totalorder %s26, 1
      %p70 = por %p68, %p69
      %p72 = scmp.ne.s32.totalorder %s57, %s71
      %p73 = scmp.eq.s32.totalorder %s26, 0
      %p74 = por %p72, %p73
      %s76 = sadd.s32 %s75, 1
      %p79 = scmp.eq.s32.totalorder %s20, 1
      %p80 = scmp.ne.s32.totalorder %s75, %s77
      %p81 = scmp.eq.s32.totalorder %s20, 0
      %p82 = por %p80, %p81
      %p83 = scmp.ne.s32.totalorder %s75, %s77
      %p84 = scmp.eq.s32.totalorder %s25, 1
      %p85 = por %p83, %p84
      %p86 = scmp.ne.s32.totalorder %s77, %s78
      %p87 = scmp.eq.s32.totalorder %s25, 0
      %p88 = por %p86, %p87
      %p89 = scmp.ne.s32.totalorder %s77, %s78
      %p90 = scmp.eq.s32.totalorder %s26, 1
      %p91 = por %p89, %p90
      %p93 = scmp.ne.s32.totalorder %s78, %s92
      %p94 = scmp.eq.s32.totalorder %s26, 0
      %p95 = por %p93, %p94
      %s97 = sadd.s32 %s96, 1
      %p100 = scmp.eq.s32.totalorder %s20, 1
      %p101 = scmp.ne.s32.totalorder %s96, %s98
      %p102 = scmp.eq.s32.totalorder %s20, 0
      %p103 = por %p101, %p102
      %p104 = scmp.ne.s32.totalorder %s96, %s98
      %p105 = scmp.eq.s32.totalorder %s25, 1
      %p106 = por %p104, %p105
      %p107 = scmp.ne.s32.totalorder %s98, %s99
      %p108 = scmp.eq.s32.totalorder %s25, 0
      %p109 = por %p107, %p108
      %p110 = scmp.ne.s32.totalorder %s98, %s99
      %p111 = scmp.eq.s32.totalorder %s26, 1
      %p112 = por %p110, %p111
      %p114 = scmp.ne.s32.totalorder %s99, %s113
      %p115 = scmp.eq.s32.totalorder %s26, 0
      %p116 = por %p114, %p115
      %s118 = sadd.s32 %s117, 1
      %p121 = scmp.eq.s32.totalorder %s20, 1
      %p122 = scmp.ne.s32.totalorder %s117, %s119
      %p123 = scmp.eq.s32.totalorder %s20, 0
      %p124 = por %p122, %p123
      %p125 = scmp.ne.s32.totalorder %s117, %s119
      %p126 = scmp.eq.s32.totalorder %s25, 1
      %p127 = por %p125, %p126
      %p128 = scmp.ne.s32.totalorder %s119, %s120
      %p129 = scmp.eq.s32.totalorder %s25, 0
      %p130 = por %p128, %p129
      %p131 = scmp.ne.s32.totalorder %s119, %s120
      %p132 = scmp.eq.s32.totalorder %s26, 1
      %p133 = por %p131, %p132
      %p135 = scmp.ne.s32.totalorder %s120, %s134
      %p136 = scmp.eq.s32.totalorder %s26, 0
      %p137 = por %p135, %p136
      %s139 = sadd.s32 %s138, 1
      %p142 = scmp.eq.s32.totalorder %s20, 1
      %p143 = scmp.ne.s32.totalorder %s138, %s140
      %p144 = scmp.eq.s32.totalorder %s20, 0
      %p145 = por %p143, %p144
      %p146 = scmp.ne.s32.totalorder %s138, %s140
      %p147 = scmp.eq.s32.totalorder %s25, 1
      %p148 = por %p146, %p147
      %p149 = scmp.ne.s32.totalorder %s140, %s141
      %p150 = scmp.eq.s32.totalorder %s25, 0
      %p151 = por %p149, %p150
      %p152 = scmp.ne.s32.totalorder %s140, %s141
      %p153 = scmp.eq.s32.totalorder %s26, 1
      %p154 = por %p152, %p153
      %p156 = scmp.ne.s32.totalorder %s141, %s155
      %p157 = scmp.eq.s32.totalorder %s26, 0
      %p158 = por %p156, %p157
      %s160 = sadd.s32 %s159, 1
      %p163 = scmp.eq.s32.totalorder %s20, 1
      %p164 = scmp.ne.s32.totalorder %s159, %s161
      %p165 = scmp.eq.s32.totalorder %s20, 0
      %p166 = por %p164, %p165
      %p167 = scmp.ne.s32.totalorder %s159, %s161
      %p168 = scmp.eq.s32.totalorder %s25, 1
      %p169 = por %p167, %p168
      %p170 = scmp.ne.s32.totalorder %s161, %s162
      %p171 = scmp.eq.s32.totalorder %s25, 0
      %p172 = por %p170, %p171
      %p173 = scmp.ne.s32.totalorder %s161, %s162
      %p174 = scmp.eq.s32.totalorder %s26, 1
      %p175 = por %p173, %p174
      %p177 = scmp.ne.s32.totalorder %s162, %s176
      %p178 = scmp.eq.s32.totalorder %s26, 0
      %p179 = por %p177, %p178
      %s181 = sadd.s32 %s180, 1
      %p184 = scmp.eq.s32.totalorder %s20, 1
      %p185 = scmp.ne.s32.totalorder %s180, %s182
      %p186 = scmp.eq.s32.totalorder %s20, 0
      %p187 = por %p185, %p186
      %p188 = scmp.ne.s32.totalorder %s180, %s182
      %p189 = scmp.eq.s32.totalorder %s25, 1
      %p190 = por %p188, %p189
      %p191 = scmp.ne.s32.totalorder %s182, %s183
      %p192 = scmp.eq.s32.totalorder %s25, 0
      %p193 = por %p191, %p192
      %p194 = scmp.ne.s32.totalorder %s182, %s183
      %p195 = scmp.eq.s32.totalorder %s26, 1
      %p196 = por %p194, %p195
      %p198 = scmp.ne.s32.totalorder %s183, %s197
      %p199 = scmp.eq.s32.totalorder %s26, 0
      %p200 = por %p198, %p199
      %s201 = ssub.s32 %s20, %s27
      %p202 = scmp.eq.s32.totalorder %s201, 0
      %s204 = sadd.s32 %s203, 1
      %s205 = scalar_select %p202, %s203, %s204
      %p208 = pneg %p202
      %p209 = scmp.eq.s32.totalorder %s20, 1
      %p210 = por %p208, %p209
      %p211 = scmp.ne.s32.totalorder %s203, %s206
      %p212 = scmp.eq.s32.totalorder %s20, 0
      %p213 = por %p211, %p212
      %p214 = scmp.ne.s32.totalorder %s203, %s206
      %p215 = scmp.eq.s32.totalorder %s25, 1
      %p216 = por %p214, %p215
      %p217 = scmp.ne.s32.totalorder %s206, %s207
      %p218 = scmp.eq.s32.totalorder %s25, 0
      %p219 = por %p217, %p218
      %p220 = scmp.ne.s32.totalorder %s206, %s207
      %p221 = scmp.eq.s32.totalorder %s26, 1
      %p222 = por %p220, %p221
      %p224 = scmp.ne.s32.totalorder %s207, %s223
      %p225 = scmp.eq.s32.totalorder %s26, 0
      %p226 = por %p224, %p225
      %p227 = scmp.le.s32.totalorder 1, %s20
      %p228 = scmp.lt.s32.totalorder %s20, 3
      %p229 = pnand %p227, %p228
      %p230 = pneg %p229
      // Predicated region
      $region9: #{tpu_custom_call.1} parent=5 // pred_check
        _
      $region10: #{tpu_custom_call.1} parent=5 // pred_check_branch
        %232 = sbr.rel (%p229) target = $region12
      $region11: #{tpu_custom_call.1} parent=5 // pred_region
        %s233 = ssub.s32 %s20, 1
        // Predicated region
        $region13: #{tpu_custom_call.1} parent=11 // pred_check
          %p234 = pneg %p67
        $region14: #{tpu_custom_call.1} parent=11 // pred_check_branch
          %236 = sbr.rel (%p234) target = $region16
        $region15: #{tpu_custom_call.1} parent=11 // pred_region
          _
        $region16: #{tpu_custom_call.1} parent=11 // pred_fallthru
          _
        // Predicated region
        $region17: #{tpu_custom_call.1} parent=11 // pred_check
          %p237 = pneg %p88
        $region18: #{tpu_custom_call.1} parent=11 // pred_check_branch
          %239 = sbr.rel (%p237) target = $region20
        $region19: #{tpu_custom_call.1} parent=11 // pred_region
          _
        $region20: #{tpu_custom_call.1} parent=11 // pred_fallthru
          _
        // Predicated region
        $region21: #{tpu_custom_call.1} parent=11 // pred_check
          %p240 = pneg %p109
        $region22: #{tpu_custom_call.1} parent=11 // pred_check_branch
          %242 = sbr.rel (%p240) target = $region24
        $region23: #{tpu_custom_call.1} parent=11 // pred_region
          _
        $region24: #{tpu_custom_call.1} parent=11 // pred_fallthru
          _
        // Predicated region
        $region25: #{tpu_custom_call.1} parent=11 // pred_check
          %p243 = pneg %p130
        $region26: #{tpu_custom_call.1} parent=11 // pred_check_branch
          %245 = sbr.rel (%p243) target = $region28
        $region27: #{tpu_custom_call.1} parent=11 // pred_region
          _
        $region28: #{tpu_custom_call.1} parent=11 // pred_fallthru
          _
        // Predicated region
        $region29: #{tpu_custom_call.1} parent=11 // pred_check
          %p246 = pneg %p151
        $region30: #{tpu_custom_call.1} parent=11 // pred_check_branch
          %248 = sbr.rel (%p246) target = $region32
        $region31: #{tpu_custom_call.1} parent=11 // pred_region
          _
        $region32: #{tpu_custom_call.1} parent=11 // pred_fallthru
          _
        // Predicated region
        $region33: #{tpu_custom_call.1} parent=11 // pred_check
          %p249 = pneg %p172
        $region34: #{tpu_custom_call.1} parent=11 // pred_check_branch
          %251 = sbr.rel (%p249) target = $region36
        $region35: #{tpu_custom_call.1} parent=11 // pred_region
          _
        $region36: #{tpu_custom_call.1} parent=11 // pred_fallthru
          _
        // Predicated region
        $region37: #{tpu_custom_call.1} parent=11 // pred_check
          %p252 = pneg %p193
        $region38: #{tpu_custom_call.1} parent=11 // pred_check_branch
          %254 = sbr.rel (%p252) target = $region40
        $region39: #{tpu_custom_call.1} parent=11 // pred_region
          _
        $region40: #{tpu_custom_call.1} parent=11 // pred_fallthru
          _
      $region12: #{tpu_custom_call.1} parent=5 // pred_fallthru
        _
      %p255 = scmp.lt.s32.totalorder %s20, 2
      // Predicated region
      $region41: #{tpu_custom_call.1} parent=5 // pred_check
        %p256 = pneg %p255
      $region42: #{tpu_custom_call.1} parent=5 // pred_check_branch
        %258 = sbr.rel (%p256) target = $region44
      $region43: #{tpu_custom_call.1} parent=5 // pred_region
        // Predicated region
        $region45: #{tpu_custom_call.1} parent=43 // pred_check
          %p259 = pneg %p40
        $region46: #{tpu_custom_call.1} parent=43 // pred_check_branch
          %261 = sbr.rel (%p259) target = $region48
        $region47: #{tpu_custom_call.1} parent=43 // pred_region
          %s262 = sand.u32 %s30, 1
          %s263 = scalar_lea.sflag [#allocation3], %s262
          %s264 = sand.u32 %s30, 1
          %s265 = smul.addr %s264, 480
          %s266 = scalar_lea.vmem [#allocation2], %s265
          %268 = vsyncadd %s263, 0
          %s269 = smul.addr %s20, 120
          %s270 = smul.addr %s269, 4
          %s271 = scalar_lea.hbm %s0, %s270
          %s272 = sshll.u32 %s271, 4
          %s273 = int_to_ptr.hbm [resolvable:$true] %s272
          %s274 = sshll.u32 %s266, 4
          %s275 = int_to_ptr.vmem [resolvable:$true] %s274
          %280 = dma.hbm_to_vmem [thread:$0]  %s273, 7680, %s275, %s263, 1536, 1536, 96
        $region48: #{tpu_custom_call.1} parent=43 // pred_fallthru
          _
      $region44: #{tpu_custom_call.1} parent=5 // pred_fallthru
        _
      %p281 = scmp.le.s32.totalorder 1, %s20
      %p282 = scmp.lt.s32.totalorder %s20, 3
      %p283 = pnand %p281, %p282
      %p284 = pneg %p283
      // Predicated region
      $region49: #{tpu_custom_call.1} parent=5 // pred_check
        _
      $region50: #{tpu_custom_call.1} parent=5 // pred_check_branch
        %286 = sbr.rel (%p283) target = $region52
      $region51: #{tpu_custom_call.1} parent=5 // pred_region
        %s287 = ssub.s32 %s20, 1
        %s288 = sand.u32 %s33, 1
        %s289 = scalar_lea.sflag [#allocation3], %s288
        %s290 = sand.u32 %s33, 1
        %s291 = smul.addr %s290, 480
        %s292 = scalar_lea.vmem [#allocation2], %s291
        // Predicated region
        $region53: #{tpu_custom_call.1} parent=51 // pred_check
          %p293 = pneg %p46
        $region54: #{tpu_custom_call.1} parent=51 // pred_check_branch
          %295 = sbr.rel (%p293) target = $region56
        $region55: #{tpu_custom_call.1} parent=51 // pred_region
          %297 = dma.done %s289, 7680
        $region56: #{tpu_custom_call.1} parent=51 // pred_fallthru
          _
        %s298 = sand.u32 %s33, 1
        %s299 = scalar_lea.sflag [#allocation3], %s298
        %s300 = sand.u32 %s33, 1
        %s301 = smul.addr %s300, 480
        %s302 = scalar_lea.vmem [#allocation2], %s301
        %p303 = pneg %p46
        %p304 = pneg %p43
        %p305 = pneg %p67
        %p306 = pneg %p64
        %p307 = pneg %p88
        %p308 = pneg %p85
        %p309 = pneg %p109
        %p310 = pneg %p106
        %p311 = pneg %p130
        %p312 = pneg %p127
        %p313 = pneg %p151
        %p314 = pneg %p148
        %p315 = pneg %p172
        %p316 = pneg %p169
        %p317 = pneg %p193
        %p318 = pneg %p190
        %p319 = pneg %p219
        %p320 = pneg %p216
        %s321 = sand.u32 %s206, 1
        %s322 = scalar_lea.sflag [#allocation4], %s321
        %s323 = sand.u32 %s206, 1
        %s324 = smul.addr %s323, 192
        %s325 = scalar_lea.vmem [#allocation5], %s324
        %v326 = vld [vmem:[%s292] sm:$0xff]
        %v327 = vld [vmem:[%s292 + $0x8] sm:$0xff]
        %v328 = vld [vmem:[%s292 + $0x10] sm:$0xff]
        %v329 = vld [vmem:[%s292 + $0x18] sm:$0xff]
        %v330 = vld [vmem:[%s292 + $0x20] sm:$0xff]
        %v331 = vld [vmem:[%s292 + $0x28] sm:$0xff]
        %v332 = vld [vmem:[%s292 + $0x30] sm:$0xff]
        %v333 = vld [vmem:[%s292 + $0x38] sm:$0xff]
        %v334 = vld [vmem:[%s292 + $0x40] sm:$0xff]
        %v335 = vld [vmem:[%s292 + $0x48] sm:$0xff]
        %v336 = vld [vmem:[%s292 + $0x50] sm:$0xff]
        %v337 = vld [vmem:[%s292 + $0x58] sm:$0xff]
        %s338 = scalar_lea.vmem %s292, 96 [#allocation2]
        %v339 = vld [vmem:[%s338] sm:$0xff]
        %v340 = vld [vmem:[%s338 + $0x8] sm:$0xff]
        %v341 = vld [vmem:[%s338 + $0x10] sm:$0xff]
        %v342 = vld [vmem:[%s338 + $0x18] sm:$0xff]
        %v343 = vld [vmem:[%s338 + $0x20] sm:$0xff]
        %v344 = vld [vmem:[%s338 + $0x28] sm:$0xff]
        %v345 = vld [vmem:[%s338 + $0x30] sm:$0xff]
        %v346 = vld [vmem:[%s338 + $0x38] sm:$0xff]
        %v347 = vld [vmem:[%s338 + $0x40] sm:$0xff]
        %v348 = vld [vmem:[%s338 + $0x48] sm:$0xff]
        %v349 = vld [vmem:[%s338 + $0x50] sm:$0xff]
        %v350 = vld [vmem:[%s338 + $0x58] sm:$0xff]
        %s351 = scalar_lea.vmem %s292, 192 [#allocation2]
        %v352 = vld [vmem:[%s351] sm:$0xff]
        %v353 = vld [vmem:[%s351 + $0x8] sm:$0xff]
        %v354 = vld [vmem:[%s351 + $0x10] sm:$0xff]
        %v355 = vld [vmem:[%s351 + $0x18] sm:$0xff]
        %v356 = vld [vmem:[%s351 + $0x20] sm:$0xff]
        %v357 = vld [vmem:[%s351 + $0x28] sm:$0xff]
        %v358 = vld [vmem:[%s351 + $0x30] sm:$0xff]
        %v359 = vld [vmem:[%s351 + $0x38] sm:$0xff]
        %v360 = vld [vmem:[%s351 + $0x40] sm:$0xff]
        %v361 = vld [vmem:[%s351 + $0x48] sm:$0xff]
        %v362 = vld [vmem:[%s351 + $0x50] sm:$0xff]
        %v363 = vld [vmem:[%s351 + $0x58] sm:$0xff]
        %s364 = scalar_lea.vmem %s292, 288 [#allocation2]
        %v365 = vld [vmem:[%s364] sm:$0xff]
        %v366 = vld [vmem:[%s364 + $0x8] sm:$0xff]
        %v367 = vld [vmem:[%s364 + $0x10] sm:$0xff]
        %v368 = vld [vmem:[%s364 + $0x18] sm:$0xff]
        %v369 = vld [vmem:[%s364 + $0x20] sm:$0xff]
        %v370 = vld [vmem:[%s364 + $0x28] sm:$0xff]
        %v371 = vld [vmem:[%s364 + $0x30] sm:$0xff]
        %v372 = vld [vmem:[%s364 + $0x38] sm:$0xff]
        %v373 = vld [vmem:[%s364 + $0x40] sm:$0xff]
        %v374 = vld [vmem:[%s364 + $0x48] sm:$0xff]
        %v375 = vld [vmem:[%s364 + $0x50] sm:$0xff]
        %v376 = vld [vmem:[%s364 + $0x58] sm:$0xff]
        %s377 = scalar_lea.vmem %s292, 384 [#allocation2]
        %v378 = vld [vmem:[%s377] sm:$0xff]
        %v379 = vld [vmem:[%s377 + $0x8] sm:$0xff]
        %v380 = vld [vmem:[%s377 + $0x10] sm:$0xff]
        %v381 = vld [vmem:[%s377 + $0x18] sm:$0xff]
        %v382 = vld [vmem:[%s377 + $0x20] sm:$0xff]
        %v383 = vld [vmem:[%s377 + $0x28] sm:$0xff]
        %v384 = vld [vmem:[%s377 + $0x30] sm:$0xff]
        %v385 = vld [vmem:[%s377 + $0x38] sm:$0xff]
        %v386 = vld [vmem:[%s377 + $0x40] sm:$0xff]
        %v387 = vld [vmem:[%s377 + $0x48] sm:$0xff]
        %v388 = vld [vmem:[%s377 + $0x50] sm:$0xff]
        %v389 = vld [vmem:[%s377 + $0x58] sm:$0xff]
        %v390 = vld [vmem:[%s3] sm:$0xff]
        %v391 = vld [vmem:[%s4] sm:$0xff]
        %v392 = vld [vmem:[%s4 + $0x8] sm:$0xff]
        %v393 = vld [vmem:[%s1] sm:$0xff]
        %s394 = scalar_lea.vmem %s1, 8
        %v395 = vld [vmem:[%s394] sm:$0xff]
        %408 = vst [vmem:[#allocation1] ss:$2 sm:$0xff] %v339
        %s409 = scalar_lea.vmem [#allocation1], 16
        %410 = vst [vmem:[%s409] ss:$2 sm:$0xff] %v340
        %s411 = scalar_lea.vmem [#allocation1], 32
        %412 = vst [vmem:[%s411] ss:$2 sm:$0xff] %v341
        %s413 = scalar_lea.vmem [#allocation1], 48
        %414 = vst [vmem:[%s413] ss:$2 sm:$0xff] %v342
        %v415 = vld.sshfl [vmem:[#allocation1] sm:$0xff pattern:$0x75316420]
        %v416 = vld.sshfl [vmem:[#allocation1 + $0x8] sm:$0xff pattern:$0x75316420]
        %v417 = vld.sshfl [vmem:[#allocation1 + $0x10] sm:$0xff pattern:$0x75316420]
        %v418 = vld.sshfl [vmem:[#allocation1 + $0x18] sm:$0xff pattern:$0x75316420]
        %v419 = vld.sshfl [vmem:[#allocation1 + $0x20] sm:$0xff pattern:$0x75316420]
        %v420 = vld.sshfl [vmem:[#allocation1 + $0x28] sm:$0xff pattern:$0x75316420]
        %v421 = vld.sshfl [vmem:[#allocation1 + $0x30] sm:$0xff pattern:$0x75316420]
        %v422 = vld.sshfl [vmem:[#allocation1 + $0x38] sm:$0xff pattern:$0x75316420]
        %423 = vst [vmem:[#allocation1] ss:$2 sm:$0xff] %v343
        %424 = vst [vmem:[%s409] ss:$2 sm:$0xff] %v344
        %425 = vst [vmem:[%s411] ss:$2 sm:$0xff] %v345
        %426 = vst [vmem:[%s413] ss:$2 sm:$0xff] %v346
        %v427 = vld.sshfl [vmem:[#allocation1] sm:$0xff pattern:$0x75316420]
        %v428 = vld.sshfl [vmem:[#allocation1 + $0x8] sm:$0xff pattern:$0x75316420]
        %v429 = vld.sshfl [vmem:[#allocation1 + $0x10] sm:$0xff pattern:$0x75316420]
        %v430 = vld.sshfl [vmem:[#allocation1 + $0x18] sm:$0xff pattern:$0x75316420]
        %v431 = vld.sshfl [vmem:[#allocation1 + $0x20] sm:$0xff pattern:$0x75316420]
        %v432 = vld.sshfl [vmem:[#allocation1 + $0x28] sm:$0xff pattern:$0x75316420]
        %v433 = vld.sshfl [vmem:[#allocation1 + $0x30] sm:$0xff pattern:$0x75316420]
        %v434 = vld.sshfl [vmem:[#allocation1 + $0x38] sm:$0xff pattern:$0x75316420]
        %435 = vst [vmem:[#allocation1] ss:$2 sm:$0xff] %v347
        %436 = vst [vmem:[%s409] ss:$2 sm:$0xff] %v348
        %437 = vst [vmem:[%s411] ss:$2 sm:$0xff] %v349
        %438 = vst [vmem:[%s413] ss:$2 sm:$0xff] %v350
        %v439 = vld.sshfl [vmem:[#allocation1] sm:$0xff pattern:$0x75316420]
        %v440 = vld.sshfl [vmem:[#allocation1 + $0x8] sm:$0xff pattern:$0x75316420]
        %v441 = vld.sshfl [vmem:[#allocation1 + $0x10] sm:$0xff pattern:$0x75316420]
        %v442 = vld.sshfl [vmem:[#allocation1 + $0x18] sm:$0xff pattern:$0x75316420]
        %v443 = vld.sshfl [vmem:[#allocation1 + $0x20] sm:$0xff pattern:$0x75316420]
        %v444 = vld.sshfl [vmem:[#allocation1 + $0x28] sm:$0xff pattern:$0x75316420]
        %v445 = vld.sshfl [vmem:[#allocation1 + $0x30] sm:$0xff pattern:$0x75316420]
        %v446 = vld.sshfl [vmem:[#allocation1 + $0x38] sm:$0xff pattern:$0x75316420]
        %vm447 = vcmask 31744
        %v449 = vsel %vm447, %v395, 0
        %vm451 = vcmask 1043456
        %v452 = vsel %vm451, %v415, 0
        %v454 = vsel %vm451, %v416, 0
        %v456 = vsel %vm451, %v417, 0
        %v458 = vsel %vm451, %v418, 0
        %v460 = vsel %vm451, %v419, 0
        %v462 = vsel %vm451, %v420, 0
        %v464 = vsel %vm451, %v421, 0
        %v466 = vsel %vm451, %v422, 0
        %v468 = vsel %vm451, %v427, 0
        %v470 = vsel %vm451, %v428, 0
        %v472 = vsel %vm451, %v429, 0
        %v474 = vsel %vm451, %v430, 0
        %v476 = vsel %vm451, %v431, 0
        %v478 = vsel %vm451, %v432, 0
        %v480 = vsel %vm451, %v433, 0
        %v482 = vsel %vm451, %v434, 0
        %v484 = vsel %vm451, %v439, 0
        %v486 = vsel %vm451, %v440, 0
        %v488 = vsel %vm451, %v441, 0
        %v490 = vsel %vm451, %v442, 0
        %v492 = vsel %vm451, %v443, 0
        %v494 = vsel %vm451, %v444, 0
        %v496 = vsel %vm451, %v445, 0
        %v498 = vsel %vm451, %v446, 0
        %500 = vmatpush.msra.mxu0 0.0
        %501 = vmatpush.msra.mxu0 0.0
        %502 = vmatpush.msra.mxu0 0.0
        %503 = vmatpush.msra.mxu0 0.0
        %504 = vmatpush.msra.mxu0 0.0
        %505 = vmatpush.msra.mxu0 0.0
        %506 = vmatpush.msra.mxu0 0.0
        %507 = vmatpush.msra.mxu0 0.0
        %508 = vmatpush.msra.mxu0 0.0
        %509 = vmatpush.msra.mxu0 0.0
        %510 = vmatpush.msra.mxu0 0.0
        %511 = vmatpush.msra.mxu0 0.0
        %512 = vmatpush.msra.mxu0 0.0
        %513 = vmatpush.msra.mxu0 0.0
        %514 = vmatpush.msra.mxu0 0.0
        %515 = vmatpush.msra.mxu0 %v452
        %516 = vmatmul.f32.gmra.mxu0 %v449
        %v517 = vpop.f32.mrf.mxu0
        %v518 = vadd.f32 0.0, %v517
        %519 = vdwg.mxu0
        %520 = vmatpush.msra.mxu0 0.0
        %521 = vmatpush.msra.mxu0 0.0
        %522 = vmatpush.msra.mxu0 0.0
        %523 = vmatpush.msra.mxu0 0.0
        %524 = vmatpush.msra.mxu0 0.0
        %525 = vmatpush.msra.mxu0 0.0
        %526 = vmatpush.msra.mxu0 0.0
        %527 = vmatpush.msra.mxu0 0.0
        %528 = vmatpush.msra.mxu0 0.0
        %529 = vmatpush.msra.mxu0 0.0
        %530 = vmatpush.msra.mxu0 0.0
        %531 = vmatpush.msra.mxu0 0.0
        %532 = vmatpush.msra.mxu0 0.0
        %533 = vmatpush.msra.mxu0 0.0
        %534 = vmatpush.msra.mxu0 0.0
        %535 = vmatpush.msra.mxu0 %v454
        %536 = vmatmul.f32.gmra.mxu0 %v449
        %v537 = vpop.f32.mrf.mxu0
        %v538 = vadd.f32 0.0, %v537
        %539 = vdwg.mxu0
        %540 = vmatpush.msra.mxu0 0.0
        %541 = vmatpush.msra.mxu0 0.0
        %542 = vmatpush.msra.mxu0 0.0
        %543 = vmatpush.msra.mxu0 0.0
        %544 = vmatpush.msra.mxu0 0.0
        %545 = vmatpush.msra.mxu0 0.0
        %546 = vmatpush.msra.mxu0 0.0
        %547 = vmatpush.msra.mxu0 0.0
        %548 = vmatpush.msra.mxu0 0.0
        %549 = vmatpush.msra.mxu0 0.0
        %550 = vmatpush.msra.mxu0 0.0
        %551 = vmatpush.msra.mxu0 0.0
        %552 = vmatpush.msra.mxu0 0.0
        %553 = vmatpush.msra.mxu0 0.0
        %554 = vmatpush.msra.mxu0 0.0
        %555 = vmatpush.msra.mxu0 %v456
        %556 = vmatmul.f32.gmra.mxu0 %v449
        %v557 = vpop.f32.mrf.mxu0
        %v558 = vadd.f32 0.0, %v557
        %559 = vdwg.mxu0
        %560 = vmatpush.msra.mxu0 0.0
        %561 = vmatpush.msra.mxu0 0.0
        %562 = vmatpush.msra.mxu0 0.0
        %563 = vmatpush.msra.mxu0 0.0
        %564 = vmatpush.msra.mxu0 0.0
        %565 = vmatpush.msra.mxu0 0.0
        %566 = vmatpush.msra.mxu0 0.0
        %567 = vmatpush.msra.mxu0 0.0
        %568 = vmatpush.msra.mxu0 0.0
        %569 = vmatpush.msra.mxu0 0.0
        %570 = vmatpush.msra.mxu0 0.0
        %571 = vmatpush.msra.mxu0 0.0
        %572 = vmatpush.msra.mxu0 0.0
        %573 = vmatpush.msra.mxu0 0.0
        %574 = vmatpush.msra.mxu0 0.0
        %575 = vmatpush.msra.mxu0 %v458
        %576 = vmatmul.f32.gmra.mxu0 %v449
        %v577 = vpop.f32.mrf.mxu0
        %v578 = vadd.f32 0.0, %v577
        %579 = vdwg.mxu0
        %580 = vmatpush.msra.mxu0 0.0
        %581 = vmatpush.msra.mxu0 0.0
        %582 = vmatpush.msra.mxu0 0.0
        %583 = vmatpush.msra.mxu0 0.0
        %584 = vmatpush.msra.mxu0 0.0
        %585 = vmatpush.msra.mxu0 0.0
        %586 = vmatpush.msra.mxu0 0.0
        %587 = vmatpush.msra.mxu0 0.0
        %588 = vmatpush.msra.mxu0 0.0
        %589 = vmatpush.msra.mxu0 0.0
        %590 = vmatpush.msra.mxu0 0.0
        %591 = vmatpush.msra.mxu0 0.0
        %592 = vmatpush.msra.mxu0 0.0
        %593 = vmatpush.msra.mxu0 0.0
        %594 = vmatpush.msra.mxu0 0.0
        %595 = vmatpush.msra.mxu0 %v460
        %596 = vmatmul.f32.gmra.mxu0 %v449
        %v597 = vpop.f32.mrf.mxu0
        %v598 = vadd.f32 0.0, %v597
        %599 = vdwg.mxu0
        %600 = vmatpush.msra.mxu0 0.0
        %601 = vmatpush.msra.mxu0 0.0
        %602 = vmatpush.msra.mxu0 0.0
        %603 = vmatpush.msra.mxu0 0.0
        %604 = vmatpush.msra.mxu0 0.0
        %605 = vmatpush.msra.mxu0 0.0
        %606 = vmatpush.msra.mxu0 0.0
        %607 = vmatpush.msra.mxu0 0.0
        %608 = vmatpush.msra.mxu0 0.0
        %609 = vmatpush.msra.mxu0 0.0
        %610 = vmatpush.msra.mxu0 0.0
        %611 = vmatpush.msra.mxu0 0.0
        %612 = vmatpush.msra.mxu0 0.0
        %613 = vmatpush.msra.mxu0 0.0
        %614 = vmatpush.msra.mxu0 0.0
        %615 = vmatpush.msra.mxu0 %v462
        %616 = vmatmul.f32.gmra.mxu0 %v449
        %v617 = vpop.f32.mrf.mxu0
        %v618 = vadd.f32 0.0, %v617
        %619 = vdwg.mxu0
        %620 = vmatpush.msra.mxu0 0.0
        %621 = vmatpush.msra.mxu0 0.0
        %622 = vmatpush.msra.mxu0 0.0
        %623 = vmatpush.msra.mxu0 0.0
        %624 = vmatpush.msra.mxu0 0.0
        %625 = vmatpush.msra.mxu0 0.0
        %626 = vmatpush.msra.mxu0 0.0
        %627 = vmatpush.msra.mxu0 0.0
        %628 = vmatpush.msra.mxu0 0.0
        %629 = vmatpush.msra.mxu0 0.0
        %630 = vmatpush.msra.mxu0 0.0
        %631 = vmatpush.msra.mxu0 0.0
        %632 = vmatpush.msra.mxu0 0.0
        %633 = vmatpush.msra.mxu0 0.0
        %634 = vmatpush.msra.mxu0 0.0
        %635 = vmatpush.msra.mxu0 %v464
        %636 = vmatmul.f32.gmra.mxu0 %v449
        %v637 = vpop.f32.mrf.mxu0
        %v638 = vadd.f32 0.0, %v637
        %639 = vdwg.mxu0
        %640 = vmatpush.msra.mxu0 0.0
        %641 = vmatpush.msra.mxu0 0.0
        %642 = vmatpush.msra.mxu0 0.0
        %643 = vmatpush.msra.mxu0 0.0
        %644 = vmatpush.msra.mxu0 0.0
        %645 = vmatpush.msra.mxu0 0.0
        %646 = vmatpush.msra.mxu0 0.0
        %647 = vmatpush.msra.mxu0 0.0
        %648 = vmatpush.msra.mxu0 0.0
        %649 = vmatpush.msra.mxu0 0.0
        %650 = vmatpush.msra.mxu0 0.0
        %651 = vmatpush.msra.mxu0 0.0
        %652 = vmatpush.msra.mxu0 0.0
        %653 = vmatpush.msra.mxu0 0.0
        %654 = vmatpush.msra.mxu0 0.0
        %655 = vmatpush.msra.mxu0 %v466
        %656 = vmatmul.f32.gmra.mxu0 %v449
        %v657 = vpop.f32.mrf.mxu0
        %v658 = vadd.f32 0.0, %v657
        %659 = vdwg.mxu0
        %660 = vmatpush.msra.mxu0 0.0
        %661 = vmatpush.msra.mxu0 0.0
        %662 = vmatpush.msra.mxu0 0.0
        %663 = vmatpush.msra.mxu0 0.0
        %664 = vmatpush.msra.mxu0 0.0
        %665 = vmatpush.msra.mxu0 0.0
        %666 = vmatpush.msra.mxu0 0.0
        %667 = vmatpush.msra.mxu0 0.0
        %668 = vmatpush.msra.mxu0 0.0
        %669 = vmatpush.msra.mxu0 0.0
        %670 = vmatpush.msra.mxu0 0.0
        %671 = vmatpush.msra.mxu0 0.0
        %672 = vmatpush.msra.mxu0 0.0
        %673 = vmatpush.msra.mxu0 0.0
        %674 = vmatpush.msra.mxu0 0.0
        %675 = vmatpush.msra.mxu0 %v468
        %676 = vmatmul.f32.gmra.mxu0 %v449
        %v677 = vpop.f32.mrf.mxu0
        %v678 = vadd.f32 0.0, %v677
        %679 = vdwg.mxu0
        %680 = vmatpush.msra.mxu0 0.0
        %681 = vmatpush.msra.mxu0 0.0
        %682 = vmatpush.msra.mxu0 0.0
        %683 = vmatpush.msra.mxu0 0.0
        %684 = vmatpush.msra.mxu0 0.0
        %685 = vmatpush.msra.mxu0 0.0
        %686 = vmatpush.msra.mxu0 0.0
        %687 = vmatpush.msra.mxu0 0.0
        %688 = vmatpush.msra.mxu0 0.0
        %689 = vmatpush.msra.mxu0 0.0
        %690 = vmatpush.msra.mxu0 0.0
        %691 = vmatpush.msra.mxu0 0.0
        %692 = vmatpush.msra.mxu0 0.0
        %693 = vmatpush.msra.mxu0 0.0
        %694 = vmatpush.msra.mxu0 0.0
        %695 = vmatpush.msra.mxu0 %v470
        %696 = vmatmul.f32.gmra.mxu0 %v449
        %v697 = vpop.f32.mrf.mxu0
        %v698 = vadd.f32 0.0, %v697
        %699 = vdwg.mxu0
        %700 = vmatpush.msra.mxu0 0.0
        %701 = vmatpush.msra.mxu0 0.0
        %702 = vmatpush.msra.mxu0 0.0
        %703 = vmatpush.msra.mxu0 0.0
        %704 = vmatpush.msra.mxu0 0.0
        %705 = vmatpush.msra.mxu0 0.0
        %706 = vmatpush.msra.mxu0 0.0
        %707 = vmatpush.msra.mxu0 0.0
        %708 = vmatpush.msra.mxu0 0.0
        %709 = vmatpush.msra.mxu0 0.0
        %710 = vmatpush.msra.mxu0 0.0
        %711 = vmatpush.msra.mxu0 0.0
        %712 = vmatpush.msra.mxu0 0.0
        %713 = vmatpush.msra.mxu0 0.0
        %714 = vmatpush.msra.mxu0 0.0
        %715 = vmatpush.msra.mxu0 %v472
        %716 = vmatmul.f32.gmra.mxu0 %v449
        %v717 = vpop.f32.mrf.mxu0
        %v718 = vadd.f32 0.0, %v717
        %719 = vdwg.mxu0
        %720 = vmatpush.msra.mxu0 0.0
        %721 = vmatpush.msra.mxu0 0.0
        %722 = vmatpush.msra.mxu0 0.0
        %723 = vmatpush.msra.mxu0 0.0
        %724 = vmatpush.msra.mxu0 0.0
        %725 = vmatpush.msra.mxu0 0.0
        %726 = vmatpush.msra.mxu0 0.0
        %727 = vmatpush.msra.mxu0 0.0
        %728 = vmatpush.msra.mxu0 0.0
        %729 = vmatpush.msra.mxu0 0.0
        %730 = vmatpush.msra.mxu0 0.0
        %731 = vmatpush.msra.mxu0 0.0
        %732 = vmatpush.msra.mxu0 0.0
        %733 = vmatpush.msra.mxu0 0.0
        %734 = vmatpush.msra.mxu0 0.0
        %735 = vmatpush.msra.mxu0 %v474
        %736 = vmatmul.f32.gmra.mxu0 %v449
        %v737 = vpop.f32.mrf.mxu0
        %v738 = vadd.f32 0.0, %v737
        %739 = vdwg.mxu0
        %740 = vmatpush.msra.mxu0 0.0
        %741 = vmatpush.msra.mxu0 0.0
        %742 = vmatpush.msra.mxu0 0.0
        %743 = vmatpush.msra.mxu0 0.0
        %744 = vmatpush.msra.mxu0 0.0
        %745 = vmatpush.msra.mxu0 0.0
        %746 = vmatpush.msra.mxu0 0.0
        %747 = vmatpush.msra.mxu0 0.0
        %748 = vmatpush.msra.mxu0 0.0
        %749 = vmatpush.msra.mxu0 0.0
        %750 = vmatpush.msra.mxu0 0.0
        %751 = vmatpush.msra.mxu0 0.0
        %752 = vmatpush.msra.mxu0 0.0
        %753 = vmatpush.msra.mxu0 0.0
        %754 = vmatpush.msra.mxu0 0.0
        %755 = vmatpush.msra.mxu0 %v476
        %756 = vmatmul.f32.gmra.mxu0 %v449
        %v757 = vpop.f32.mrf.mxu0
        %v758 = vadd.f32 0.0, %v757
        %759 = vdwg.mxu0
        %760 = vmatpush.msra.mxu0 0.0
        %761 = vmatpush.msra.mxu0 0.0
        %762 = vmatpush.msra.mxu0 0.0
        %763 = vmatpush.msra.mxu0 0.0
        %764 = vmatpush.msra.mxu0 0.0
        %765 = vmatpush.msra.mxu0 0.0
        %766 = vmatpush.msra.mxu0 0.0
        %767 = vmatpush.msra.mxu0 0.0
        %768 = vmatpush.msra.mxu0 0.0
        %769 = vmatpush.msra.mxu0 0.0
        %770 = vmatpush.msra.mxu0 0.0
        %771 = vmatpush.msra.mxu0 0.0
        %772 = vmatpush.msra.mxu0 0.0
        %773 = vmatpush.msra.mxu0 0.0
        %774 = vmatpush.msra.mxu0 0.0
        %775 = vmatpush.msra.mxu0 %v478
        %776 = vmatmul.f32.gmra.mxu0 %v449
        %v777 = vpop.f32.mrf.mxu0
        %v778 = vadd.f32 0.0, %v777
        %779 = vdwg.mxu0
        %780 = vmatpush.msra.mxu0 0.0
        %781 = vmatpush.msra.mxu0 0.0
        %782 = vmatpush.msra.mxu0 0.0
        %783 = vmatpush.msra.mxu0 0.0
        %784 = vmatpush.msra.mxu0 0.0
        %785 = vmatpush.msra.mxu0 0.0
        %786 = vmatpush.msra.mxu0 0.0
        %787 = vmatpush.msra.mxu0 0.0
        %788 = vmatpush.msra.mxu0 0.0
        %789 = vmatpush.msra.mxu0 0.0
        %790 = vmatpush.msra.mxu0 0.0
        %791 = vmatpush.msra.mxu0 0.0
        %792 = vmatpush.msra.mxu0 0.0
        %793 = vmatpush.msra.mxu0 0.0
        %794 = vmatpush.msra.mxu0 0.0
        %795 = vmatpush.msra.mxu0 %v480
        %796 = vmatmul.f32.gmra.mxu0 %v449
        %v797 = vpop.f32.mrf.mxu0
        %v798 = vadd.f32 0.0, %v797
        %799 = vdwg.mxu0
        %800 = vmatpush.msra.mxu0 0.0
        %801 = vmatpush.msra.mxu0 0.0
        %802 = vmatpush.msra.mxu0 0.0
        %803 = vmatpush.msra.mxu0 0.0
        %804 = vmatpush.msra.mxu0 0.0
        %805 = vmatpush.msra.mxu0 0.0
        %806 = vmatpush.msra.mxu0 0.0
        %807 = vmatpush.msra.mxu0 0.0
        %808 = vmatpush.msra.mxu0 0.0
        %809 = vmatpush.msra.mxu0 0.0
        %810 = vmatpush.msra.mxu0 0.0
        %811 = vmatpush.msra.mxu0 0.0
        %812 = vmatpush.msra.mxu0 0.0
        %813 = vmatpush.msra.mxu0 0.0
        %814 = vmatpush.msra.mxu0 0.0
        %815 = vmatpush.msra.mxu0 %v482
        %816 = vmatmul.f32.gmra.mxu0 %v449
        %v817 = vpop.f32.mrf.mxu0
        %v818 = vadd.f32 0.0, %v817
        %819 = vdwg.mxu0
        %820 = vmatpush.msra.mxu0 0.0
        %821 = vmatpush.msra.mxu0 0.0
        %822 = vmatpush.msra.mxu0 0.0
        %823 = vmatpush.msra.mxu0 0.0
        %824 = vmatpush.msra.mxu0 0.0
        %825 = vmatpush.msra.mxu0 0.0
        %826 = vmatpush.msra.mxu0 0.0
        %827 = vmatpush.msra.mxu0 0.0
        %828 = vmatpush.msra.mxu0 0.0
        %829 = vmatpush.msra.mxu0 0.0
        %830 = vmatpush.msra.mxu0 0.0
        %831 = vmatpush.msra.mxu0 0.0
        %832 = vmatpush.msra.mxu0 0.0
        %833 = vmatpush.msra.mxu0 0.0
        %834 = vmatpush.msra.mxu0 0.0
        %835 = vmatpush.msra.mxu0 %v484
        %836 = vmatmul.f32.gmra.mxu0 %v449
        %v837 = vpop.f32.mrf.mxu0
        %v838 = vadd.f32 0.0, %v837
        %839 = vdwg.mxu0
        %840 = vmatpush.msra.mxu0 0.0
        %841 = vmatpush.msra.mxu0 0.0
        %842 = vmatpush.msra.mxu0 0.0
        %843 = vmatpush.msra.mxu0 0.0
        %844 = vmatpush.msra.mxu0 0.0
        %845 = vmatpush.msra.mxu0 0.0
        %846 = vmatpush.msra.mxu0 0.0
        %847 = vmatpush.msra.mxu0 0.0
        %848 = vmatpush.msra.mxu0 0.0
        %849 = vmatpush.msra.mxu0 0.0
        %850 = vmatpush.msra.mxu0 0.0
        %851 = vmatpush.msra.mxu0 0.0
        %852 = vmatpush.msra.mxu0 0.0
        %853 = vmatpush.msra.mxu0 0.0
        %854 = vmatpush.msra.mxu0 0.0
        %855 = vmatpush.msra.mxu0 %v486
        %856 = vmatmul.f32.gmra.mxu0 %v449
        %v857 = vpop.f32.mrf.mxu0
        %v858 = vadd.f32 0.0, %v857
        %859 = vdwg.mxu0
        %860 = vmatpush.msra.mxu0 0.0
        %861 = vmatpush.msra.mxu0 0.0
        %862 = vmatpush.msra.mxu0 0.0
        %863 = vmatpush.msra.mxu0 0.0
        %864 = vmatpush.msra.mxu0 0.0
        %865 = vmatpush.msra.mxu0 0.0
        %866 = vmatpush.msra.mxu0 0.0
        %867 = vmatpush.msra.mxu0 0.0
        %868 = vmatpush.msra.mxu0 0.0
        %869 = vmatpush.msra.mxu0 0.0
        %870 = vmatpush.msra.mxu0 0.0
        %871 = vmatpush.msra.mxu0 0.0
        %872 = vmatpush.msra.mxu0 0.0
        %873 = vmatpush.msra.mxu0 0.0
        %874 = vmatpush.msra.mxu0 0.0
        %875 = vmatpush.msra.mxu0 %v488
        %876 = vmatmul.f32.gmra.mxu0 %v449
        %v877 = vpop.f32.mrf.mxu0
        %v878 = vadd.f32 0.0, %v877
        %879 = vdwg.mxu0
        %880 = vmatpush.msra.mxu0 0.0
        %881 = vmatpush.msra.mxu0 0.0
        %882 = vmatpush.msra.mxu0 0.0
        %883 = vmatpush.msra.mxu0 0.0
        %884 = vmatpush.msra.mxu0 0.0
        %885 = vmatpush.msra.mxu0 0.0
        %886 = vmatpush.msra.mxu0 0.0
        %887 = vmatpush.msra.mxu0 0.0
        %888 = vmatpush.msra.mxu0 0.0
        %889 = vmatpush.msra.mxu0 0.0
        %890 = vmatpush.msra.mxu0 0.0
        %891 = vmatpush.msra.mxu0 0.0
        %892 = vmatpush.msra.mxu0 0.0
        %893 = vmatpush.msra.mxu0 0.0
        %894 = vmatpush.msra.mxu0 0.0
        %895 = vmatpush.msra.mxu0 %v490
        %896 = vmatmul.f32.gmra.mxu0 %v449
        %v897 = vpop.f32.mrf.mxu0
        %v898 = vadd.f32 0.0, %v897
        %899 = vdwg.mxu0
        %900 = vmatpush.msra.mxu0 0.0
        %901 = vmatpush.msra.mxu0 0.0
        %902 = vmatpush.msra.mxu0 0.0
        %903 = vmatpush.msra.mxu0 0.0
        %904 = vmatpush.msra.mxu0 0.0
        %905 = vmatpush.msra.mxu0 0.0
        %906 = vmatpush.msra.mxu0 0.0
        %907 = vmatpush.msra.mxu0 0.0
        %908 = vmatpush.msra.mxu0 0.0
        %909 = vmatpush.msra.mxu0 0.0
        %910 = vmatpush.msra.mxu0 0.0
        %911 = vmatpush.msra.mxu0 0.0
        %912 = vmatpush.msra.mxu0 0.0
        %913 = vmatpush.msra.mxu0 0.0
        %914 = vmatpush.msra.mxu0 0.0
        %915 = vmatpush.msra.mxu0 %v492
        %916 = vmatmul.f32.gmra.mxu0 %v449
        %v917 = vpop.f32.mrf.mxu0
        %v918 = vadd.f32 0.0, %v917
        %919 = vdwg.mxu0
        %920 = vmatpush.msra.mxu0 0.0
        %921 = vmatpush.msra.mxu0 0.0
        %922 = vmatpush.msra.mxu0 0.0
        %923 = vmatpush.msra.mxu0 0.0
        %924 = vmatpush.msra.mxu0 0.0
        %925 = vmatpush.msra.mxu0 0.0
        %926 = vmatpush.msra.mxu0 0.0
        %927 = vmatpush.msra.mxu0 0.0
        %928 = vmatpush.msra.mxu0 0.0
        %929 = vmatpush.msra.mxu0 0.0
        %930 = vmatpush.msra.mxu0 0.0
        %931 = vmatpush.msra.mxu0 0.0
        %932 = vmatpush.msra.mxu0 0.0
        %933 = vmatpush.msra.mxu0 0.0
        %934 = vmatpush.msra.mxu0 0.0
        %935 = vmatpush.msra.mxu0 %v494
        %936 = vmatmul.f32.gmra.mxu0 %v449
        %v937 = vpop.f32.mrf.mxu0
        %v938 = vadd.f32 0.0, %v937
        %939 = vdwg.mxu0
        %940 = vmatpush.msra.mxu0 0.0
        %941 = vmatpush.msra.mxu0 0.0
        %942 = vmatpush.msra.mxu0 0.0
        %943 = vmatpush.msra.mxu0 0.0
        %944 = vmatpush.msra.mxu0 0.0
        %945 = vmatpush.msra.mxu0 0.0
        %946 = vmatpush.msra.mxu0 0.0
        %947 = vmatpush.msra.mxu0 0.0
        %948 = vmatpush.msra.mxu0 0.0
        %949 = vmatpush.msra.mxu0 0.0
        %950 = vmatpush.msra.mxu0 0.0
        %951 = vmatpush.msra.mxu0 0.0
        %952 = vmatpush.msra.mxu0 0.0
        %953 = vmatpush.msra.mxu0 0.0
        %954 = vmatpush.msra.mxu0 0.0
        %955 = vmatpush.msra.mxu0 %v496
        %956 = vmatmul.f32.gmra.mxu0 %v449
        %v957 = vpop.f32.mrf.mxu0
        %v958 = vadd.f32 0.0, %v957
        %959 = vdwg.mxu0
        %960 = vmatpush.msra.mxu0 0.0
        %961 = vmatpush.msra.mxu0 0.0
        %962 = vmatpush.msra.mxu0 0.0
        %963 = vmatpush.msra.mxu0 0.0
        %964 = vmatpush.msra.mxu0 0.0
        %965 = vmatpush.msra.mxu0 0.0
        %966 = vmatpush.msra.mxu0 0.0
        %967 = vmatpush.msra.mxu0 0.0
        %968 = vmatpush.msra.mxu0 0.0
        %969 = vmatpush.msra.mxu0 0.0
        %970 = vmatpush.msra.mxu0 0.0
        %971 = vmatpush.msra.mxu0 0.0
        %972 = vmatpush.msra.mxu0 0.0
        %973 = vmatpush.msra.mxu0 0.0
        %974 = vmatpush.msra.mxu0 0.0
        %975 = vmatpush.msra.mxu0 %v498
        %976 = vmatmul.f32.gmra.mxu0 %v449
        %v977 = vpop.f32.mrf.mxu0
        %v978 = vadd.f32 0.0, %v977
        %979 = vdwg.mxu0
        %992 = vst [vmem:[#allocation1] ss:$2 sm:$0xff] %v326
        %s993 = scalar_lea.vmem [#allocation1], 16
        %994 = vst [vmem:[%s993] ss:$2 sm:$0xff] %v327
        %s995 = scalar_lea.vmem [#allocation1], 32
        %996 = vst [vmem:[%s995] ss:$2 sm:$0xff] %v328
        %s997 = scalar_lea.vmem [#allocation1], 48
        %998 = vst [vmem:[%s997] ss:$2 sm:$0xff] %v329
        %v999 = vld.sshfl [vmem:[#allocation1] sm:$0xff pattern:$0x75316420]
        %v1000 = vld.sshfl [vmem:[#allocation1 + $0x8] sm:$0xff pattern:$0x75316420]
        %v1001 = vld.sshfl [vmem:[#allocation1 + $0x10] sm:$0xff pattern:$0x75316420]
        %v1002 = vld.sshfl [vmem:[#allocation1 + $0x18] sm:$0xff pattern:$0x75316420]
        %v1003 = vld.sshfl [vmem:[#allocation1 + $0x20] sm:$0xff pattern:$0x75316420]
        %v1004 = vld.sshfl [vmem:[#allocation1 + $0x28] sm:$0xff pattern:$0x75316420]
        %v1005 = vld.sshfl [vmem:[#allocation1 + $0x30] sm:$0xff pattern:$0x75316420]
        %v1006 = vld.sshfl [vmem:[#allocation1 + $0x38] sm:$0xff pattern:$0x75316420]
        %1007 = vst [vmem:[#allocation1] ss:$2 sm:$0xff] %v330
        %1008 = vst [vmem:[%s993] ss:$2 sm:$0xff] %v331
        %1009 = vst [vmem:[%s995] ss:$2 sm:$0xff] %v332
        %1010 = vst [vmem:[%s997] ss:$2 sm:$0xff] %v333
        %v1011 = vld.sshfl [vmem:[#allocation1] sm:$0xff pattern:$0x75316420]
        %v1012 = vld.sshfl [vmem:[#allocation1 + $0x8] sm:$0xff pattern:$0x75316420]
        %v1013 = vld.sshfl [vmem:[#allocation1 + $0x10] sm:$0xff pattern:$0x75316420]
        %v1014 = vld.sshfl [vmem:[#allocation1 + $0x18] sm:$0xff pattern:$0x75316420]
        %v1015 = vld.sshfl [vmem:[#allocation1 + $0x20] sm:$0xff pattern:$0x75316420]
        %v1016 = vld.sshfl [vmem:[#allocation1 + $0x28] sm:$0xff pattern:$0x75316420]
        %v1017 = vld.sshfl [vmem:[#allocation1 + $0x30] sm:$0xff pattern:$0x75316420]
        %v1018 = vld.sshfl [vmem:[#allocation1 + $0x38] sm:$0xff pattern:$0x75316420]
        %1019 = vst [vmem:[#allocation1] ss:$2 sm:$0xff] %v334
        %1020 = vst [vmem:[%s993] ss:$2 sm:$0xff] %v335
        %1021 = vst [vmem:[%s995] ss:$2 sm:$0xff] %v336
        %1022 = vst [vmem:[%s997] ss:$2 sm:$0xff] %v337
        %v1023 = vld.sshfl [vmem:[#allocation1] sm:$0xff pattern:$0x75316420]
        %v1024 = vld.sshfl [vmem:[#allocation1 + $0x8] sm:$0xff pattern:$0x75316420]
        %v1025 = vld.sshfl [vmem:[#allocation1 + $0x10] sm:$0xff pattern:$0x75316420]
        %v1026 = vld.sshfl [vmem:[#allocation1 + $0x18] sm:$0xff pattern:$0x75316420]
        %v1027 = vld.sshfl [vmem:[#allocation1 + $0x20] sm:$0xff pattern:$0x75316420]
        %v1028 = vld.sshfl [vmem:[#allocation1 + $0x28] sm:$0xff pattern:$0x75316420]
        %v1029 = vld.sshfl [vmem:[#allocation1 + $0x30] sm:$0xff pattern:$0x75316420]
        %v1030 = vld.sshfl [vmem:[#allocation1 + $0x38] sm:$0xff pattern:$0x75316420]
        %v1032 = vsel %vm447, %v393, 0
        %v1034 = vsel %vm451, %v999, 0
        %v1036 = vsel %vm451, %v1000, 0
        %v1038 = vsel %vm451, %v1001, 0
        %v1040 = vsel %vm451, %v1002, 0
        %v1042 = vsel %vm451, %v1003, 0
        %v1044 = vsel %vm451, %v1004, 0
        %v1046 = vsel %vm451, %v1005, 0
        %v1048 = vsel %vm451, %v1006, 0
        %v1050 = vsel %vm451, %v1011, 0
        %v1052 = vsel %vm451, %v1012, 0
        %v1054 = vsel %vm451, %v1013, 0
        %v1056 = vsel %vm451, %v1014, 0
        %v1058 = vsel %vm451, %v1015, 0
        %v1060 = vsel %vm451, %v1016, 0
        %v1062 = vsel %vm451, %v1017, 0
        %v1064 = vsel %vm451, %v1018, 0
        %v1066 = vsel %vm451, %v1023, 0
        %v1068 = vsel %vm451, %v1024, 0
        %v1070 = vsel %vm451, %v1025, 0
        %v1072 = vsel %vm451, %v1026, 0
        %v1074 = vsel %vm451, %v1027, 0
        %v1076 = vsel %vm451, %v1028, 0
        %v1078 = vsel %vm451, %v1029, 0
        %v1080 = vsel %vm451, %v1030, 0
        %1082 = vmatpush.msra.mxu0 0.0
        %1083 = vmatpush.msra.mxu0 0.0
        %1084 = vmatpush.msra.mxu0 0.0
        %1085 = vmatpush.msra.mxu0 0.0
        %1086 = vmatpush.msra.mxu0 0.0
        %1087 = vmatpush.msra.mxu0 0.0
        %1088 = vmatpush.msra.mxu0 0.0
        %1089 = vmatpush.msra.mxu0 0.0
        %1090 = vmatpush.msra.mxu0 0.0
        %1091 = vmatpush.msra.mxu0 0.0
        %1092 = vmatpush.msra.mxu0 0.0
        %1093 = vmatpush.msra.mxu0 0.0
        %1094 = vmatpush.msra.mxu0 0.0
        %1095 = vmatpush.msra.mxu0 0.0
        %1096 = vmatpush.msra.mxu0 0.0
        %1097 = vmatpush.msra.mxu0 %v1034
        %1098 = vmatmul.f32.gmra.mxu0 %v1032
        %v1099 = vpop.f32.mrf.mxu0
        %v1100 = vadd.f32 %v518, %v1099
        %1101 = vdwg.mxu0
        %1102 = vmatpush.msra.mxu0 0.0
        %1103 = vmatpush.msra.mxu0 0.0
        %1104 = vmatpush.msra.mxu0 0.0
        %1105 = vmatpush.msra.mxu0 0.0
        %1106 = vmatpush.msra.mxu0 0.0
        %1107 = vmatpush.msra.mxu0 0.0
        %1108 = vmatpush.msra.mxu0 0.0
        %1109 = vmatpush.msra.mxu0 0.0
        %1110 = vmatpush.msra.mxu0 0.0
        %1111 = vmatpush.msra.mxu0 0.0
        %1112 = vmatpush.msra.mxu0 0.0
        %1113 = vmatpush.msra.mxu0 0.0
        %1114 = vmatpush.msra.mxu0 0.0
        %1115 = vmatpush.msra.mxu0 0.0
        %1116 = vmatpush.msra.mxu0 0.0
        %1117 = vmatpush.msra.mxu0 %v1036
        %1118 = vmatmul.f32.gmra.mxu0 %v1032
        %v1119 = vpop.f32.mrf.mxu0
        %v1120 = vadd.f32 %v538, %v1119
        %1121 = vdwg.mxu0
        %1122 = vmatpush.msra.mxu0 0.0
        %1123 = vmatpush.msra.mxu0 0.0
        %1124 = vmatpush.msra.mxu0 0.0
        %1125 = vmatpush.msra.mxu0 0.0
        %1126 = vmatpush.msra.mxu0 0.0
        %1127 = vmatpush.msra.mxu0 0.0
        %1128 = vmatpush.msra.mxu0 0.0
        %1129 = vmatpush.msra.mxu0 0.0
        %1130 = vmatpush.msra.mxu0 0.0
        %1131 = vmatpush.msra.mxu0 0.0
        %1132 = vmatpush.msra.mxu0 0.0
        %1133 = vmatpush.msra.mxu0 0.0
        %1134 = vmatpush.msra.mxu0 0.0
        %1135 = vmatpush.msra.mxu0 0.0
        %1136 = vmatpush.msra.mxu0 0.0
        %1137 = vmatpush.msra.mxu0 %v1038
        %1138 = vmatmul.f32.gmra.mxu0 %v1032
        %v1139 = vpop.f32.mrf.mxu0
        %v1140 = vadd.f32 %v558, %v1139
        %1141 = vdwg.mxu0
        %1142 = vmatpush.msra.mxu0 0.0
        %1143 = vmatpush.msra.mxu0 0.0
        %1144 = vmatpush.msra.mxu0 0.0
        %1145 = vmatpush.msra.mxu0 0.0
        %1146 = vmatpush.msra.mxu0 0.0
        %1147 = vmatpush.msra.mxu0 0.0
        %1148 = vmatpush.msra.mxu0 0.0
        %1149 = vmatpush.msra.mxu0 0.0
        %1150 = vmatpush.msra.mxu0 0.0
        %1151 = vmatpush.msra.mxu0 0.0
        %1152 = vmatpush.msra.mxu0 0.0
        %1153 = vmatpush.msra.mxu0 0.0
        %1154 = vmatpush.msra.mxu0 0.0
        %1155 = vmatpush.msra.mxu0 0.0
        %1156 = vmatpush.msra.mxu0 0.0
        %1157 = vmatpush.msra.mxu0 %v1040
        %1158 = vmatmul.f32.gmra.mxu0 %v1032
        %v1159 = vpop.f32.mrf.mxu0
        %v1160 = vadd.f32 %v578, %v1159
        %1161 = vdwg.mxu0
        %1162 = vmatpush.msra.mxu0 0.0
        %1163 = vmatpush.msra.mxu0 0.0
        %1164 = vmatpush.msra.mxu0 0.0
        %1165 = vmatpush.msra.mxu0 0.0
        %1166 = vmatpush.msra.mxu0 0.0
        %1167 = vmatpush.msra.mxu0 0.0
        %1168 = vmatpush.msra.mxu0 0.0
        %1169 = vmatpush.msra.mxu0 0.0
        %1170 = vmatpush.msra.mxu0 0.0
        %1171 = vmatpush.msra.mxu0 0.0
        %1172 = vmatpush.msra.mxu0 0.0
        %1173 = vmatpush.msra.mxu0 0.0
        %1174 = vmatpush.msra.mxu0 0.0
        %1175 = vmatpush.msra.mxu0 0.0
        %1176 = vmatpush.msra.mxu0 0.0
        %1177 = vmatpush.msra.mxu0 %v1042
        %1178 = vmatmul.f32.gmra.mxu0 %v1032
        %v1179 = vpop.f32.mrf.mxu0
        %v1180 = vadd.f32 %v598, %v1179
        %1181 = vdwg.mxu0
        %1182 = vmatpush.msra.mxu0 0.0
        %1183 = vmatpush.msra.mxu0 0.0
        %1184 = vmatpush.msra.mxu0 0.0
        %1185 = vmatpush.msra.mxu0 0.0
        %1186 = vmatpush.msra.mxu0 0.0
        %1187 = vmatpush.msra.mxu0 0.0
        %1188 = vmatpush.msra.mxu0 0.0
        %1189 = vmatpush.msra.mxu0 0.0
        %1190 = vmatpush.msra.mxu0 0.0
        %1191 = vmatpush.msra.mxu0 0.0
        %1192 = vmatpush.msra.mxu0 0.0
        %1193 = vmatpush.msra.mxu0 0.0
        %1194 = vmatpush.msra.mxu0 0.0
        %1195 = vmatpush.msra.mxu0 0.0
        %1196 = vmatpush.msra.mxu0 0.0
        %1197 = vmatpush.msra.mxu0 %v1044
        %1198 = vmatmul.f32.gmra.mxu0 %v1032
        %v1199 = vpop.f32.mrf.mxu0
        %v1200 = vadd.f32 %v618, %v1199
        %1201 = vdwg.mxu0
        %1202 = vmatpush.msra.mxu0 0.0
        %1203 = vmatpush.msra.mxu0 0.0
        %1204 = vmatpush.msra.mxu0 0.0
        %1205 = vmatpush.msra.mxu0 0.0
        %1206 = vmatpush.msra.mxu0 0.0
        %1207 = vmatpush.msra.mxu0 0.0
        %1208 = vmatpush.msra.mxu0 0.0
        %1209 = vmatpush.msra.mxu0 0.0
        %1210 = vmatpush.msra.mxu0 0.0
        %1211 = vmatpush.msra.mxu0 0.0
        %1212 = vmatpush.msra.mxu0 0.0
        %1213 = vmatpush.msra.mxu0 0.0
        %1214 = vmatpush.msra.mxu0 0.0
        %1215 = vmatpush.msra.mxu0 0.0
        %1216 = vmatpush.msra.mxu0 0.0
        %1217 = vmatpush.msra.mxu0 %v1046
        %1218 = vmatmul.f32.gmra.mxu0 %v1032
        %v1219 = vpop.f32.mrf.mxu0
        %v1220 = vadd.f32 %v638, %v1219
        %1221 = vdwg.mxu0
        %1222 = vmatpush.msra.mxu0 0.0
        %1223 = vmatpush.msra.mxu0 0.0
        %1224 = vmatpush.msra.mxu0 0.0
        %1225 = vmatpush.msra.mxu0 0.0
        %1226 = vmatpush.msra.mxu0 0.0
        %1227 = vmatpush.msra.mxu0 0.0
        %1228 = vmatpush.msra.mxu0 0.0
        %1229 = vmatpush.msra.mxu0 0.0
        %1230 = vmatpush.msra.mxu0 0.0
        %1231 = vmatpush.msra.mxu0 0.0
        %1232 = vmatpush.msra.mxu0 0.0
        %1233 = vmatpush.msra.mxu0 0.0
        %1234 = vmatpush.msra.mxu0 0.0
        %1235 = vmatpush.msra.mxu0 0.0
        %1236 = vmatpush.msra.mxu0 0.0
        %1237 = vmatpush.msra.mxu0 %v1048
        %1238 = vmatmul.f32.gmra.mxu0 %v1032
        %v1239 = vpop.f32.mrf.mxu0
        %v1240 = vadd.f32 %v658, %v1239
        %1241 = vdwg.mxu0
        %1242 = vmatpush.msra.mxu0 0.0
        %1243 = vmatpush.msra.mxu0 0.0
        %1244 = vmatpush.msra.mxu0 0.0
        %1245 = vmatpush.msra.mxu0 0.0
        %1246 = vmatpush.msra.mxu0 0.0
        %1247 = vmatpush.msra.mxu0 0.0
        %1248 = vmatpush.msra.mxu0 0.0
        %1249 = vmatpush.msra.mxu0 0.0
        %1250 = vmatpush.msra.mxu0 0.0
        %1251 = vmatpush.msra.mxu0 0.0
        %1252 = vmatpush.msra.mxu0 0.0
        %1253 = vmatpush.msra.mxu0 0.0
        %1254 = vmatpush.msra.mxu0 0.0
        %1255 = vmatpush.msra.mxu0 0.0
        %1256 = vmatpush.msra.mxu0 0.0
        %1257 = vmatpush.msra.mxu0 %v1050
        %1258 = vmatmul.f32.gmra.mxu0 %v1032
        %v1259 = vpop.f32.mrf.mxu0
        %v1260 = vadd.f32 %v678, %v1259
        %1261 = vdwg.mxu0
        %1262 = vmatpush.msra.mxu0 0.0
        %1263 = vmatpush.msra.mxu0 0.0
        %1264 = vmatpush.msra.mxu0 0.0
        %1265 = vmatpush.msra.mxu0 0.0
        %1266 = vmatpush.msra.mxu0 0.0
        %1267 = vmatpush.msra.mxu0 0.0
        %1268 = vmatpush.msra.mxu0 0.0
        %1269 = vmatpush.msra.mxu0 0.0
        %1270 = vmatpush.msra.mxu0 0.0
        %1271 = vmatpush.msra.mxu0 0.0
        %1272 = vmatpush.msra.mxu0 0.0
        %1273 = vmatpush.msra.mxu0 0.0
        %1274 = vmatpush.msra.mxu0 0.0
        %1275 = vmatpush.msra.mxu0 0.0
        %1276 = vmatpush.msra.mxu0 0.0
        %1277 = vmatpush.msra.mxu0 %v1052
        %1278 = vmatmul.f32.gmra.mxu0 %v1032
        %v1279 = vpop.f32.mrf.mxu0
        %v1280 = vadd.f32 %v698, %v1279
        %1281 = vdwg.mxu0
        %1282 = vmatpush.msra.mxu0 0.0
        %1283 = vmatpush.msra.mxu0 0.0
        %1284 = vmatpush.msra.mxu0 0.0
        %1285 = vmatpush.msra.mxu0 0.0
        %1286 = vmatpush.msra.mxu0 0.0
        %1287 = vmatpush.msra.mxu0 0.0
        %1288 = vmatpush.msra.mxu0 0.0
        %1289 = vmatpush.msra.mxu0 0.0
        %1290 = vmatpush.msra.mxu0 0.0
        %1291 = vmatpush.msra.mxu0 0.0
        %1292 = vmatpush.msra.mxu0 0.0
        %1293 = vmatpush.msra.mxu0 0.0
        %1294 = vmatpush.msra.mxu0 0.0
        %1295 = vmatpush.msra.mxu0 0.0
        %1296 = vmatpush.msra.mxu0 0.0
        %1297 = vmatpush.msra.mxu0 %v1054
        %1298 = vmatmul.f32.gmra.mxu0 %v1032
        %v1299 = vpop.f32.mrf.mxu0
        %v1300 = vadd.f32 %v718, %v1299
        %1301 = vdwg.mxu0
        %1302 = vmatpush.msra.mxu0 0.0
        %1303 = vmatpush.msra.mxu0 0.0
        %1304 = vmatpush.msra.mxu0 0.0
        %1305 = vmatpush.msra.mxu0 0.0
        %1306 = vmatpush.msra.mxu0 0.0
        %1307 = vmatpush.msra.mxu0 0.0
        %1308 = vmatpush.msra.mxu0 0.0
        %1309 = vmatpush.msra.mxu0 0.0
        %1310 = vmatpush.msra.mxu0 0.0
        %1311 = vmatpush.msra.mxu0 0.0
        %1312 = vmatpush.msra.mxu0 0.0
        %1313 = vmatpush.msra.mxu0 0.0
        %1314 = vmatpush.msra.mxu0 0.0
        %1315 = vmatpush.msra.mxu0 0.0
        %1316 = vmatpush.msra.mxu0 0.0
        %1317 = vmatpush.msra.mxu0 %v1056
        %1318 = vmatmul.f32.gmra.mxu0 %v1032
        %v1319 = vpop.f32.mrf.mxu0
        %v1320 = vadd.f32 %v738, %v1319
        %1321 = vdwg.mxu0
        %1322 = vmatpush.msra.mxu0 0.0
        %1323 = vmatpush.msra.mxu0 0.0
        %1324 = vmatpush.msra.mxu0 0.0
        %1325 = vmatpush.msra.mxu0 0.0
        %1326 = vmatpush.msra.mxu0 0.0
        %1327 = vmatpush.msra.mxu0 0.0
        %1328 = vmatpush.msra.mxu0 0.0
        %1329 = vmatpush.msra.mxu0 0.0
        %1330 = vmatpush.msra.mxu0 0.0
        %1331 = vmatpush.msra.mxu0 0.0
        %1332 = vmatpush.msra.mxu0 0.0
        %1333 = vmatpush.msra.mxu0 0.0
        %1334 = vmatpush.msra.mxu0 0.0
        %1335 = vmatpush.msra.mxu0 0.0
        %1336 = vmatpush.msra.mxu0 0.0
        %1337 = vmatpush.msra.mxu0 %v1058
        %1338 = vmatmul.f32.gmra.mxu0 %v1032
        %v1339 = vpop.f32.mrf.mxu0
        %v1340 = vadd.f32 %v758, %v1339
        %1341 = vdwg.mxu0
        %1342 = vmatpush.msra.mxu0 0.0
        %1343 = vmatpush.msra.mxu0 0.0
        %1344 = vmatpush.msra.mxu0 0.0
        %1345 = vmatpush.msra.mxu0 0.0
        %1346 = vmatpush.msra.mxu0 0.0
        %1347 = vmatpush.msra.mxu0 0.0
        %1348 = vmatpush.msra.mxu0 0.0
        %1349 = vmatpush.msra.mxu0 0.0
        %1350 = vmatpush.msra.mxu0 0.0
        %1351 = vmatpush.msra.mxu0 0.0
        %1352 = vmatpush.msra.mxu0 0.0
        %1353 = vmatpush.msra.mxu0 0.0
        %1354 = vmatpush.msra.mxu0 0.0
        %1355 = vmatpush.msra.mxu0 0.0
        %1356 = vmatpush.msra.mxu0 0.0
        %1357 = vmatpush.msra.mxu0 %v1060
        %1358 = vmatmul.f32.gmra.mxu0 %v1032
        %v1359 = vpop.f32.mrf.mxu0
        %v1360 = vadd.f32 %v778, %v1359
        %1361 = vdwg.mxu0
        %1362 = vmatpush.msra.mxu0 0.0
        %1363 = vmatpush.msra.mxu0 0.0
        %1364 = vmatpush.msra.mxu0 0.0
        %1365 = vmatpush.msra.mxu0 0.0
        %1366 = vmatpush.msra.mxu0 0.0
        %1367 = vmatpush.msra.mxu0 0.0
        %1368 = vmatpush.msra.mxu0 0.0
        %1369 = vmatpush.msra.mxu0 0.0
        %1370 = vmatpush.msra.mxu0 0.0
        %1371 = vmatpush.msra.mxu0 0.0
        %1372 = vmatpush.msra.mxu0 0.0
        %1373 = vmatpush.msra.mxu0 0.0
        %1374 = vmatpush.msra.mxu0 0.0
        %1375 = vmatpush.msra.mxu0 0.0
        %1376 = vmatpush.msra.mxu0 0.0
        %1377 = vmatpush.msra.mxu0 %v1062
        %1378 = vmatmul.f32.gmra.mxu0 %v1032
        %v1379 = vpop.f32.mrf.mxu0
        %v1380 = vadd.f32 %v798, %v1379
        %1381 = vdwg.mxu0
        %1382 = vmatpush.msra.mxu0 0.0
        %1383 = vmatpush.msra.mxu0 0.0
        %1384 = vmatpush.msra.mxu0 0.0
        %1385 = vmatpush.msra.mxu0 0.0
        %1386 = vmatpush.msra.mxu0 0.0
        %1387 = vmatpush.msra.mxu0 0.0
        %1388 = vmatpush.msra.mxu0 0.0
        %1389 = vmatpush.msra.mxu0 0.0
        %1390 = vmatpush.msra.mxu0 0.0
        %1391 = vmatpush.msra.mxu0 0.0
        %1392 = vmatpush.msra.mxu0 0.0
        %1393 = vmatpush.msra.mxu0 0.0
        %1394 = vmatpush.msra.mxu0 0.0
        %1395 = vmatpush.msra.mxu0 0.0
        %1396 = vmatpush.msra.mxu0 0.0
        %1397 = vmatpush.msra.mxu0 %v1064
        %1398 = vmatmul.f32.gmra.mxu0 %v1032
        %v1399 = vpop.f32.mrf.mxu0
        %v1400 = vadd.f32 %v818, %v1399
        %1401 = vdwg.mxu0
        %1402 = vmatpush.msra.mxu0 0.0
        %1403 = vmatpush.msra.mxu0 0.0
        %1404 = vmatpush.msra.mxu0 0.0
        %1405 = vmatpush.msra.mxu0 0.0
        %1406 = vmatpush.msra.mxu0 0.0
        %1407 = vmatpush.msra.mxu0 0.0
        %1408 = vmatpush.msra.mxu0 0.0
        %1409 = vmatpush.msra.mxu0 0.0
        %1410 = vmatpush.msra.mxu0 0.0
        %1411 = vmatpush.msra.mxu0 0.0
        %1412 = vmatpush.msra.mxu0 0.0
        %1413 = vmatpush.msra.mxu0 0.0
        %1414 = vmatpush.msra.mxu0 0.0
        %1415 = vmatpush.msra.mxu0 0.0
        %1416 = vmatpush.msra.mxu0 0.0
        %1417 = vmatpush.msra.mxu0 %v1066
        %1418 = vmatmul.f32.gmra.mxu0 %v1032
        %v1419 = vpop.f32.mrf.mxu0
        %v1420 = vadd.f32 %v838, %v1419
        %1421 = vdwg.mxu0
        %1422 = vmatpush.msra.mxu0 0.0
        %1423 = vmatpush.msra.mxu0 0.0
        %1424 = vmatpush.msra.mxu0 0.0
        %1425 = vmatpush.msra.mxu0 0.0
        %1426 = vmatpush.msra.mxu0 0.0
        %1427 = vmatpush.msra.mxu0 0.0
        %1428 = vmatpush.msra.mxu0 0.0
        %1429 = vmatpush.msra.mxu0 0.0
        %1430 = vmatpush.msra.mxu0 0.0
        %1431 = vmatpush.msra.mxu0 0.0
        %1432 = vmatpush.msra.mxu0 0.0
        %1433 = vmatpush.msra.mxu0 0.0
        %1434 = vmatpush.msra.mxu0 0.0
        %1435 = vmatpush.msra.mxu0 0.0
        %1436 = vmatpush.msra.mxu0 0.0
        %1437 = vmatpush.msra.mxu0 %v1068
        %1438 = vmatmul.f32.gmra.mxu0 %v1032
        %v1439 = vpop.f32.mrf.mxu0
        %v1440 = vadd.f32 %v858, %v1439
        %1441 = vdwg.mxu0
        %1442 = vmatpush.msra.mxu0 0.0
        %1443 = vmatpush.msra.mxu0 0.0
        %1444 = vmatpush.msra.mxu0 0.0
        %1445 = vmatpush.msra.mxu0 0.0
        %1446 = vmatpush.msra.mxu0 0.0
        %1447 = vmatpush.msra.mxu0 0.0
        %1448 = vmatpush.msra.mxu0 0.0
        %1449 = vmatpush.msra.mxu0 0.0
        %1450 = vmatpush.msra.mxu0 0.0
        %1451 = vmatpush.msra.mxu0 0.0
        %1452 = vmatpush.msra.mxu0 0.0
        %1453 = vmatpush.msra.mxu0 0.0
        %1454 = vmatpush.msra.mxu0 0.0
        %1455 = vmatpush.msra.mxu0 0.0
        %1456 = vmatpush.msra.mxu0 0.0
        %1457 = vmatpush.msra.mxu0 %v1070
        %1458 = vmatmul.f32.gmra.mxu0 %v1032
        %v1459 = vpop.f32.mrf.mxu0
        %v1460 = vadd.f32 %v878, %v1459
        %1461 = vdwg.mxu0
        %1462 = vmatpush.msra.mxu0 0.0
        %1463 = vmatpush.msra.mxu0 0.0
        %1464 = vmatpush.msra.mxu0 0.0
        %1465 = vmatpush.msra.mxu0 0.0
        %1466 = vmatpush.msra.mxu0 0.0
        %1467 = vmatpush.msra.mxu0 0.0
        %1468 = vmatpush.msra.mxu0 0.0
        %1469 = vmatpush.msra.mxu0 0.0
        %1470 = vmatpush.msra.mxu0 0.0
        %1471 = vmatpush.msra.mxu0 0.0
        %1472 = vmatpush.msra.mxu0 0.0
        %1473 = vmatpush.msra.mxu0 0.0
        %1474 = vmatpush.msra.mxu0 0.0
        %1475 = vmatpush.msra.mxu0 0.0
        %1476 = vmatpush.msra.mxu0 0.0
        %1477 = vmatpush.msra.mxu0 %v1072
        %1478 = vmatmul.f32.gmra.mxu0 %v1032
        %v1479 = vpop.f32.mrf.mxu0
        %v1480 = vadd.f32 %v898, %v1479
        %1481 = vdwg.mxu0
        %1482 = vmatpush.msra.mxu0 0.0
        %1483 = vmatpush.msra.mxu0 0.0
        %1484 = vmatpush.msra.mxu0 0.0
        %1485 = vmatpush.msra.mxu0 0.0
        %1486 = vmatpush.msra.mxu0 0.0
        %1487 = vmatpush.msra.mxu0 0.0
        %1488 = vmatpush.msra.mxu0 0.0
        %1489 = vmatpush.msra.mxu0 0.0
        %1490 = vmatpush.msra.mxu0 0.0
        %1491 = vmatpush.msra.mxu0 0.0
        %1492 = vmatpush.msra.mxu0 0.0
        %1493 = vmatpush.msra.mxu0 0.0
        %1494 = vmatpush.msra.mxu0 0.0
        %1495 = vmatpush.msra.mxu0 0.0
        %1496 = vmatpush.msra.mxu0 0.0
        %1497 = vmatpush.msra.mxu0 %v1074
        %1498 = vmatmul.f32.gmra.mxu0 %v1032
        %v1499 = vpop.f32.mrf.mxu0
        %v1500 = vadd.f32 %v918, %v1499
        %1501 = vdwg.mxu0
        %1502 = vmatpush.msra.mxu0 0.0
        %1503 = vmatpush.msra.mxu0 0.0
        %1504 = vmatpush.msra.mxu0 0.0
        %1505 = vmatpush.msra.mxu0 0.0
        %1506 = vmatpush.msra.mxu0 0.0
        %1507 = vmatpush.msra.mxu0 0.0
        %1508 = vmatpush.msra.mxu0 0.0
        %1509 = vmatpush.msra.mxu0 0.0
        %1510 = vmatpush.msra.mxu0 0.0
        %1511 = vmatpush.msra.mxu0 0.0
        %1512 = vmatpush.msra.mxu0 0.0
        %1513 = vmatpush.msra.mxu0 0.0
        %1514 = vmatpush.msra.mxu0 0.0
        %1515 = vmatpush.msra.mxu0 0.0
        %1516 = vmatpush.msra.mxu0 0.0
        %1517 = vmatpush.msra.mxu0 %v1076
        %1518 = vmatmul.f32.gmra.mxu0 %v1032
        %v1519 = vpop.f32.mrf.mxu0
        %v1520 = vadd.f32 %v938, %v1519
        %1521 = vdwg.mxu0
        %1522 = vmatpush.msra.mxu0 0.0
        %1523 = vmatpush.msra.mxu0 0.0
        %1524 = vmatpush.msra.mxu0 0.0
        %1525 = vmatpush.msra.mxu0 0.0
        %1526 = vmatpush.msra.mxu0 0.0
        %1527 = vmatpush.msra.mxu0 0.0
        %1528 = vmatpush.msra.mxu0 0.0
        %1529 = vmatpush.msra.mxu0 0.0
        %1530 = vmatpush.msra.mxu0 0.0
        %1531 = vmatpush.msra.mxu0 0.0
        %1532 = vmatpush.msra.mxu0 0.0
        %1533 = vmatpush.msra.mxu0 0.0
        %1534 = vmatpush.msra.mxu0 0.0
        %1535 = vmatpush.msra.mxu0 0.0
        %1536 = vmatpush.msra.mxu0 0.0
        %1537 = vmatpush.msra.mxu0 %v1078
        %1538 = vmatmul.f32.gmra.mxu0 %v1032
        %v1539 = vpop.f32.mrf.mxu0
        %v1540 = vadd.f32 %v958, %v1539
        %1541 = vdwg.mxu0
        %1542 = vmatpush.msra.mxu0 0.0
        %1543 = vmatpush.msra.mxu0 0.0
        %1544 = vmatpush.msra.mxu0 0.0
        %1545 = vmatpush.msra.mxu0 0.0
        %1546 = vmatpush.msra.mxu0 0.0
        %1547 = vmatpush.msra.mxu0 0.0
        %1548 = vmatpush.msra.mxu0 0.0
        %1549 = vmatpush.msra.mxu0 0.0
        %1550 = vmatpush.msra.mxu0 0.0
        %1551 = vmatpush.msra.mxu0 0.0
        %1552 = vmatpush.msra.mxu0 0.0
        %1553 = vmatpush.msra.mxu0 0.0
        %1554 = vmatpush.msra.mxu0 0.0
        %1555 = vmatpush.msra.mxu0 0.0
        %1556 = vmatpush.msra.mxu0 0.0
        %1557 = vmatpush.msra.mxu0 %v1080
        %1558 = vmatmul.f32.gmra.mxu0 %v1032
        %v1559 = vpop.f32.mrf.mxu0
        %v1560 = vadd.f32 %v978, %v1559
        %1561 = vdwg.mxu0
        %s1562 = scalar_lea.vmem %s1, 16
        %v1563 = vld [vmem:[%s1562] sm:$0xff]
        %1576 = vst [vmem:[#allocation1] ss:$2 sm:$0xff] %v352
        %s1577 = scalar_lea.vmem [#allocation1], 16
        %1578 = vst [vmem:[%s1577] ss:$2 sm:$0xff] %v353
        %s1579 = scalar_lea.vmem [#allocation1], 32
        %1580 = vst [vmem:[%s1579] ss:$2 sm:$0xff] %v354
        %s1581 = scalar_lea.vmem [#allocation1], 48
        %1582 = vst [vmem:[%s1581] ss:$2 sm:$0xff] %v355
        %v1583 = vld.sshfl [vmem:[#allocation1] sm:$0xff pattern:$0x75316420]
        %v1584 = vld.sshfl [vmem:[#allocation1 + $0x8] sm:$0xff pattern:$0x75316420]
        %v1585 = vld.sshfl [vmem:[#allocation1 + $0x10] sm:$0xff pattern:$0x75316420]
        %v1586 = vld.sshfl [vmem:[#allocation1 + $0x18] sm:$0xff pattern:$0x75316420]
        %v1587 = vld.sshfl [vmem:[#allocation1 + $0x20] sm:$0xff pattern:$0x75316420]
        %v1588 = vld.sshfl [vmem:[#allocation1 + $0x28] sm:$0xff pattern:$0x75316420]
        %v1589 = vld.sshfl [vmem:[#allocation1 + $0x30] sm:$0xff pattern:$0x75316420]
        %v1590 = vld.sshfl [vmem:[#allocation1 + $0x38] sm:$0xff pattern:$0x75316420]
        %1591 = vst [vmem:[#allocation1] ss:$2 sm:$0xff] %v356
        %1592 = vst [vmem:[%s1577] ss:$2 sm:$0xff] %v357
        %1593 = vst [vmem:[%s1579] ss:$2 sm:$0xff] %v358
        %1594 = vst [vmem:[%s1581] ss:$2 sm:$0xff] %v359
        %v1595 = vld.sshfl [vmem:[#allocation1] sm:$0xff pattern:$0x75316420]
        %v1596 = vld.sshfl [vmem:[#allocation1 + $0x8] sm:$0xff pattern:$0x75316420]
        %v1597 = vld.sshfl [vmem:[#allocation1 + $0x10] sm:$0xff pattern:$0x75316420]
        %v1598 = vld.sshfl [vmem:[#allocation1 + $0x18] sm:$0xff pattern:$0x75316420]
        %v1599 = vld.sshfl [vmem:[#allocation1 + $0x20] sm:$0xff pattern:$0x75316420]
        %v1600 = vld.sshfl [vmem:[#allocation1 + $0x28] sm:$0xff pattern:$0x75316420]
        %v1601 = vld.sshfl [vmem:[#allocation1 + $0x30] sm:$0xff pattern:$0x75316420]
        %v1602 = vld.sshfl [vmem:[#allocation1 + $0x38] sm:$0xff pattern:$0x75316420]
        %1603 = vst [vmem:[#allocation1] ss:$2 sm:$0xff] %v360
        %1604 = vst [vmem:[%s1577] ss:$2 sm:$0xff] %v361
        %1605 = vst [vmem:[%s1579] ss:$2 sm:$0xff] %v362
        %1606 = vst [vmem:[%s1581] ss:$2 sm:$0xff] %v363
        %v1607 = vld.sshfl [vmem:[#allocation1] sm:$0xff pattern:$0x75316420]
        %v1608 = vld.sshfl [vmem:[#allocation1 + $0x8] sm:$0xff pattern:$0x75316420]
        %v1609 = vld.sshfl [vmem:[#allocation1 + $0x10] sm:$0xff pattern:$0x75316420]
        %v1610 = vld.sshfl [vmem:[#allocation1 + $0x18] sm:$0xff pattern:$0x75316420]
        %v1611 = vld.sshfl [vmem:[#allocation1 + $0x20] sm:$0xff pattern:$0x75316420]
        %v1612 = vld.sshfl [vmem:[#allocation1 + $0x28] sm:$0xff pattern:$0x75316420]
        %v1613 = vld.sshfl [vmem:[#allocation1 + $0x30] sm:$0xff pattern:$0x75316420]
        %v1614 = vld.sshfl [vmem:[#allocation1 + $0x38] sm:$0xff pattern:$0x75316420]
        %v1616 = vsel %vm447, %v1563, 0
        %v1618 = vsel %vm451, %v1583, 0
        %v1620 = vsel %vm451, %v1584, 0
        %v1622 = vsel %vm451, %v1585, 0
        %v1624 = vsel %vm451, %v1586, 0
        %v1626 = vsel %vm451, %v1587, 0
        %v1628 = vsel %vm451, %v1588, 0
        %v1630 = vsel %vm451, %v1589, 0
        %v1632 = vsel %vm451, %v1590, 0
        %v1634 = vsel %vm451, %v1595, 0
        %v1636 = vsel %vm451, %v1596, 0
        %v1638 = vsel %vm451, %v1597, 0
        %v1640 = vsel %vm451, %v1598, 0
        %v1642 = vsel %vm451, %v1599, 0
        %v1644 = vsel %vm451, %v1600, 0
        %v1646 = vsel %vm451, %v1601, 0
        %v1648 = vsel %vm451, %v1602, 0
        %v1650 = vsel %vm451, %v1607, 0
        %v1652 = vsel %vm451, %v1608, 0
        %v1654 = vsel %vm451, %v1609, 0
        %v1656 = vsel %vm451, %v1610, 0
        %v1658 = vsel %vm451, %v1611, 0
        %v1660 = vsel %vm451, %v1612, 0
        %v1662 = vsel %vm451, %v1613, 0
        %v1664 = vsel %vm451, %v1614, 0
        %1666 = vmatpush.msra.mxu0 0.0
        %1667 = vmatpush.msra.mxu0 0.0
        %1668 = vmatpush.msra.mxu0 0.0
        %1669 = vmatpush.msra.mxu0 0.0
        %1670 = vmatpush.msra.mxu0 0.0
        %1671 = vmatpush.msra.mxu0 0.0
        %1672 = vmatpush.msra.mxu0 0.0
        %1673 = vmatpush.msra.mxu0 0.0
        %1674 = vmatpush.msra.mxu0 0.0
        %1675 = vmatpush.msra.mxu0 0.0
        %1676 = vmatpush.msra.mxu0 0.0
        %1677 = vmatpush.msra.mxu0 0.0
        %1678 = vmatpush.msra.mxu0 0.0
        %1679 = vmatpush.msra.mxu0 0.0
        %1680 = vmatpush.msra.mxu0 0.0
        %1681 = vmatpush.msra.mxu0 %v1618
        %1682 = vmatmul.f32.gmra.mxu0 %v1616
        %v1683 = vpop.f32.mrf.mxu0
        %v1684 = vadd.f32 0.0, %v1683
        %1685 = vdwg.mxu0
        %1686 = vmatpush.msra.mxu0 0.0
        %1687 = vmatpush.msra.mxu0 0.0
        %1688 = vmatpush.msra.mxu0 0.0
        %1689 = vmatpush.msra.mxu0 0.0
        %1690 = vmatpush.msra.mxu0 0.0
        %1691 = vmatpush.msra.mxu0 0.0
        %1692 = vmatpush.msra.mxu0 0.0
        %1693 = vmatpush.msra.mxu0 0.0
        %1694 = vmatpush.msra.mxu0 0.0
        %1695 = vmatpush.msra.mxu0 0.0
        %1696 = vmatpush.msra.mxu0 0.0
        %1697 = vmatpush.msra.mxu0 0.0
        %1698 = vmatpush.msra.mxu0 0.0
        %1699 = vmatpush.msra.mxu0 0.0
        %1700 = vmatpush.msra.mxu0 0.0
        %1701 = vmatpush.msra.mxu0 %v1620
        %1702 = vmatmul.f32.gmra.mxu0 %v1616
        %v1703 = vpop.f32.mrf.mxu0
        %v1704 = vadd.f32 0.0, %v1703
        %1705 = vdwg.mxu0
        %1706 = vmatpush.msra.mxu0 0.0
        %1707 = vmatpush.msra.mxu0 0.0
        %1708 = vmatpush.msra.mxu0 0.0
        %1709 = vmatpush.msra.mxu0 0.0
        %1710 = vmatpush.msra.mxu0 0.0
        %1711 = vmatpush.msra.mxu0 0.0
        %1712 = vmatpush.msra.mxu0 0.0
        %1713 = vmatpush.msra.mxu0 0.0
        %1714 = vmatpush.msra.mxu0 0.0
        %1715 = vmatpush.msra.mxu0 0.0
        %1716 = vmatpush.msra.mxu0 0.0
        %1717 = vmatpush.msra.mxu0 0.0
        %1718 = vmatpush.msra.mxu0 0.0
        %1719 = vmatpush.msra.mxu0 0.0
        %1720 = vmatpush.msra.mxu0 0.0
        %1721 = vmatpush.msra.mxu0 %v1622
        %1722 = vmatmul.f32.gmra.mxu0 %v1616
        %v1723 = vpop.f32.mrf.mxu0
        %v1724 = vadd.f32 0.0, %v1723
        %1725 = vdwg.mxu0
        %1726 = vmatpush.msra.mxu0 0.0
        %1727 = vmatpush.msra.mxu0 0.0
        %1728 = vmatpush.msra.mxu0 0.0
        %1729 = vmatpush.msra.mxu0 0.0
        %1730 = vmatpush.msra.mxu0 0.0
        %1731 = vmatpush.msra.mxu0 0.0
        %1732 = vmatpush.msra.mxu0 0.0
        %1733 = vmatpush.msra.mxu0 0.0
        %1734 = vmatpush.msra.mxu0 0.0
        %1735 = vmatpush.msra.mxu0 0.0
        %1736 = vmatpush.msra.mxu0 0.0
        %1737 = vmatpush.msra.mxu0 0.0
        %1738 = vmatpush.msra.mxu0 0.0
        %1739 = vmatpush.msra.mxu0 0.0
        %1740 = vmatpush.msra.mxu0 0.0
        %1741 = vmatpush.msra.mxu0 %v1624
        %1742 = vmatmul.f32.gmra.mxu0 %v1616
        %v1743 = vpop.f32.mrf.mxu0
        %v1744 = vadd.f32 0.0, %v1743
        %1745 = vdwg.mxu0
        %1746 = vmatpush.msra.mxu0 0.0
        %1747 = vmatpush.msra.mxu0 0.0
        %1748 = vmatpush.msra.mxu0 0.0
        %1749 = vmatpush.msra.mxu0 0.0
        %1750 = vmatpush.msra.mxu0 0.0
        %1751 = vmatpush.msra.mxu0 0.0
        %1752 = vmatpush.msra.mxu0 0.0
        %1753 = vmatpush.msra.mxu0 0.0
        %1754 = vmatpush.msra.mxu0 0.0
        %1755 = vmatpush.msra.mxu0 0.0
        %1756 = vmatpush.msra.mxu0 0.0
        %1757 = vmatpush.msra.mxu0 0.0
        %1758 = vmatpush.msra.mxu0 0.0
        %1759 = vmatpush.msra.mxu0 0.0
        %1760 = vmatpush.msra.mxu0 0.0
        %1761 = vmatpush.msra.mxu0 %v1626
        %1762 = vmatmul.f32.gmra.mxu0 %v1616
        %v1763 = vpop.f32.mrf.mxu0
        %v1764 = vadd.f32 0.0, %v1763
        %1765 = vdwg.mxu0
        %1766 = vmatpush.msra.mxu0 0.0
        %1767 = vmatpush.msra.mxu0 0.0
        %1768 = vmatpush.msra.mxu0 0.0
        %1769 = vmatpush.msra.mxu0 0.0
        %1770 = vmatpush.msra.mxu0 0.0
        %1771 = vmatpush.msra.mxu0 0.0
        %1772 = vmatpush.msra.mxu0 0.0
        %1773 = vmatpush.msra.mxu0 0.0
        %1774 = vmatpush.msra.mxu0 0.0
        %1775 = vmatpush.msra.mxu0 0.0
        %1776 = vmatpush.msra.mxu0 0.0
        %1777 = vmatpush.msra.mxu0 0.0
        %1778 = vmatpush.msra.mxu0 0.0
        %1779 = vmatpush.msra.mxu0 0.0
        %1780 = vmatpush.msra.mxu0 0.0
        %1781 = vmatpush.msra.mxu0 %v1628
        %1782 = vmatmul.f32.gmra.mxu0 %v1616
        %v1783 = vpop.f32.mrf.mxu0
        %v1784 = vadd.f32 0.0, %v1783
        %1785 = vdwg.mxu0
        %1786 = vmatpush.msra.mxu0 0.0
        %1787 = vmatpush.msra.mxu0 0.0
        %1788 = vmatpush.msra.mxu0 0.0
        %1789 = vmatpush.msra.mxu0 0.0
        %1790 = vmatpush.msra.mxu0 0.0
        %1791 = vmatpush.msra.mxu0 0.0
        %1792 = vmatpush.msra.mxu0 0.0
        %1793 = vmatpush.msra.mxu0 0.0
        %1794 = vmatpush.msra.mxu0 0.0
        %1795 = vmatpush.msra.mxu0 0.0
        %1796 = vmatpush.msra.mxu0 0.0
        %1797 = vmatpush.msra.mxu0 0.0
        %1798 = vmatpush.msra.mxu0 0.0
        %1799 = vmatpush.msra.mxu0 0.0
        %1800 = vmatpush.msra.mxu0 0.0
        %1801 = vmatpush.msra.mxu0 %v1630
        %1802 = vmatmul.f32.gmra.mxu0 %v1616
        %v1803 = vpop.f32.mrf.mxu0
        %v1804 = vadd.f32 0.0, %v1803
        %1805 = vdwg.mxu0
        %1806 = vmatpush.msra.mxu0 0.0
        %1807 = vmatpush.msra.mxu0 0.0
        %1808 = vmatpush.msra.mxu0 0.0
        %1809 = vmatpush.msra.mxu0 0.0
        %1810 = vmatpush.msra.mxu0 0.0
        %1811 = vmatpush.msra.mxu0 0.0
        %1812 = vmatpush.msra.mxu0 0.0
        %1813 = vmatpush.msra.mxu0 0.0
        %1814 = vmatpush.msra.mxu0 0.0
        %1815 = vmatpush.msra.mxu0 0.0
        %1816 = vmatpush.msra.mxu0 0.0
        %1817 = vmatpush.msra.mxu0 0.0
        %1818 = vmatpush.msra.mxu0 0.0
        %1819 = vmatpush.msra.mxu0 0.0
        %1820 = vmatpush.msra.mxu0 0.0
        %1821 = vmatpush.msra.mxu0 %v1632
        %1822 = vmatmul.f32.gmra.mxu0 %v1616
        %v1823 = vpop.f32.mrf.mxu0
        %v1824 = vadd.f32 0.0, %v1823
        %1825 = vdwg.mxu0
        %1826 = vmatpush.msra.mxu0 0.0
        %1827 = vmatpush.msra.mxu0 0.0
        %1828 = vmatpush.msra.mxu0 0.0
        %1829 = vmatpush.msra.mxu0 0.0
        %1830 = vmatpush.msra.mxu0 0.0
        %1831 = vmatpush.msra.mxu0 0.0
        %1832 = vmatpush.msra.mxu0 0.0
        %1833 = vmatpush.msra.mxu0 0.0
        %1834 = vmatpush.msra.mxu0 0.0
        %1835 = vmatpush.msra.mxu0 0.0
        %1836 = vmatpush.msra.mxu0 0.0
        %1837 = vmatpush.msra.mxu0 0.0
        %1838 = vmatpush.msra.mxu0 0.0
        %1839 = vmatpush.msra.mxu0 0.0
        %1840 = vmatpush.msra.mxu0 0.0
        %1841 = vmatpush.msra.mxu0 %v1634
        %1842 = vmatmul.f32.gmra.mxu0 %v1616
        %v1843 = vpop.f32.mrf.mxu0
        %v1844 = vadd.f32 0.0, %v1843
        %1845 = vdwg.mxu0
        %1846 = vmatpush.msra.mxu0 0.0
        %1847 = vmatpush.msra.mxu0 0.0
        %1848 = vmatpush.msra.mxu0 0.0
        %1849 = vmatpush.msra.mxu0 0.0
        %1850 = vmatpush.msra.mxu0 0.0
        %1851 = vmatpush.msra.mxu0 0.0
        %1852 = vmatpush.msra.mxu0 0.0
        %1853 = vmatpush.msra.mxu0 0.0
        %1854 = vmatpush.msra.mxu0 0.0
        %1855 = vmatpush.msra.mxu0 0.0
        %1856 = vmatpush.msra.mxu0 0.0
        %1857 = vmatpush.msra.mxu0 0.0
        %1858 = vmatpush.msra.mxu0 0.0
        %1859 = vmatpush.msra.mxu0 0.0
        %1860 = vmatpush.msra.mxu0 0.0
        %1861 = vmatpush.msra.mxu0 %v1636
        %1862 = vmatmul.f32.gmra.mxu0 %v1616
        %v1863 = vpop.f32.mrf.mxu0
        %v1864 = vadd.f32 0.0, %v1863
        %1865 = vdwg.mxu0
        %1866 = vmatpush.msra.mxu0 0.0
        %1867 = vmatpush.msra.mxu0 0.0
        %1868 = vmatpush.msra.mxu0 0.0
        %1869 = vmatpush.msra.mxu0 0.0
        %1870 = vmatpush.msra.mxu0 0.0
        %1871 = vmatpush.msra.mxu0 0.0
        %1872 = vmatpush.msra.mxu0 0.0
        %1873 = vmatpush.msra.mxu0 0.0
        %1874 = vmatpush.msra.mxu0 0.0
        %1875 = vmatpush.msra.mxu0 0.0
        %1876 = vmatpush.msra.mxu0 0.0
        %1877 = vmatpush.msra.mxu0 0.0
        %1878 = vmatpush.msra.mxu0 0.0
        %1879 = vmatpush.msra.mxu0 0.0
        %1880 = vmatpush.msra.mxu0 0.0
        %1881 = vmatpush.msra.mxu0 %v1638
        %1882 = vmatmul.f32.gmra.mxu0 %v1616
        %v1883 = vpop.f32.mrf.mxu0
        %v1884 = vadd.f32 0.0, %v1883
        %1885 = vdwg.mxu0
        %1886 = vmatpush.msra.mxu0 0.0
        %1887 = vmatpush.msra.mxu0 0.0
        %1888 = vmatpush.msra.mxu0 0.0
        %1889 = vmatpush.msra.mxu0 0.0
        %1890 = vmatpush.msra.mxu0 0.0
        %1891 = vmatpush.msra.mxu0 0.0
        %1892 = vmatpush.msra.mxu0 0.0
        %1893 = vmatpush.msra.mxu0 0.0
        %1894 = vmatpush.msra.mxu0 0.0
        %1895 = vmatpush.msra.mxu0 0.0
        %1896 = vmatpush.msra.mxu0 0.0
        %1897 = vmatpush.msra.mxu0 0.0
        %1898 = vmatpush.msra.mxu0 0.0
        %1899 = vmatpush.msra.mxu0 0.0
        %1900 = vmatpush.msra.mxu0 0.0
        %1901 = vmatpush.msra.mxu0 %v1640
        %1902 = vmatmul.f32.gmra.mxu0 %v1616
        %v1903 = vpop.f32.mrf.mxu0
        %v1904 = vadd.f32 0.0, %v1903
        %1905 = vdwg.mxu0
        %1906 = vmatpush.msra.mxu0 0.0
        %1907 = vmatpush.msra.mxu0 0.0
        %1908 = vmatpush.msra.mxu0 0.0
        %1909 = vmatpush.msra.mxu0 0.0
        %1910 = vmatpush.msra.mxu0 0.0
        %1911 = vmatpush.msra.mxu0 0.0
        %1912 = vmatpush.msra.mxu0 0.0
        %1913 = vmatpush.msra.mxu0 0.0
        %1914 = vmatpush.msra.mxu0 0.0
        %1915 = vmatpush.msra.mxu0 0.0
        %1916 = vmatpush.msra.mxu0 0.0
        %1917 = vmatpush.msra.mxu0 0.0
        %1918 = vmatpush.msra.mxu0 0.0
        %1919 = vmatpush.msra.mxu0 0.0
        %1920 = vmatpush.msra.mxu0 0.0
        %1921 = vmatpush.msra.mxu0 %v1642
        %1922 = vmatmul.f32.gmra.mxu0 %v1616
        %v1923 = vpop.f32.mrf.mxu0
        %v1924 = vadd.f32 0.0, %v1923
        %1925 = vdwg.mxu0
        %1926 = vmatpush.msra.mxu0 0.0
        %1927 = vmatpush.msra.mxu0 0.0
        %1928 = vmatpush.msra.mxu0 0.0
        %1929 = vmatpush.msra.mxu0 0.0
        %1930 = vmatpush.msra.mxu0 0.0
        %1931 = vmatpush.msra.mxu0 0.0
        %1932 = vmatpush.msra.mxu0 0.0
        %1933 = vmatpush.msra.mxu0 0.0
        %1934 = vmatpush.msra.mxu0 0.0
        %1935 = vmatpush.msra.mxu0 0.0
        %1936 = vmatpush.msra.mxu0 0.0
        %1937 = vmatpush.msra.mxu0 0.0
        %1938 = vmatpush.msra.mxu0 0.0
        %1939 = vmatpush.msra.mxu0 0.0
        %1940 = vmatpush.msra.mxu0 0.0
        %1941 = vmatpush.msra.mxu0 %v1644
        %1942 = vmatmul.f32.gmra.mxu0 %v1616
        %v1943 = vpop.f32.mrf.mxu0
        %v1944 = vadd.f32 0.0, %v1943
        %1945 = vdwg.mxu0
        %1946 = vmatpush.msra.mxu0 0.0
        %1947 = vmatpush.msra.mxu0 0.0
        %1948 = vmatpush.msra.mxu0 0.0
        %1949 = vmatpush.msra.mxu0 0.0
        %1950 = vmatpush.msra.mxu0 0.0
        %1951 = vmatpush.msra.mxu0 0.0
        %1952 = vmatpush.msra.mxu0 0.0
        %1953 = vmatpush.msra.mxu0 0.0
        %1954 = vmatpush.msra.mxu0 0.0
        %1955 = vmatpush.msra.mxu0 0.0
        %1956 = vmatpush.msra.mxu0 0.0
        %1957 = vmatpush.msra.mxu0 0.0
        %1958 = vmatpush.msra.mxu0 0.0
        %1959 = vmatpush.msra.mxu0 0.0
        %1960 = vmatpush.msra.mxu0 0.0
        %1961 = vmatpush.msra.mxu0 %v1646
        %1962 = vmatmul.f32.gmra.mxu0 %v1616
        %v1963 = vpop.f32.mrf.mxu0
        %v1964 = vadd.f32 0.0, %v1963
        %1965 = vdwg.mxu0
        %1966 = vmatpush.msra.mxu0 0.0
        %1967 = vmatpush.msra.mxu0 0.0
        %1968 = vmatpush.msra.mxu0 0.0
        %1969 = vmatpush.msra.mxu0 0.0
        %1970 = vmatpush.msra.mxu0 0.0
        %1971 = vmatpush.msra.mxu0 0.0
        %1972 = vmatpush.msra.mxu0 0.0
        %1973 = vmatpush.msra.mxu0 0.0
        %1974 = vmatpush.msra.mxu0 0.0
        %1975 = vmatpush.msra.mxu0 0.0
        %1976 = vmatpush.msra.mxu0 0.0
        %1977 = vmatpush.msra.mxu0 0.0
        %1978 = vmatpush.msra.mxu0 0.0
        %1979 = vmatpush.msra.mxu0 0.0
        %1980 = vmatpush.msra.mxu0 0.0
        %1981 = vmatpush.msra.mxu0 %v1648
        %1982 = vmatmul.f32.gmra.mxu0 %v1616
        %v1983 = vpop.f32.mrf.mxu0
        %v1984 = vadd.f32 0.0, %v1983
        %1985 = vdwg.mxu0
        %1986 = vmatpush.msra.mxu0 0.0
        %1987 = vmatpush.msra.mxu0 0.0
        %1988 = vmatpush.msra.mxu0 0.0
        %1989 = vmatpush.msra.mxu0 0.0
        %1990 = vmatpush.msra.mxu0 0.0
        %1991 = vmatpush.msra.mxu0 0.0
        %1992 = vmatpush.msra.mxu0 0.0
        %1993 = vmatpush.msra.mxu0 0.0
        %1994 = vmatpush.msra.mxu0 0.0
        %1995 = vmatpush.msra.mxu0 0.0
        %1996 = vmatpush.msra.mxu0 0.0
        %1997 = vmatpush.msra.mxu0 0.0
        %1998 = vmatpush.msra.mxu0 0.0
        %1999 = vmatpush.msra.mxu0 0.0
        %2000 = vmatpush.msra.mxu0 0.0
        %2001 = vmatpush.msra.mxu0 %v1650
        %2002 = vmatmul.f32.gmra.mxu0 %v1616
        %v2003 = vpop.f32.mrf.mxu0
        %v2004 = vadd.f32 0.0, %v2003
        %2005 = vdwg.mxu0
        %2006 = vmatpush.msra.mxu0 0.0
        %2007 = vmatpush.msra.mxu0 0.0
        %2008 = vmatpush.msra.mxu0 0.0
        %2009 = vmatpush.msra.mxu0 0.0
        %2010 = vmatpush.msra.mxu0 0.0
        %2011 = vmatpush.msra.mxu0 0.0
        %2012 = vmatpush.msra.mxu0 0.0
        %2013 = vmatpush.msra.mxu0 0.0
        %2014 = vmatpush.msra.mxu0 0.0
        %2015 = vmatpush.msra.mxu0 0.0
        %2016 = vmatpush.msra.mxu0 0.0
        %2017 = vmatpush.msra.mxu0 0.0
        %2018 = vmatpush.msra.mxu0 0.0
        %2019 = vmatpush.msra.mxu0 0.0
        %2020 = vmatpush.msra.mxu0 0.0
        %2021 = vmatpush.msra.mxu0 %v1652
        %2022 = vmatmul.f32.gmra.mxu0 %v1616
        %v2023 = vpop.f32.mrf.mxu0
        %v2024 = vadd.f32 0.0, %v2023
        %2025 = vdwg.mxu0
        %2026 = vmatpush.msra.mxu0 0.0
        %2027 = vmatpush.msra.mxu0 0.0
        %2028 = vmatpush.msra.mxu0 0.0
        %2029 = vmatpush.msra.mxu0 0.0
        %2030 = vmatpush.msra.mxu0 0.0
        %2031 = vmatpush.msra.mxu0 0.0
        %2032 = vmatpush.msra.mxu0 0.0
        %2033 = vmatpush.msra.mxu0 0.0
        %2034 = vmatpush.msra.mxu0 0.0
        %2035 = vmatpush.msra.mxu0 0.0
        %2036 = vmatpush.msra.mxu0 0.0
        %2037 = vmatpush.msra.mxu0 0.0
        %2038 = vmatpush.msra.mxu0 0.0
        %2039 = vmatpush.msra.mxu0 0.0
        %2040 = vmatpush.msra.mxu0 0.0
        %2041 = vmatpush.msra.mxu0 %v1654
        %2042 = vmatmul.f32.gmra.mxu0 %v1616
        %v2043 = vpop.f32.mrf.mxu0
        %v2044 = vadd.f32 0.0, %v2043
        %2045 = vdwg.mxu0
        %2046 = vmatpush.msra.mxu0 0.0
        %2047 = vmatpush.msra.mxu0 0.0
        %2048 = vmatpush.msra.mxu0 0.0
        %2049 = vmatpush.msra.mxu0 0.0
        %2050 = vmatpush.msra.mxu0 0.0
        %2051 = vmatpush.msra.mxu0 0.0
        %2052 = vmatpush.msra.mxu0 0.0
        %2053 = vmatpush.msra.mxu0 0.0
        %2054 = vmatpush.msra.mxu0 0.0
        %2055 = vmatpush.msra.mxu0 0.0
        %2056 = vmatpush.msra.mxu0 0.0
        %2057 = vmatpush.msra.mxu0 0.0
        %2058 = vmatpush.msra.mxu0 0.0
        %2059 = vmatpush.msra.mxu0 0.0
        %2060 = vmatpush.msra.mxu0 0.0
        %2061 = vmatpush.msra.mxu0 %v1656
        %2062 = vmatmul.f32.gmra.mxu0 %v1616
        %v2063 = vpop.f32.mrf.mxu0
        %v2064 = vadd.f32 0.0, %v2063
        %2065 = vdwg.mxu0
        %2066 = vmatpush.msra.mxu0 0.0
        %2067 = vmatpush.msra.mxu0 0.0
        %2068 = vmatpush.msra.mxu0 0.0
        %2069 = vmatpush.msra.mxu0 0.0
        %2070 = vmatpush.msra.mxu0 0.0
        %2071 = vmatpush.msra.mxu0 0.0
        %2072 = vmatpush.msra.mxu0 0.0
        %2073 = vmatpush.msra.mxu0 0.0
        %2074 = vmatpush.msra.mxu0 0.0
        %2075 = vmatpush.msra.mxu0 0.0
        %2076 = vmatpush.msra.mxu0 0.0
        %2077 = vmatpush.msra.mxu0 0.0
        %2078 = vmatpush.msra.mxu0 0.0
        %2079 = vmatpush.msra.mxu0 0.0
        %2080 = vmatpush.msra.mxu0 0.0
        %2081 = vmatpush.msra.mxu0 %v1658
        %2082 = vmatmul.f32.gmra.mxu0 %v1616
        %v2083 = vpop.f32.mrf.mxu0
        %v2084 = vadd.f32 0.0, %v2083
        %2085 = vdwg.mxu0
        %2086 = vmatpush.msra.mxu0 0.0
        %2087 = vmatpush.msra.mxu0 0.0
        %2088 = vmatpush.msra.mxu0 0.0
        %2089 = vmatpush.msra.mxu0 0.0
        %2090 = vmatpush.msra.mxu0 0.0
        %2091 = vmatpush.msra.mxu0 0.0
        %2092 = vmatpush.msra.mxu0 0.0
        %2093 = vmatpush.msra.mxu0 0.0
        %2094 = vmatpush.msra.mxu0 0.0
        %2095 = vmatpush.msra.mxu0 0.0
        %2096 = vmatpush.msra.mxu0 0.0
        %2097 = vmatpush.msra.mxu0 0.0
        %2098 = vmatpush.msra.mxu0 0.0
        %2099 = vmatpush.msra.mxu0 0.0
        %2100 = vmatpush.msra.mxu0 0.0
        %2101 = vmatpush.msra.mxu0 %v1660
        %2102 = vmatmul.f32.gmra.mxu0 %v1616
        %v2103 = vpop.f32.mrf.mxu0
        %v2104 = vadd.f32 0.0, %v2103
        %2105 = vdwg.mxu0
        %2106 = vmatpush.msra.mxu0 0.0
        %2107 = vmatpush.msra.mxu0 0.0
        %2108 = vmatpush.msra.mxu0 0.0
        %2109 = vmatpush.msra.mxu0 0.0
        %2110 = vmatpush.msra.mxu0 0.0
        %2111 = vmatpush.msra.mxu0 0.0
        %2112 = vmatpush.msra.mxu0 0.0
        %2113 = vmatpush.msra.mxu0 0.0
        %2114 = vmatpush.msra.mxu0 0.0
        %2115 = vmatpush.msra.mxu0 0.0
        %2116 = vmatpush.msra.mxu0 0.0
        %2117 = vmatpush.msra.mxu0 0.0
        %2118 = vmatpush.msra.mxu0 0.0
        %2119 = vmatpush.msra.mxu0 0.0
        %2120 = vmatpush.msra.mxu0 0.0
        %2121 = vmatpush.msra.mxu0 %v1662
        %2122 = vmatmul.f32.gmra.mxu0 %v1616
        %v2123 = vpop.f32.mrf.mxu0
        %v2124 = vadd.f32 0.0, %v2123
        %2125 = vdwg.mxu0
        %2126 = vmatpush.msra.mxu0 0.0
        %2127 = vmatpush.msra.mxu0 0.0
        %2128 = vmatpush.msra.mxu0 0.0
        %2129 = vmatpush.msra.mxu0 0.0
        %2130 = vmatpush.msra.mxu0 0.0
        %2131 = vmatpush.msra.mxu0 0.0
        %2132 = vmatpush.msra.mxu0 0.0
        %2133 = vmatpush.msra.mxu0 0.0
        %2134 = vmatpush.msra.mxu0 0.0
        %2135 = vmatpush.msra.mxu0 0.0
        %2136 = vmatpush.msra.mxu0 0.0
        %2137 = vmatpush.msra.mxu0 0.0
        %2138 = vmatpush.msra.mxu0 0.0
        %2139 = vmatpush.msra.mxu0 0.0
        %2140 = vmatpush.msra.mxu0 0.0
        %2141 = vmatpush.msra.mxu0 %v1664
        %2142 = vmatmul.f32.gmra.mxu0 %v1616
        %v2143 = vpop.f32.mrf.mxu0
        %v2144 = vadd.f32 0.0, %v2143
        %2145 = vdwg.mxu0
        %v2146 = vadd.f32 %v1100, %v1684
        %v2147 = vadd.f32 %v1120, %v1704
        %v2148 = vadd.f32 %v1140, %v1724
        %v2149 = vadd.f32 %v1160, %v1744
        %v2150 = vadd.f32 %v1180, %v1764
        %v2151 = vadd.f32 %v1200, %v1784
        %v2152 = vadd.f32 %v1220, %v1804
        %v2153 = vadd.f32 %v1240, %v1824
        %v2154 = vadd.f32 %v1260, %v1844
        %v2155 = vadd.f32 %v1280, %v1864
        %v2156 = vadd.f32 %v1300, %v1884
        %v2157 = vadd.f32 %v1320, %v1904
        %v2158 = vadd.f32 %v1340, %v1924
        %v2159 = vadd.f32 %v1360, %v1944
        %v2160 = vadd.f32 %v1380, %v1964
        %v2161 = vadd.f32 %v1400, %v1984
        %v2162 = vadd.f32 %v1420, %v2004
        %v2163 = vadd.f32 %v1440, %v2024
        %v2164 = vadd.f32 %v1460, %v2044
        %v2165 = vadd.f32 %v1480, %v2064
        %v2166 = vadd.f32 %v1500, %v2084
        %v2167 = vadd.f32 %v1520, %v2104
        %v2168 = vadd.f32 %v1540, %v2124
        %v2169 = vadd.f32 %v1560, %v2144
        %2170 = vst [vmem:[#allocation1] ss:$2 sm:$0xff] %v352
        %s2171 = scalar_lea.vmem [#allocation1], 16
        %2172 = vst [vmem:[%s2171] ss:$2 sm:$0xff] %v353
        %s2173 = scalar_lea.vmem [#allocation1], 32
        %2174 = vst [vmem:[%s2173] ss:$2 sm:$0xff] %v354
        %s2175 = scalar_lea.vmem [#allocation1], 48
        %2176 = vst [vmem:[%s2175] ss:$2 sm:$0xff] %v355
        %v2177 = vld.sshfl [vmem:[#allocation1] sm:$0xff pattern:$0x75316420]
        %v2178 = vld.sshfl [vmem:[#allocation1 + $0x8] sm:$0xff pattern:$0x75316420]
        %v2179 = vld.sshfl [vmem:[#allocation1 + $0x10] sm:$0xff pattern:$0x75316420]
        %v2180 = vld.sshfl [vmem:[#allocation1 + $0x18] sm:$0xff pattern:$0x75316420]
        %v2181 = vld.sshfl [vmem:[#allocation1 + $0x20] sm:$0xff pattern:$0x75316420]
        %v2182 = vld.sshfl [vmem:[#allocation1 + $0x28] sm:$0xff pattern:$0x75316420]
        %v2183 = vld.sshfl [vmem:[#allocation1 + $0x30] sm:$0xff pattern:$0x75316420]
        %v2184 = vld.sshfl [vmem:[#allocation1 + $0x38] sm:$0xff pattern:$0x75316420]
        %2185 = vst [vmem:[#allocation1] ss:$2 sm:$0xff] %v356
        %2186 = vst [vmem:[%s2171] ss:$2 sm:$0xff] %v357
        %2187 = vst [vmem:[%s2173] ss:$2 sm:$0xff] %v358
        %2188 = vst [vmem:[%s2175] ss:$2 sm:$0xff] %v359
        %v2189 = vld.sshfl [vmem:[#allocation1] sm:$0xff pattern:$0x75316420]
        %v2190 = vld.sshfl [vmem:[#allocation1 + $0x8] sm:$0xff pattern:$0x75316420]
        %v2191 = vld.sshfl [vmem:[#allocation1 + $0x10] sm:$0xff pattern:$0x75316420]
        %v2192 = vld.sshfl [vmem:[#allocation1 + $0x18] sm:$0xff pattern:$0x75316420]
        %v2193 = vld.sshfl [vmem:[#allocation1 + $0x20] sm:$0xff pattern:$0x75316420]
        %v2194 = vld.sshfl [vmem:[#allocation1 + $0x28] sm:$0xff pattern:$0x75316420]
        %v2195 = vld.sshfl [vmem:[#allocation1 + $0x30] sm:$0xff pattern:$0x75316420]
        %v2196 = vld.sshfl [vmem:[#allocation1 + $0x38] sm:$0xff pattern:$0x75316420]
        %2197 = vst [vmem:[#allocation1] ss:$2 sm:$0xff] %v360
        %2198 = vst [vmem:[%s2171] ss:$2 sm:$0xff] %v361
        %2199 = vst [vmem:[%s2173] ss:$2 sm:$0xff] %v362
        %2200 = vst [vmem:[%s2175] ss:$2 sm:$0xff] %v363
        %v2201 = vld.sshfl [vmem:[#allocation1] sm:$0xff pattern:$0x75316420]
        %v2202 = vld.sshfl [vmem:[#allocation1 + $0x8] sm:$0xff pattern:$0x75316420]
        %v2203 = vld.sshfl [vmem:[#allocation1 + $0x10] sm:$0xff pattern:$0x75316420]
        %v2204 = vld.sshfl [vmem:[#allocation1 + $0x18] sm:$0xff pattern:$0x75316420]
        %v2205 = vld.sshfl [vmem:[#allocation1 + $0x20] sm:$0xff pattern:$0x75316420]
        %v2206 = vld.sshfl [vmem:[#allocation1 + $0x28] sm:$0xff pattern:$0x75316420]
        %v2207 = vld.sshfl [vmem:[#allocation1 + $0x30] sm:$0xff pattern:$0x75316420]
        %v2208 = vld.sshfl [vmem:[#allocation1 + $0x38] sm:$0xff pattern:$0x75316420]
        %v2209 = vsel %vm451, %v2177, 0
        %v2211 = vsel %vm451, %v2178, 0
        %v2213 = vsel %vm451, %v2179, 0
        %v2215 = vsel %vm451, %v2180, 0
        %v2217 = vsel %vm451, %v2181, 0
        %v2219 = vsel %vm451, %v2182, 0
        %v2221 = vsel %vm451, %v2183, 0
        %v2223 = vsel %vm451, %v2184, 0
        %v2225 = vsel %vm451, %v2189, 0
        %v2227 = vsel %vm451, %v2190, 0
        %v2229 = vsel %vm451, %v2191, 0
        %v2231 = vsel %vm451, %v2192, 0
        %v2233 = vsel %vm451, %v2193, 0
        %v2235 = vsel %vm451, %v2194, 0
        %v2237 = vsel %vm451, %v2195, 0
        %v2239 = vsel %vm451, %v2196, 0
        %v2241 = vsel %vm451, %v2201, 0
        %v2243 = vsel %vm451, %v2202, 0
        %v2245 = vsel %vm451, %v2203, 0
        %v2247 = vsel %vm451, %v2204, 0
        %v2249 = vsel %vm451, %v2205, 0
        %v2251 = vsel %vm451, %v2206, 0
        %v2253 = vsel %vm451, %v2207, 0
        %v2255 = vsel %vm451, %v2208, 0
        %2257 = vmatpush.msra.mxu0 0.0
        %2258 = vmatpush.msra.mxu0 0.0
        %2259 = vmatpush.msra.mxu0 0.0
        %2260 = vmatpush.msra.mxu0 0.0
        %2261 = vmatpush.msra.mxu0 0.0
        %2262 = vmatpush.msra.mxu0 0.0
        %2263 = vmatpush.msra.mxu0 0.0
        %2264 = vmatpush.msra.mxu0 0.0
        %2265 = vmatpush.msra.mxu0 0.0
        %2266 = vmatpush.msra.mxu0 0.0
        %2267 = vmatpush.msra.mxu0 0.0
        %2268 = vmatpush.msra.mxu0 0.0
        %2269 = vmatpush.msra.mxu0 0.0
        %2270 = vmatpush.msra.mxu0 0.0
        %2271 = vmatpush.msra.mxu0 0.0
        %2272 = vmatpush.msra.mxu0 %v2209
        %2273 = vmatmul.f32.gmra.mxu0 %v449
        %v2274 = vpop.f32.mrf.mxu0
        %v2275 = vadd.f32 0.0, %v2274
        %2276 = vdwg.mxu0
        %2277 = vmatpush.msra.mxu0 0.0
        %2278 = vmatpush.msra.mxu0 0.0
        %2279 = vmatpush.msra.mxu0 0.0
        %2280 = vmatpush.msra.mxu0 0.0
        %2281 = vmatpush.msra.mxu0 0.0
        %2282 = vmatpush.msra.mxu0 0.0
        %2283 = vmatpush.msra.mxu0 0.0
        %2284 = vmatpush.msra.mxu0 0.0
        %2285 = vmatpush.msra.mxu0 0.0
        %2286 = vmatpush.msra.mxu0 0.0
        %2287 = vmatpush.msra.mxu0 0.0
        %2288 = vmatpush.msra.mxu0 0.0
        %2289 = vmatpush.msra.mxu0 0.0
        %2290 = vmatpush.msra.mxu0 0.0
        %2291 = vmatpush.msra.mxu0 0.0
        %2292 = vmatpush.msra.mxu0 %v2211
        %2293 = vmatmul.f32.gmra.mxu0 %v449
        %v2294 = vpop.f32.mrf.mxu0
        %v2295 = vadd.f32 0.0, %v2294
        %2296 = vdwg.mxu0
        %2297 = vmatpush.msra.mxu0 0.0
        %2298 = vmatpush.msra.mxu0 0.0
        %2299 = vmatpush.msra.mxu0 0.0
        %2300 = vmatpush.msra.mxu0 0.0
        %2301 = vmatpush.msra.mxu0 0.0
        %2302 = vmatpush.msra.mxu0 0.0
        %2303 = vmatpush.msra.mxu0 0.0
        %2304 = vmatpush.msra.mxu0 0.0
        %2305 = vmatpush.msra.mxu0 0.0
        %2306 = vmatpush.msra.mxu0 0.0
        %2307 = vmatpush.msra.mxu0 0.0
        %2308 = vmatpush.msra.mxu0 0.0
        %2309 = vmatpush.msra.mxu0 0.0
        %2310 = vmatpush.msra.mxu0 0.0
        %2311 = vmatpush.msra.mxu0 0.0
        %2312 = vmatpush.msra.mxu0 %v2213
        %2313 = vmatmul.f32.gmra.mxu0 %v449
        %v2314 = vpop.f32.mrf.mxu0
        %v2315 = vadd.f32 0.0, %v2314
        %2316 = vdwg.mxu0
        %2317 = vmatpush.msra.mxu0 0.0
        %2318 = vmatpush.msra.mxu0 0.0
        %2319 = vmatpush.msra.mxu0 0.0
        %2320 = vmatpush.msra.mxu0 0.0
        %2321 = vmatpush.msra.mxu0 0.0
        %2322 = vmatpush.msra.mxu0 0.0
        %2323 = vmatpush.msra.mxu0 0.0
        %2324 = vmatpush.msra.mxu0 0.0
        %2325 = vmatpush.msra.mxu0 0.0
        %2326 = vmatpush.msra.mxu0 0.0
        %2327 = vmatpush.msra.mxu0 0.0
        %2328 = vmatpush.msra.mxu0 0.0
        %2329 = vmatpush.msra.mxu0 0.0
        %2330 = vmatpush.msra.mxu0 0.0
        %2331 = vmatpush.msra.mxu0 0.0
        %2332 = vmatpush.msra.mxu0 %v2215
        %2333 = vmatmul.f32.gmra.mxu0 %v449
        %v2334 = vpop.f32.mrf.mxu0
        %v2335 = vadd.f32 0.0, %v2334
        %2336 = vdwg.mxu0
        %2337 = vmatpush.msra.mxu0 0.0
        %2338 = vmatpush.msra.mxu0 0.0
        %2339 = vmatpush.msra.mxu0 0.0
        %2340 = vmatpush.msra.mxu0 0.0
        %2341 = vmatpush.msra.mxu0 0.0
        %2342 = vmatpush.msra.mxu0 0.0
        %2343 = vmatpush.msra.mxu0 0.0
        %2344 = vmatpush.msra.mxu0 0.0
        %2345 = vmatpush.msra.mxu0 0.0
        %2346 = vmatpush.msra.mxu0 0.0
        %2347 = vmatpush.msra.mxu0 0.0
        %2348 = vmatpush.msra.mxu0 0.0
        %2349 = vmatpush.msra.mxu0 0.0
        %2350 = vmatpush.msra.mxu0 0.0
        %2351 = vmatpush.msra.mxu0 0.0
        %2352 = vmatpush.msra.mxu0 %v2217
        %2353 = vmatmul.f32.gmra.mxu0 %v449
        %v2354 = vpop.f32.mrf.mxu0
        %v2355 = vadd.f32 0.0, %v2354
        %2356 = vdwg.mxu0
        %2357 = vmatpush.msra.mxu0 0.0
        %2358 = vmatpush.msra.mxu0 0.0
        %2359 = vmatpush.msra.mxu0 0.0
        %2360 = vmatpush.msra.mxu0 0.0
        %2361 = vmatpush.msra.mxu0 0.0
        %2362 = vmatpush.msra.mxu0 0.0
        %2363 = vmatpush.msra.mxu0 0.0
        %2364 = vmatpush.msra.mxu0 0.0
        %2365 = vmatpush.msra.mxu0 0.0
        %2366 = vmatpush.msra.mxu0 0.0
        %2367 = vmatpush.msra.mxu0 0.0
        %2368 = vmatpush.msra.mxu0 0.0
        %2369 = vmatpush.msra.mxu0 0.0
        %2370 = vmatpush.msra.mxu0 0.0
        %2371 = vmatpush.msra.mxu0 0.0
        %2372 = vmatpush.msra.mxu0 %v2219
        %2373 = vmatmul.f32.gmra.mxu0 %v449
        %v2374 = vpop.f32.mrf.mxu0
        %v2375 = vadd.f32 0.0, %v2374
        %2376 = vdwg.mxu0
        %2377 = vmatpush.msra.mxu0 0.0
        %2378 = vmatpush.msra.mxu0 0.0
        %2379 = vmatpush.msra.mxu0 0.0
        %2380 = vmatpush.msra.mxu0 0.0
        %2381 = vmatpush.msra.mxu0 0.0
        %2382 = vmatpush.msra.mxu0 0.0
        %2383 = vmatpush.msra.mxu0 0.0
        %2384 = vmatpush.msra.mxu0 0.0
        %2385 = vmatpush.msra.mxu0 0.0
        %2386 = vmatpush.msra.mxu0 0.0
        %2387 = vmatpush.msra.mxu0 0.0
        %2388 = vmatpush.msra.mxu0 0.0
        %2389 = vmatpush.msra.mxu0 0.0
        %2390 = vmatpush.msra.mxu0 0.0
        %2391 = vmatpush.msra.mxu0 0.0
        %2392 = vmatpush.msra.mxu0 %v2221
        %2393 = vmatmul.f32.gmra.mxu0 %v449
        %v2394 = vpop.f32.mrf.mxu0
        %v2395 = vadd.f32 0.0, %v2394
        %2396 = vdwg.mxu0
        %2397 = vmatpush.msra.mxu0 0.0
        %2398 = vmatpush.msra.mxu0 0.0
        %2399 = vmatpush.msra.mxu0 0.0
        %2400 = vmatpush.msra.mxu0 0.0
        %2401 = vmatpush.msra.mxu0 0.0
        %2402 = vmatpush.msra.mxu0 0.0
        %2403 = vmatpush.msra.mxu0 0.0
        %2404 = vmatpush.msra.mxu0 0.0
        %2405 = vmatpush.msra.mxu0 0.0
        %2406 = vmatpush.msra.mxu0 0.0
        %2407 = vmatpush.msra.mxu0 0.0
        %2408 = vmatpush.msra.mxu0 0.0
        %2409 = vmatpush.msra.mxu0 0.0
        %2410 = vmatpush.msra.mxu0 0.0
        %2411 = vmatpush.msra.mxu0 0.0
        %2412 = vmatpush.msra.mxu0 %v2223
        %2413 = vmatmul.f32.gmra.mxu0 %v449
        %v2414 = vpop.f32.mrf.mxu0
        %v2415 = vadd.f32 0.0, %v2414
        %2416 = vdwg.mxu0
        %2417 = vmatpush.msra.mxu0 0.0
        %2418 = vmatpush.msra.mxu0 0.0
        %2419 = vmatpush.msra.mxu0 0.0
        %2420 = vmatpush.msra.mxu0 0.0
        %2421 = vmatpush.msra.mxu0 0.0
        %2422 = vmatpush.msra.mxu0 0.0
        %2423 = vmatpush.msra.mxu0 0.0
        %2424 = vmatpush.msra.mxu0 0.0
        %2425 = vmatpush.msra.mxu0 0.0
        %2426 = vmatpush.msra.mxu0 0.0
        %2427 = vmatpush.msra.mxu0 0.0
        %2428 = vmatpush.msra.mxu0 0.0
        %2429 = vmatpush.msra.mxu0 0.0
        %2430 = vmatpush.msra.mxu0 0.0
        %2431 = vmatpush.msra.mxu0 0.0
        %2432 = vmatpush.msra.mxu0 %v2225
        %2433 = vmatmul.f32.gmra.mxu0 %v449
        %v2434 = vpop.f32.mrf.mxu0
        %v2435 = vadd.f32 0.0, %v2434
        %2436 = vdwg.mxu0
        %2437 = vmatpush.msra.mxu0 0.0
        %2438 = vmatpush.msra.mxu0 0.0
        %2439 = vmatpush.msra.mxu0 0.0
        %2440 = vmatpush.msra.mxu0 0.0
        %2441 = vmatpush.msra.mxu0 0.0
        %2442 = vmatpush.msra.mxu0 0.0
        %2443 = vmatpush.msra.mxu0 0.0
        %2444 = vmatpush.msra.mxu0 0.0
        %2445 = vmatpush.msra.mxu0 0.0
        %2446 = vmatpush.msra.mxu0 0.0
        %2447 = vmatpush.msra.mxu0 0.0
        %2448 = vmatpush.msra.mxu0 0.0
        %2449 = vmatpush.msra.mxu0 0.0
        %2450 = vmatpush.msra.mxu0 0.0
        %2451 = vmatpush.msra.mxu0 0.0
        %2452 = vmatpush.msra.mxu0 %v2227
        %2453 = vmatmul.f32.gmra.mxu0 %v449
        %v2454 = vpop.f32.mrf.mxu0
        %v2455 = vadd.f32 0.0, %v2454
        %2456 = vdwg.mxu0
        %2457 = vmatpush.msra.mxu0 0.0
        %2458 = vmatpush.msra.mxu0 0.0
        %2459 = vmatpush.msra.mxu0 0.0
        %2460 = vmatpush.msra.mxu0 0.0
        %2461 = vmatpush.msra.mxu0 0.0
        %2462 = vmatpush.msra.mxu0 0.0
        %2463 = vmatpush.msra.mxu0 0.0
        %2464 = vmatpush.msra.mxu0 0.0
        %2465 = vmatpush.msra.mxu0 0.0
        %2466 = vmatpush.msra.mxu0 0.0
        %2467 = vmatpush.msra.mxu0 0.0
        %2468 = vmatpush.msra.mxu0 0.0
        %2469 = vmatpush.msra.mxu0 0.0
        %2470 = vmatpush.msra.mxu0 0.0
        %2471 = vmatpush.msra.mxu0 0.0
        %2472 = vmatpush.msra.mxu0 %v2229
        %2473 = vmatmul.f32.gmra.mxu0 %v449
        %v2474 = vpop.f32.mrf.mxu0
        %v2475 = vadd.f32 0.0, %v2474
        %2476 = vdwg.mxu0
        %2477 = vmatpush.msra.mxu0 0.0
        %2478 = vmatpush.msra.mxu0 0.0
        %2479 = vmatpush.msra.mxu0 0.0
        %2480 = vmatpush.msra.mxu0 0.0
        %2481 = vmatpush.msra.mxu0 0.0
        %2482 = vmatpush.msra.mxu0 0.0
        %2483 = vmatpush.msra.mxu0 0.0
        %2484 = vmatpush.msra.mxu0 0.0
        %2485 = vmatpush.msra.mxu0 0.0
        %2486 = vmatpush.msra.mxu0 0.0
        %2487 = vmatpush.msra.mxu0 0.0
        %2488 = vmatpush.msra.mxu0 0.0
        %2489 = vmatpush.msra.mxu0 0.0
        %2490 = vmatpush.msra.mxu0 0.0
        %2491 = vmatpush.msra.mxu0 0.0
        %2492 = vmatpush.msra.mxu0 %v2231
        %2493 = vmatmul.f32.gmra.mxu0 %v449
        %v2494 = vpop.f32.mrf.mxu0
        %v2495 = vadd.f32 0.0, %v2494
        %2496 = vdwg.mxu0
        %2497 = vmatpush.msra.mxu0 0.0
        %2498 = vmatpush.msra.mxu0 0.0
        %2499 = vmatpush.msra.mxu0 0.0
        %2500 = vmatpush.msra.mxu0 0.0
        %2501 = vmatpush.msra.mxu0 0.0
        %2502 = vmatpush.msra.mxu0 0.0
        %2503 = vmatpush.msra.mxu0 0.0
        %2504 = vmatpush.msra.mxu0 0.0
        %2505 = vmatpush.msra.mxu0 0.0
        %2506 = vmatpush.msra.mxu0 0.0
        %2507 = vmatpush.msra.mxu0 0.0
        %2508 = vmatpush.msra.mxu0 0.0
        %2509 = vmatpush.msra.mxu0 0.0
        %2510 = vmatpush.msra.mxu0 0.0
        %2511 = vmatpush.msra.mxu0 0.0
        %2512 = vmatpush.msra.mxu0 %v2233
        %2513 = vmatmul.f32.gmra.mxu0 %v449
        %v2514 = vpop.f32.mrf.mxu0
        %v2515 = vadd.f32 0.0, %v2514
        %2516 = vdwg.mxu0
        %2517 = vmatpush.msra.mxu0 0.0
        %2518 = vmatpush.msra.mxu0 0.0
        %2519 = vmatpush.msra.mxu0 0.0
        %2520 = vmatpush.msra.mxu0 0.0
        %2521 = vmatpush.msra.mxu0 0.0
        %2522 = vmatpush.msra.mxu0 0.0
        %2523 = vmatpush.msra.mxu0 0.0
        %2524 = vmatpush.msra.mxu0 0.0
        %2525 = vmatpush.msra.mxu0 0.0
        %2526 = vmatpush.msra.mxu0 0.0
        %2527 = vmatpush.msra.mxu0 0.0
        %2528 = vmatpush.msra.mxu0 0.0
        %2529 = vmatpush.msra.mxu0 0.0
        %2530 = vmatpush.msra.mxu0 0.0
        %2531 = vmatpush.msra.mxu0 0.0
        %2532 = vmatpush.msra.mxu0 %v2235
        %2533 = vmatmul.f32.gmra.mxu0 %v449
        %v2534 = vpop.f32.mrf.mxu0
        %v2535 = vadd.f32 0.0, %v2534
        %2536 = vdwg.mxu0
        %2537 = vmatpush.msra.mxu0 0.0
        %2538 = vmatpush.msra.mxu0 0.0
        %2539 = vmatpush.msra.mxu0 0.0
        %2540 = vmatpush.msra.mxu0 0.0
        %2541 = vmatpush.msra.mxu0 0.0
        %2542 = vmatpush.msra.mxu0 0.0
        %2543 = vmatpush.msra.mxu0 0.0
        %2544 = vmatpush.msra.mxu0 0.0
        %2545 = vmatpush.msra.mxu0 0.0
        %2546 = vmatpush.msra.mxu0 0.0
        %2547 = vmatpush.msra.mxu0 0.0
        %2548 = vmatpush.msra.mxu0 0.0
        %2549 = vmatpush.msra.mxu0 0.0
        %2550 = vmatpush.msra.mxu0 0.0
        %2551 = vmatpush.msra.mxu0 0.0
        %2552 = vmatpush.msra.mxu0 %v2237
        %2553 = vmatmul.f32.gmra.mxu0 %v449
        %v2554 = vpop.f32.mrf.mxu0
        %v2555 = vadd.f32 0.0, %v2554
        %2556 = vdwg.mxu0
        %2557 = vmatpush.msra.mxu0 0.0
        %2558 = vmatpush.msra.mxu0 0.0
        %2559 = vmatpush.msra.mxu0 0.0
        %2560 = vmatpush.msra.mxu0 0.0
        %2561 = vmatpush.msra.mxu0 0.0
        %2562 = vmatpush.msra.mxu0 0.0
        %2563 = vmatpush.msra.mxu0 0.0
        %2564 = vmatpush.msra.mxu0 0.0
        %2565 = vmatpush.msra.mxu0 0.0
        %2566 = vmatpush.msra.mxu0 0.0
        %2567 = vmatpush.msra.mxu0 0.0
        %2568 = vmatpush.msra.mxu0 0.0
        %2569 = vmatpush.msra.mxu0 0.0
        %2570 = vmatpush.msra.mxu0 0.0
        %2571 = vmatpush.msra.mxu0 0.0
        %2572 = vmatpush.msra.mxu0 %v2239
        %2573 = vmatmul.f32.gmra.mxu0 %v449
        %v2574 = vpop.f32.mrf.mxu0
        %v2575 = vadd.f32 0.0, %v2574
        %2576 = vdwg.mxu0
        %2577 = vmatpush.msra.mxu0 0.0
        %2578 = vmatpush.msra.mxu0 0.0
        %2579 = vmatpush.msra.mxu0 0.0
        %2580 = vmatpush.msra.mxu0 0.0
        %2581 = vmatpush.msra.mxu0 0.0
        %2582 = vmatpush.msra.mxu0 0.0
        %2583 = vmatpush.msra.mxu0 0.0
        %2584 = vmatpush.msra.mxu0 0.0
        %2585 = vmatpush.msra.mxu0 0.0
        %2586 = vmatpush.msra.mxu0 0.0
        %2587 = vmatpush.msra.mxu0 0.0
        %2588 = vmatpush.msra.mxu0 0.0
        %2589 = vmatpush.msra.mxu0 0.0
        %2590 = vmatpush.msra.mxu0 0.0
        %2591 = vmatpush.msra.mxu0 0.0
        %2592 = vmatpush.msra.mxu0 %v2241
        %2593 = vmatmul.f32.gmra.mxu0 %v449
        %v2594 = vpop.f32.mrf.mxu0
        %v2595 = vadd.f32 0.0, %v2594
        %2596 = vdwg.mxu0
        %2597 = vmatpush.msra.mxu0 0.0
        %2598 = vmatpush.msra.mxu0 0.0
        %2599 = vmatpush.msra.mxu0 0.0
        %2600 = vmatpush.msra.mxu0 0.0
        %2601 = vmatpush.msra.mxu0 0.0
        %2602 = vmatpush.msra.mxu0 0.0
        %2603 = vmatpush.msra.mxu0 0.0
        %2604 = vmatpush.msra.mxu0 0.0
        %2605 = vmatpush.msra.mxu0 0.0
        %2606 = vmatpush.msra.mxu0 0.0
        %2607 = vmatpush.msra.mxu0 0.0
        %2608 = vmatpush.msra.mxu0 0.0
        %2609 = vmatpush.msra.mxu0 0.0
        %2610 = vmatpush.msra.mxu0 0.0
        %2611 = vmatpush.msra.mxu0 0.0
        %2612 = vmatpush.msra.mxu0 %v2243
        %2613 = vmatmul.f32.gmra.mxu0 %v449
        %v2614 = vpop.f32.mrf.mxu0
        %v2615 = vadd.f32 0.0, %v2614
        %2616 = vdwg.mxu0
        %2617 = vmatpush.msra.mxu0 0.0
        %2618 = vmatpush.msra.mxu0 0.0
        %2619 = vmatpush.msra.mxu0 0.0
        %2620 = vmatpush.msra.mxu0 0.0
        %2621 = vmatpush.msra.mxu0 0.0
        %2622 = vmatpush.msra.mxu0 0.0
        %2623 = vmatpush.msra.mxu0 0.0
        %2624 = vmatpush.msra.mxu0 0.0
        %2625 = vmatpush.msra.mxu0 0.0
        %2626 = vmatpush.msra.mxu0 0.0
        %2627 = vmatpush.msra.mxu0 0.0
        %2628 = vmatpush.msra.mxu0 0.0
        %2629 = vmatpush.msra.mxu0 0.0
        %2630 = vmatpush.msra.mxu0 0.0
        %2631 = vmatpush.msra.mxu0 0.0
        %2632 = vmatpush.msra.mxu0 %v2245
        %2633 = vmatmul.f32.gmra.mxu0 %v449
        %v2634 = vpop.f32.mrf.mxu0
        %v2635 = vadd.f32 0.0, %v2634
        %2636 = vdwg.mxu0
        %2637 = vmatpush.msra.mxu0 0.0
        %2638 = vmatpush.msra.mxu0 0.0
        %2639 = vmatpush.msra.mxu0 0.0
        %2640 = vmatpush.msra.mxu0 0.0
        %2641 = vmatpush.msra.mxu0 0.0
        %2642 = vmatpush.msra.mxu0 0.0
        %2643 = vmatpush.msra.mxu0 0.0
        %2644 = vmatpush.msra.mxu0 0.0
        %2645 = vmatpush.msra.mxu0 0.0
        %2646 = vmatpush.msra.mxu0 0.0
        %2647 = vmatpush.msra.mxu0 0.0
        %2648 = vmatpush.msra.mxu0 0.0
        %2649 = vmatpush.msra.mxu0 0.0
        %2650 = vmatpush.msra.mxu0 0.0
        %2651 = vmatpush.msra.mxu0 0.0
        %2652 = vmatpush.msra.mxu0 %v2247
        %2653 = vmatmul.f32.gmra.mxu0 %v449
        %v2654 = vpop.f32.mrf.mxu0
        %v2655 = vadd.f32 0.0, %v2654
        %2656 = vdwg.mxu0
        %2657 = vmatpush.msra.mxu0 0.0
        %2658 = vmatpush.msra.mxu0 0.0
        %2659 = vmatpush.msra.mxu0 0.0
        %2660 = vmatpush.msra.mxu0 0.0
        %2661 = vmatpush.msra.mxu0 0.0
        %2662 = vmatpush.msra.mxu0 0.0
        %2663 = vmatpush.msra.mxu0 0.0
        %2664 = vmatpush.msra.mxu0 0.0
        %2665 = vmatpush.msra.mxu0 0.0
        %2666 = vmatpush.msra.mxu0 0.0
        %2667 = vmatpush.msra.mxu0 0.0
        %2668 = vmatpush.msra.mxu0 0.0
        %2669 = vmatpush.msra.mxu0 0.0
        %2670 = vmatpush.msra.mxu0 0.0
        %2671 = vmatpush.msra.mxu0 0.0
        %2672 = vmatpush.msra.mxu0 %v2249
        %2673 = vmatmul.f32.gmra.mxu0 %v449
        %v2674 = vpop.f32.mrf.mxu0
        %v2675 = vadd.f32 0.0, %v2674
        %2676 = vdwg.mxu0
        %2677 = vmatpush.msra.mxu0 0.0
        %2678 = vmatpush.msra.mxu0 0.0
        %2679 = vmatpush.msra.mxu0 0.0
        %2680 = vmatpush.msra.mxu0 0.0
        %2681 = vmatpush.msra.mxu0 0.0
        %2682 = vmatpush.msra.mxu0 0.0
        %2683 = vmatpush.msra.mxu0 0.0
        %2684 = vmatpush.msra.mxu0 0.0
        %2685 = vmatpush.msra.mxu0 0.0
        %2686 = vmatpush.msra.mxu0 0.0
        %2687 = vmatpush.msra.mxu0 0.0
        %2688 = vmatpush.msra.mxu0 0.0
        %2689 = vmatpush.msra.mxu0 0.0
        %2690 = vmatpush.msra.mxu0 0.0
        %2691 = vmatpush.msra.mxu0 0.0
        %2692 = vmatpush.msra.mxu0 %v2251
        %2693 = vmatmul.f32.gmra.mxu0 %v449
        %v2694 = vpop.f32.mrf.mxu0
        %v2695 = vadd.f32 0.0, %v2694
        %2696 = vdwg.mxu0
        %2697 = vmatpush.msra.mxu0 0.0
        %2698 = vmatpush.msra.mxu0 0.0
        %2699 = vmatpush.msra.mxu0 0.0
        %2700 = vmatpush.msra.mxu0 0.0
        %2701 = vmatpush.msra.mxu0 0.0
        %2702 = vmatpush.msra.mxu0 0.0
        %2703 = vmatpush.msra.mxu0 0.0
        %2704 = vmatpush.msra.mxu0 0.0
        %2705 = vmatpush.msra.mxu0 0.0
        %2706 = vmatpush.msra.mxu0 0.0
        %2707 = vmatpush.msra.mxu0 0.0
        %2708 = vmatpush.msra.mxu0 0.0
        %2709 = vmatpush.msra.mxu0 0.0
        %2710 = vmatpush.msra.mxu0 0.0
        %2711 = vmatpush.msra.mxu0 0.0
        %2712 = vmatpush.msra.mxu0 %v2253
        %2713 = vmatmul.f32.gmra.mxu0 %v449
        %v2714 = vpop.f32.mrf.mxu0
        %v2715 = vadd.f32 0.0, %v2714
        %2716 = vdwg.mxu0
        %2717 = vmatpush.msra.mxu0 0.0
        %2718 = vmatpush.msra.mxu0 0.0
        %2719 = vmatpush.msra.mxu0 0.0
        %2720 = vmatpush.msra.mxu0 0.0
        %2721 = vmatpush.msra.mxu0 0.0
        %2722 = vmatpush.msra.mxu0 0.0
        %2723 = vmatpush.msra.mxu0 0.0
        %2724 = vmatpush.msra.mxu0 0.0
        %2725 = vmatpush.msra.mxu0 0.0
        %2726 = vmatpush.msra.mxu0 0.0
        %2727 = vmatpush.msra.mxu0 0.0
        %2728 = vmatpush.msra.mxu0 0.0
        %2729 = vmatpush.msra.mxu0 0.0
        %2730 = vmatpush.msra.mxu0 0.0
        %2731 = vmatpush.msra.mxu0 0.0
        %2732 = vmatpush.msra.mxu0 %v2255
        %2733 = vmatmul.f32.gmra.mxu0 %v449
        %v2734 = vpop.f32.mrf.mxu0
        %v2735 = vadd.f32 0.0, %v2734
        %2736 = vdwg.mxu0
        %2737 = vst [vmem:[#allocation1] ss:$2 sm:$0xff] %v339
        %s2738 = scalar_lea.vmem [#allocation1], 16
        %2739 = vst [vmem:[%s2738] ss:$2 sm:$0xff] %v340
        %s2740 = scalar_lea.vmem [#allocation1], 32
        %2741 = vst [vmem:[%s2740] ss:$2 sm:$0xff] %v341
        %s2742 = scalar_lea.vmem [#allocation1], 48
        %2743 = vst [vmem:[%s2742] ss:$2 sm:$0xff] %v342
        %v2744 = vld.sshfl [vmem:[#allocation1] sm:$0xff pattern:$0x75316420]
        %v2745 = vld.sshfl [vmem:[#allocation1 + $0x8] sm:$0xff pattern:$0x75316420]
        %v2746 = vld.sshfl [vmem:[#allocation1 + $0x10] sm:$0xff pattern:$0x75316420]
        %v2747 = vld.sshfl [vmem:[#allocation1 + $0x18] sm:$0xff pattern:$0x75316420]
        %v2748 = vld.sshfl [vmem:[#allocation1 + $0x20] sm:$0xff pattern:$0x75316420]
        %v2749 = vld.sshfl [vmem:[#allocation1 + $0x28] sm:$0xff pattern:$0x75316420]
        %v2750 = vld.sshfl [vmem:[#allocation1 + $0x30] sm:$0xff pattern:$0x75316420]
        %v2751 = vld.sshfl [vmem:[#allocation1 + $0x38] sm:$0xff pattern:$0x75316420]
        %2752 = vst [vmem:[#allocation1] ss:$2 sm:$0xff] %v343
        %2753 = vst [vmem:[%s2738] ss:$2 sm:$0xff] %v344
        %2754 = vst [vmem:[%s2740] ss:$2 sm:$0xff] %v345
        %2755 = vst [vmem:[%s2742] ss:$2 sm:$0xff] %v346
        %v2756 = vld.sshfl [vmem:[#allocation1] sm:$0xff pattern:$0x75316420]
        %v2757 = vld.sshfl [vmem:[#allocation1 + $0x8] sm:$0xff pattern:$0x75316420]
        %v2758 = vld.sshfl [vmem:[#allocation1 + $0x10] sm:$0xff pattern:$0x75316420]
        %v2759 = vld.sshfl [vmem:[#allocation1 + $0x18] sm:$0xff pattern:$0x75316420]
        %v2760 = vld.sshfl [vmem:[#allocation1 + $0x20] sm:$0xff pattern:$0x75316420]
        %v2761 = vld.sshfl [vmem:[#allocation1 + $0x28] sm:$0xff pattern:$0x75316420]
        %v2762 = vld.sshfl [vmem:[#allocation1 + $0x30] sm:$0xff pattern:$0x75316420]
        %v2763 = vld.sshfl [vmem:[#allocation1 + $0x38] sm:$0xff pattern:$0x75316420]
        %2764 = vst [vmem:[#allocation1] ss:$2 sm:$0xff] %v347
        %2765 = vst [vmem:[%s2738] ss:$2 sm:$0xff] %v348
        %2766 = vst [vmem:[%s2740] ss:$2 sm:$0xff] %v349
        %2767 = vst [vmem:[%s2742] ss:$2 sm:$0xff] %v350
        %v2768 = vld.sshfl [vmem:[#allocation1] sm:$0xff pattern:$0x75316420]
        %v2769 = vld.sshfl [vmem:[#allocation1 + $0x8] sm:$0xff pattern:$0x75316420]
        %v2770 = vld.sshfl [vmem:[#allocation1 + $0x10] sm:$0xff pattern:$0x75316420]
        %v2771 = vld.sshfl [vmem:[#allocation1 + $0x18] sm:$0xff pattern:$0x75316420]
        %v2772 = vld.sshfl [vmem:[#allocation1 + $0x20] sm:$0xff pattern:$0x75316420]
        %v2773 = vld.sshfl [vmem:[#allocation1 + $0x28] sm:$0xff pattern:$0x75316420]
        %v2774 = vld.sshfl [vmem:[#allocation1 + $0x30] sm:$0xff pattern:$0x75316420]
        %v2775 = vld.sshfl [vmem:[#allocation1 + $0x38] sm:$0xff pattern:$0x75316420]
        %v2776 = vsel %vm451, %v2744, 0
        %v2778 = vsel %vm451, %v2745, 0
        %v2780 = vsel %vm451, %v2746, 0
        %v2782 = vsel %vm451, %v2747, 0
        %v2784 = vsel %vm451, %v2748, 0
        %v2786 = vsel %vm451, %v2749, 0
        %v2788 = vsel %vm451, %v2750, 0
        %v2790 = vsel %vm451, %v2751, 0
        %v2792 = vsel %vm451, %v2756, 0
        %v2794 = vsel %vm451, %v2757, 0
        %v2796 = vsel %vm451, %v2758, 0
        %v2798 = vsel %vm451, %v2759, 0
        %v2800 = vsel %vm451, %v2760, 0
        %v2802 = vsel %vm451, %v2761, 0
        %v2804 = vsel %vm451, %v2762, 0
        %v2806 = vsel %vm451, %v2763, 0
        %v2808 = vsel %vm451, %v2768, 0
        %v2810 = vsel %vm451, %v2769, 0
        %v2812 = vsel %vm451, %v2770, 0
        %v2814 = vsel %vm451, %v2771, 0
        %v2816 = vsel %vm451, %v2772, 0
        %v2818 = vsel %vm451, %v2773, 0
        %v2820 = vsel %vm451, %v2774, 0
        %v2822 = vsel %vm451, %v2775, 0
        %2824 = vmatpush.msra.mxu0 0.0
        %2825 = vmatpush.msra.mxu0 0.0
        %2826 = vmatpush.msra.mxu0 0.0
        %2827 = vmatpush.msra.mxu0 0.0
        %2828 = vmatpush.msra.mxu0 0.0
        %2829 = vmatpush.msra.mxu0 0.0
        %2830 = vmatpush.msra.mxu0 0.0
        %2831 = vmatpush.msra.mxu0 0.0
        %2832 = vmatpush.msra.mxu0 0.0
        %2833 = vmatpush.msra.mxu0 0.0
        %2834 = vmatpush.msra.mxu0 0.0
        %2835 = vmatpush.msra.mxu0 0.0
        %2836 = vmatpush.msra.mxu0 0.0
        %2837 = vmatpush.msra.mxu0 0.0
        %2838 = vmatpush.msra.mxu0 0.0
        %2839 = vmatpush.msra.mxu0 %v2776
        %2840 = vmatmul.f32.gmra.mxu0 %v1032
        %v2841 = vpop.f32.mrf.mxu0
        %v2842 = vadd.f32 %v2275, %v2841
        %2843 = vdwg.mxu0
        %2844 = vmatpush.msra.mxu0 0.0
        %2845 = vmatpush.msra.mxu0 0.0
        %2846 = vmatpush.msra.mxu0 0.0
        %2847 = vmatpush.msra.mxu0 0.0
        %2848 = vmatpush.msra.mxu0 0.0
        %2849 = vmatpush.msra.mxu0 0.0
        %2850 = vmatpush.msra.mxu0 0.0
        %2851 = vmatpush.msra.mxu0 0.0
        %2852 = vmatpush.msra.mxu0 0.0
        %2853 = vmatpush.msra.mxu0 0.0
        %2854 = vmatpush.msra.mxu0 0.0
        %2855 = vmatpush.msra.mxu0 0.0
        %2856 = vmatpush.msra.mxu0 0.0
        %2857 = vmatpush.msra.mxu0 0.0
        %2858 = vmatpush.msra.mxu0 0.0
        %2859 = vmatpush.msra.mxu0 %v2778
        %2860 = vmatmul.f32.gmra.mxu0 %v1032
        %v2861 = vpop.f32.mrf.mxu0
        %v2862 = vadd.f32 %v2295, %v2861
        %2863 = vdwg.mxu0
        %2864 = vmatpush.msra.mxu0 0.0
        %2865 = vmatpush.msra.mxu0 0.0
        %2866 = vmatpush.msra.mxu0 0.0
        %2867 = vmatpush.msra.mxu0 0.0
        %2868 = vmatpush.msra.mxu0 0.0
        %2869 = vmatpush.msra.mxu0 0.0
        %2870 = vmatpush.msra.mxu0 0.0
        %2871 = vmatpush.msra.mxu0 0.0
        %2872 = vmatpush.msra.mxu0 0.0
        %2873 = vmatpush.msra.mxu0 0.0
        %2874 = vmatpush.msra.mxu0 0.0
        %2875 = vmatpush.msra.mxu0 0.0
        %2876 = vmatpush.msra.mxu0 0.0
        %2877 = vmatpush.msra.mxu0 0.0
        %2878 = vmatpush.msra.mxu0 0.0
        %2879 = vmatpush.msra.mxu0 %v2780
        %2880 = vmatmul.f32.gmra.mxu0 %v1032
        %v2881 = vpop.f32.mrf.mxu0
        %v2882 = vadd.f32 %v2315, %v2881
        %2883 = vdwg.mxu0
        %2884 = vmatpush.msra.mxu0 0.0
        %2885 = vmatpush.msra.mxu0 0.0
        %2886 = vmatpush.msra.mxu0 0.0
        %2887 = vmatpush.msra.mxu0 0.0
        %2888 = vmatpush.msra.mxu0 0.0
        %2889 = vmatpush.msra.mxu0 0.0
        %2890 = vmatpush.msra.mxu0 0.0
        %2891 = vmatpush.msra.mxu0 0.0
        %2892 = vmatpush.msra.mxu0 0.0
        %2893 = vmatpush.msra.mxu0 0.0
        %2894 = vmatpush.msra.mxu0 0.0
        %2895 = vmatpush.msra.mxu0 0.0
        %2896 = vmatpush.msra.mxu0 0.0
        %2897 = vmatpush.msra.mxu0 0.0
        %2898 = vmatpush.msra.mxu0 0.0
        %2899 = vmatpush.msra.mxu0 %v2782
        %2900 = vmatmul.f32.gmra.mxu0 %v1032
        %v2901 = vpop.f32.mrf.mxu0
        %v2902 = vadd.f32 %v2335, %v2901
        %2903 = vdwg.mxu0
        %2904 = vmatpush.msra.mxu0 0.0
        %2905 = vmatpush.msra.mxu0 0.0
        %2906 = vmatpush.msra.mxu0 0.0
        %2907 = vmatpush.msra.mxu0 0.0
        %2908 = vmatpush.msra.mxu0 0.0
        %2909 = vmatpush.msra.mxu0 0.0
        %2910 = vmatpush.msra.mxu0 0.0
        %2911 = vmatpush.msra.mxu0 0.0
        %2912 = vmatpush.msra.mxu0 0.0
        %2913 = vmatpush.msra.mxu0 0.0
        %2914 = vmatpush.msra.mxu0 0.0
        %2915 = vmatpush.msra.mxu0 0.0
        %2916 = vmatpush.msra.mxu0 0.0
        %2917 = vmatpush.msra.mxu0 0.0
        %2918 = vmatpush.msra.mxu0 0.0
        %2919 = vmatpush.msra.mxu0 %v2784
        %2920 = vmatmul.f32.gmra.mxu0 %v1032
        %v2921 = vpop.f32.mrf.mxu0
        %v2922 = vadd.f32 %v2355, %v2921
        %2923 = vdwg.mxu0
        %2924 = vmatpush.msra.mxu0 0.0
        %2925 = vmatpush.msra.mxu0 0.0
        %2926 = vmatpush.msra.mxu0 0.0
        %2927 = vmatpush.msra.mxu0 0.0
        %2928 = vmatpush.msra.mxu0 0.0
        %2929 = vmatpush.msra.mxu0 0.0
        %2930 = vmatpush.msra.mxu0 0.0
        %2931 = vmatpush.msra.mxu0 0.0
        %2932 = vmatpush.msra.mxu0 0.0
        %2933 = vmatpush.msra.mxu0 0.0
        %2934 = vmatpush.msra.mxu0 0.0
        %2935 = vmatpush.msra.mxu0 0.0
        %2936 = vmatpush.msra.mxu0 0.0
        %2937 = vmatpush.msra.mxu0 0.0
        %2938 = vmatpush.msra.mxu0 0.0
        %2939 = vmatpush.msra.mxu0 %v2786
        %2940 = vmatmul.f32.gmra.mxu0 %v1032
        %v2941 = vpop.f32.mrf.mxu0
        %v2942 = vadd.f32 %v2375, %v2941
        %2943 = vdwg.mxu0
        %2944 = vmatpush.msra.mxu0 0.0
        %2945 = vmatpush.msra.mxu0 0.0
        %2946 = vmatpush.msra.mxu0 0.0
        %2947 = vmatpush.msra.mxu0 0.0
        %2948 = vmatpush.msra.mxu0 0.0
        %2949 = vmatpush.msra.mxu0 0.0
        %2950 = vmatpush.msra.mxu0 0.0
        %2951 = vmatpush.msra.mxu0 0.0
        %2952 = vmatpush.msra.mxu0 0.0
        %2953 = vmatpush.msra.mxu0 0.0
        %2954 = vmatpush.msra.mxu0 0.0
        %2955 = vmatpush.msra.mxu0 0.0
        %2956 = vmatpush.msra.mxu0 0.0
        %2957 = vmatpush.msra.mxu0 0.0
        %2958 = vmatpush.msra.mxu0 0.0
        %2959 = vmatpush.msra.mxu0 %v2788
        %2960 = vmatmul.f32.gmra.mxu0 %v1032
        %v2961 = vpop.f32.mrf.mxu0
        %v2962 = vadd.f32 %v2395, %v2961
        %2963 = vdwg.mxu0
        %2964 = vmatpush.msra.mxu0 0.0
        %2965 = vmatpush.msra.mxu0 0.0
        %2966 = vmatpush.msra.mxu0 0.0
        %2967 = vmatpush.msra.mxu0 0.0
        %2968 = vmatpush.msra.mxu0 0.0
        %2969 = vmatpush.msra.mxu0 0.0
        %2970 = vmatpush.msra.mxu0 0.0
        %2971 = vmatpush.msra.mxu0 0.0
        %2972 = vmatpush.msra.mxu0 0.0
        %2973 = vmatpush.msra.mxu0 0.0
        %2974 = vmatpush.msra.mxu0 0.0
        %2975 = vmatpush.msra.mxu0 0.0
        %2976 = vmatpush.msra.mxu0 0.0
        %2977 = vmatpush.msra.mxu0 0.0
        %2978 = vmatpush.msra.mxu0 0.0
        %2979 = vmatpush.msra.mxu0 %v2790
        %2980 = vmatmul.f32.gmra.mxu0 %v1032
        %v2981 = vpop.f32.mrf.mxu0
        %v2982 = vadd.f32 %v2415, %v2981
        %2983 = vdwg.mxu0
        %2984 = vmatpush.msra.mxu0 0.0
        %2985 = vmatpush.msra.mxu0 0.0
        %2986 = vmatpush.msra.mxu0 0.0
        %2987 = vmatpush.msra.mxu0 0.0
        %2988 = vmatpush.msra.mxu0 0.0
        %2989 = vmatpush.msra.mxu0 0.0
        %2990 = vmatpush.msra.mxu0 0.0
        %2991 = vmatpush.msra.mxu0 0.0
        %2992 = vmatpush.msra.mxu0 0.0
        %2993 = vmatpush.msra.mxu0 0.0
        %2994 = vmatpush.msra.mxu0 0.0
        %2995 = vmatpush.msra.mxu0 0.0
        %2996 = vmatpush.msra.mxu0 0.0
        %2997 = vmatpush.msra.mxu0 0.0
        %2998 = vmatpush.msra.mxu0 0.0
        %2999 = vmatpush.msra.mxu0 %v2792
        %3000 = vmatmul.f32.gmra.mxu0 %v1032
        %v3001 = vpop.f32.mrf.mxu0
        %v3002 = vadd.f32 %v2435, %v3001
        %3003 = vdwg.mxu0
        %3004 = vmatpush.msra.mxu0 0.0
        %3005 = vmatpush.msra.mxu0 0.0
        %3006 = vmatpush.msra.mxu0 0.0
        %3007 = vmatpush.msra.mxu0 0.0
        %3008 = vmatpush.msra.mxu0 0.0
        %3009 = vmatpush.msra.mxu0 0.0
        %3010 = vmatpush.msra.mxu0 0.0
        %3011 = vmatpush.msra.mxu0 0.0
        %3012 = vmatpush.msra.mxu0 0.0
        %3013 = vmatpush.msra.mxu0 0.0
        %3014 = vmatpush.msra.mxu0 0.0
        %3015 = vmatpush.msra.mxu0 0.0
        %3016 = vmatpush.msra.mxu0 0.0
        %3017 = vmatpush.msra.mxu0 0.0
        %3018 = vmatpush.msra.mxu0 0.0
        %3019 = vmatpush.msra.mxu0 %v2794
        %3020 = vmatmul.f32.gmra.mxu0 %v1032
        %v3021 = vpop.f32.mrf.mxu0
        %v3022 = vadd.f32 %v2455, %v3021
        %3023 = vdwg.mxu0
        %3024 = vmatpush.msra.mxu0 0.0
        %3025 = vmatpush.msra.mxu0 0.0
        %3026 = vmatpush.msra.mxu0 0.0
        %3027 = vmatpush.msra.mxu0 0.0
        %3028 = vmatpush.msra.mxu0 0.0
        %3029 = vmatpush.msra.mxu0 0.0
        %3030 = vmatpush.msra.mxu0 0.0
        %3031 = vmatpush.msra.mxu0 0.0
        %3032 = vmatpush.msra.mxu0 0.0
        %3033 = vmatpush.msra.mxu0 0.0
        %3034 = vmatpush.msra.mxu0 0.0
        %3035 = vmatpush.msra.mxu0 0.0
        %3036 = vmatpush.msra.mxu0 0.0
        %3037 = vmatpush.msra.mxu0 0.0
        %3038 = vmatpush.msra.mxu0 0.0
        %3039 = vmatpush.msra.mxu0 %v2796
        %3040 = vmatmul.f32.gmra.mxu0 %v1032
        %v3041 = vpop.f32.mrf.mxu0
        %v3042 = vadd.f32 %v2475, %v3041
        %3043 = vdwg.mxu0
        %3044 = vmatpush.msra.mxu0 0.0
        %3045 = vmatpush.msra.mxu0 0.0
        %3046 = vmatpush.msra.mxu0 0.0
        %3047 = vmatpush.msra.mxu0 0.0
        %3048 = vmatpush.msra.mxu0 0.0
        %3049 = vmatpush.msra.mxu0 0.0
        %3050 = vmatpush.msra.mxu0 0.0
        %3051 = vmatpush.msra.mxu0 0.0
        %3052 = vmatpush.msra.mxu0 0.0
        %3053 = vmatpush.msra.mxu0 0.0
        %3054 = vmatpush.msra.mxu0 0.0
        %3055 = vmatpush.msra.mxu0 0.0
        %3056 = vmatpush.msra.mxu0 0.0
        %3057 = vmatpush.msra.mxu0 0.0
        %3058 = vmatpush.msra.mxu0 0.0
        %3059 = vmatpush.msra.mxu0 %v2798
        %3060 = vmatmul.f32.gmra.mxu0 %v1032
        %v3061 = vpop.f32.mrf.mxu0
        %v3062 = vadd.f32 %v2495, %v3061
        %3063 = vdwg.mxu0
        %3064 = vmatpush.msra.mxu0 0.0
        %3065 = vmatpush.msra.mxu0 0.0
        %3066 = vmatpush.msra.mxu0 0.0
        %3067 = vmatpush.msra.mxu0 0.0
        %3068 = vmatpush.msra.mxu0 0.0
        %3069 = vmatpush.msra.mxu0 0.0
        %3070 = vmatpush.msra.mxu0 0.0
        %3071 = vmatpush.msra.mxu0 0.0
        %3072 = vmatpush.msra.mxu0 0.0
        %3073 = vmatpush.msra.mxu0 0.0
        %3074 = vmatpush.msra.mxu0 0.0
        %3075 = vmatpush.msra.mxu0 0.0
        %3076 = vmatpush.msra.mxu0 0.0
        %3077 = vmatpush.msra.mxu0 0.0
        %3078 = vmatpush.msra.mxu0 0.0
        %3079 = vmatpush.msra.mxu0 %v2800
        %3080 = vmatmul.f32.gmra.mxu0 %v1032
        %v3081 = vpop.f32.mrf.mxu0
        %v3082 = vadd.f32 %v2515, %v3081
        %3083 = vdwg.mxu0
        %3084 = vmatpush.msra.mxu0 0.0
        %3085 = vmatpush.msra.mxu0 0.0
        %3086 = vmatpush.msra.mxu0 0.0
        %3087 = vmatpush.msra.mxu0 0.0
        %3088 = vmatpush.msra.mxu0 0.0
        %3089 = vmatpush.msra.mxu0 0.0
        %3090 = vmatpush.msra.mxu0 0.0
        %3091 = vmatpush.msra.mxu0 0.0
        %3092 = vmatpush.msra.mxu0 0.0
        %3093 = vmatpush.msra.mxu0 0.0
        %3094 = vmatpush.msra.mxu0 0.0
        %3095 = vmatpush.msra.mxu0 0.0
        %3096 = vmatpush.msra.mxu0 0.0
        %3097 = vmatpush.msra.mxu0 0.0
        %3098 = vmatpush.msra.mxu0 0.0
        %3099 = vmatpush.msra.mxu0 %v2802
        %3100 = vmatmul.f32.gmra.mxu0 %v1032
        %v3101 = vpop.f32.mrf.mxu0
        %v3102 = vadd.f32 %v2535, %v3101
        %3103 = vdwg.mxu0
        %3104 = vmatpush.msra.mxu0 0.0
        %3105 = vmatpush.msra.mxu0 0.0
        %3106 = vmatpush.msra.mxu0 0.0
        %3107 = vmatpush.msra.mxu0 0.0
        %3108 = vmatpush.msra.mxu0 0.0
        %3109 = vmatpush.msra.mxu0 0.0
        %3110 = vmatpush.msra.mxu0 0.0
        %3111 = vmatpush.msra.mxu0 0.0
        %3112 = vmatpush.msra.mxu0 0.0
        %3113 = vmatpush.msra.mxu0 0.0
        %3114 = vmatpush.msra.mxu0 0.0
        %3115 = vmatpush.msra.mxu0 0.0
        %3116 = vmatpush.msra.mxu0 0.0
        %3117 = vmatpush.msra.mxu0 0.0
        %3118 = vmatpush.msra.mxu0 0.0
        %3119 = vmatpush.msra.mxu0 %v2804
        %3120 = vmatmul.f32.gmra.mxu0 %v1032
        %v3121 = vpop.f32.mrf.mxu0
        %v3122 = vadd.f32 %v2555, %v3121
        %3123 = vdwg.mxu0
        %3124 = vmatpush.msra.mxu0 0.0
        %3125 = vmatpush.msra.mxu0 0.0
        %3126 = vmatpush.msra.mxu0 0.0
        %3127 = vmatpush.msra.mxu0 0.0
        %3128 = vmatpush.msra.mxu0 0.0
        %3129 = vmatpush.msra.mxu0 0.0
        %3130 = vmatpush.msra.mxu0 0.0
        %3131 = vmatpush.msra.mxu0 0.0
        %3132 = vmatpush.msra.mxu0 0.0
        %3133 = vmatpush.msra.mxu0 0.0
        %3134 = vmatpush.msra.mxu0 0.0
        %3135 = vmatpush.msra.mxu0 0.0
        %3136 = vmatpush.msra.mxu0 0.0
        %3137 = vmatpush.msra.mxu0 0.0
        %3138 = vmatpush.msra.mxu0 0.0
        %3139 = vmatpush.msra.mxu0 %v2806
        %3140 = vmatmul.f32.gmra.mxu0 %v1032
        %v3141 = vpop.f32.mrf.mxu0
        %v3142 = vadd.f32 %v2575, %v3141
        %3143 = vdwg.mxu0
        %3144 = vmatpush.msra.mxu0 0.0
        %3145 = vmatpush.msra.mxu0 0.0
        %3146 = vmatpush.msra.mxu0 0.0
        %3147 = vmatpush.msra.mxu0 0.0
        %3148 = vmatpush.msra.mxu0 0.0
        %3149 = vmatpush.msra.mxu0 0.0
        %3150 = vmatpush.msra.mxu0 0.0
        %3151 = vmatpush.msra.mxu0 0.0
        %3152 = vmatpush.msra.mxu0 0.0
        %3153 = vmatpush.msra.mxu0 0.0
        %3154 = vmatpush.msra.mxu0 0.0
        %3155 = vmatpush.msra.mxu0 0.0
        %3156 = vmatpush.msra.mxu0 0.0
        %3157 = vmatpush.msra.mxu0 0.0
        %3158 = vmatpush.msra.mxu0 0.0
        %3159 = vmatpush.msra.mxu0 %v2808
        %3160 = vmatmul.f32.gmra.mxu0 %v1032
        %v3161 = vpop.f32.mrf.mxu0
        %v3162 = vadd.f32 %v2595, %v3161
        %3163 = vdwg.mxu0
        %3164 = vmatpush.msra.mxu0 0.0
        %3165 = vmatpush.msra.mxu0 0.0
        %3166 = vmatpush.msra.mxu0 0.0
        %3167 = vmatpush.msra.mxu0 0.0
        %3168 = vmatpush.msra.mxu0 0.0
        %3169 = vmatpush.msra.mxu0 0.0
        %3170 = vmatpush.msra.mxu0 0.0
        %3171 = vmatpush.msra.mxu0 0.0
        %3172 = vmatpush.msra.mxu0 0.0
        %3173 = vmatpush.msra.mxu0 0.0
        %3174 = vmatpush.msra.mxu0 0.0
        %3175 = vmatpush.msra.mxu0 0.0
        %3176 = vmatpush.msra.mxu0 0.0
        %3177 = vmatpush.msra.mxu0 0.0
        %3178 = vmatpush.msra.mxu0 0.0
        %3179 = vmatpush.msra.mxu0 %v2810
        %3180 = vmatmul.f32.gmra.mxu0 %v1032
        %v3181 = vpop.f32.mrf.mxu0
        %v3182 = vadd.f32 %v2615, %v3181
        %3183 = vdwg.mxu0
        %3184 = vmatpush.msra.mxu0 0.0
        %3185 = vmatpush.msra.mxu0 0.0
        %3186 = vmatpush.msra.mxu0 0.0
        %3187 = vmatpush.msra.mxu0 0.0
        %3188 = vmatpush.msra.mxu0 0.0
        %3189 = vmatpush.msra.mxu0 0.0
        %3190 = vmatpush.msra.mxu0 0.0
        %3191 = vmatpush.msra.mxu0 0.0
        %3192 = vmatpush.msra.mxu0 0.0
        %3193 = vmatpush.msra.mxu0 0.0
        %3194 = vmatpush.msra.mxu0 0.0
        %3195 = vmatpush.msra.mxu0 0.0
        %3196 = vmatpush.msra.mxu0 0.0
        %3197 = vmatpush.msra.mxu0 0.0
        %3198 = vmatpush.msra.mxu0 0.0
        %3199 = vmatpush.msra.mxu0 %v2812
        %3200 = vmatmul.f32.gmra.mxu0 %v1032
        %v3201 = vpop.f32.mrf.mxu0
        %v3202 = vadd.f32 %v2635, %v3201
        %3203 = vdwg.mxu0
        %3204 = vmatpush.msra.mxu0 0.0
        %3205 = vmatpush.msra.mxu0 0.0
        %3206 = vmatpush.msra.mxu0 0.0
        %3207 = vmatpush.msra.mxu0 0.0
        %3208 = vmatpush.msra.mxu0 0.0
        %3209 = vmatpush.msra.mxu0 0.0
        %3210 = vmatpush.msra.mxu0 0.0
        %3211 = vmatpush.msra.mxu0 0.0
        %3212 = vmatpush.msra.mxu0 0.0
        %3213 = vmatpush.msra.mxu0 0.0
        %3214 = vmatpush.msra.mxu0 0.0
        %3215 = vmatpush.msra.mxu0 0.0
        %3216 = vmatpush.msra.mxu0 0.0
        %3217 = vmatpush.msra.mxu0 0.0
        %3218 = vmatpush.msra.mxu0 0.0
        %3219 = vmatpush.msra.mxu0 %v2814
        %3220 = vmatmul.f32.gmra.mxu0 %v1032
        %v3221 = vpop.f32.mrf.mxu0
        %v3222 = vadd.f32 %v2655, %v3221
        %3223 = vdwg.mxu0
        %3224 = vmatpush.msra.mxu0 0.0
        %3225 = vmatpush.msra.mxu0 0.0
        %3226 = vmatpush.msra.mxu0 0.0
        %3227 = vmatpush.msra.mxu0 0.0
        %3228 = vmatpush.msra.mxu0 0.0
        %3229 = vmatpush.msra.mxu0 0.0
        %3230 = vmatpush.msra.mxu0 0.0
        %3231 = vmatpush.msra.mxu0 0.0
        %3232 = vmatpush.msra.mxu0 0.0
        %3233 = vmatpush.msra.mxu0 0.0
        %3234 = vmatpush.msra.mxu0 0.0
        %3235 = vmatpush.msra.mxu0 0.0
        %3236 = vmatpush.msra.mxu0 0.0
        %3237 = vmatpush.msra.mxu0 0.0
        %3238 = vmatpush.msra.mxu0 0.0
        %3239 = vmatpush.msra.mxu0 %v2816
        %3240 = vmatmul.f32.gmra.mxu0 %v1032
        %v3241 = vpop.f32.mrf.mxu0
        %v3242 = vadd.f32 %v2675, %v3241
        %3243 = vdwg.mxu0
        %3244 = vmatpush.msra.mxu0 0.0
        %3245 = vmatpush.msra.mxu0 0.0
        %3246 = vmatpush.msra.mxu0 0.0
        %3247 = vmatpush.msra.mxu0 0.0
        %3248 = vmatpush.msra.mxu0 0.0
        %3249 = vmatpush.msra.mxu0 0.0
        %3250 = vmatpush.msra.mxu0 0.0
        %3251 = vmatpush.msra.mxu0 0.0
        %3252 = vmatpush.msra.mxu0 0.0
        %3253 = vmatpush.msra.mxu0 0.0
        %3254 = vmatpush.msra.mxu0 0.0
        %3255 = vmatpush.msra.mxu0 0.0
        %3256 = vmatpush.msra.mxu0 0.0
        %3257 = vmatpush.msra.mxu0 0.0
        %3258 = vmatpush.msra.mxu0 0.0
        %3259 = vmatpush.msra.mxu0 %v2818
        %3260 = vmatmul.f32.gmra.mxu0 %v1032
        %v3261 = vpop.f32.mrf.mxu0
        %v3262 = vadd.f32 %v2695, %v3261
        %3263 = vdwg.mxu0
        %3264 = vmatpush.msra.mxu0 0.0
        %3265 = vmatpush.msra.mxu0 0.0
        %3266 = vmatpush.msra.mxu0 0.0
        %3267 = vmatpush.msra.mxu0 0.0
        %3268 = vmatpush.msra.mxu0 0.0
        %3269 = vmatpush.msra.mxu0 0.0
        %3270 = vmatpush.msra.mxu0 0.0
        %3271 = vmatpush.msra.mxu0 0.0
        %3272 = vmatpush.msra.mxu0 0.0
        %3273 = vmatpush.msra.mxu0 0.0
        %3274 = vmatpush.msra.mxu0 0.0
        %3275 = vmatpush.msra.mxu0 0.0
        %3276 = vmatpush.msra.mxu0 0.0
        %3277 = vmatpush.msra.mxu0 0.0
        %3278 = vmatpush.msra.mxu0 0.0
        %3279 = vmatpush.msra.mxu0 %v2820
        %3280 = vmatmul.f32.gmra.mxu0 %v1032
        %v3281 = vpop.f32.mrf.mxu0
        %v3282 = vadd.f32 %v2715, %v3281
        %3283 = vdwg.mxu0
        %3284 = vmatpush.msra.mxu0 0.0
        %3285 = vmatpush.msra.mxu0 0.0
        %3286 = vmatpush.msra.mxu0 0.0
        %3287 = vmatpush.msra.mxu0 0.0
        %3288 = vmatpush.msra.mxu0 0.0
        %3289 = vmatpush.msra.mxu0 0.0
        %3290 = vmatpush.msra.mxu0 0.0
        %3291 = vmatpush.msra.mxu0 0.0
        %3292 = vmatpush.msra.mxu0 0.0
        %3293 = vmatpush.msra.mxu0 0.0
        %3294 = vmatpush.msra.mxu0 0.0
        %3295 = vmatpush.msra.mxu0 0.0
        %3296 = vmatpush.msra.mxu0 0.0
        %3297 = vmatpush.msra.mxu0 0.0
        %3298 = vmatpush.msra.mxu0 0.0
        %3299 = vmatpush.msra.mxu0 %v2822
        %3300 = vmatmul.f32.gmra.mxu0 %v1032
        %v3301 = vpop.f32.mrf.mxu0
        %v3302 = vadd.f32 %v2735, %v3301
        %3303 = vdwg.mxu0
        %3316 = vst [vmem:[#allocation1] ss:$2 sm:$0xff] %v365
        %s3317 = scalar_lea.vmem [#allocation1], 16
        %3318 = vst [vmem:[%s3317] ss:$2 sm:$0xff] %v366
        %s3319 = scalar_lea.vmem [#allocation1], 32
        %3320 = vst [vmem:[%s3319] ss:$2 sm:$0xff] %v367
        %s3321 = scalar_lea.vmem [#allocation1], 48
        %3322 = vst [vmem:[%s3321] ss:$2 sm:$0xff] %v368
        %v3323 = vld.sshfl [vmem:[#allocation1] sm:$0xff pattern:$0x75316420]
        %v3324 = vld.sshfl [vmem:[#allocation1 + $0x8] sm:$0xff pattern:$0x75316420]
        %v3325 = vld.sshfl [vmem:[#allocation1 + $0x10] sm:$0xff pattern:$0x75316420]
        %v3326 = vld.sshfl [vmem:[#allocation1 + $0x18] sm:$0xff pattern:$0x75316420]
        %v3327 = vld.sshfl [vmem:[#allocation1 + $0x20] sm:$0xff pattern:$0x75316420]
        %v3328 = vld.sshfl [vmem:[#allocation1 + $0x28] sm:$0xff pattern:$0x75316420]
        %v3329 = vld.sshfl [vmem:[#allocation1 + $0x30] sm:$0xff pattern:$0x75316420]
        %v3330 = vld.sshfl [vmem:[#allocation1 + $0x38] sm:$0xff pattern:$0x75316420]
        %3331 = vst [vmem:[#allocation1] ss:$2 sm:$0xff] %v369
        %3332 = vst [vmem:[%s3317] ss:$2 sm:$0xff] %v370
        %3333 = vst [vmem:[%s3319] ss:$2 sm:$0xff] %v371
        %3334 = vst [vmem:[%s3321] ss:$2 sm:$0xff] %v372
        %v3335 = vld.sshfl [vmem:[#allocation1] sm:$0xff pattern:$0x75316420]
        %v3336 = vld.sshfl [vmem:[#allocation1 + $0x8] sm:$0xff pattern:$0x75316420]
        %v3337 = vld.sshfl [vmem:[#allocation1 + $0x10] sm:$0xff pattern:$0x75316420]
        %v3338 = vld.sshfl [vmem:[#allocation1 + $0x18] sm:$0xff pattern:$0x75316420]
        %v3339 = vld.sshfl [vmem:[#allocation1 + $0x20] sm:$0xff pattern:$0x75316420]
        %v3340 = vld.sshfl [vmem:[#allocation1 + $0x28] sm:$0xff pattern:$0x75316420]
        %v3341 = vld.sshfl [vmem:[#allocation1 + $0x30] sm:$0xff pattern:$0x75316420]
        %v3342 = vld.sshfl [vmem:[#allocation1 + $0x38] sm:$0xff pattern:$0x75316420]
        %3343 = vst [vmem:[#allocation1] ss:$2 sm:$0xff] %v373
        %3344 = vst [vmem:[%s3317] ss:$2 sm:$0xff] %v374
        %3345 = vst [vmem:[%s3319] ss:$2 sm:$0xff] %v375
        %3346 = vst [vmem:[%s3321] ss:$2 sm:$0xff] %v376
        %v3347 = vld.sshfl [vmem:[#allocation1] sm:$0xff pattern:$0x75316420]
        %v3348 = vld.sshfl [vmem:[#allocation1 + $0x8] sm:$0xff pattern:$0x75316420]
        %v3349 = vld.sshfl [vmem:[#allocation1 + $0x10] sm:$0xff pattern:$0x75316420]
        %v3350 = vld.sshfl [vmem:[#allocation1 + $0x18] sm:$0xff pattern:$0x75316420]
        %v3351 = vld.sshfl [vmem:[#allocation1 + $0x20] sm:$0xff pattern:$0x75316420]
        %v3352 = vld.sshfl [vmem:[#allocation1 + $0x28] sm:$0xff pattern:$0x75316420]
        %v3353 = vld.sshfl [vmem:[#allocation1 + $0x30] sm:$0xff pattern:$0x75316420]
        %v3354 = vld.sshfl [vmem:[#allocation1 + $0x38] sm:$0xff pattern:$0x75316420]
        %v3355 = vsel %vm451, %v3323, 0
        %v3357 = vsel %vm451, %v3324, 0
        %v3359 = vsel %vm451, %v3325, 0
        %v3361 = vsel %vm451, %v3326, 0
        %v3363 = vsel %vm451, %v3327, 0
        %v3365 = vsel %vm451, %v3328, 0
        %v3367 = vsel %vm451, %v3329, 0
        %v3369 = vsel %vm451, %v3330, 0
        %v3371 = vsel %vm451, %v3335, 0
        %v3373 = vsel %vm451, %v3336, 0
        %v3375 = vsel %vm451, %v3337, 0
        %v3377 = vsel %vm451, %v3338, 0
        %v3379 = vsel %vm451, %v3339, 0
        %v3381 = vsel %vm451, %v3340, 0
        %v3383 = vsel %vm451, %v3341, 0
        %v3385 = vsel %vm451, %v3342, 0
        %v3387 = vsel %vm451, %v3347, 0
        %v3389 = vsel %vm451, %v3348, 0
        %v3391 = vsel %vm451, %v3349, 0
        %v3393 = vsel %vm451, %v3350, 0
        %v3395 = vsel %vm451, %v3351, 0
        %v3397 = vsel %vm451, %v3352, 0
        %v3399 = vsel %vm451, %v3353, 0
        %v3401 = vsel %vm451, %v3354, 0
        %3403 = vmatpush.msra.mxu0 0.0
        %3404 = vmatpush.msra.mxu0 0.0
        %3405 = vmatpush.msra.mxu0 0.0
        %3406 = vmatpush.msra.mxu0 0.0
        %3407 = vmatpush.msra.mxu0 0.0
        %3408 = vmatpush.msra.mxu0 0.0
        %3409 = vmatpush.msra.mxu0 0.0
        %3410 = vmatpush.msra.mxu0 0.0
        %3411 = vmatpush.msra.mxu0 0.0
        %3412 = vmatpush.msra.mxu0 0.0
        %3413 = vmatpush.msra.mxu0 0.0
        %3414 = vmatpush.msra.mxu0 0.0
        %3415 = vmatpush.msra.mxu0 0.0
        %3416 = vmatpush.msra.mxu0 0.0
        %3417 = vmatpush.msra.mxu0 0.0
        %3418 = vmatpush.msra.mxu0 %v3355
        %3419 = vmatmul.f32.gmra.mxu0 %v1616
        %v3420 = vpop.f32.mrf.mxu0
        %v3421 = vadd.f32 0.0, %v3420
        %3422 = vdwg.mxu0
        %3423 = vmatpush.msra.mxu0 0.0
        %3424 = vmatpush.msra.mxu0 0.0
        %3425 = vmatpush.msra.mxu0 0.0
        %3426 = vmatpush.msra.mxu0 0.0
        %3427 = vmatpush.msra.mxu0 0.0
        %3428 = vmatpush.msra.mxu0 0.0
        %3429 = vmatpush.msra.mxu0 0.0
        %3430 = vmatpush.msra.mxu0 0.0
        %3431 = vmatpush.msra.mxu0 0.0
        %3432 = vmatpush.msra.mxu0 0.0
        %3433 = vmatpush.msra.mxu0 0.0
        %3434 = vmatpush.msra.mxu0 0.0
        %3435 = vmatpush.msra.mxu0 0.0
        %3436 = vmatpush.msra.mxu0 0.0
        %3437 = vmatpush.msra.mxu0 0.0
        %3438 = vmatpush.msra.mxu0 %v3357
        %3439 = vmatmul.f32.gmra.mxu0 %v1616
        %v3440 = vpop.f32.mrf.mxu0
        %v3441 = vadd.f32 0.0, %v3440
        %3442 = vdwg.mxu0
        %3443 = vmatpush.msra.mxu0 0.0
        %3444 = vmatpush.msra.mxu0 0.0
        %3445 = vmatpush.msra.mxu0 0.0
        %3446 = vmatpush.msra.mxu0 0.0
        %3447 = vmatpush.msra.mxu0 0.0
        %3448 = vmatpush.msra.mxu0 0.0
        %3449 = vmatpush.msra.mxu0 0.0
        %3450 = vmatpush.msra.mxu0 0.0
        %3451 = vmatpush.msra.mxu0 0.0
        %3452 = vmatpush.msra.mxu0 0.0
        %3453 = vmatpush.msra.mxu0 0.0
        %3454 = vmatpush.msra.mxu0 0.0
        %3455 = vmatpush.msra.mxu0 0.0
        %3456 = vmatpush.msra.mxu0 0.0
        %3457 = vmatpush.msra.mxu0 0.0
        %3458 = vmatpush.msra.mxu0 %v3359
        %3459 = vmatmul.f32.gmra.mxu0 %v1616
        %v3460 = vpop.f32.mrf.mxu0
        %v3461 = vadd.f32 0.0, %v3460
        %3462 = vdwg.mxu0
        %3463 = vmatpush.msra.mxu0 0.0
        %3464 = vmatpush.msra.mxu0 0.0
        %3465 = vmatpush.msra.mxu0 0.0
        %3466 = vmatpush.msra.mxu0 0.0
        %3467 = vmatpush.msra.mxu0 0.0
        %3468 = vmatpush.msra.mxu0 0.0
        %3469 = vmatpush.msra.mxu0 0.0
        %3470 = vmatpush.msra.mxu0 0.0
        %3471 = vmatpush.msra.mxu0 0.0
        %3472 = vmatpush.msra.mxu0 0.0
        %3473 = vmatpush.msra.mxu0 0.0
        %3474 = vmatpush.msra.mxu0 0.0
        %3475 = vmatpush.msra.mxu0 0.0
        %3476 = vmatpush.msra.mxu0 0.0
        %3477 = vmatpush.msra.mxu0 0.0
        %3478 = vmatpush.msra.mxu0 %v3361
        %3479 = vmatmul.f32.gmra.mxu0 %v1616
        %v3480 = vpop.f32.mrf.mxu0
        %v3481 = vadd.f32 0.0, %v3480
        %3482 = vdwg.mxu0
        %3483 = vmatpush.msra.mxu0 0.0
        %3484 = vmatpush.msra.mxu0 0.0
        %3485 = vmatpush.msra.mxu0 0.0
        %3486 = vmatpush.msra.mxu0 0.0
        %3487 = vmatpush.msra.mxu0 0.0
        %3488 = vmatpush.msra.mxu0 0.0
        %3489 = vmatpush.msra.mxu0 0.0
        %3490 = vmatpush.msra.mxu0 0.0
        %3491 = vmatpush.msra.mxu0 0.0
        %3492 = vmatpush.msra.mxu0 0.0
        %3493 = vmatpush.msra.mxu0 0.0
        %3494 = vmatpush.msra.mxu0 0.0
        %3495 = vmatpush.msra.mxu0 0.0
        %3496 = vmatpush.msra.mxu0 0.0
        %3497 = vmatpush.msra.mxu0 0.0
        %3498 = vmatpush.msra.mxu0 %v3363
        %3499 = vmatmul.f32.gmra.mxu0 %v1616
        %v3500 = vpop.f32.mrf.mxu0
        %v3501 = vadd.f32 0.0, %v3500
        %3502 = vdwg.mxu0
        %3503 = vmatpush.msra.mxu0 0.0
        %3504 = vmatpush.msra.mxu0 0.0
        %3505 = vmatpush.msra.mxu0 0.0
        %3506 = vmatpush.msra.mxu0 0.0
        %3507 = vmatpush.msra.mxu0 0.0
        %3508 = vmatpush.msra.mxu0 0.0
        %3509 = vmatpush.msra.mxu0 0.0
        %3510 = vmatpush.msra.mxu0 0.0
        %3511 = vmatpush.msra.mxu0 0.0
        %3512 = vmatpush.msra.mxu0 0.0
        %3513 = vmatpush.msra.mxu0 0.0
        %3514 = vmatpush.msra.mxu0 0.0
        %3515 = vmatpush.msra.mxu0 0.0
        %3516 = vmatpush.msra.mxu0 0.0
        %3517 = vmatpush.msra.mxu0 0.0
        %3518 = vmatpush.msra.mxu0 %v3365
        %3519 = vmatmul.f32.gmra.mxu0 %v1616
        %v3520 = vpop.f32.mrf.mxu0
        %v3521 = vadd.f32 0.0, %v3520
        %3522 = vdwg.mxu0
        %3523 = vmatpush.msra.mxu0 0.0
        %3524 = vmatpush.msra.mxu0 0.0
        %3525 = vmatpush.msra.mxu0 0.0
        %3526 = vmatpush.msra.mxu0 0.0
        %3527 = vmatpush.msra.mxu0 0.0
        %3528 = vmatpush.msra.mxu0 0.0
        %3529 = vmatpush.msra.mxu0 0.0
        %3530 = vmatpush.msra.mxu0 0.0
        %3531 = vmatpush.msra.mxu0 0.0
        %3532 = vmatpush.msra.mxu0 0.0
        %3533 = vmatpush.msra.mxu0 0.0
        %3534 = vmatpush.msra.mxu0 0.0
        %3535 = vmatpush.msra.mxu0 0.0
        %3536 = vmatpush.msra.mxu0 0.0
        %3537 = vmatpush.msra.mxu0 0.0
        %3538 = vmatpush.msra.mxu0 %v3367
        %3539 = vmatmul.f32.gmra.mxu0 %v1616
        %v3540 = vpop.f32.mrf.mxu0
        %v3541 = vadd.f32 0.0, %v3540
        %3542 = vdwg.mxu0
        %3543 = vmatpush.msra.mxu0 0.0
        %3544 = vmatpush.msra.mxu0 0.0
        %3545 = vmatpush.msra.mxu0 0.0
        %3546 = vmatpush.msra.mxu0 0.0
        %3547 = vmatpush.msra.mxu0 0.0
        %3548 = vmatpush.msra.mxu0 0.0
        %3549 = vmatpush.msra.mxu0 0.0
        %3550 = vmatpush.msra.mxu0 0.0
        %3551 = vmatpush.msra.mxu0 0.0
        %3552 = vmatpush.msra.mxu0 0.0
        %3553 = vmatpush.msra.mxu0 0.0
        %3554 = vmatpush.msra.mxu0 0.0
        %3555 = vmatpush.msra.mxu0 0.0
        %3556 = vmatpush.msra.mxu0 0.0
        %3557 = vmatpush.msra.mxu0 0.0
        %3558 = vmatpush.msra.mxu0 %v3369
        %3559 = vmatmul.f32.gmra.mxu0 %v1616
        %v3560 = vpop.f32.mrf.mxu0
        %v3561 = vadd.f32 0.0, %v3560
        %3562 = vdwg.mxu0
        %3563 = vmatpush.msra.mxu0 0.0
        %3564 = vmatpush.msra.mxu0 0.0
        %3565 = vmatpush.msra.mxu0 0.0
        %3566 = vmatpush.msra.mxu0 0.0
        %3567 = vmatpush.msra.mxu0 0.0
        %3568 = vmatpush.msra.mxu0 0.0
        %3569 = vmatpush.msra.mxu0 0.0
        %3570 = vmatpush.msra.mxu0 0.0
        %3571 = vmatpush.msra.mxu0 0.0
        %3572 = vmatpush.msra.mxu0 0.0
        %3573 = vmatpush.msra.mxu0 0.0
        %3574 = vmatpush.msra.mxu0 0.0
        %3575 = vmatpush.msra.mxu0 0.0
        %3576 = vmatpush.msra.mxu0 0.0
        %3577 = vmatpush.msra.mxu0 0.0
        %3578 = vmatpush.msra.mxu0 %v3371
        %3579 = vmatmul.f32.gmra.mxu0 %v1616
        %v3580 = vpop.f32.mrf.mxu0
        %v3581 = vadd.f32 0.0, %v3580
        %3582 = vdwg.mxu0
        %3583 = vmatpush.msra.mxu0 0.0
        %3584 = vmatpush.msra.mxu0 0.0
        %3585 = vmatpush.msra.mxu0 0.0
        %3586 = vmatpush.msra.mxu0 0.0
        %3587 = vmatpush.msra.mxu0 0.0
        %3588 = vmatpush.msra.mxu0 0.0
        %3589 = vmatpush.msra.mxu0 0.0
        %3590 = vmatpush.msra.mxu0 0.0
        %3591 = vmatpush.msra.mxu0 0.0
        %3592 = vmatpush.msra.mxu0 0.0
        %3593 = vmatpush.msra.mxu0 0.0
        %3594 = vmatpush.msra.mxu0 0.0
        %3595 = vmatpush.msra.mxu0 0.0
        %3596 = vmatpush.msra.mxu0 0.0
        %3597 = vmatpush.msra.mxu0 0.0
        %3598 = vmatpush.msra.mxu0 %v3373
        %3599 = vmatmul.f32.gmra.mxu0 %v1616
        %v3600 = vpop.f32.mrf.mxu0
        %v3601 = vadd.f32 0.0, %v3600
        %3602 = vdwg.mxu0
        %3603 = vmatpush.msra.mxu0 0.0
        %3604 = vmatpush.msra.mxu0 0.0
        %3605 = vmatpush.msra.mxu0 0.0
        %3606 = vmatpush.msra.mxu0 0.0
        %3607 = vmatpush.msra.mxu0 0.0
        %3608 = vmatpush.msra.mxu0 0.0
        %3609 = vmatpush.msra.mxu0 0.0
        %3610 = vmatpush.msra.mxu0 0.0
        %3611 = vmatpush.msra.mxu0 0.0
        %3612 = vmatpush.msra.mxu0 0.0
        %3613 = vmatpush.msra.mxu0 0.0
        %3614 = vmatpush.msra.mxu0 0.0
        %3615 = vmatpush.msra.mxu0 0.0
        %3616 = vmatpush.msra.mxu0 0.0
        %3617 = vmatpush.msra.mxu0 0.0
        %3618 = vmatpush.msra.mxu0 %v3375
        %3619 = vmatmul.f32.gmra.mxu0 %v1616
        %v3620 = vpop.f32.mrf.mxu0
        %v3621 = vadd.f32 0.0, %v3620
        %3622 = vdwg.mxu0
        %3623 = vmatpush.msra.mxu0 0.0
        %3624 = vmatpush.msra.mxu0 0.0
        %3625 = vmatpush.msra.mxu0 0.0
        %3626 = vmatpush.msra.mxu0 0.0
        %3627 = vmatpush.msra.mxu0 0.0
        %3628 = vmatpush.msra.mxu0 0.0
        %3629 = vmatpush.msra.mxu0 0.0
        %3630 = vmatpush.msra.mxu0 0.0
        %3631 = vmatpush.msra.mxu0 0.0
        %3632 = vmatpush.msra.mxu0 0.0
        %3633 = vmatpush.msra.mxu0 0.0
        %3634 = vmatpush.msra.mxu0 0.0
        %3635 = vmatpush.msra.mxu0 0.0
        %3636 = vmatpush.msra.mxu0 0.0
        %3637 = vmatpush.msra.mxu0 0.0
        %3638 = vmatpush.msra.mxu0 %v3377
        %3639 = vmatmul.f32.gmra.mxu0 %v1616
        %v3640 = vpop.f32.mrf.mxu0
        %v3641 = vadd.f32 0.0, %v3640
        %3642 = vdwg.mxu0
        %3643 = vmatpush.msra.mxu0 0.0
        %3644 = vmatpush.msra.mxu0 0.0
        %3645 = vmatpush.msra.mxu0 0.0
        %3646 = vmatpush.msra.mxu0 0.0
        %3647 = vmatpush.msra.mxu0 0.0
        %3648 = vmatpush.msra.mxu0 0.0
        %3649 = vmatpush.msra.mxu0 0.0
        %3650 = vmatpush.msra.mxu0 0.0
        %3651 = vmatpush.msra.mxu0 0.0
        %3652 = vmatpush.msra.mxu0 0.0
        %3653 = vmatpush.msra.mxu0 0.0
        %3654 = vmatpush.msra.mxu0 0.0
        %3655 = vmatpush.msra.mxu0 0.0
        %3656 = vmatpush.msra.mxu0 0.0
        %3657 = vmatpush.msra.mxu0 0.0
        %3658 = vmatpush.msra.mxu0 %v3379
        %3659 = vmatmul.f32.gmra.mxu0 %v1616
        %v3660 = vpop.f32.mrf.mxu0
        %v3661 = vadd.f32 0.0, %v3660
        %3662 = vdwg.mxu0
        %3663 = vmatpush.msra.mxu0 0.0
        %3664 = vmatpush.msra.mxu0 0.0
        %3665 = vmatpush.msra.mxu0 0.0
        %3666 = vmatpush.msra.mxu0 0.0
        %3667 = vmatpush.msra.mxu0 0.0
        %3668 = vmatpush.msra.mxu0 0.0
        %3669 = vmatpush.msra.mxu0 0.0
        %3670 = vmatpush.msra.mxu0 0.0
        %3671 = vmatpush.msra.mxu0 0.0
        %3672 = vmatpush.msra.mxu0 0.0
        %3673 = vmatpush.msra.mxu0 0.0
        %3674 = vmatpush.msra.mxu0 0.0
        %3675 = vmatpush.msra.mxu0 0.0
        %3676 = vmatpush.msra.mxu0 0.0
        %3677 = vmatpush.msra.mxu0 0.0
        %3678 = vmatpush.msra.mxu0 %v3381
        %3679 = vmatmul.f32.gmra.mxu0 %v1616
        %v3680 = vpop.f32.mrf.mxu0
        %v3681 = vadd.f32 0.0, %v3680
        %3682 = vdwg.mxu0
        %3683 = vmatpush.msra.mxu0 0.0
        %3684 = vmatpush.msra.mxu0 0.0
        %3685 = vmatpush.msra.mxu0 0.0
        %3686 = vmatpush.msra.mxu0 0.0
        %3687 = vmatpush.msra.mxu0 0.0
        %3688 = vmatpush.msra.mxu0 0.0
        %3689 = vmatpush.msra.mxu0 0.0
        %3690 = vmatpush.msra.mxu0 0.0
        %3691 = vmatpush.msra.mxu0 0.0
        %3692 = vmatpush.msra.mxu0 0.0
        %3693 = vmatpush.msra.mxu0 0.0
        %3694 = vmatpush.msra.mxu0 0.0
        %3695 = vmatpush.msra.mxu0 0.0
        %3696 = vmatpush.msra.mxu0 0.0
        %3697 = vmatpush.msra.mxu0 0.0
        %3698 = vmatpush.msra.mxu0 %v3383
        %3699 = vmatmul.f32.gmra.mxu0 %v1616
        %v3700 = vpop.f32.mrf.mxu0
        %v3701 = vadd.f32 0.0, %v3700
        %3702 = vdwg.mxu0
        %3703 = vmatpush.msra.mxu0 0.0
        %3704 = vmatpush.msra.mxu0 0.0
        %3705 = vmatpush.msra.mxu0 0.0
        %3706 = vmatpush.msra.mxu0 0.0
        %3707 = vmatpush.msra.mxu0 0.0
        %3708 = vmatpush.msra.mxu0 0.0
        %3709 = vmatpush.msra.mxu0 0.0
        %3710 = vmatpush.msra.mxu0 0.0
        %3711 = vmatpush.msra.mxu0 0.0
        %3712 = vmatpush.msra.mxu0 0.0
        %3713 = vmatpush.msra.mxu0 0.0
        %3714 = vmatpush.msra.mxu0 0.0
        %3715 = vmatpush.msra.mxu0 0.0
        %3716 = vmatpush.msra.mxu0 0.0
        %3717 = vmatpush.msra.mxu0 0.0
        %3718 = vmatpush.msra.mxu0 %v3385
        %3719 = vmatmul.f32.gmra.mxu0 %v1616
        %v3720 = vpop.f32.mrf.mxu0
        %v3721 = vadd.f32 0.0, %v3720
        %3722 = vdwg.mxu0
        %3723 = vmatpush.msra.mxu0 0.0
        %3724 = vmatpush.msra.mxu0 0.0
        %3725 = vmatpush.msra.mxu0 0.0
        %3726 = vmatpush.msra.mxu0 0.0
        %3727 = vmatpush.msra.mxu0 0.0
        %3728 = vmatpush.msra.mxu0 0.0
        %3729 = vmatpush.msra.mxu0 0.0
        %3730 = vmatpush.msra.mxu0 0.0
        %3731 = vmatpush.msra.mxu0 0.0
        %3732 = vmatpush.msra.mxu0 0.0
        %3733 = vmatpush.msra.mxu0 0.0
        %3734 = vmatpush.msra.mxu0 0.0
        %3735 = vmatpush.msra.mxu0 0.0
        %3736 = vmatpush.msra.mxu0 0.0
        %3737 = vmatpush.msra.mxu0 0.0
        %3738 = vmatpush.msra.mxu0 %v3387
        %3739 = vmatmul.f32.gmra.mxu0 %v1616
        %v3740 = vpop.f32.mrf.mxu0
        %v3741 = vadd.f32 0.0, %v3740
        %3742 = vdwg.mxu0
        %3743 = vmatpush.msra.mxu0 0.0
        %3744 = vmatpush.msra.mxu0 0.0
        %3745 = vmatpush.msra.mxu0 0.0
        %3746 = vmatpush.msra.mxu0 0.0
        %3747 = vmatpush.msra.mxu0 0.0
        %3748 = vmatpush.msra.mxu0 0.0
        %3749 = vmatpush.msra.mxu0 0.0
        %3750 = vmatpush.msra.mxu0 0.0
        %3751 = vmatpush.msra.mxu0 0.0
        %3752 = vmatpush.msra.mxu0 0.0
        %3753 = vmatpush.msra.mxu0 0.0
        %3754 = vmatpush.msra.mxu0 0.0
        %3755 = vmatpush.msra.mxu0 0.0
        %3756 = vmatpush.msra.mxu0 0.0
        %3757 = vmatpush.msra.mxu0 0.0
        %3758 = vmatpush.msra.mxu0 %v3389
        %3759 = vmatmul.f32.gmra.mxu0 %v1616
        %v3760 = vpop.f32.mrf.mxu0
        %v3761 = vadd.f32 0.0, %v3760
        %3762 = vdwg.mxu0
        %3763 = vmatpush.msra.mxu0 0.0
        %3764 = vmatpush.msra.mxu0 0.0
        %3765 = vmatpush.msra.mxu0 0.0
        %3766 = vmatpush.msra.mxu0 0.0
        %3767 = vmatpush.msra.mxu0 0.0
        %3768 = vmatpush.msra.mxu0 0.0
        %3769 = vmatpush.msra.mxu0 0.0
        %3770 = vmatpush.msra.mxu0 0.0
        %3771 = vmatpush.msra.mxu0 0.0
        %3772 = vmatpush.msra.mxu0 0.0
        %3773 = vmatpush.msra.mxu0 0.0
        %3774 = vmatpush.msra.mxu0 0.0
        %3775 = vmatpush.msra.mxu0 0.0
        %3776 = vmatpush.msra.mxu0 0.0
        %3777 = vmatpush.msra.mxu0 0.0
        %3778 = vmatpush.msra.mxu0 %v3391
        %3779 = vmatmul.f32.gmra.mxu0 %v1616
        %v3780 = vpop.f32.mrf.mxu0
        %v3781 = vadd.f32 0.0, %v3780
        %3782 = vdwg.mxu0
        %3783 = vmatpush.msra.mxu0 0.0
        %3784 = vmatpush.msra.mxu0 0.0
        %3785 = vmatpush.msra.mxu0 0.0
        %3786 = vmatpush.msra.mxu0 0.0
        %3787 = vmatpush.msra.mxu0 0.0
        %3788 = vmatpush.msra.mxu0 0.0
        %3789 = vmatpush.msra.mxu0 0.0
        %3790 = vmatpush.msra.mxu0 0.0
        %3791 = vmatpush.msra.mxu0 0.0
        %3792 = vmatpush.msra.mxu0 0.0
        %3793 = vmatpush.msra.mxu0 0.0
        %3794 = vmatpush.msra.mxu0 0.0
        %3795 = vmatpush.msra.mxu0 0.0
        %3796 = vmatpush.msra.mxu0 0.0
        %3797 = vmatpush.msra.mxu0 0.0
        %3798 = vmatpush.msra.mxu0 %v3393
        %3799 = vmatmul.f32.gmra.mxu0 %v1616
        %v3800 = vpop.f32.mrf.mxu0
        %v3801 = vadd.f32 0.0, %v3800
        %3802 = vdwg.mxu0
        %3803 = vmatpush.msra.mxu0 0.0
        %3804 = vmatpush.msra.mxu0 0.0
        %3805 = vmatpush.msra.mxu0 0.0
        %3806 = vmatpush.msra.mxu0 0.0
        %3807 = vmatpush.msra.mxu0 0.0
        %3808 = vmatpush.msra.mxu0 0.0
        %3809 = vmatpush.msra.mxu0 0.0
        %3810 = vmatpush.msra.mxu0 0.0
        %3811 = vmatpush.msra.mxu0 0.0
        %3812 = vmatpush.msra.mxu0 0.0
        %3813 = vmatpush.msra.mxu0 0.0
        %3814 = vmatpush.msra.mxu0 0.0
        %3815 = vmatpush.msra.mxu0 0.0
        %3816 = vmatpush.msra.mxu0 0.0
        %3817 = vmatpush.msra.mxu0 0.0
        %3818 = vmatpush.msra.mxu0 %v3395
        %3819 = vmatmul.f32.gmra.mxu0 %v1616
        %v3820 = vpop.f32.mrf.mxu0
        %v3821 = vadd.f32 0.0, %v3820
        %3822 = vdwg.mxu0
        %3823 = vmatpush.msra.mxu0 0.0
        %3824 = vmatpush.msra.mxu0 0.0
        %3825 = vmatpush.msra.mxu0 0.0
        %3826 = vmatpush.msra.mxu0 0.0
        %3827 = vmatpush.msra.mxu0 0.0
        %3828 = vmatpush.msra.mxu0 0.0
        %3829 = vmatpush.msra.mxu0 0.0
        %3830 = vmatpush.msra.mxu0 0.0
        %3831 = vmatpush.msra.mxu0 0.0
        %3832 = vmatpush.msra.mxu0 0.0
        %3833 = vmatpush.msra.mxu0 0.0
        %3834 = vmatpush.msra.mxu0 0.0
        %3835 = vmatpush.msra.mxu0 0.0
        %3836 = vmatpush.msra.mxu0 0.0
        %3837 = vmatpush.msra.mxu0 0.0
        %3838 = vmatpush.msra.mxu0 %v3397
        %3839 = vmatmul.f32.gmra.mxu0 %v1616
        %v3840 = vpop.f32.mrf.mxu0
        %v3841 = vadd.f32 0.0, %v3840
        %3842 = vdwg.mxu0
        %3843 = vmatpush.msra.mxu0 0.0
        %3844 = vmatpush.msra.mxu0 0.0
        %3845 = vmatpush.msra.mxu0 0.0
        %3846 = vmatpush.msra.mxu0 0.0
        %3847 = vmatpush.msra.mxu0 0.0
        %3848 = vmatpush.msra.mxu0 0.0
        %3849 = vmatpush.msra.mxu0 0.0
        %3850 = vmatpush.msra.mxu0 0.0
        %3851 = vmatpush.msra.mxu0 0.0
        %3852 = vmatpush.msra.mxu0 0.0
        %3853 = vmatpush.msra.mxu0 0.0
        %3854 = vmatpush.msra.mxu0 0.0
        %3855 = vmatpush.msra.mxu0 0.0
        %3856 = vmatpush.msra.mxu0 0.0
        %3857 = vmatpush.msra.mxu0 0.0
        %3858 = vmatpush.msra.mxu0 %v3399
        %3859 = vmatmul.f32.gmra.mxu0 %v1616
        %v3860 = vpop.f32.mrf.mxu0
        %v3861 = vadd.f32 0.0, %v3860
        %3862 = vdwg.mxu0
        %3863 = vmatpush.msra.mxu0 0.0
        %3864 = vmatpush.msra.mxu0 0.0
        %3865 = vmatpush.msra.mxu0 0.0
        %3866 = vmatpush.msra.mxu0 0.0
        %3867 = vmatpush.msra.mxu0 0.0
        %3868 = vmatpush.msra.mxu0 0.0
        %3869 = vmatpush.msra.mxu0 0.0
        %3870 = vmatpush.msra.mxu0 0.0
        %3871 = vmatpush.msra.mxu0 0.0
        %3872 = vmatpush.msra.mxu0 0.0
        %3873 = vmatpush.msra.mxu0 0.0
        %3874 = vmatpush.msra.mxu0 0.0
        %3875 = vmatpush.msra.mxu0 0.0
        %3876 = vmatpush.msra.mxu0 0.0
        %3877 = vmatpush.msra.mxu0 0.0
        %3878 = vmatpush.msra.mxu0 %v3401
        %3879 = vmatmul.f32.gmra.mxu0 %v1616
        %v3880 = vpop.f32.mrf.mxu0
        %v3881 = vadd.f32 0.0, %v3880
        %3882 = vdwg.mxu0
        %v3883 = vadd.f32 %v2842, %v3421
        %v3884 = vadd.f32 %v2862, %v3441
        %v3885 = vadd.f32 %v2882, %v3461
        %v3886 = vadd.f32 %v2902, %v3481
        %v3887 = vadd.f32 %v2922, %v3501
        %v3888 = vadd.f32 %v2942, %v3521
        %v3889 = vadd.f32 %v2962, %v3541
        %v3890 = vadd.f32 %v2982, %v3561
        %v3891 = vadd.f32 %v3002, %v3581
        %v3892 = vadd.f32 %v3022, %v3601
        %v3893 = vadd.f32 %v3042, %v3621
        %v3894 = vadd.f32 %v3062, %v3641
        %v3895 = vadd.f32 %v3082, %v3661
        %v3896 = vadd.f32 %v3102, %v3681
        %v3897 = vadd.f32 %v3122, %v3701
        %v3898 = vadd.f32 %v3142, %v3721
        %v3899 = vadd.f32 %v3162, %v3741
        %v3900 = vadd.f32 %v3182, %v3761
        %v3901 = vadd.f32 %v3202, %v3781
        %v3902 = vadd.f32 %v3222, %v3801
        %v3903 = vadd.f32 %v3242, %v3821
        %v3904 = vadd.f32 %v3262, %v3841
        %v3905 = vadd.f32 %v3282, %v3861
        %v3906 = vadd.f32 %v3302, %v3881
        %3907 = vst [vmem:[#allocation1] ss:$2 sm:$0xff] %v326
        %s3908 = scalar_lea.vmem [#allocation1], 16
        %3909 = vst [vmem:[%s3908] ss:$2 sm:$0xff] %v327
        %s3910 = scalar_lea.vmem [#allocation1], 32
        %3911 = vst [vmem:[%s3910] ss:$2 sm:$0xff] %v328
        %s3912 = scalar_lea.vmem [#allocation1], 48
        %3913 = vst [vmem:[%s3912] ss:$2 sm:$0xff] %v329
        %v3914 = vld.sshfl [vmem:[#allocation1] sm:$0xff pattern:$0x75316420]
        %v3915 = vld.sshfl [vmem:[#allocation1 + $0x8] sm:$0xff pattern:$0x75316420]
        %v3916 = vld.sshfl [vmem:[#allocation1 + $0x10] sm:$0xff pattern:$0x75316420]
        %v3917 = vld.sshfl [vmem:[#allocation1 + $0x18] sm:$0xff pattern:$0x75316420]
        %v3918 = vld.sshfl [vmem:[#allocation1 + $0x20] sm:$0xff pattern:$0x75316420]
        %v3919 = vld.sshfl [vmem:[#allocation1 + $0x28] sm:$0xff pattern:$0x75316420]
        %v3920 = vld.sshfl [vmem:[#allocation1 + $0x30] sm:$0xff pattern:$0x75316420]
        %v3921 = vld.sshfl [vmem:[#allocation1 + $0x38] sm:$0xff pattern:$0x75316420]
        %3922 = vst [vmem:[#allocation1] ss:$2 sm:$0xff] %v330
        %3923 = vst [vmem:[%s3908] ss:$2 sm:$0xff] %v331
        %3924 = vst [vmem:[%s3910] ss:$2 sm:$0xff] %v332
        %3925 = vst [vmem:[%s3912] ss:$2 sm:$0xff] %v333
        %v3926 = vld.sshfl [vmem:[#allocation1] sm:$0xff pattern:$0x75316420]
        %v3927 = vld.sshfl [vmem:[#allocation1 + $0x8] sm:$0xff pattern:$0x75316420]
        %v3928 = vld.sshfl [vmem:[#allocation1 + $0x10] sm:$0xff pattern:$0x75316420]
        %v3929 = vld.sshfl [vmem:[#allocation1 + $0x18] sm:$0xff pattern:$0x75316420]
        %v3930 = vld.sshfl [vmem:[#allocation1 + $0x20] sm:$0xff pattern:$0x75316420]
        %v3931 = vld.sshfl [vmem:[#allocation1 + $0x28] sm:$0xff pattern:$0x75316420]
        %v3932 = vld.sshfl [vmem:[#allocation1 + $0x30] sm:$0xff pattern:$0x75316420]
        %v3933 = vld.sshfl [vmem:[#allocation1 + $0x38] sm:$0xff pattern:$0x75316420]
        %3934 = vst [vmem:[#allocation1] ss:$2 sm:$0xff] %v334
        %3935 = vst [vmem:[%s3908] ss:$2 sm:$0xff] %v335
        %3936 = vst [vmem:[%s3910] ss:$2 sm:$0xff] %v336
        %3937 = vst [vmem:[%s3912] ss:$2 sm:$0xff] %v337
        %v3938 = vld.sshfl [vmem:[#allocation1] sm:$0xff pattern:$0x75316420]
        %v3939 = vld.sshfl [vmem:[#allocation1 + $0x8] sm:$0xff pattern:$0x75316420]
        %v3940 = vld.sshfl [vmem:[#allocation1 + $0x10] sm:$0xff pattern:$0x75316420]
        %v3941 = vld.sshfl [vmem:[#allocation1 + $0x18] sm:$0xff pattern:$0x75316420]
        %v3942 = vld.sshfl [vmem:[#allocation1 + $0x20] sm:$0xff pattern:$0x75316420]
        %v3943 = vld.sshfl [vmem:[#allocation1 + $0x28] sm:$0xff pattern:$0x75316420]
        %v3944 = vld.sshfl [vmem:[#allocation1 + $0x30] sm:$0xff pattern:$0x75316420]
        %v3945 = vld.sshfl [vmem:[#allocation1 + $0x38] sm:$0xff pattern:$0x75316420]
        %v3946 = vsel %vm451, %v3914, 0
        %v3948 = vsel %vm451, %v3915, 0
        %v3950 = vsel %vm451, %v3916, 0
        %v3952 = vsel %vm451, %v3917, 0
        %v3954 = vsel %vm451, %v3918, 0
        %v3956 = vsel %vm451, %v3919, 0
        %v3958 = vsel %vm451, %v3920, 0
        %v3960 = vsel %vm451, %v3921, 0
        %v3962 = vsel %vm451, %v3926, 0
        %v3964 = vsel %vm451, %v3927, 0
        %v3966 = vsel %vm451, %v3928, 0
        %v3968 = vsel %vm451, %v3929, 0
        %v3970 = vsel %vm451, %v3930, 0
        %v3972 = vsel %vm451, %v3931, 0
        %v3974 = vsel %vm451, %v3932, 0
        %v3976 = vsel %vm451, %v3933, 0
        %v3978 = vsel %vm451, %v3938, 0
        %v3980 = vsel %vm451, %v3939, 0
        %v3982 = vsel %vm451, %v3940, 0
        %v3984 = vsel %vm451, %v3941, 0
        %v3986 = vsel %vm451, %v3942, 0
        %v3988 = vsel %vm451, %v3943, 0
        %v3990 = vsel %vm451, %v3944, 0
        %v3992 = vsel %vm451, %v3945, 0
        %3994 = vmatpush.msra.mxu0 0.0
        %3995 = vmatpush.msra.mxu0 0.0
        %3996 = vmatpush.msra.mxu0 0.0
        %3997 = vmatpush.msra.mxu0 0.0
        %3998 = vmatpush.msra.mxu0 0.0
        %3999 = vmatpush.msra.mxu0 0.0
        %4000 = vmatpush.msra.mxu0 0.0
        %4001 = vmatpush.msra.mxu0 0.0
        %4002 = vmatpush.msra.mxu0 0.0
        %4003 = vmatpush.msra.mxu0 0.0
        %4004 = vmatpush.msra.mxu0 0.0
        %4005 = vmatpush.msra.mxu0 0.0
        %4006 = vmatpush.msra.mxu0 0.0
        %4007 = vmatpush.msra.mxu0 0.0
        %4008 = vmatpush.msra.mxu0 0.0
        %4009 = vmatpush.msra.mxu0 %v3946
        %4010 = vmatmul.f32.gmra.mxu0 %v449
        %v4011 = vpop.f32.mrf.mxu0
        %v4012 = vadd.f32 0.0, %v4011
        %4013 = vdwg.mxu0
        %4014 = vmatpush.msra.mxu0 0.0
        %4015 = vmatpush.msra.mxu0 0.0
        %4016 = vmatpush.msra.mxu0 0.0
        %4017 = vmatpush.msra.mxu0 0.0
        %4018 = vmatpush.msra.mxu0 0.0
        %4019 = vmatpush.msra.mxu0 0.0
        %4020 = vmatpush.msra.mxu0 0.0
        %4021 = vmatpush.msra.mxu0 0.0
        %4022 = vmatpush.msra.mxu0 0.0
        %4023 = vmatpush.msra.mxu0 0.0
        %4024 = vmatpush.msra.mxu0 0.0
        %4025 = vmatpush.msra.mxu0 0.0
        %4026 = vmatpush.msra.mxu0 0.0
        %4027 = vmatpush.msra.mxu0 0.0
        %4028 = vmatpush.msra.mxu0 0.0
        %4029 = vmatpush.msra.mxu0 %v3948
        %4030 = vmatmul.f32.gmra.mxu0 %v449
        %v4031 = vpop.f32.mrf.mxu0
        %v4032 = vadd.f32 0.0, %v4031
        %4033 = vdwg.mxu0
        %4034 = vmatpush.msra.mxu0 0.0
        %4035 = vmatpush.msra.mxu0 0.0
        %4036 = vmatpush.msra.mxu0 0.0
        %4037 = vmatpush.msra.mxu0 0.0
        %4038 = vmatpush.msra.mxu0 0.0
        %4039 = vmatpush.msra.mxu0 0.0
        %4040 = vmatpush.msra.mxu0 0.0
        %4041 = vmatpush.msra.mxu0 0.0
        %4042 = vmatpush.msra.mxu0 0.0
        %4043 = vmatpush.msra.mxu0 0.0
        %4044 = vmatpush.msra.mxu0 0.0
        %4045 = vmatpush.msra.mxu0 0.0
        %4046 = vmatpush.msra.mxu0 0.0
        %4047 = vmatpush.msra.mxu0 0.0
        %4048 = vmatpush.msra.mxu0 0.0
        %4049 = vmatpush.msra.mxu0 %v3950
        %4050 = vmatmul.f32.gmra.mxu0 %v449
        %v4051 = vpop.f32.mrf.mxu0
        %v4052 = vadd.f32 0.0, %v4051
        %4053 = vdwg.mxu0
        %4054 = vmatpush.msra.mxu0 0.0
        %4055 = vmatpush.msra.mxu0 0.0
        %4056 = vmatpush.msra.mxu0 0.0
        %4057 = vmatpush.msra.mxu0 0.0
        %4058 = vmatpush.msra.mxu0 0.0
        %4059 = vmatpush.msra.mxu0 0.0
        %4060 = vmatpush.msra.mxu0 0.0
        %4061 = vmatpush.msra.mxu0 0.0
        %4062 = vmatpush.msra.mxu0 0.0
        %4063 = vmatpush.msra.mxu0 0.0
        %4064 = vmatpush.msra.mxu0 0.0
        %4065 = vmatpush.msra.mxu0 0.0
        %4066 = vmatpush.msra.mxu0 0.0
        %4067 = vmatpush.msra.mxu0 0.0
        %4068 = vmatpush.msra.mxu0 0.0
        %4069 = vmatpush.msra.mxu0 %v3952
        %4070 = vmatmul.f32.gmra.mxu0 %v449
        %v4071 = vpop.f32.mrf.mxu0
        %v4072 = vadd.f32 0.0, %v4071
        %4073 = vdwg.mxu0
        %4074 = vmatpush.msra.mxu0 0.0
        %4075 = vmatpush.msra.mxu0 0.0
        %4076 = vmatpush.msra.mxu0 0.0
        %4077 = vmatpush.msra.mxu0 0.0
        %4078 = vmatpush.msra.mxu0 0.0
        %4079 = vmatpush.msra.mxu0 0.0
        %4080 = vmatpush.msra.mxu0 0.0
        %4081 = vmatpush.msra.mxu0 0.0
        %4082 = vmatpush.msra.mxu0 0.0
        %4083 = vmatpush.msra.mxu0 0.0
        %4084 = vmatpush.msra.mxu0 0.0
        %4085 = vmatpush.msra.mxu0 0.0
        %4086 = vmatpush.msra.mxu0 0.0
        %4087 = vmatpush.msra.mxu0 0.0
        %4088 = vmatpush.msra.mxu0 0.0
        %4089 = vmatpush.msra.mxu0 %v3954
        %4090 = vmatmul.f32.gmra.mxu0 %v449
        %v4091 = vpop.f32.mrf.mxu0
        %v4092 = vadd.f32 0.0, %v4091
        %4093 = vdwg.mxu0
        %4094 = vmatpush.msra.mxu0 0.0
        %4095 = vmatpush.msra.mxu0 0.0
        %4096 = vmatpush.msra.mxu0 0.0
        %4097 = vmatpush.msra.mxu0 0.0
        %4098 = vmatpush.msra.mxu0 0.0
        %4099 = vmatpush.msra.mxu0 0.0
        %4100 = vmatpush.msra.mxu0 0.0
        %4101 = vmatpush.msra.mxu0 0.0
        %4102 = vmatpush.msra.mxu0 0.0
        %4103 = vmatpush.msra.mxu0 0.0
        %4104 = vmatpush.msra.mxu0 0.0
        %4105 = vmatpush.msra.mxu0 0.0
        %4106 = vmatpush.msra.mxu0 0.0
        %4107 = vmatpush.msra.mxu0 0.0
        %4108 = vmatpush.msra.mxu0 0.0
        %4109 = vmatpush.msra.mxu0 %v3956
        %4110 = vmatmul.f32.gmra.mxu0 %v449
        %v4111 = vpop.f32.mrf.mxu0
        %v4112 = vadd.f32 0.0, %v4111
        %4113 = vdwg.mxu0
        %4114 = vmatpush.msra.mxu0 0.0
        %4115 = vmatpush.msra.mxu0 0.0
        %4116 = vmatpush.msra.mxu0 0.0
        %4117 = vmatpush.msra.mxu0 0.0
        %4118 = vmatpush.msra.mxu0 0.0
        %4119 = vmatpush.msra.mxu0 0.0
        %4120 = vmatpush.msra.mxu0 0.0
        %4121 = vmatpush.msra.mxu0 0.0
        %4122 = vmatpush.msra.mxu0 0.0
        %4123 = vmatpush.msra.mxu0 0.0
        %4124 = vmatpush.msra.mxu0 0.0
        %4125 = vmatpush.msra.mxu0 0.0
        %4126 = vmatpush.msra.mxu0 0.0
        %4127 = vmatpush.msra.mxu0 0.0
        %4128 = vmatpush.msra.mxu0 0.0
        %4129 = vmatpush.msra.mxu0 %v3958
        %4130 = vmatmul.f32.gmra.mxu0 %v449
        %v4131 = vpop.f32.mrf.mxu0
        %v4132 = vadd.f32 0.0, %v4131
        %4133 = vdwg.mxu0
        %4134 = vmatpush.msra.mxu0 0.0
        %4135 = vmatpush.msra.mxu0 0.0
        %4136 = vmatpush.msra.mxu0 0.0
        %4137 = vmatpush.msra.mxu0 0.0
        %4138 = vmatpush.msra.mxu0 0.0
        %4139 = vmatpush.msra.mxu0 0.0
        %4140 = vmatpush.msra.mxu0 0.0
        %4141 = vmatpush.msra.mxu0 0.0
        %4142 = vmatpush.msra.mxu0 0.0
        %4143 = vmatpush.msra.mxu0 0.0
        %4144 = vmatpush.msra.mxu0 0.0
        %4145 = vmatpush.msra.mxu0 0.0
        %4146 = vmatpush.msra.mxu0 0.0
        %4147 = vmatpush.msra.mxu0 0.0
        %4148 = vmatpush.msra.mxu0 0.0
        %4149 = vmatpush.msra.mxu0 %v3960
        %4150 = vmatmul.f32.gmra.mxu0 %v449
        %v4151 = vpop.f32.mrf.mxu0
        %v4152 = vadd.f32 0.0, %v4151
        %4153 = vdwg.mxu0
        %4154 = vmatpush.msra.mxu0 0.0
        %4155 = vmatpush.msra.mxu0 0.0
        %4156 = vmatpush.msra.mxu0 0.0
        %4157 = vmatpush.msra.mxu0 0.0
        %4158 = vmatpush.msra.mxu0 0.0
        %4159 = vmatpush.msra.mxu0 0.0
        %4160 = vmatpush.msra.mxu0 0.0
        %4161 = vmatpush.msra.mxu0 0.0
        %4162 = vmatpush.msra.mxu0 0.0
        %4163 = vmatpush.msra.mxu0 0.0
        %4164 = vmatpush.msra.mxu0 0.0
        %4165 = vmatpush.msra.mxu0 0.0
        %4166 = vmatpush.msra.mxu0 0.0
        %4167 = vmatpush.msra.mxu0 0.0
        %4168 = vmatpush.msra.mxu0 0.0
        %4169 = vmatpush.msra.mxu0 %v3962
        %4170 = vmatmul.f32.gmra.mxu0 %v449
        %v4171 = vpop.f32.mrf.mxu0
        %v4172 = vadd.f32 0.0, %v4171
        %4173 = vdwg.mxu0
        %4174 = vmatpush.msra.mxu0 0.0
        %4175 = vmatpush.msra.mxu0 0.0
        %4176 = vmatpush.msra.mxu0 0.0
        %4177 = vmatpush.msra.mxu0 0.0
        %4178 = vmatpush.msra.mxu0 0.0
        %4179 = vmatpush.msra.mxu0 0.0
        %4180 = vmatpush.msra.mxu0 0.0
        %4181 = vmatpush.msra.mxu0 0.0
        %4182 = vmatpush.msra.mxu0 0.0
        %4183 = vmatpush.msra.mxu0 0.0
        %4184 = vmatpush.msra.mxu0 0.0
        %4185 = vmatpush.msra.mxu0 0.0
        %4186 = vmatpush.msra.mxu0 0.0
        %4187 = vmatpush.msra.mxu0 0.0
        %4188 = vmatpush.msra.mxu0 0.0
        %4189 = vmatpush.msra.mxu0 %v3964
        %4190 = vmatmul.f32.gmra.mxu0 %v449
        %v4191 = vpop.f32.mrf.mxu0
        %v4192 = vadd.f32 0.0, %v4191
        %4193 = vdwg.mxu0
        %4194 = vmatpush.msra.mxu0 0.0
        %4195 = vmatpush.msra.mxu0 0.0
        %4196 = vmatpush.msra.mxu0 0.0
        %4197 = vmatpush.msra.mxu0 0.0
        %4198 = vmatpush.msra.mxu0 0.0
        %4199 = vmatpush.msra.mxu0 0.0
        %4200 = vmatpush.msra.mxu0 0.0
        %4201 = vmatpush.msra.mxu0 0.0
        %4202 = vmatpush.msra.mxu0 0.0
        %4203 = vmatpush.msra.mxu0 0.0
        %4204 = vmatpush.msra.mxu0 0.0
        %4205 = vmatpush.msra.mxu0 0.0
        %4206 = vmatpush.msra.mxu0 0.0
        %4207 = vmatpush.msra.mxu0 0.0
        %4208 = vmatpush.msra.mxu0 0.0
        %4209 = vmatpush.msra.mxu0 %v3966
        %4210 = vmatmul.f32.gmra.mxu0 %v449
        %v4211 = vpop.f32.mrf.mxu0
        %v4212 = vadd.f32 0.0, %v4211
        %4213 = vdwg.mxu0
        %4214 = vmatpush.msra.mxu0 0.0
        %4215 = vmatpush.msra.mxu0 0.0
        %4216 = vmatpush.msra.mxu0 0.0
        %4217 = vmatpush.msra.mxu0 0.0
        %4218 = vmatpush.msra.mxu0 0.0
        %4219 = vmatpush.msra.mxu0 0.0
        %4220 = vmatpush.msra.mxu0 0.0
        %4221 = vmatpush.msra.mxu0 0.0
        %4222 = vmatpush.msra.mxu0 0.0
        %4223 = vmatpush.msra.mxu0 0.0
        %4224 = vmatpush.msra.mxu0 0.0
        %4225 = vmatpush.msra.mxu0 0.0
        %4226 = vmatpush.msra.mxu0 0.0
        %4227 = vmatpush.msra.mxu0 0.0
        %4228 = vmatpush.msra.mxu0 0.0
        %4229 = vmatpush.msra.mxu0 %v3968
        %4230 = vmatmul.f32.gmra.mxu0 %v449
        %v4231 = vpop.f32.mrf.mxu0
        %v4232 = vadd.f32 0.0, %v4231
        %4233 = vdwg.mxu0
        %4234 = vmatpush.msra.mxu0 0.0
        %4235 = vmatpush.msra.mxu0 0.0
        %4236 = vmatpush.msra.mxu0 0.0
        %4237 = vmatpush.msra.mxu0 0.0
        %4238 = vmatpush.msra.mxu0 0.0
        %4239 = vmatpush.msra.mxu0 0.0
        %4240 = vmatpush.msra.mxu0 0.0
        %4241 = vmatpush.msra.mxu0 0.0
        %4242 = vmatpush.msra.mxu0 0.0
        %4243 = vmatpush.msra.mxu0 0.0
        %4244 = vmatpush.msra.mxu0 0.0
        %4245 = vmatpush.msra.mxu0 0.0
        %4246 = vmatpush.msra.mxu0 0.0
        %4247 = vmatpush.msra.mxu0 0.0
        %4248 = vmatpush.msra.mxu0 0.0
        %4249 = vmatpush.msra.mxu0 %v3970
        %4250 = vmatmul.f32.gmra.mxu0 %v449
        %v4251 = vpop.f32.mrf.mxu0
        %v4252 = vadd.f32 0.0, %v4251
        %4253 = vdwg.mxu0
        %4254 = vmatpush.msra.mxu0 0.0
        %4255 = vmatpush.msra.mxu0 0.0
        %4256 = vmatpush.msra.mxu0 0.0
        %4257 = vmatpush.msra.mxu0 0.0
        %4258 = vmatpush.msra.mxu0 0.0
        %4259 = vmatpush.msra.mxu0 0.0
        %4260 = vmatpush.msra.mxu0 0.0
        %4261 = vmatpush.msra.mxu0 0.0
        %4262 = vmatpush.msra.mxu0 0.0
        %4263 = vmatpush.msra.mxu0 0.0
        %4264 = vmatpush.msra.mxu0 0.0
        %4265 = vmatpush.msra.mxu0 0.0
        %4266 = vmatpush.msra.mxu0 0.0
        %4267 = vmatpush.msra.mxu0 0.0
        %4268 = vmatpush.msra.mxu0 0.0
        %4269 = vmatpush.msra.mxu0 %v3972
        %4270 = vmatmul.f32.gmra.mxu0 %v449
        %v4271 = vpop.f32.mrf.mxu0
        %v4272 = vadd.f32 0.0, %v4271
        %4273 = vdwg.mxu0
        %4274 = vmatpush.msra.mxu0 0.0
        %4275 = vmatpush.msra.mxu0 0.0
        %4276 = vmatpush.msra.mxu0 0.0
        %4277 = vmatpush.msra.mxu0 0.0
        %4278 = vmatpush.msra.mxu0 0.0
        %4279 = vmatpush.msra.mxu0 0.0
        %4280 = vmatpush.msra.mxu0 0.0
        %4281 = vmatpush.msra.mxu0 0.0
        %4282 = vmatpush.msra.mxu0 0.0
        %4283 = vmatpush.msra.mxu0 0.0
        %4284 = vmatpush.msra.mxu0 0.0
        %4285 = vmatpush.msra.mxu0 0.0
        %4286 = vmatpush.msra.mxu0 0.0
        %4287 = vmatpush.msra.mxu0 0.0
        %4288 = vmatpush.msra.mxu0 0.0
        %4289 = vmatpush.msra.mxu0 %v3974
        %4290 = vmatmul.f32.gmra.mxu0 %v449
        %v4291 = vpop.f32.mrf.mxu0
        %v4292 = vadd.f32 0.0, %v4291
        %4293 = vdwg.mxu0
        %4294 = vmatpush.msra.mxu0 0.0
        %4295 = vmatpush.msra.mxu0 0.0
        %4296 = vmatpush.msra.mxu0 0.0
        %4297 = vmatpush.msra.mxu0 0.0
        %4298 = vmatpush.msra.mxu0 0.0
        %4299 = vmatpush.msra.mxu0 0.0
        %4300 = vmatpush.msra.mxu0 0.0
        %4301 = vmatpush.msra.mxu0 0.0
        %4302 = vmatpush.msra.mxu0 0.0
        %4303 = vmatpush.msra.mxu0 0.0
        %4304 = vmatpush.msra.mxu0 0.0
        %4305 = vmatpush.msra.mxu0 0.0
        %4306 = vmatpush.msra.mxu0 0.0
        %4307 = vmatpush.msra.mxu0 0.0
        %4308 = vmatpush.msra.mxu0 0.0
        %4309 = vmatpush.msra.mxu0 %v3976
        %4310 = vmatmul.f32.gmra.mxu0 %v449
        %v4311 = vpop.f32.mrf.mxu0
        %v4312 = vadd.f32 0.0, %v4311
        %4313 = vdwg.mxu0
        %4314 = vmatpush.msra.mxu0 0.0
        %4315 = vmatpush.msra.mxu0 0.0
        %4316 = vmatpush.msra.mxu0 0.0
        %4317 = vmatpush.msra.mxu0 0.0
        %4318 = vmatpush.msra.mxu0 0.0
        %4319 = vmatpush.msra.mxu0 0.0
        %4320 = vmatpush.msra.mxu0 0.0
        %4321 = vmatpush.msra.mxu0 0.0
        %4322 = vmatpush.msra.mxu0 0.0
        %4323 = vmatpush.msra.mxu0 0.0
        %4324 = vmatpush.msra.mxu0 0.0
        %4325 = vmatpush.msra.mxu0 0.0
        %4326 = vmatpush.msra.mxu0 0.0
        %4327 = vmatpush.msra.mxu0 0.0
        %4328 = vmatpush.msra.mxu0 0.0
        %4329 = vmatpush.msra.mxu0 %v3978
        %4330 = vmatmul.f32.gmra.mxu0 %v449
        %v4331 = vpop.f32.mrf.mxu0
        %v4332 = vadd.f32 0.0, %v4331
        %4333 = vdwg.mxu0
        %4334 = vmatpush.msra.mxu0 0.0
        %4335 = vmatpush.msra.mxu0 0.0
        %4336 = vmatpush.msra.mxu0 0.0
        %4337 = vmatpush.msra.mxu0 0.0
        %4338 = vmatpush.msra.mxu0 0.0
        %4339 = vmatpush.msra.mxu0 0.0
        %4340 = vmatpush.msra.mxu0 0.0
        %4341 = vmatpush.msra.mxu0 0.0
        %4342 = vmatpush.msra.mxu0 0.0
        %4343 = vmatpush.msra.mxu0 0.0
        %4344 = vmatpush.msra.mxu0 0.0
        %4345 = vmatpush.msra.mxu0 0.0
        %4346 = vmatpush.msra.mxu0 0.0
        %4347 = vmatpush.msra.mxu0 0.0
        %4348 = vmatpush.msra.mxu0 0.0
        %4349 = vmatpush.msra.mxu0 %v3980
        %4350 = vmatmul.f32.gmra.mxu0 %v449
        %v4351 = vpop.f32.mrf.mxu0
        %v4352 = vadd.f32 0.0, %v4351
        %4353 = vdwg.mxu0
        %4354 = vmatpush.msra.mxu0 0.0
        %4355 = vmatpush.msra.mxu0 0.0
        %4356 = vmatpush.msra.mxu0 0.0
        %4357 = vmatpush.msra.mxu0 0.0
        %4358 = vmatpush.msra.mxu0 0.0
        %4359 = vmatpush.msra.mxu0 0.0
        %4360 = vmatpush.msra.mxu0 0.0
        %4361 = vmatpush.msra.mxu0 0.0
        %4362 = vmatpush.msra.mxu0 0.0
        %4363 = vmatpush.msra.mxu0 0.0
        %4364 = vmatpush.msra.mxu0 0.0
        %4365 = vmatpush.msra.mxu0 0.0
        %4366 = vmatpush.msra.mxu0 0.0
        %4367 = vmatpush.msra.mxu0 0.0
        %4368 = vmatpush.msra.mxu0 0.0
        %4369 = vmatpush.msra.mxu0 %v3982
        %4370 = vmatmul.f32.gmra.mxu0 %v449
        %v4371 = vpop.f32.mrf.mxu0
        %v4372 = vadd.f32 0.0, %v4371
        %4373 = vdwg.mxu0
        %4374 = vmatpush.msra.mxu0 0.0
        %4375 = vmatpush.msra.mxu0 0.0
        %4376 = vmatpush.msra.mxu0 0.0
        %4377 = vmatpush.msra.mxu0 0.0
        %4378 = vmatpush.msra.mxu0 0.0
        %4379 = vmatpush.msra.mxu0 0.0
        %4380 = vmatpush.msra.mxu0 0.0
        %4381 = vmatpush.msra.mxu0 0.0
        %4382 = vmatpush.msra.mxu0 0.0
        %4383 = vmatpush.msra.mxu0 0.0
        %4384 = vmatpush.msra.mxu0 0.0
        %4385 = vmatpush.msra.mxu0 0.0
        %4386 = vmatpush.msra.mxu0 0.0
        %4387 = vmatpush.msra.mxu0 0.0
        %4388 = vmatpush.msra.mxu0 0.0
        %4389 = vmatpush.msra.mxu0 %v3984
        %4390 = vmatmul.f32.gmra.mxu0 %v449
        %v4391 = vpop.f32.mrf.mxu0
        %v4392 = vadd.f32 0.0, %v4391
        %4393 = vdwg.mxu0
        %4394 = vmatpush.msra.mxu0 0.0
        %4395 = vmatpush.msra.mxu0 0.0
        %4396 = vmatpush.msra.mxu0 0.0
        %4397 = vmatpush.msra.mxu0 0.0
        %4398 = vmatpush.msra.mxu0 0.0
        %4399 = vmatpush.msra.mxu0 0.0
        %4400 = vmatpush.msra.mxu0 0.0
        %4401 = vmatpush.msra.mxu0 0.0
        %4402 = vmatpush.msra.mxu0 0.0
        %4403 = vmatpush.msra.mxu0 0.0
        %4404 = vmatpush.msra.mxu0 0.0
        %4405 = vmatpush.msra.mxu0 0.0
        %4406 = vmatpush.msra.mxu0 0.0
        %4407 = vmatpush.msra.mxu0 0.0
        %4408 = vmatpush.msra.mxu0 0.0
        %4409 = vmatpush.msra.mxu0 %v3986
        %4410 = vmatmul.f32.gmra.mxu0 %v449
        %v4411 = vpop.f32.mrf.mxu0
        %v4412 = vadd.f32 0.0, %v4411
        %4413 = vdwg.mxu0
        %4414 = vmatpush.msra.mxu0 0.0
        %4415 = vmatpush.msra.mxu0 0.0
        %4416 = vmatpush.msra.mxu0 0.0
        %4417 = vmatpush.msra.mxu0 0.0
        %4418 = vmatpush.msra.mxu0 0.0
        %4419 = vmatpush.msra.mxu0 0.0
        %4420 = vmatpush.msra.mxu0 0.0
        %4421 = vmatpush.msra.mxu0 0.0
        %4422 = vmatpush.msra.mxu0 0.0
        %4423 = vmatpush.msra.mxu0 0.0
        %4424 = vmatpush.msra.mxu0 0.0
        %4425 = vmatpush.msra.mxu0 0.0
        %4426 = vmatpush.msra.mxu0 0.0
        %4427 = vmatpush.msra.mxu0 0.0
        %4428 = vmatpush.msra.mxu0 0.0
        %4429 = vmatpush.msra.mxu0 %v3988
        %4430 = vmatmul.f32.gmra.mxu0 %v449
        %v4431 = vpop.f32.mrf.mxu0
        %v4432 = vadd.f32 0.0, %v4431
        %4433 = vdwg.mxu0
        %4434 = vmatpush.msra.mxu0 0.0
        %4435 = vmatpush.msra.mxu0 0.0
        %4436 = vmatpush.msra.mxu0 0.0
        %4437 = vmatpush.msra.mxu0 0.0
        %4438 = vmatpush.msra.mxu0 0.0
        %4439 = vmatpush.msra.mxu0 0.0
        %4440 = vmatpush.msra.mxu0 0.0
        %4441 = vmatpush.msra.mxu0 0.0
        %4442 = vmatpush.msra.mxu0 0.0
        %4443 = vmatpush.msra.mxu0 0.0
        %4444 = vmatpush.msra.mxu0 0.0
        %4445 = vmatpush.msra.mxu0 0.0
        %4446 = vmatpush.msra.mxu0 0.0
        %4447 = vmatpush.msra.mxu0 0.0
        %4448 = vmatpush.msra.mxu0 0.0
        %4449 = vmatpush.msra.mxu0 %v3990
        %4450 = vmatmul.f32.gmra.mxu0 %v449
        %v4451 = vpop.f32.mrf.mxu0
        %v4452 = vadd.f32 0.0, %v4451
        %4453 = vdwg.mxu0
        %4454 = vmatpush.msra.mxu0 0.0
        %4455 = vmatpush.msra.mxu0 0.0
        %4456 = vmatpush.msra.mxu0 0.0
        %4457 = vmatpush.msra.mxu0 0.0
        %4458 = vmatpush.msra.mxu0 0.0
        %4459 = vmatpush.msra.mxu0 0.0
        %4460 = vmatpush.msra.mxu0 0.0
        %4461 = vmatpush.msra.mxu0 0.0
        %4462 = vmatpush.msra.mxu0 0.0
        %4463 = vmatpush.msra.mxu0 0.0
        %4464 = vmatpush.msra.mxu0 0.0
        %4465 = vmatpush.msra.mxu0 0.0
        %4466 = vmatpush.msra.mxu0 0.0
        %4467 = vmatpush.msra.mxu0 0.0
        %4468 = vmatpush.msra.mxu0 0.0
        %4469 = vmatpush.msra.mxu0 %v3992
        %4470 = vmatmul.f32.gmra.mxu0 %v449
        %v4471 = vpop.f32.mrf.mxu0
        %v4472 = vadd.f32 0.0, %v4471
        %4473 = vdwg.mxu0
        %4486 = vst [vmem:[#allocation1] ss:$2 sm:$0xff] %v378
        %s4487 = scalar_lea.vmem [#allocation1], 16
        %4488 = vst [vmem:[%s4487] ss:$2 sm:$0xff] %v379
        %s4489 = scalar_lea.vmem [#allocation1], 32
        %4490 = vst [vmem:[%s4489] ss:$2 sm:$0xff] %v380
        %s4491 = scalar_lea.vmem [#allocation1], 48
        %4492 = vst [vmem:[%s4491] ss:$2 sm:$0xff] %v381
        %v4493 = vld.sshfl [vmem:[#allocation1] sm:$0xff pattern:$0x75316420]
        %v4494 = vld.sshfl [vmem:[#allocation1 + $0x8] sm:$0xff pattern:$0x75316420]
        %v4495 = vld.sshfl [vmem:[#allocation1 + $0x10] sm:$0xff pattern:$0x75316420]
        %v4496 = vld.sshfl [vmem:[#allocation1 + $0x18] sm:$0xff pattern:$0x75316420]
        %v4497 = vld.sshfl [vmem:[#allocation1 + $0x20] sm:$0xff pattern:$0x75316420]
        %v4498 = vld.sshfl [vmem:[#allocation1 + $0x28] sm:$0xff pattern:$0x75316420]
        %v4499 = vld.sshfl [vmem:[#allocation1 + $0x30] sm:$0xff pattern:$0x75316420]
        %v4500 = vld.sshfl [vmem:[#allocation1 + $0x38] sm:$0xff pattern:$0x75316420]
        %4501 = vst [vmem:[#allocation1] ss:$2 sm:$0xff] %v382
        %4502 = vst [vmem:[%s4487] ss:$2 sm:$0xff] %v383
        %4503 = vst [vmem:[%s4489] ss:$2 sm:$0xff] %v384
        %4504 = vst [vmem:[%s4491] ss:$2 sm:$0xff] %v385
        %v4505 = vld.sshfl [vmem:[#allocation1] sm:$0xff pattern:$0x75316420]
        %v4506 = vld.sshfl [vmem:[#allocation1 + $0x8] sm:$0xff pattern:$0x75316420]
        %v4507 = vld.sshfl [vmem:[#allocation1 + $0x10] sm:$0xff pattern:$0x75316420]
        %v4508 = vld.sshfl [vmem:[#allocation1 + $0x18] sm:$0xff pattern:$0x75316420]
        %v4509 = vld.sshfl [vmem:[#allocation1 + $0x20] sm:$0xff pattern:$0x75316420]
        %v4510 = vld.sshfl [vmem:[#allocation1 + $0x28] sm:$0xff pattern:$0x75316420]
        %v4511 = vld.sshfl [vmem:[#allocation1 + $0x30] sm:$0xff pattern:$0x75316420]
        %v4512 = vld.sshfl [vmem:[#allocation1 + $0x38] sm:$0xff pattern:$0x75316420]
        %4513 = vst [vmem:[#allocation1] ss:$2 sm:$0xff] %v386
        %4514 = vst [vmem:[%s4487] ss:$2 sm:$0xff] %v387
        %4515 = vst [vmem:[%s4489] ss:$2 sm:$0xff] %v388
        %4516 = vst [vmem:[%s4491] ss:$2 sm:$0xff] %v389
        %v4517 = vld.sshfl [vmem:[#allocation1] sm:$0xff pattern:$0x75316420]
        %v4518 = vld.sshfl [vmem:[#allocation1 + $0x8] sm:$0xff pattern:$0x75316420]
        %v4519 = vld.sshfl [vmem:[#allocation1 + $0x10] sm:$0xff pattern:$0x75316420]
        %v4520 = vld.sshfl [vmem:[#allocation1 + $0x18] sm:$0xff pattern:$0x75316420]
        %v4521 = vld.sshfl [vmem:[#allocation1 + $0x20] sm:$0xff pattern:$0x75316420]
        %v4522 = vld.sshfl [vmem:[#allocation1 + $0x28] sm:$0xff pattern:$0x75316420]
        %v4523 = vld.sshfl [vmem:[#allocation1 + $0x30] sm:$0xff pattern:$0x75316420]
        %v4524 = vld.sshfl [vmem:[#allocation1 + $0x38] sm:$0xff pattern:$0x75316420]
        %v4525 = vsel %vm451, %v4493, 0
        %v4527 = vsel %vm451, %v4494, 0
        %v4529 = vsel %vm451, %v4495, 0
        %v4531 = vsel %vm451, %v4496, 0
        %v4533 = vsel %vm451, %v4497, 0
        %v4535 = vsel %vm451, %v4498, 0
        %v4537 = vsel %vm451, %v4499, 0
        %v4539 = vsel %vm451, %v4500, 0
        %v4541 = vsel %vm451, %v4505, 0
        %v4543 = vsel %vm451, %v4506, 0
        %v4545 = vsel %vm451, %v4507, 0
        %v4547 = vsel %vm451, %v4508, 0
        %v4549 = vsel %vm451, %v4509, 0
        %v4551 = vsel %vm451, %v4510, 0
        %v4553 = vsel %vm451, %v4511, 0
        %v4555 = vsel %vm451, %v4512, 0
        %v4557 = vsel %vm451, %v4517, 0
        %v4559 = vsel %vm451, %v4518, 0
        %v4561 = vsel %vm451, %v4519, 0
        %v4563 = vsel %vm451, %v4520, 0
        %v4565 = vsel %vm451, %v4521, 0
        %v4567 = vsel %vm451, %v4522, 0
        %v4569 = vsel %vm451, %v4523, 0
        %v4571 = vsel %vm451, %v4524, 0
        %4573 = vmatpush.msra.mxu0 0.0
        %4574 = vmatpush.msra.mxu0 0.0
        %4575 = vmatpush.msra.mxu0 0.0
        %4576 = vmatpush.msra.mxu0 0.0
        %4577 = vmatpush.msra.mxu0 0.0
        %4578 = vmatpush.msra.mxu0 0.0
        %4579 = vmatpush.msra.mxu0 0.0
        %4580 = vmatpush.msra.mxu0 0.0
        %4581 = vmatpush.msra.mxu0 0.0
        %4582 = vmatpush.msra.mxu0 0.0
        %4583 = vmatpush.msra.mxu0 0.0
        %4584 = vmatpush.msra.mxu0 0.0
        %4585 = vmatpush.msra.mxu0 0.0
        %4586 = vmatpush.msra.mxu0 0.0
        %4587 = vmatpush.msra.mxu0 0.0
        %4588 = vmatpush.msra.mxu0 %v4525
        %4589 = vmatmul.f32.gmra.mxu0 %v1032
        %v4590 = vpop.f32.mrf.mxu0
        %v4591 = vadd.f32 %v4012, %v4590
        %4592 = vdwg.mxu0
        %4593 = vmatpush.msra.mxu0 0.0
        %4594 = vmatpush.msra.mxu0 0.0
        %4595 = vmatpush.msra.mxu0 0.0
        %4596 = vmatpush.msra.mxu0 0.0
        %4597 = vmatpush.msra.mxu0 0.0
        %4598 = vmatpush.msra.mxu0 0.0
        %4599 = vmatpush.msra.mxu0 0.0
        %4600 = vmatpush.msra.mxu0 0.0
        %4601 = vmatpush.msra.mxu0 0.0
        %4602 = vmatpush.msra.mxu0 0.0
        %4603 = vmatpush.msra.mxu0 0.0
        %4604 = vmatpush.msra.mxu0 0.0
        %4605 = vmatpush.msra.mxu0 0.0
        %4606 = vmatpush.msra.mxu0 0.0
        %4607 = vmatpush.msra.mxu0 0.0
        %4608 = vmatpush.msra.mxu0 %v4527
        %4609 = vmatmul.f32.gmra.mxu0 %v1032
        %v4610 = vpop.f32.mrf.mxu0
        %v4611 = vadd.f32 %v4032, %v4610
        %4612 = vdwg.mxu0
        %4613 = vmatpush.msra.mxu0 0.0
        %4614 = vmatpush.msra.mxu0 0.0
        %4615 = vmatpush.msra.mxu0 0.0
        %4616 = vmatpush.msra.mxu0 0.0
        %4617 = vmatpush.msra.mxu0 0.0
        %4618 = vmatpush.msra.mxu0 0.0
        %4619 = vmatpush.msra.mxu0 0.0
        %4620 = vmatpush.msra.mxu0 0.0
        %4621 = vmatpush.msra.mxu0 0.0
        %4622 = vmatpush.msra.mxu0 0.0
        %4623 = vmatpush.msra.mxu0 0.0
        %4624 = vmatpush.msra.mxu0 0.0
        %4625 = vmatpush.msra.mxu0 0.0
        %4626 = vmatpush.msra.mxu0 0.0
        %4627 = vmatpush.msra.mxu0 0.0
        %4628 = vmatpush.msra.mxu0 %v4529
        %4629 = vmatmul.f32.gmra.mxu0 %v1032
        %v4630 = vpop.f32.mrf.mxu0
        %v4631 = vadd.f32 %v4052, %v4630
        %4632 = vdwg.mxu0
        %4633 = vmatpush.msra.mxu0 0.0
        %4634 = vmatpush.msra.mxu0 0.0
        %4635 = vmatpush.msra.mxu0 0.0
        %4636 = vmatpush.msra.mxu0 0.0
        %4637 = vmatpush.msra.mxu0 0.0
        %4638 = vmatpush.msra.mxu0 0.0
        %4639 = vmatpush.msra.mxu0 0.0
        %4640 = vmatpush.msra.mxu0 0.0
        %4641 = vmatpush.msra.mxu0 0.0
        %4642 = vmatpush.msra.mxu0 0.0
        %4643 = vmatpush.msra.mxu0 0.0
        %4644 = vmatpush.msra.mxu0 0.0
        %4645 = vmatpush.msra.mxu0 0.0
        %4646 = vmatpush.msra.mxu0 0.0
        %4647 = vmatpush.msra.mxu0 0.0
        %4648 = vmatpush.msra.mxu0 %v4531
        %4649 = vmatmul.f32.gmra.mxu0 %v1032
        %v4650 = vpop.f32.mrf.mxu0
        %v4651 = vadd.f32 %v4072, %v4650
        %4652 = vdwg.mxu0
        %4653 = vmatpush.msra.mxu0 0.0
        %4654 = vmatpush.msra.mxu0 0.0
        %4655 = vmatpush.msra.mxu0 0.0
        %4656 = vmatpush.msra.mxu0 0.0
        %4657 = vmatpush.msra.mxu0 0.0
        %4658 = vmatpush.msra.mxu0 0.0
        %4659 = vmatpush.msra.mxu0 0.0
        %4660 = vmatpush.msra.mxu0 0.0
        %4661 = vmatpush.msra.mxu0 0.0
        %4662 = vmatpush.msra.mxu0 0.0
        %4663 = vmatpush.msra.mxu0 0.0
        %4664 = vmatpush.msra.mxu0 0.0
        %4665 = vmatpush.msra.mxu0 0.0
        %4666 = vmatpush.msra.mxu0 0.0
        %4667 = vmatpush.msra.mxu0 0.0
        %4668 = vmatpush.msra.mxu0 %v4533
        %4669 = vmatmul.f32.gmra.mxu0 %v1032
        %v4670 = vpop.f32.mrf.mxu0
        %v4671 = vadd.f32 %v4092, %v4670
        %4672 = vdwg.mxu0
        %4673 = vmatpush.msra.mxu0 0.0
        %4674 = vmatpush.msra.mxu0 0.0
        %4675 = vmatpush.msra.mxu0 0.0
        %4676 = vmatpush.msra.mxu0 0.0
        %4677 = vmatpush.msra.mxu0 0.0
        %4678 = vmatpush.msra.mxu0 0.0
        %4679 = vmatpush.msra.mxu0 0.0
        %4680 = vmatpush.msra.mxu0 0.0
        %4681 = vmatpush.msra.mxu0 0.0
        %4682 = vmatpush.msra.mxu0 0.0
        %4683 = vmatpush.msra.mxu0 0.0
        %4684 = vmatpush.msra.mxu0 0.0
        %4685 = vmatpush.msra.mxu0 0.0
        %4686 = vmatpush.msra.mxu0 0.0
        %4687 = vmatpush.msra.mxu0 0.0
        %4688 = vmatpush.msra.mxu0 %v4535
        %4689 = vmatmul.f32.gmra.mxu0 %v1032
        %v4690 = vpop.f32.mrf.mxu0
        %v4691 = vadd.f32 %v4112, %v4690
        %4692 = vdwg.mxu0
        %4693 = vmatpush.msra.mxu0 0.0
        %4694 = vmatpush.msra.mxu0 0.0
        %4695 = vmatpush.msra.mxu0 0.0
        %4696 = vmatpush.msra.mxu0 0.0
        %4697 = vmatpush.msra.mxu0 0.0
        %4698 = vmatpush.msra.mxu0 0.0
        %4699 = vmatpush.msra.mxu0 0.0
        %4700 = vmatpush.msra.mxu0 0.0
        %4701 = vmatpush.msra.mxu0 0.0
        %4702 = vmatpush.msra.mxu0 0.0
        %4703 = vmatpush.msra.mxu0 0.0
        %4704 = vmatpush.msra.mxu0 0.0
        %4705 = vmatpush.msra.mxu0 0.0
        %4706 = vmatpush.msra.mxu0 0.0
        %4707 = vmatpush.msra.mxu0 0.0
        %4708 = vmatpush.msra.mxu0 %v4537
        %4709 = vmatmul.f32.gmra.mxu0 %v1032
        %v4710 = vpop.f32.mrf.mxu0
        %v4711 = vadd.f32 %v4132, %v4710
        %4712 = vdwg.mxu0
        %4713 = vmatpush.msra.mxu0 0.0
        %4714 = vmatpush.msra.mxu0 0.0
        %4715 = vmatpush.msra.mxu0 0.0
        %4716 = vmatpush.msra.mxu0 0.0
        %4717 = vmatpush.msra.mxu0 0.0
        %4718 = vmatpush.msra.mxu0 0.0
        %4719 = vmatpush.msra.mxu0 0.0
        %4720 = vmatpush.msra.mxu0 0.0
        %4721 = vmatpush.msra.mxu0 0.0
        %4722 = vmatpush.msra.mxu0 0.0
        %4723 = vmatpush.msra.mxu0 0.0
        %4724 = vmatpush.msra.mxu0 0.0
        %4725 = vmatpush.msra.mxu0 0.0
        %4726 = vmatpush.msra.mxu0 0.0
        %4727 = vmatpush.msra.mxu0 0.0
        %4728 = vmatpush.msra.mxu0 %v4539
        %4729 = vmatmul.f32.gmra.mxu0 %v1032
        %v4730 = vpop.f32.mrf.mxu0
        %v4731 = vadd.f32 %v4152, %v4730
        %4732 = vdwg.mxu0
        %4733 = vmatpush.msra.mxu0 0.0
        %4734 = vmatpush.msra.mxu0 0.0
        %4735 = vmatpush.msra.mxu0 0.0
        %4736 = vmatpush.msra.mxu0 0.0
        %4737 = vmatpush.msra.mxu0 0.0
        %4738 = vmatpush.msra.mxu0 0.0
        %4739 = vmatpush.msra.mxu0 0.0
        %4740 = vmatpush.msra.mxu0 0.0
        %4741 = vmatpush.msra.mxu0 0.0
        %4742 = vmatpush.msra.mxu0 0.0
        %4743 = vmatpush.msra.mxu0 0.0
        %4744 = vmatpush.msra.mxu0 0.0
        %4745 = vmatpush.msra.mxu0 0.0
        %4746 = vmatpush.msra.mxu0 0.0
        %4747 = vmatpush.msra.mxu0 0.0
        %4748 = vmatpush.msra.mxu0 %v4541
        %4749 = vmatmul.f32.gmra.mxu0 %v1032
        %v4750 = vpop.f32.mrf.mxu0
        %v4751 = vadd.f32 %v4172, %v4750
        %4752 = vdwg.mxu0
        %4753 = vmatpush.msra.mxu0 0.0
        %4754 = vmatpush.msra.mxu0 0.0
        %4755 = vmatpush.msra.mxu0 0.0
        %4756 = vmatpush.msra.mxu0 0.0
        %4757 = vmatpush.msra.mxu0 0.0
        %4758 = vmatpush.msra.mxu0 0.0
        %4759 = vmatpush.msra.mxu0 0.0
        %4760 = vmatpush.msra.mxu0 0.0
        %4761 = vmatpush.msra.mxu0 0.0
        %4762 = vmatpush.msra.mxu0 0.0
        %4763 = vmatpush.msra.mxu0 0.0
        %4764 = vmatpush.msra.mxu0 0.0
        %4765 = vmatpush.msra.mxu0 0.0
        %4766 = vmatpush.msra.mxu0 0.0
        %4767 = vmatpush.msra.mxu0 0.0
        %4768 = vmatpush.msra.mxu0 %v4543
        %4769 = vmatmul.f32.gmra.mxu0 %v1032
        %v4770 = vpop.f32.mrf.mxu0
        %v4771 = vadd.f32 %v4192, %v4770
        %4772 = vdwg.mxu0
        %4773 = vmatpush.msra.mxu0 0.0
        %4774 = vmatpush.msra.mxu0 0.0
        %4775 = vmatpush.msra.mxu0 0.0
        %4776 = vmatpush.msra.mxu0 0.0
        %4777 = vmatpush.msra.mxu0 0.0
        %4778 = vmatpush.msra.mxu0 0.0
        %4779 = vmatpush.msra.mxu0 0.0
        %4780 = vmatpush.msra.mxu0 0.0
        %4781 = vmatpush.msra.mxu0 0.0
        %4782 = vmatpush.msra.mxu0 0.0
        %4783 = vmatpush.msra.mxu0 0.0
        %4784 = vmatpush.msra.mxu0 0.0
        %4785 = vmatpush.msra.mxu0 0.0
        %4786 = vmatpush.msra.mxu0 0.0
        %4787 = vmatpush.msra.mxu0 0.0
        %4788 = vmatpush.msra.mxu0 %v4545
        %4789 = vmatmul.f32.gmra.mxu0 %v1032
        %v4790 = vpop.f32.mrf.mxu0
        %v4791 = vadd.f32 %v4212, %v4790
        %4792 = vdwg.mxu0
        %4793 = vmatpush.msra.mxu0 0.0
        %4794 = vmatpush.msra.mxu0 0.0
        %4795 = vmatpush.msra.mxu0 0.0
        %4796 = vmatpush.msra.mxu0 0.0
        %4797 = vmatpush.msra.mxu0 0.0
        %4798 = vmatpush.msra.mxu0 0.0
        %4799 = vmatpush.msra.mxu0 0.0
        %4800 = vmatpush.msra.mxu0 0.0
        %4801 = vmatpush.msra.mxu0 0.0
        %4802 = vmatpush.msra.mxu0 0.0
        %4803 = vmatpush.msra.mxu0 0.0
        %4804 = vmatpush.msra.mxu0 0.0
        %4805 = vmatpush.msra.mxu0 0.0
        %4806 = vmatpush.msra.mxu0 0.0
        %4807 = vmatpush.msra.mxu0 0.0
        %4808 = vmatpush.msra.mxu0 %v4547
        %4809 = vmatmul.f32.gmra.mxu0 %v1032
        %v4810 = vpop.f32.mrf.mxu0
        %v4811 = vadd.f32 %v4232, %v4810
        %4812 = vdwg.mxu0
        %4813 = vmatpush.msra.mxu0 0.0
        %4814 = vmatpush.msra.mxu0 0.0
        %4815 = vmatpush.msra.mxu0 0.0
        %4816 = vmatpush.msra.mxu0 0.0
        %4817 = vmatpush.msra.mxu0 0.0
        %4818 = vmatpush.msra.mxu0 0.0
        %4819 = vmatpush.msra.mxu0 0.0
        %4820 = vmatpush.msra.mxu0 0.0
        %4821 = vmatpush.msra.mxu0 0.0
        %4822 = vmatpush.msra.mxu0 0.0
        %4823 = vmatpush.msra.mxu0 0.0
        %4824 = vmatpush.msra.mxu0 0.0
        %4825 = vmatpush.msra.mxu0 0.0
        %4826 = vmatpush.msra.mxu0 0.0
        %4827 = vmatpush.msra.mxu0 0.0
        %4828 = vmatpush.msra.mxu0 %v4549
        %4829 = vmatmul.f32.gmra.mxu0 %v1032
        %v4830 = vpop.f32.mrf.mxu0
        %v4831 = vadd.f32 %v4252, %v4830
        %4832 = vdwg.mxu0
        %4833 = vmatpush.msra.mxu0 0.0
        %4834 = vmatpush.msra.mxu0 0.0
        %4835 = vmatpush.msra.mxu0 0.0
        %4836 = vmatpush.msra.mxu0 0.0
        %4837 = vmatpush.msra.mxu0 0.0
        %4838 = vmatpush.msra.mxu0 0.0
        %4839 = vmatpush.msra.mxu0 0.0
        %4840 = vmatpush.msra.mxu0 0.0
        %4841 = vmatpush.msra.mxu0 0.0
        %4842 = vmatpush.msra.mxu0 0.0
        %4843 = vmatpush.msra.mxu0 0.0
        %4844 = vmatpush.msra.mxu0 0.0
        %4845 = vmatpush.msra.mxu0 0.0
        %4846 = vmatpush.msra.mxu0 0.0
        %4847 = vmatpush.msra.mxu0 0.0
        %4848 = vmatpush.msra.mxu0 %v4551
        %4849 = vmatmul.f32.gmra.mxu0 %v1032
        %v4850 = vpop.f32.mrf.mxu0
        %v4851 = vadd.f32 %v4272, %v4850
        %4852 = vdwg.mxu0
        %4853 = vmatpush.msra.mxu0 0.0
        %4854 = vmatpush.msra.mxu0 0.0
        %4855 = vmatpush.msra.mxu0 0.0
        %4856 = vmatpush.msra.mxu0 0.0
        %4857 = vmatpush.msra.mxu0 0.0
        %4858 = vmatpush.msra.mxu0 0.0
        %4859 = vmatpush.msra.mxu0 0.0
        %4860 = vmatpush.msra.mxu0 0.0
        %4861 = vmatpush.msra.mxu0 0.0
        %4862 = vmatpush.msra.mxu0 0.0
        %4863 = vmatpush.msra.mxu0 0.0
        %4864 = vmatpush.msra.mxu0 0.0
        %4865 = vmatpush.msra.mxu0 0.0
        %4866 = vmatpush.msra.mxu0 0.0
        %4867 = vmatpush.msra.mxu0 0.0
        %4868 = vmatpush.msra.mxu0 %v4553
        %4869 = vmatmul.f32.gmra.mxu0 %v1032
        %v4870 = vpop.f32.mrf.mxu0
        %v4871 = vadd.f32 %v4292, %v4870
        %4872 = vdwg.mxu0
        %4873 = vmatpush.msra.mxu0 0.0
        %4874 = vmatpush.msra.mxu0 0.0
        %4875 = vmatpush.msra.mxu0 0.0
        %4876 = vmatpush.msra.mxu0 0.0
        %4877 = vmatpush.msra.mxu0 0.0
        %4878 = vmatpush.msra.mxu0 0.0
        %4879 = vmatpush.msra.mxu0 0.0
        %4880 = vmatpush.msra.mxu0 0.0
        %4881 = vmatpush.msra.mxu0 0.0
        %4882 = vmatpush.msra.mxu0 0.0
        %4883 = vmatpush.msra.mxu0 0.0
        %4884 = vmatpush.msra.mxu0 0.0
        %4885 = vmatpush.msra.mxu0 0.0
        %4886 = vmatpush.msra.mxu0 0.0
        %4887 = vmatpush.msra.mxu0 0.0
        %4888 = vmatpush.msra.mxu0 %v4555
        %4889 = vmatmul.f32.gmra.mxu0 %v1032
        %v4890 = vpop.f32.mrf.mxu0
        %v4891 = vadd.f32 %v4312, %v4890
        %4892 = vdwg.mxu0
        %4893 = vmatpush.msra.mxu0 0.0
        %4894 = vmatpush.msra.mxu0 0.0
        %4895 = vmatpush.msra.mxu0 0.0
        %4896 = vmatpush.msra.mxu0 0.0
        %4897 = vmatpush.msra.mxu0 0.0
        %4898 = vmatpush.msra.mxu0 0.0
        %4899 = vmatpush.msra.mxu0 0.0
        %4900 = vmatpush.msra.mxu0 0.0
        %4901 = vmatpush.msra.mxu0 0.0
        %4902 = vmatpush.msra.mxu0 0.0
        %4903 = vmatpush.msra.mxu0 0.0
        %4904 = vmatpush.msra.mxu0 0.0
        %4905 = vmatpush.msra.mxu0 0.0
        %4906 = vmatpush.msra.mxu0 0.0
        %4907 = vmatpush.msra.mxu0 0.0
        %4908 = vmatpush.msra.mxu0 %v4557
        %4909 = vmatmul.f32.gmra.mxu0 %v1032
        %v4910 = vpop.f32.mrf.mxu0
        %v4911 = vadd.f32 %v4332, %v4910
        %4912 = vdwg.mxu0
        %4913 = vmatpush.msra.mxu0 0.0
        %4914 = vmatpush.msra.mxu0 0.0
        %4915 = vmatpush.msra.mxu0 0.0
        %4916 = vmatpush.msra.mxu0 0.0
        %4917 = vmatpush.msra.mxu0 0.0
        %4918 = vmatpush.msra.mxu0 0.0
        %4919 = vmatpush.msra.mxu0 0.0
        %4920 = vmatpush.msra.mxu0 0.0
        %4921 = vmatpush.msra.mxu0 0.0
        %4922 = vmatpush.msra.mxu0 0.0
        %4923 = vmatpush.msra.mxu0 0.0
        %4924 = vmatpush.msra.mxu0 0.0
        %4925 = vmatpush.msra.mxu0 0.0
        %4926 = vmatpush.msra.mxu0 0.0
        %4927 = vmatpush.msra.mxu0 0.0
        %4928 = vmatpush.msra.mxu0 %v4559
        %4929 = vmatmul.f32.gmra.mxu0 %v1032
        %v4930 = vpop.f32.mrf.mxu0
        %v4931 = vadd.f32 %v4352, %v4930
        %4932 = vdwg.mxu0
        %4933 = vmatpush.msra.mxu0 0.0
        %4934 = vmatpush.msra.mxu0 0.0
        %4935 = vmatpush.msra.mxu0 0.0
        %4936 = vmatpush.msra.mxu0 0.0
        %4937 = vmatpush.msra.mxu0 0.0
        %4938 = vmatpush.msra.mxu0 0.0
        %4939 = vmatpush.msra.mxu0 0.0
        %4940 = vmatpush.msra.mxu0 0.0
        %4941 = vmatpush.msra.mxu0 0.0
        %4942 = vmatpush.msra.mxu0 0.0
        %4943 = vmatpush.msra.mxu0 0.0
        %4944 = vmatpush.msra.mxu0 0.0
        %4945 = vmatpush.msra.mxu0 0.0
        %4946 = vmatpush.msra.mxu0 0.0
        %4947 = vmatpush.msra.mxu0 0.0
        %4948 = vmatpush.msra.mxu0 %v4561
        %4949 = vmatmul.f32.gmra.mxu0 %v1032
        %v4950 = vpop.f32.mrf.mxu0
        %v4951 = vadd.f32 %v4372, %v4950
        %4952 = vdwg.mxu0
        %4953 = vmatpush.msra.mxu0 0.0
        %4954 = vmatpush.msra.mxu0 0.0
        %4955 = vmatpush.msra.mxu0 0.0
        %4956 = vmatpush.msra.mxu0 0.0
        %4957 = vmatpush.msra.mxu0 0.0
        %4958 = vmatpush.msra.mxu0 0.0
        %4959 = vmatpush.msra.mxu0 0.0
        %4960 = vmatpush.msra.mxu0 0.0
        %4961 = vmatpush.msra.mxu0 0.0
        %4962 = vmatpush.msra.mxu0 0.0
        %4963 = vmatpush.msra.mxu0 0.0
        %4964 = vmatpush.msra.mxu0 0.0
        %4965 = vmatpush.msra.mxu0 0.0
        %4966 = vmatpush.msra.mxu0 0.0
        %4967 = vmatpush.msra.mxu0 0.0
        %4968 = vmatpush.msra.mxu0 %v4563
        %4969 = vmatmul.f32.gmra.mxu0 %v1032
        %v4970 = vpop.f32.mrf.mxu0
        %v4971 = vadd.f32 %v4392, %v4970
        %4972 = vdwg.mxu0
        %4973 = vmatpush.msra.mxu0 0.0
        %4974 = vmatpush.msra.mxu0 0.0
        %4975 = vmatpush.msra.mxu0 0.0
        %4976 = vmatpush.msra.mxu0 0.0
        %4977 = vmatpush.msra.mxu0 0.0
        %4978 = vmatpush.msra.mxu0 0.0
        %4979 = vmatpush.msra.mxu0 0.0
        %4980 = vmatpush.msra.mxu0 0.0
        %4981 = vmatpush.msra.mxu0 0.0
        %4982 = vmatpush.msra.mxu0 0.0
        %4983 = vmatpush.msra.mxu0 0.0
        %4984 = vmatpush.msra.mxu0 0.0
        %4985 = vmatpush.msra.mxu0 0.0
        %4986 = vmatpush.msra.mxu0 0.0
        %4987 = vmatpush.msra.mxu0 0.0
        %4988 = vmatpush.msra.mxu0 %v4565
        %4989 = vmatmul.f32.gmra.mxu0 %v1032
        %v4990 = vpop.f32.mrf.mxu0
        %v4991 = vadd.f32 %v4412, %v4990
        %4992 = vdwg.mxu0
        %4993 = vmatpush.msra.mxu0 0.0
        %4994 = vmatpush.msra.mxu0 0.0
        %4995 = vmatpush.msra.mxu0 0.0
        %4996 = vmatpush.msra.mxu0 0.0
        %4997 = vmatpush.msra.mxu0 0.0
        %4998 = vmatpush.msra.mxu0 0.0
        %4999 = vmatpush.msra.mxu0 0.0
        %5000 = vmatpush.msra.mxu0 0.0
        %5001 = vmatpush.msra.mxu0 0.0
        %5002 = vmatpush.msra.mxu0 0.0
        %5003 = vmatpush.msra.mxu0 0.0
        %5004 = vmatpush.msra.mxu0 0.0
        %5005 = vmatpush.msra.mxu0 0.0
        %5006 = vmatpush.msra.mxu0 0.0
        %5007 = vmatpush.msra.mxu0 0.0
        %5008 = vmatpush.msra.mxu0 %v4567
        %5009 = vmatmul.f32.gmra.mxu0 %v1032
        %v5010 = vpop.f32.mrf.mxu0
        %v5011 = vadd.f32 %v4432, %v5010
        %5012 = vdwg.mxu0
        %5013 = vmatpush.msra.mxu0 0.0
        %5014 = vmatpush.msra.mxu0 0.0
        %5015 = vmatpush.msra.mxu0 0.0
        %5016 = vmatpush.msra.mxu0 0.0
        %5017 = vmatpush.msra.mxu0 0.0
        %5018 = vmatpush.msra.mxu0 0.0
        %5019 = vmatpush.msra.mxu0 0.0
        %5020 = vmatpush.msra.mxu0 0.0
        %5021 = vmatpush.msra.mxu0 0.0
        %5022 = vmatpush.msra.mxu0 0.0
        %5023 = vmatpush.msra.mxu0 0.0
        %5024 = vmatpush.msra.mxu0 0.0
        %5025 = vmatpush.msra.mxu0 0.0
        %5026 = vmatpush.msra.mxu0 0.0
        %5027 = vmatpush.msra.mxu0 0.0
        %5028 = vmatpush.msra.mxu0 %v4569
        %5029 = vmatmul.f32.gmra.mxu0 %v1032
        %v5030 = vpop.f32.mrf.mxu0
        %v5031 = vadd.f32 %v4452, %v5030
        %5032 = vdwg.mxu0
        %5033 = vmatpush.msra.mxu0 0.0
        %5034 = vmatpush.msra.mxu0 0.0
        %5035 = vmatpush.msra.mxu0 0.0
        %5036 = vmatpush.msra.mxu0 0.0
        %5037 = vmatpush.msra.mxu0 0.0
        %5038 = vmatpush.msra.mxu0 0.0
        %5039 = vmatpush.msra.mxu0 0.0
        %5040 = vmatpush.msra.mxu0 0.0
        %5041 = vmatpush.msra.mxu0 0.0
        %5042 = vmatpush.msra.mxu0 0.0
        %5043 = vmatpush.msra.mxu0 0.0
        %5044 = vmatpush.msra.mxu0 0.0
        %5045 = vmatpush.msra.mxu0 0.0
        %5046 = vmatpush.msra.mxu0 0.0
        %5047 = vmatpush.msra.mxu0 0.0
        %5048 = vmatpush.msra.mxu0 %v4571
        %5049 = vmatmul.f32.gmra.mxu0 %v1032
        %v5050 = vpop.f32.mrf.mxu0
        %v5051 = vadd.f32 %v4472, %v5050
        %5052 = vdwg.mxu0
        %5053 = vst [vmem:[#allocation1] ss:$2 sm:$0xff] %v339
        %s5054 = scalar_lea.vmem [#allocation1], 16
        %5055 = vst [vmem:[%s5054] ss:$2 sm:$0xff] %v340
        %s5056 = scalar_lea.vmem [#allocation1], 32
        %5057 = vst [vmem:[%s5056] ss:$2 sm:$0xff] %v341
        %s5058 = scalar_lea.vmem [#allocation1], 48
        %5059 = vst [vmem:[%s5058] ss:$2 sm:$0xff] %v342
        %v5060 = vld.sshfl [vmem:[#allocation1] sm:$0xff pattern:$0x75316420]
        %v5061 = vld.sshfl [vmem:[#allocation1 + $0x8] sm:$0xff pattern:$0x75316420]
        %v5062 = vld.sshfl [vmem:[#allocation1 + $0x10] sm:$0xff pattern:$0x75316420]
        %v5063 = vld.sshfl [vmem:[#allocation1 + $0x18] sm:$0xff pattern:$0x75316420]
        %v5064 = vld.sshfl [vmem:[#allocation1 + $0x20] sm:$0xff pattern:$0x75316420]
        %v5065 = vld.sshfl [vmem:[#allocation1 + $0x28] sm:$0xff pattern:$0x75316420]
        %v5066 = vld.sshfl [vmem:[#allocation1 + $0x30] sm:$0xff pattern:$0x75316420]
        %v5067 = vld.sshfl [vmem:[#allocation1 + $0x38] sm:$0xff pattern:$0x75316420]
        %5068 = vst [vmem:[#allocation1] ss:$2 sm:$0xff] %v343
        %5069 = vst [vmem:[%s5054] ss:$2 sm:$0xff] %v344
        %5070 = vst [vmem:[%s5056] ss:$2 sm:$0xff] %v345
        %5071 = vst [vmem:[%s5058] ss:$2 sm:$0xff] %v346
        %v5072 = vld.sshfl [vmem:[#allocation1] sm:$0xff pattern:$0x75316420]
        %v5073 = vld.sshfl [vmem:[#allocation1 + $0x8] sm:$0xff pattern:$0x75316420]
        %v5074 = vld.sshfl [vmem:[#allocation1 + $0x10] sm:$0xff pattern:$0x75316420]
        %v5075 = vld.sshfl [vmem:[#allocation1 + $0x18] sm:$0xff pattern:$0x75316420]
        %v5076 = vld.sshfl [vmem:[#allocation1 + $0x20] sm:$0xff pattern:$0x75316420]
        %v5077 = vld.sshfl [vmem:[#allocation1 + $0x28] sm:$0xff pattern:$0x75316420]
        %v5078 = vld.sshfl [vmem:[#allocation1 + $0x30] sm:$0xff pattern:$0x75316420]
        %v5079 = vld.sshfl [vmem:[#allocation1 + $0x38] sm:$0xff pattern:$0x75316420]
        %5080 = vst [vmem:[#allocation1] ss:$2 sm:$0xff] %v347
        %5081 = vst [vmem:[%s5054] ss:$2 sm:$0xff] %v348
        %5082 = vst [vmem:[%s5056] ss:$2 sm:$0xff] %v349
        %5083 = vst [vmem:[%s5058] ss:$2 sm:$0xff] %v350
        %v5084 = vld.sshfl [vmem:[#allocation1] sm:$0xff pattern:$0x75316420]
        %v5085 = vld.sshfl [vmem:[#allocation1 + $0x8] sm:$0xff pattern:$0x75316420]
        %v5086 = vld.sshfl [vmem:[#allocation1 + $0x10] sm:$0xff pattern:$0x75316420]
        %v5087 = vld.sshfl [vmem:[#allocation1 + $0x18] sm:$0xff pattern:$0x75316420]
        %v5088 = vld.sshfl [vmem:[#allocation1 + $0x20] sm:$0xff pattern:$0x75316420]
        %v5089 = vld.sshfl [vmem:[#allocation1 + $0x28] sm:$0xff pattern:$0x75316420]
        %v5090 = vld.sshfl [vmem:[#allocation1 + $0x30] sm:$0xff pattern:$0x75316420]
        %v5091 = vld.sshfl [vmem:[#allocation1 + $0x38] sm:$0xff pattern:$0x75316420]
        %v5092 = vsel %vm451, %v5060, 0
        %v5094 = vsel %vm451, %v5061, 0
        %v5096 = vsel %vm451, %v5062, 0
        %v5098 = vsel %vm451, %v5063, 0
        %v5100 = vsel %vm451, %v5064, 0
        %v5102 = vsel %vm451, %v5065, 0
        %v5104 = vsel %vm451, %v5066, 0
        %v5106 = vsel %vm451, %v5067, 0
        %v5108 = vsel %vm451, %v5072, 0
        %v5110 = vsel %vm451, %v5073, 0
        %v5112 = vsel %vm451, %v5074, 0
        %v5114 = vsel %vm451, %v5075, 0
        %v5116 = vsel %vm451, %v5076, 0
        %v5118 = vsel %vm451, %v5077, 0
        %v5120 = vsel %vm451, %v5078, 0
        %v5122 = vsel %vm451, %v5079, 0
        %v5124 = vsel %vm451, %v5084, 0
        %v5126 = vsel %vm451, %v5085, 0
        %v5128 = vsel %vm451, %v5086, 0
        %v5130 = vsel %vm451, %v5087, 0
        %v5132 = vsel %vm451, %v5088, 0
        %v5134 = vsel %vm451, %v5089, 0
        %v5136 = vsel %vm451, %v5090, 0
        %v5138 = vsel %vm451, %v5091, 0
        %5140 = vmatpush.msra.mxu0 0.0
        %5141 = vmatpush.msra.mxu0 0.0
        %5142 = vmatpush.msra.mxu0 0.0
        %5143 = vmatpush.msra.mxu0 0.0
        %5144 = vmatpush.msra.mxu0 0.0
        %5145 = vmatpush.msra.mxu0 0.0
        %5146 = vmatpush.msra.mxu0 0.0
        %5147 = vmatpush.msra.mxu0 0.0
        %5148 = vmatpush.msra.mxu0 0.0
        %5149 = vmatpush.msra.mxu0 0.0
        %5150 = vmatpush.msra.mxu0 0.0
        %5151 = vmatpush.msra.mxu0 0.0
        %5152 = vmatpush.msra.mxu0 0.0
        %5153 = vmatpush.msra.mxu0 0.0
        %5154 = vmatpush.msra.mxu0 0.0
        %5155 = vmatpush.msra.mxu0 %v5092
        %5156 = vmatmul.f32.gmra.mxu0 %v1616
        %v5157 = vpop.f32.mrf.mxu0
        %v5158 = vadd.f32 0.0, %v5157
        %5159 = vdwg.mxu0
        %5160 = vmatpush.msra.mxu0 0.0
        %5161 = vmatpush.msra.mxu0 0.0
        %5162 = vmatpush.msra.mxu0 0.0
        %5163 = vmatpush.msra.mxu0 0.0
        %5164 = vmatpush.msra.mxu0 0.0
        %5165 = vmatpush.msra.mxu0 0.0
        %5166 = vmatpush.msra.mxu0 0.0
        %5167 = vmatpush.msra.mxu0 0.0
        %5168 = vmatpush.msra.mxu0 0.0
        %5169 = vmatpush.msra.mxu0 0.0
        %5170 = vmatpush.msra.mxu0 0.0
        %5171 = vmatpush.msra.mxu0 0.0
        %5172 = vmatpush.msra.mxu0 0.0
        %5173 = vmatpush.msra.mxu0 0.0
        %5174 = vmatpush.msra.mxu0 0.0
        %5175 = vmatpush.msra.mxu0 %v5094
        %5176 = vmatmul.f32.gmra.mxu0 %v1616
        %v5177 = vpop.f32.mrf.mxu0
        %v5178 = vadd.f32 0.0, %v5177
        %5179 = vdwg.mxu0
        %5180 = vmatpush.msra.mxu0 0.0
        %5181 = vmatpush.msra.mxu0 0.0
        %5182 = vmatpush.msra.mxu0 0.0
        %5183 = vmatpush.msra.mxu0 0.0
        %5184 = vmatpush.msra.mxu0 0.0
        %5185 = vmatpush.msra.mxu0 0.0
        %5186 = vmatpush.msra.mxu0 0.0
        %5187 = vmatpush.msra.mxu0 0.0
        %5188 = vmatpush.msra.mxu0 0.0
        %5189 = vmatpush.msra.mxu0 0.0
        %5190 = vmatpush.msra.mxu0 0.0
        %5191 = vmatpush.msra.mxu0 0.0
        %5192 = vmatpush.msra.mxu0 0.0
        %5193 = vmatpush.msra.mxu0 0.0
        %5194 = vmatpush.msra.mxu0 0.0
        %5195 = vmatpush.msra.mxu0 %v5096
        %5196 = vmatmul.f32.gmra.mxu0 %v1616
        %v5197 = vpop.f32.mrf.mxu0
        %v5198 = vadd.f32 0.0, %v5197
        %5199 = vdwg.mxu0
        %5200 = vmatpush.msra.mxu0 0.0
        %5201 = vmatpush.msra.mxu0 0.0
        %5202 = vmatpush.msra.mxu0 0.0
        %5203 = vmatpush.msra.mxu0 0.0
        %5204 = vmatpush.msra.mxu0 0.0
        %5205 = vmatpush.msra.mxu0 0.0
        %5206 = vmatpush.msra.mxu0 0.0
        %5207 = vmatpush.msra.mxu0 0.0
        %5208 = vmatpush.msra.mxu0 0.0
        %5209 = vmatpush.msra.mxu0 0.0
        %5210 = vmatpush.msra.mxu0 0.0
        %5211 = vmatpush.msra.mxu0 0.0
        %5212 = vmatpush.msra.mxu0 0.0
        %5213 = vmatpush.msra.mxu0 0.0
        %5214 = vmatpush.msra.mxu0 0.0
        %5215 = vmatpush.msra.mxu0 %v5098
        %5216 = vmatmul.f32.gmra.mxu0 %v1616
        %v5217 = vpop.f32.mrf.mxu0
        %v5218 = vadd.f32 0.0, %v5217
        %5219 = vdwg.mxu0
        %5220 = vmatpush.msra.mxu0 0.0
        %5221 = vmatpush.msra.mxu0 0.0
        %5222 = vmatpush.msra.mxu0 0.0
        %5223 = vmatpush.msra.mxu0 0.0
        %5224 = vmatpush.msra.mxu0 0.0
        %5225 = vmatpush.msra.mxu0 0.0
        %5226 = vmatpush.msra.mxu0 0.0
        %5227 = vmatpush.msra.mxu0 0.0
        %5228 = vmatpush.msra.mxu0 0.0
        %5229 = vmatpush.msra.mxu0 0.0
        %5230 = vmatpush.msra.mxu0 0.0
        %5231 = vmatpush.msra.mxu0 0.0
        %5232 = vmatpush.msra.mxu0 0.0
        %5233 = vmatpush.msra.mxu0 0.0
        %5234 = vmatpush.msra.mxu0 0.0
        %5235 = vmatpush.msra.mxu0 %v5100
        %5236 = vmatmul.f32.gmra.mxu0 %v1616
        %v5237 = vpop.f32.mrf.mxu0
        %v5238 = vadd.f32 0.0, %v5237
        %5239 = vdwg.mxu0
        %5240 = vmatpush.msra.mxu0 0.0
        %5241 = vmatpush.msra.mxu0 0.0
        %5242 = vmatpush.msra.mxu0 0.0
        %5243 = vmatpush.msra.mxu0 0.0
        %5244 = vmatpush.msra.mxu0 0.0
        %5245 = vmatpush.msra.mxu0 0.0
        %5246 = vmatpush.msra.mxu0 0.0
        %5247 = vmatpush.msra.mxu0 0.0
        %5248 = vmatpush.msra.mxu0 0.0
        %5249 = vmatpush.msra.mxu0 0.0
        %5250 = vmatpush.msra.mxu0 0.0
        %5251 = vmatpush.msra.mxu0 0.0
        %5252 = vmatpush.msra.mxu0 0.0
        %5253 = vmatpush.msra.mxu0 0.0
        %5254 = vmatpush.msra.mxu0 0.0
        %5255 = vmatpush.msra.mxu0 %v5102
        %5256 = vmatmul.f32.gmra.mxu0 %v1616
        %v5257 = vpop.f32.mrf.mxu0
        %v5258 = vadd.f32 0.0, %v5257
        %5259 = vdwg.mxu0
        %5260 = vmatpush.msra.mxu0 0.0
        %5261 = vmatpush.msra.mxu0 0.0
        %5262 = vmatpush.msra.mxu0 0.0
        %5263 = vmatpush.msra.mxu0 0.0
        %5264 = vmatpush.msra.mxu0 0.0
        %5265 = vmatpush.msra.mxu0 0.0
        %5266 = vmatpush.msra.mxu0 0.0
        %5267 = vmatpush.msra.mxu0 0.0
        %5268 = vmatpush.msra.mxu0 0.0
        %5269 = vmatpush.msra.mxu0 0.0
        %5270 = vmatpush.msra.mxu0 0.0
        %5271 = vmatpush.msra.mxu0 0.0
        %5272 = vmatpush.msra.mxu0 0.0
        %5273 = vmatpush.msra.mxu0 0.0
        %5274 = vmatpush.msra.mxu0 0.0
        %5275 = vmatpush.msra.mxu0 %v5104
        %5276 = vmatmul.f32.gmra.mxu0 %v1616
        %v5277 = vpop.f32.mrf.mxu0
        %v5278 = vadd.f32 0.0, %v5277
        %5279 = vdwg.mxu0
        %5280 = vmatpush.msra.mxu0 0.0
        %5281 = vmatpush.msra.mxu0 0.0
        %5282 = vmatpush.msra.mxu0 0.0
        %5283 = vmatpush.msra.mxu0 0.0
        %5284 = vmatpush.msra.mxu0 0.0
        %5285 = vmatpush.msra.mxu0 0.0
        %5286 = vmatpush.msra.mxu0 0.0
        %5287 = vmatpush.msra.mxu0 0.0
        %5288 = vmatpush.msra.mxu0 0.0
        %5289 = vmatpush.msra.mxu0 0.0
        %5290 = vmatpush.msra.mxu0 0.0
        %5291 = vmatpush.msra.mxu0 0.0
        %5292 = vmatpush.msra.mxu0 0.0
        %5293 = vmatpush.msra.mxu0 0.0
        %5294 = vmatpush.msra.mxu0 0.0
        %5295 = vmatpush.msra.mxu0 %v5106
        %5296 = vmatmul.f32.gmra.mxu0 %v1616
        %v5297 = vpop.f32.mrf.mxu0
        %v5298 = vadd.f32 0.0, %v5297
        %5299 = vdwg.mxu0
        %5300 = vmatpush.msra.mxu0 0.0
        %5301 = vmatpush.msra.mxu0 0.0
        %5302 = vmatpush.msra.mxu0 0.0
        %5303 = vmatpush.msra.mxu0 0.0
        %5304 = vmatpush.msra.mxu0 0.0
        %5305 = vmatpush.msra.mxu0 0.0
        %5306 = vmatpush.msra.mxu0 0.0
        %5307 = vmatpush.msra.mxu0 0.0
        %5308 = vmatpush.msra.mxu0 0.0
        %5309 = vmatpush.msra.mxu0 0.0
        %5310 = vmatpush.msra.mxu0 0.0
        %5311 = vmatpush.msra.mxu0 0.0
        %5312 = vmatpush.msra.mxu0 0.0
        %5313 = vmatpush.msra.mxu0 0.0
        %5314 = vmatpush.msra.mxu0 0.0
        %5315 = vmatpush.msra.mxu0 %v5108
        %5316 = vmatmul.f32.gmra.mxu0 %v1616
        %v5317 = vpop.f32.mrf.mxu0
        %v5318 = vadd.f32 0.0, %v5317
        %5319 = vdwg.mxu0
        %5320 = vmatpush.msra.mxu0 0.0
        %5321 = vmatpush.msra.mxu0 0.0
        %5322 = vmatpush.msra.mxu0 0.0
        %5323 = vmatpush.msra.mxu0 0.0
        %5324 = vmatpush.msra.mxu0 0.0
        %5325 = vmatpush.msra.mxu0 0.0
        %5326 = vmatpush.msra.mxu0 0.0
        %5327 = vmatpush.msra.mxu0 0.0
        %5328 = vmatpush.msra.mxu0 0.0
        %5329 = vmatpush.msra.mxu0 0.0
        %5330 = vmatpush.msra.mxu0 0.0
        %5331 = vmatpush.msra.mxu0 0.0
        %5332 = vmatpush.msra.mxu0 0.0
        %5333 = vmatpush.msra.mxu0 0.0
        %5334 = vmatpush.msra.mxu0 0.0
        %5335 = vmatpush.msra.mxu0 %v5110
        %5336 = vmatmul.f32.gmra.mxu0 %v1616
        %v5337 = vpop.f32.mrf.mxu0
        %v5338 = vadd.f32 0.0, %v5337
        %5339 = vdwg.mxu0
        %5340 = vmatpush.msra.mxu0 0.0
        %5341 = vmatpush.msra.mxu0 0.0
        %5342 = vmatpush.msra.mxu0 0.0
        %5343 = vmatpush.msra.mxu0 0.0
        %5344 = vmatpush.msra.mxu0 0.0
        %5345 = vmatpush.msra.mxu0 0.0
        %5346 = vmatpush.msra.mxu0 0.0
        %5347 = vmatpush.msra.mxu0 0.0
        %5348 = vmatpush.msra.mxu0 0.0
        %5349 = vmatpush.msra.mxu0 0.0
        %5350 = vmatpush.msra.mxu0 0.0
        %5351 = vmatpush.msra.mxu0 0.0
        %5352 = vmatpush.msra.mxu0 0.0
        %5353 = vmatpush.msra.mxu0 0.0
        %5354 = vmatpush.msra.mxu0 0.0
        %5355 = vmatpush.msra.mxu0 %v5112
        %5356 = vmatmul.f32.gmra.mxu0 %v1616
        %v5357 = vpop.f32.mrf.mxu0
        %v5358 = vadd.f32 0.0, %v5357
        %5359 = vdwg.mxu0
        %5360 = vmatpush.msra.mxu0 0.0
        %5361 = vmatpush.msra.mxu0 0.0
        %5362 = vmatpush.msra.mxu0 0.0
        %5363 = vmatpush.msra.mxu0 0.0
        %5364 = vmatpush.msra.mxu0 0.0
        %5365 = vmatpush.msra.mxu0 0.0
        %5366 = vmatpush.msra.mxu0 0.0
        %5367 = vmatpush.msra.mxu0 0.0
        %5368 = vmatpush.msra.mxu0 0.0
        %5369 = vmatpush.msra.mxu0 0.0
        %5370 = vmatpush.msra.mxu0 0.0
        %5371 = vmatpush.msra.mxu0 0.0
        %5372 = vmatpush.msra.mxu0 0.0
        %5373 = vmatpush.msra.mxu0 0.0
        %5374 = vmatpush.msra.mxu0 0.0
        %5375 = vmatpush.msra.mxu0 %v5114
        %5376 = vmatmul.f32.gmra.mxu0 %v1616
        %v5377 = vpop.f32.mrf.mxu0
        %v5378 = vadd.f32 0.0, %v5377
        %5379 = vdwg.mxu0
        %5380 = vmatpush.msra.mxu0 0.0
        %5381 = vmatpush.msra.mxu0 0.0
        %5382 = vmatpush.msra.mxu0 0.0
        %5383 = vmatpush.msra.mxu0 0.0
        %5384 = vmatpush.msra.mxu0 0.0
        %5385 = vmatpush.msra.mxu0 0.0
        %5386 = vmatpush.msra.mxu0 0.0
        %5387 = vmatpush.msra.mxu0 0.0
        %5388 = vmatpush.msra.mxu0 0.0
        %5389 = vmatpush.msra.mxu0 0.0
        %5390 = vmatpush.msra.mxu0 0.0
        %5391 = vmatpush.msra.mxu0 0.0
        %5392 = vmatpush.msra.mxu0 0.0
        %5393 = vmatpush.msra.mxu0 0.0
        %5394 = vmatpush.msra.mxu0 0.0
        %5395 = vmatpush.msra.mxu0 %v5116
        %5396 = vmatmul.f32.gmra.mxu0 %v1616
        %v5397 = vpop.f32.mrf.mxu0
        %v5398 = vadd.f32 0.0, %v5397
        %5399 = vdwg.mxu0
        %5400 = vmatpush.msra.mxu0 0.0
        %5401 = vmatpush.msra.mxu0 0.0
        %5402 = vmatpush.msra.mxu0 0.0
        %5403 = vmatpush.msra.mxu0 0.0
        %5404 = vmatpush.msra.mxu0 0.0
        %5405 = vmatpush.msra.mxu0 0.0
        %5406 = vmatpush.msra.mxu0 0.0
        %5407 = vmatpush.msra.mxu0 0.0
        %5408 = vmatpush.msra.mxu0 0.0
        %5409 = vmatpush.msra.mxu0 0.0
        %5410 = vmatpush.msra.mxu0 0.0
        %5411 = vmatpush.msra.mxu0 0.0
        %5412 = vmatpush.msra.mxu0 0.0
        %5413 = vmatpush.msra.mxu0 0.0
        %5414 = vmatpush.msra.mxu0 0.0
        %5415 = vmatpush.msra.mxu0 %v5118
        %5416 = vmatmul.f32.gmra.mxu0 %v1616
        %v5417 = vpop.f32.mrf.mxu0
        %v5418 = vadd.f32 0.0, %v5417
        %5419 = vdwg.mxu0
        %5420 = vmatpush.msra.mxu0 0.0
        %5421 = vmatpush.msra.mxu0 0.0
        %5422 = vmatpush.msra.mxu0 0.0
        %5423 = vmatpush.msra.mxu0 0.0
        %5424 = vmatpush.msra.mxu0 0.0
        %5425 = vmatpush.msra.mxu0 0.0
        %5426 = vmatpush.msra.mxu0 0.0
        %5427 = vmatpush.msra.mxu0 0.0
        %5428 = vmatpush.msra.mxu0 0.0
        %5429 = vmatpush.msra.mxu0 0.0
        %5430 = vmatpush.msra.mxu0 0.0
        %5431 = vmatpush.msra.mxu0 0.0
        %5432 = vmatpush.msra.mxu0 0.0
        %5433 = vmatpush.msra.mxu0 0.0
        %5434 = vmatpush.msra.mxu0 0.0
        %5435 = vmatpush.msra.mxu0 %v5120
        %5436 = vmatmul.f32.gmra.mxu0 %v1616
        %v5437 = vpop.f32.mrf.mxu0
        %v5438 = vadd.f32 0.0, %v5437
        %5439 = vdwg.mxu0
        %5440 = vmatpush.msra.mxu0 0.0
        %5441 = vmatpush.msra.mxu0 0.0
        %5442 = vmatpush.msra.mxu0 0.0
        %5443 = vmatpush.msra.mxu0 0.0
        %5444 = vmatpush.msra.mxu0 0.0
        %5445 = vmatpush.msra.mxu0 0.0
        %5446 = vmatpush.msra.mxu0 0.0
        %5447 = vmatpush.msra.mxu0 0.0
        %5448 = vmatpush.msra.mxu0 0.0
        %5449 = vmatpush.msra.mxu0 0.0
        %5450 = vmatpush.msra.mxu0 0.0
        %5451 = vmatpush.msra.mxu0 0.0
        %5452 = vmatpush.msra.mxu0 0.0
        %5453 = vmatpush.msra.mxu0 0.0
        %5454 = vmatpush.msra.mxu0 0.0
        %5455 = vmatpush.msra.mxu0 %v5122
        %5456 = vmatmul.f32.gmra.mxu0 %v1616
        %v5457 = vpop.f32.mrf.mxu0
        %v5458 = vadd.f32 0.0, %v5457
        %5459 = vdwg.mxu0
        %5460 = vmatpush.msra.mxu0 0.0
        %5461 = vmatpush.msra.mxu0 0.0
        %5462 = vmatpush.msra.mxu0 0.0
        %5463 = vmatpush.msra.mxu0 0.0
        %5464 = vmatpush.msra.mxu0 0.0
        %5465 = vmatpush.msra.mxu0 0.0
        %5466 = vmatpush.msra.mxu0 0.0
        %5467 = vmatpush.msra.mxu0 0.0
        %5468 = vmatpush.msra.mxu0 0.0
        %5469 = vmatpush.msra.mxu0 0.0
        %5470 = vmatpush.msra.mxu0 0.0
        %5471 = vmatpush.msra.mxu0 0.0
        %5472 = vmatpush.msra.mxu0 0.0
        %5473 = vmatpush.msra.mxu0 0.0
        %5474 = vmatpush.msra.mxu0 0.0
        %5475 = vmatpush.msra.mxu0 %v5124
        %5476 = vmatmul.f32.gmra.mxu0 %v1616
        %v5477 = vpop.f32.mrf.mxu0
        %v5478 = vadd.f32 0.0, %v5477
        %5479 = vdwg.mxu0
        %5480 = vmatpush.msra.mxu0 0.0
        %5481 = vmatpush.msra.mxu0 0.0
        %5482 = vmatpush.msra.mxu0 0.0
        %5483 = vmatpush.msra.mxu0 0.0
        %5484 = vmatpush.msra.mxu0 0.0
        %5485 = vmatpush.msra.mxu0 0.0
        %5486 = vmatpush.msra.mxu0 0.0
        %5487 = vmatpush.msra.mxu0 0.0
        %5488 = vmatpush.msra.mxu0 0.0
        %5489 = vmatpush.msra.mxu0 0.0
        %5490 = vmatpush.msra.mxu0 0.0
        %5491 = vmatpush.msra.mxu0 0.0
        %5492 = vmatpush.msra.mxu0 0.0
        %5493 = vmatpush.msra.mxu0 0.0
        %5494 = vmatpush.msra.mxu0 0.0
        %5495 = vmatpush.msra.mxu0 %v5126
        %5496 = vmatmul.f32.gmra.mxu0 %v1616
        %v5497 = vpop.f32.mrf.mxu0
        %v5498 = vadd.f32 0.0, %v5497
        %5499 = vdwg.mxu0
        %5500 = vmatpush.msra.mxu0 0.0
        %5501 = vmatpush.msra.mxu0 0.0
        %5502 = vmatpush.msra.mxu0 0.0
        %5503 = vmatpush.msra.mxu0 0.0
        %5504 = vmatpush.msra.mxu0 0.0
        %5505 = vmatpush.msra.mxu0 0.0
        %5506 = vmatpush.msra.mxu0 0.0
        %5507 = vmatpush.msra.mxu0 0.0
        %5508 = vmatpush.msra.mxu0 0.0
        %5509 = vmatpush.msra.mxu0 0.0
        %5510 = vmatpush.msra.mxu0 0.0
        %5511 = vmatpush.msra.mxu0 0.0
        %5512 = vmatpush.msra.mxu0 0.0
        %5513 = vmatpush.msra.mxu0 0.0
        %5514 = vmatpush.msra.mxu0 0.0
        %5515 = vmatpush.msra.mxu0 %v5128
        %5516 = vmatmul.f32.gmra.mxu0 %v1616
        %v5517 = vpop.f32.mrf.mxu0
        %v5518 = vadd.f32 0.0, %v5517
        %5519 = vdwg.mxu0
        %5520 = vmatpush.msra.mxu0 0.0
        %5521 = vmatpush.msra.mxu0 0.0
        %5522 = vmatpush.msra.mxu0 0.0
        %5523 = vmatpush.msra.mxu0 0.0
        %5524 = vmatpush.msra.mxu0 0.0
        %5525 = vmatpush.msra.mxu0 0.0
        %5526 = vmatpush.msra.mxu0 0.0
        %5527 = vmatpush.msra.mxu0 0.0
        %5528 = vmatpush.msra.mxu0 0.0
        %5529 = vmatpush.msra.mxu0 0.0
        %5530 = vmatpush.msra.mxu0 0.0
        %5531 = vmatpush.msra.mxu0 0.0
        %5532 = vmatpush.msra.mxu0 0.0
        %5533 = vmatpush.msra.mxu0 0.0
        %5534 = vmatpush.msra.mxu0 0.0
        %5535 = vmatpush.msra.mxu0 %v5130
        %5536 = vmatmul.f32.gmra.mxu0 %v1616
        %v5537 = vpop.f32.mrf.mxu0
        %v5538 = vadd.f32 0.0, %v5537
        %5539 = vdwg.mxu0
        %5540 = vmatpush.msra.mxu0 0.0
        %5541 = vmatpush.msra.mxu0 0.0
        %5542 = vmatpush.msra.mxu0 0.0
        %5543 = vmatpush.msra.mxu0 0.0
        %5544 = vmatpush.msra.mxu0 0.0
        %5545 = vmatpush.msra.mxu0 0.0
        %5546 = vmatpush.msra.mxu0 0.0
        %5547 = vmatpush.msra.mxu0 0.0
        %5548 = vmatpush.msra.mxu0 0.0
        %5549 = vmatpush.msra.mxu0 0.0
        %5550 = vmatpush.msra.mxu0 0.0
        %5551 = vmatpush.msra.mxu0 0.0
        %5552 = vmatpush.msra.mxu0 0.0
        %5553 = vmatpush.msra.mxu0 0.0
        %5554 = vmatpush.msra.mxu0 0.0
        %5555 = vmatpush.msra.mxu0 %v5132
        %5556 = vmatmul.f32.gmra.mxu0 %v1616
        %v5557 = vpop.f32.mrf.mxu0
        %v5558 = vadd.f32 0.0, %v5557
        %5559 = vdwg.mxu0
        %5560 = vmatpush.msra.mxu0 0.0
        %5561 = vmatpush.msra.mxu0 0.0
        %5562 = vmatpush.msra.mxu0 0.0
        %5563 = vmatpush.msra.mxu0 0.0
        %5564 = vmatpush.msra.mxu0 0.0
        %5565 = vmatpush.msra.mxu0 0.0
        %5566 = vmatpush.msra.mxu0 0.0
        %5567 = vmatpush.msra.mxu0 0.0
        %5568 = vmatpush.msra.mxu0 0.0
        %5569 = vmatpush.msra.mxu0 0.0
        %5570 = vmatpush.msra.mxu0 0.0
        %5571 = vmatpush.msra.mxu0 0.0
        %5572 = vmatpush.msra.mxu0 0.0
        %5573 = vmatpush.msra.mxu0 0.0
        %5574 = vmatpush.msra.mxu0 0.0
        %5575 = vmatpush.msra.mxu0 %v5134
        %5576 = vmatmul.f32.gmra.mxu0 %v1616
        %v5577 = vpop.f32.mrf.mxu0
        %v5578 = vadd.f32 0.0, %v5577
        %5579 = vdwg.mxu0
        %5580 = vmatpush.msra.mxu0 0.0
        %5581 = vmatpush.msra.mxu0 0.0
        %5582 = vmatpush.msra.mxu0 0.0
        %5583 = vmatpush.msra.mxu0 0.0
        %5584 = vmatpush.msra.mxu0 0.0
        %5585 = vmatpush.msra.mxu0 0.0
        %5586 = vmatpush.msra.mxu0 0.0
        %5587 = vmatpush.msra.mxu0 0.0
        %5588 = vmatpush.msra.mxu0 0.0
        %5589 = vmatpush.msra.mxu0 0.0
        %5590 = vmatpush.msra.mxu0 0.0
        %5591 = vmatpush.msra.mxu0 0.0
        %5592 = vmatpush.msra.mxu0 0.0
        %5593 = vmatpush.msra.mxu0 0.0
        %5594 = vmatpush.msra.mxu0 0.0
        %5595 = vmatpush.msra.mxu0 %v5136
        %5596 = vmatmul.f32.gmra.mxu0 %v1616
        %v5597 = vpop.f32.mrf.mxu0
        %v5598 = vadd.f32 0.0, %v5597
        %5599 = vdwg.mxu0
        %5600 = vmatpush.msra.mxu0 0.0
        %5601 = vmatpush.msra.mxu0 0.0
        %5602 = vmatpush.msra.mxu0 0.0
        %5603 = vmatpush.msra.mxu0 0.0
        %5604 = vmatpush.msra.mxu0 0.0
        %5605 = vmatpush.msra.mxu0 0.0
        %5606 = vmatpush.msra.mxu0 0.0
        %5607 = vmatpush.msra.mxu0 0.0
        %5608 = vmatpush.msra.mxu0 0.0
        %5609 = vmatpush.msra.mxu0 0.0
        %5610 = vmatpush.msra.mxu0 0.0
        %5611 = vmatpush.msra.mxu0 0.0
        %5612 = vmatpush.msra.mxu0 0.0
        %5613 = vmatpush.msra.mxu0 0.0
        %5614 = vmatpush.msra.mxu0 0.0
        %5615 = vmatpush.msra.mxu0 %v5138
        %5616 = vmatmul.f32.gmra.mxu0 %v1616
        %v5617 = vpop.f32.mrf.mxu0
        %v5618 = vadd.f32 0.0, %v5617
        %5619 = vdwg.mxu0
        %v5620 = vadd.f32 %v4591, %v5158
        %v5621 = vadd.f32 %v4611, %v5178
        %v5622 = vadd.f32 %v4631, %v5198
        %v5623 = vadd.f32 %v4651, %v5218
        %v5624 = vadd.f32 %v4671, %v5238
        %v5625 = vadd.f32 %v4691, %v5258
        %v5626 = vadd.f32 %v4711, %v5278
        %v5627 = vadd.f32 %v4731, %v5298
        %v5628 = vadd.f32 %v4751, %v5318
        %v5629 = vadd.f32 %v4771, %v5338
        %v5630 = vadd.f32 %v4791, %v5358
        %v5631 = vadd.f32 %v4811, %v5378
        %v5632 = vadd.f32 %v4831, %v5398
        %v5633 = vadd.f32 %v4851, %v5418
        %v5634 = vadd.f32 %v4871, %v5438
        %v5635 = vadd.f32 %v4891, %v5458
        %v5636 = vadd.f32 %v4911, %v5478
        %v5637 = vadd.f32 %v4931, %v5498
        %v5638 = vadd.f32 %v4951, %v5518
        %v5639 = vadd.f32 %v4971, %v5538
        %v5640 = vadd.f32 %v4991, %v5558
        %v5641 = vadd.f32 %v5011, %v5578
        %v5642 = vadd.f32 %v5031, %v5598
        %v5643 = vadd.f32 %v5051, %v5618
        %5645 = vset.pattern.permute.xlu0 0
        %5646 = vperm.xlu0 %5645, %v390
        %v5647 = vpop.permute.xlu0 %5646
        %v5649 = vadd.f32 %v2146, %v5647
        %v5650 = vadd.f32 %v2147, %v5647
        %v5651 = vadd.f32 %v2148, %v5647
        %v5652 = vadd.f32 %v2149, %v5647
        %v5653 = vadd.f32 %v2150, %v5647
        %v5654 = vadd.f32 %v2151, %v5647
        %v5655 = vadd.f32 %v2152, %v5647
        %v5656 = vadd.f32 %v2153, %v5647
        %v5657 = vadd.f32 %v2154, %v5647
        %v5658 = vadd.f32 %v2155, %v5647
        %v5659 = vadd.f32 %v2156, %v5647
        %v5660 = vadd.f32 %v2157, %v5647
        %v5661 = vadd.f32 %v2158, %v5647
        %v5662 = vadd.f32 %v2159, %v5647
        %v5663 = vadd.f32 %v2160, %v5647
        %v5664 = vadd.f32 %v2161, %v5647
        %v5665 = vadd.f32 %v2162, %v5647
        %v5666 = vadd.f32 %v2163, %v5647
        %v5667 = vadd.f32 %v2164, %v5647
        %v5668 = vadd.f32 %v2165, %v5647
        %v5669 = vadd.f32 %v2166, %v5647
        %v5670 = vadd.f32 %v2167, %v5647
        %v5671 = vadd.f32 %v2168, %v5647
        %v5672 = vadd.f32 %v2169, %v5647
        %v5673 = vmax.f32 %v5649, 0.0
        %v5674 = vmax.f32 %v5650, 0.0
        %v5675 = vmax.f32 %v5651, 0.0
        %v5676 = vmax.f32 %v5652, 0.0
        %v5677 = vmax.f32 %v5653, 0.0
        %v5678 = vmax.f32 %v5654, 0.0
        %v5679 = vmax.f32 %v5655, 0.0
        %v5680 = vmax.f32 %v5656, 0.0
        %v5681 = vmax.f32 %v5657, 0.0
        %v5682 = vmax.f32 %v5658, 0.0
        %v5683 = vmax.f32 %v5659, 0.0
        %v5684 = vmax.f32 %v5660, 0.0
        %v5685 = vmax.f32 %v5661, 0.0
        %v5686 = vmax.f32 %v5662, 0.0
        %v5687 = vmax.f32 %v5663, 0.0
        %v5688 = vmax.f32 %v5664, 0.0
        %v5689 = vmax.f32 %v5665, 0.0
        %v5690 = vmax.f32 %v5666, 0.0
        %v5691 = vmax.f32 %v5667, 0.0
        %v5692 = vmax.f32 %v5668, 0.0
        %v5693 = vmax.f32 %v5669, 0.0
        %v5694 = vmax.f32 %v5670, 0.0
        %v5695 = vmax.f32 %v5671, 0.0
        %v5696 = vmax.f32 %v5672, 0.0
        %v5697 = vadd.f32 %v3883, %v5647
        %v5698 = vadd.f32 %v3884, %v5647
        %v5699 = vadd.f32 %v3885, %v5647
        %v5700 = vadd.f32 %v3886, %v5647
        %v5701 = vadd.f32 %v3887, %v5647
        %v5702 = vadd.f32 %v3888, %v5647
        %v5703 = vadd.f32 %v3889, %v5647
        %v5704 = vadd.f32 %v3890, %v5647
        %v5705 = vadd.f32 %v3891, %v5647
        %v5706 = vadd.f32 %v3892, %v5647
        %v5707 = vadd.f32 %v3893, %v5647
        %v5708 = vadd.f32 %v3894, %v5647
        %v5709 = vadd.f32 %v3895, %v5647
        %v5710 = vadd.f32 %v3896, %v5647
        %v5711 = vadd.f32 %v3897, %v5647
        %v5712 = vadd.f32 %v3898, %v5647
        %v5713 = vadd.f32 %v3899, %v5647
        %v5714 = vadd.f32 %v3900, %v5647
        %v5715 = vadd.f32 %v3901, %v5647
        %v5716 = vadd.f32 %v3902, %v5647
        %v5717 = vadd.f32 %v3903, %v5647
        %v5718 = vadd.f32 %v3904, %v5647
        %v5719 = vadd.f32 %v3905, %v5647
        %v5720 = vadd.f32 %v3906, %v5647
        %v5721 = vmax.f32 %v5697, 0.0
        %v5722 = vmax.f32 %v5698, 0.0
        %v5723 = vmax.f32 %v5699, 0.0
        %v5724 = vmax.f32 %v5700, 0.0
        %v5725 = vmax.f32 %v5701, 0.0
        %v5726 = vmax.f32 %v5702, 0.0
        %v5727 = vmax.f32 %v5703, 0.0
        %v5728 = vmax.f32 %v5704, 0.0
        %v5729 = vmax.f32 %v5705, 0.0
        %v5730 = vmax.f32 %v5706, 0.0
        %v5731 = vmax.f32 %v5707, 0.0
        %v5732 = vmax.f32 %v5708, 0.0
        %v5733 = vmax.f32 %v5709, 0.0
        %v5734 = vmax.f32 %v5710, 0.0
        %v5735 = vmax.f32 %v5711, 0.0
        %v5736 = vmax.f32 %v5712, 0.0
        %v5737 = vmax.f32 %v5713, 0.0
        %v5738 = vmax.f32 %v5714, 0.0
        %v5739 = vmax.f32 %v5715, 0.0
        %v5740 = vmax.f32 %v5716, 0.0
        %v5741 = vmax.f32 %v5717, 0.0
        %v5742 = vmax.f32 %v5718, 0.0
        %v5743 = vmax.f32 %v5719, 0.0
        %v5744 = vmax.f32 %v5720, 0.0
        %v5745 = vld [vmem:[%s7] sm:$0xff]
        %v5746 = vld [vmem:[%s7 + $0x8] sm:$0xff]
        %v5747 = vld [vmem:[%s7 + $0x10] sm:$0xff]
        %v5748 = vadd.f32 %v5620, %v5647
        %v5749 = vadd.f32 %v5621, %v5647
        %v5750 = vadd.f32 %v5622, %v5647
        %v5751 = vadd.f32 %v5623, %v5647
        %v5752 = vadd.f32 %v5624, %v5647
        %v5753 = vadd.f32 %v5625, %v5647
        %v5754 = vadd.f32 %v5626, %v5647
        %v5755 = vadd.f32 %v5627, %v5647
        %v5756 = vadd.f32 %v5628, %v5647
        %v5757 = vadd.f32 %v5629, %v5647
        %v5758 = vadd.f32 %v5630, %v5647
        %v5759 = vadd.f32 %v5631, %v5647
        %v5760 = vadd.f32 %v5632, %v5647
        %v5761 = vadd.f32 %v5633, %v5647
        %v5762 = vadd.f32 %v5634, %v5647
        %v5763 = vadd.f32 %v5635, %v5647
        %v5764 = vadd.f32 %v5636, %v5647
        %v5765 = vadd.f32 %v5637, %v5647
        %v5766 = vadd.f32 %v5638, %v5647
        %v5767 = vadd.f32 %v5639, %v5647
        %v5768 = vadd.f32 %v5640, %v5647
        %v5769 = vadd.f32 %v5641, %v5647
        %v5770 = vadd.f32 %v5642, %v5647
        %v5771 = vadd.f32 %v5643, %v5647
        %v5772 = vmax.f32 %v5748, 0.0
        %v5773 = vmax.f32 %v5749, 0.0
        %v5774 = vmax.f32 %v5750, 0.0
        %v5775 = vmax.f32 %v5751, 0.0
        %v5776 = vmax.f32 %v5752, 0.0
        %v5777 = vmax.f32 %v5753, 0.0
        %v5778 = vmax.f32 %v5754, 0.0
        %v5779 = vmax.f32 %v5755, 0.0
        %v5780 = vmax.f32 %v5756, 0.0
        %v5781 = vmax.f32 %v5757, 0.0
        %v5782 = vmax.f32 %v5758, 0.0
        %v5783 = vmax.f32 %v5759, 0.0
        %v5784 = vmax.f32 %v5760, 0.0
        %v5785 = vmax.f32 %v5761, 0.0
        %v5786 = vmax.f32 %v5762, 0.0
        %v5787 = vmax.f32 %v5763, 0.0
        %v5788 = vmax.f32 %v5764, 0.0
        %v5789 = vmax.f32 %v5765, 0.0
        %v5790 = vmax.f32 %v5766, 0.0
        %v5791 = vmax.f32 %v5767, 0.0
        %v5792 = vmax.f32 %v5768, 0.0
        %v5793 = vmax.f32 %v5769, 0.0
        %v5794 = vmax.f32 %v5770, 0.0
        %v5795 = vmax.f32 %v5771, 0.0
        %v5799 = vperm.slane %v5745, 0
        %v5800 = vperm.slane %v5745, 1
        %v5801 = vperm.slane %v5745, 2
        %v5802 = vperm.slane %v5745, 3
        %v5803 = vperm.slane %v5745, 4
        %v5804 = vperm.slane %v5745, 5
        %v5805 = vperm.slane %v5745, 6
        %v5806 = vperm.slane %v5745, 7
        %v5807 = vperm.slane %v5746, 0
        %v5808 = vperm.slane %v5746, 1
        %v5809 = vperm.slane %v5746, 2
        %v5810 = vperm.slane %v5746, 3
        %v5811 = vperm.slane %v5746, 4
        %v5812 = vperm.slane %v5746, 5
        %v5813 = vperm.slane %v5746, 6
        %v5814 = vperm.slane %v5746, 7
        %v5815 = vperm.slane %v5747, 0
        %v5816 = vperm.slane %v5747, 1
        %v5817 = vperm.slane %v5747, 2
        %v5818 = vperm.slane %v5747, 3
        %v5819 = vperm.slane %v5747, 4
        %v5820 = vperm.slane %v5747, 5
        %v5821 = vperm.slane %v5747, 6
        %v5822 = vperm.slane %v5747, 7
        %v5847 = vmul.f32 %v5799, %v5772
        %v5848 = vmul.f32 %v5800, %v5773
        %v5849 = vmul.f32 %v5801, %v5774
        %v5850 = vmul.f32 %v5802, %v5775
        %v5851 = vmul.f32 %v5803, %v5776
        %v5852 = vmul.f32 %v5804, %v5777
        %v5853 = vmul.f32 %v5805, %v5778
        %v5854 = vmul.f32 %v5806, %v5779
        %v5855 = vmul.f32 %v5807, %v5780
        %v5856 = vmul.f32 %v5808, %v5781
        %v5857 = vmul.f32 %v5809, %v5782
        %v5858 = vmul.f32 %v5810, %v5783
        %v5859 = vmul.f32 %v5811, %v5784
        %v5860 = vmul.f32 %v5812, %v5785
        %v5861 = vmul.f32 %v5813, %v5786
        %v5862 = vmul.f32 %v5814, %v5787
        %v5863 = vmul.f32 %v5815, %v5788
        %v5864 = vmul.f32 %v5816, %v5789
        %v5865 = vmul.f32 %v5817, %v5790
        %v5866 = vmul.f32 %v5818, %v5791
        %v5867 = vmul.f32 %v5819, %v5792
        %v5868 = vmul.f32 %v5820, %v5793
        %v5869 = vmul.f32 %v5821, %v5794
        %v5870 = vmul.f32 %v5822, %v5795
        %v5871 = vld [vmem:[%s2] sm:$0xff]
        %v5872 = vld [vmem:[%s2 + $0x8] sm:$0xff]
        %s5873 = scalar_lea.vmem %s2, 16
        %v5874 = vld [vmem:[%s5873] sm:$0xff]
        %v5875 = vld [vmem:[%s5873 + $0x8] sm:$0xff]
        %vm5876 = vcmask 64512
        %v5878 = vsel %vm5876, %v5874, 0
        %v5881 = vsel %vm5876, %v5875, 0
        %5883 = vmatpush.msra.mxu0 0.0
        %5884 = vmatpush.msra.mxu0 0.0
        %5885 = vmatpush.msra.mxu0 0.0
        %5886 = vmatpush.msra.mxu0 0.0
        %5887 = vmatpush.msra.mxu0 0.0
        %5888 = vmatpush.msra.mxu0 0.0
        %5889 = vmatpush.msra.mxu0 0.0
        %5890 = vmatpush.msra.mxu0 0.0
        %5891 = vmatpush.msra.mxu0 0.0
        %5892 = vmatpush.msra.mxu0 0.0
        %5893 = vmatpush.msra.mxu0 0.0
        %5894 = vmatpush.msra.mxu0 0.0
        %5895 = vmatpush.msra.mxu0 0.0
        %5896 = vmatpush.msra.mxu0 0.0
        %5897 = vmatpush.msra.mxu0 0.0
        %5898 = vmatpush.msra.mxu0 %v5673
        %5899 = vmatmul.f32.gmra.mxu0 %v5878
        %v5900 = vpop.f32.mrf.mxu0
        %v5901 = vadd.f32 0.0, %v5900
        %5902 = vmatmul.f32.gmra.mxu0 %v5881
        %v5903 = vpop.f32.mrf.mxu0
        %v5904 = vadd.f32 0.0, %v5903
        %5905 = vdwg.mxu0
        %5906 = vmatpush.msra.mxu0 0.0
        %5907 = vmatpush.msra.mxu0 0.0
        %5908 = vmatpush.msra.mxu0 0.0
        %5909 = vmatpush.msra.mxu0 0.0
        %5910 = vmatpush.msra.mxu0 0.0
        %5911 = vmatpush.msra.mxu0 0.0
        %5912 = vmatpush.msra.mxu0 0.0
        %5913 = vmatpush.msra.mxu0 0.0
        %5914 = vmatpush.msra.mxu0 0.0
        %5915 = vmatpush.msra.mxu0 0.0
        %5916 = vmatpush.msra.mxu0 0.0
        %5917 = vmatpush.msra.mxu0 0.0
        %5918 = vmatpush.msra.mxu0 0.0
        %5919 = vmatpush.msra.mxu0 0.0
        %5920 = vmatpush.msra.mxu0 0.0
        %5921 = vmatpush.msra.mxu0 %v5674
        %5922 = vmatmul.f32.gmra.mxu0 %v5878
        %v5923 = vpop.f32.mrf.mxu0
        %v5924 = vadd.f32 0.0, %v5923
        %5925 = vmatmul.f32.gmra.mxu0 %v5881
        %v5926 = vpop.f32.mrf.mxu0
        %v5927 = vadd.f32 0.0, %v5926
        %5928 = vdwg.mxu0
        %5929 = vmatpush.msra.mxu0 0.0
        %5930 = vmatpush.msra.mxu0 0.0
        %5931 = vmatpush.msra.mxu0 0.0
        %5932 = vmatpush.msra.mxu0 0.0
        %5933 = vmatpush.msra.mxu0 0.0
        %5934 = vmatpush.msra.mxu0 0.0
        %5935 = vmatpush.msra.mxu0 0.0
        %5936 = vmatpush.msra.mxu0 0.0
        %5937 = vmatpush.msra.mxu0 0.0
        %5938 = vmatpush.msra.mxu0 0.0
        %5939 = vmatpush.msra.mxu0 0.0
        %5940 = vmatpush.msra.mxu0 0.0
        %5941 = vmatpush.msra.mxu0 0.0
        %5942 = vmatpush.msra.mxu0 0.0
        %5943 = vmatpush.msra.mxu0 0.0
        %5944 = vmatpush.msra.mxu0 %v5675
        %5945 = vmatmul.f32.gmra.mxu0 %v5878
        %v5946 = vpop.f32.mrf.mxu0
        %v5947 = vadd.f32 0.0, %v5946
        %5948 = vmatmul.f32.gmra.mxu0 %v5881
        %v5949 = vpop.f32.mrf.mxu0
        %v5950 = vadd.f32 0.0, %v5949
        %5951 = vdwg.mxu0
        %5952 = vmatpush.msra.mxu0 0.0
        %5953 = vmatpush.msra.mxu0 0.0
        %5954 = vmatpush.msra.mxu0 0.0
        %5955 = vmatpush.msra.mxu0 0.0
        %5956 = vmatpush.msra.mxu0 0.0
        %5957 = vmatpush.msra.mxu0 0.0
        %5958 = vmatpush.msra.mxu0 0.0
        %5959 = vmatpush.msra.mxu0 0.0
        %5960 = vmatpush.msra.mxu0 0.0
        %5961 = vmatpush.msra.mxu0 0.0
        %5962 = vmatpush.msra.mxu0 0.0
        %5963 = vmatpush.msra.mxu0 0.0
        %5964 = vmatpush.msra.mxu0 0.0
        %5965 = vmatpush.msra.mxu0 0.0
        %5966 = vmatpush.msra.mxu0 0.0
        %5967 = vmatpush.msra.mxu0 %v5676
        %5968 = vmatmul.f32.gmra.mxu0 %v5878
        %v5969 = vpop.f32.mrf.mxu0
        %v5970 = vadd.f32 0.0, %v5969
        %5971 = vmatmul.f32.gmra.mxu0 %v5881
        %v5972 = vpop.f32.mrf.mxu0
        %v5973 = vadd.f32 0.0, %v5972
        %5974 = vdwg.mxu0
        %5975 = vmatpush.msra.mxu0 0.0
        %5976 = vmatpush.msra.mxu0 0.0
        %5977 = vmatpush.msra.mxu0 0.0
        %5978 = vmatpush.msra.mxu0 0.0
        %5979 = vmatpush.msra.mxu0 0.0
        %5980 = vmatpush.msra.mxu0 0.0
        %5981 = vmatpush.msra.mxu0 0.0
        %5982 = vmatpush.msra.mxu0 0.0
        %5983 = vmatpush.msra.mxu0 0.0
        %5984 = vmatpush.msra.mxu0 0.0
        %5985 = vmatpush.msra.mxu0 0.0
        %5986 = vmatpush.msra.mxu0 0.0
        %5987 = vmatpush.msra.mxu0 0.0
        %5988 = vmatpush.msra.mxu0 0.0
        %5989 = vmatpush.msra.mxu0 0.0
        %5990 = vmatpush.msra.mxu0 %v5677
        %5991 = vmatmul.f32.gmra.mxu0 %v5878
        %v5992 = vpop.f32.mrf.mxu0
        %v5993 = vadd.f32 0.0, %v5992
        %5994 = vmatmul.f32.gmra.mxu0 %v5881
        %v5995 = vpop.f32.mrf.mxu0
        %v5996 = vadd.f32 0.0, %v5995
        %5997 = vdwg.mxu0
        %5998 = vmatpush.msra.mxu0 0.0
        %5999 = vmatpush.msra.mxu0 0.0
        %6000 = vmatpush.msra.mxu0 0.0
        %6001 = vmatpush.msra.mxu0 0.0
        %6002 = vmatpush.msra.mxu0 0.0
        %6003 = vmatpush.msra.mxu0 0.0
        %6004 = vmatpush.msra.mxu0 0.0
        %6005 = vmatpush.msra.mxu0 0.0
        %6006 = vmatpush.msra.mxu0 0.0
        %6007 = vmatpush.msra.mxu0 0.0
        %6008 = vmatpush.msra.mxu0 0.0
        %6009 = vmatpush.msra.mxu0 0.0
        %6010 = vmatpush.msra.mxu0 0.0
        %6011 = vmatpush.msra.mxu0 0.0
        %6012 = vmatpush.msra.mxu0 0.0
        %6013 = vmatpush.msra.mxu0 %v5678
        %6014 = vmatmul.f32.gmra.mxu0 %v5878
        %v6015 = vpop.f32.mrf.mxu0
        %v6016 = vadd.f32 0.0, %v6015
        %6017 = vmatmul.f32.gmra.mxu0 %v5881
        %v6018 = vpop.f32.mrf.mxu0
        %v6019 = vadd.f32 0.0, %v6018
        %6020 = vdwg.mxu0
        %6021 = vmatpush.msra.mxu0 0.0
        %6022 = vmatpush.msra.mxu0 0.0
        %6023 = vmatpush.msra.mxu0 0.0
        %6024 = vmatpush.msra.mxu0 0.0
        %6025 = vmatpush.msra.mxu0 0.0
        %6026 = vmatpush.msra.mxu0 0.0
        %6027 = vmatpush.msra.mxu0 0.0
        %6028 = vmatpush.msra.mxu0 0.0
        %6029 = vmatpush.msra.mxu0 0.0
        %6030 = vmatpush.msra.mxu0 0.0
        %6031 = vmatpush.msra.mxu0 0.0
        %6032 = vmatpush.msra.mxu0 0.0
        %6033 = vmatpush.msra.mxu0 0.0
        %6034 = vmatpush.msra.mxu0 0.0
        %6035 = vmatpush.msra.mxu0 0.0
        %6036 = vmatpush.msra.mxu0 %v5679
        %6037 = vmatmul.f32.gmra.mxu0 %v5878
        %v6038 = vpop.f32.mrf.mxu0
        %v6039 = vadd.f32 0.0, %v6038
        %6040 = vmatmul.f32.gmra.mxu0 %v5881
        %v6041 = vpop.f32.mrf.mxu0
        %v6042 = vadd.f32 0.0, %v6041
        %6043 = vdwg.mxu0
        %6044 = vmatpush.msra.mxu0 0.0
        %6045 = vmatpush.msra.mxu0 0.0
        %6046 = vmatpush.msra.mxu0 0.0
        %6047 = vmatpush.msra.mxu0 0.0
        %6048 = vmatpush.msra.mxu0 0.0
        %6049 = vmatpush.msra.mxu0 0.0
        %6050 = vmatpush.msra.mxu0 0.0
        %6051 = vmatpush.msra.mxu0 0.0
        %6052 = vmatpush.msra.mxu0 0.0
        %6053 = vmatpush.msra.mxu0 0.0
        %6054 = vmatpush.msra.mxu0 0.0
        %6055 = vmatpush.msra.mxu0 0.0
        %6056 = vmatpush.msra.mxu0 0.0
        %6057 = vmatpush.msra.mxu0 0.0
        %6058 = vmatpush.msra.mxu0 0.0
        %6059 = vmatpush.msra.mxu0 %v5680
        %6060 = vmatmul.f32.gmra.mxu0 %v5878
        %v6061 = vpop.f32.mrf.mxu0
        %v6062 = vadd.f32 0.0, %v6061
        %6063 = vmatmul.f32.gmra.mxu0 %v5881
        %v6064 = vpop.f32.mrf.mxu0
        %v6065 = vadd.f32 0.0, %v6064
        %6066 = vdwg.mxu0
        %6067 = vmatpush.msra.mxu0 0.0
        %6068 = vmatpush.msra.mxu0 0.0
        %6069 = vmatpush.msra.mxu0 0.0
        %6070 = vmatpush.msra.mxu0 0.0
        %6071 = vmatpush.msra.mxu0 0.0
        %6072 = vmatpush.msra.mxu0 0.0
        %6073 = vmatpush.msra.mxu0 0.0
        %6074 = vmatpush.msra.mxu0 0.0
        %6075 = vmatpush.msra.mxu0 0.0
        %6076 = vmatpush.msra.mxu0 0.0
        %6077 = vmatpush.msra.mxu0 0.0
        %6078 = vmatpush.msra.mxu0 0.0
        %6079 = vmatpush.msra.mxu0 0.0
        %6080 = vmatpush.msra.mxu0 0.0
        %6081 = vmatpush.msra.mxu0 0.0
        %6082 = vmatpush.msra.mxu0 %v5681
        %6083 = vmatmul.f32.gmra.mxu0 %v5878
        %v6084 = vpop.f32.mrf.mxu0
        %v6085 = vadd.f32 0.0, %v6084
        %6086 = vmatmul.f32.gmra.mxu0 %v5881
        %v6087 = vpop.f32.mrf.mxu0
        %v6088 = vadd.f32 0.0, %v6087
        %6089 = vdwg.mxu0
        %6090 = vmatpush.msra.mxu0 0.0
        %6091 = vmatpush.msra.mxu0 0.0
        %6092 = vmatpush.msra.mxu0 0.0
        %6093 = vmatpush.msra.mxu0 0.0
        %6094 = vmatpush.msra.mxu0 0.0
        %6095 = vmatpush.msra.mxu0 0.0
        %6096 = vmatpush.msra.mxu0 0.0
        %6097 = vmatpush.msra.mxu0 0.0
        %6098 = vmatpush.msra.mxu0 0.0
        %6099 = vmatpush.msra.mxu0 0.0
        %6100 = vmatpush.msra.mxu0 0.0
        %6101 = vmatpush.msra.mxu0 0.0
        %6102 = vmatpush.msra.mxu0 0.0
        %6103 = vmatpush.msra.mxu0 0.0
        %6104 = vmatpush.msra.mxu0 0.0
        %6105 = vmatpush.msra.mxu0 %v5682
        %6106 = vmatmul.f32.gmra.mxu0 %v5878
        %v6107 = vpop.f32.mrf.mxu0
        %v6108 = vadd.f32 0.0, %v6107
        %6109 = vmatmul.f32.gmra.mxu0 %v5881
        %v6110 = vpop.f32.mrf.mxu0
        %v6111 = vadd.f32 0.0, %v6110
        %6112 = vdwg.mxu0
        %6113 = vmatpush.msra.mxu0 0.0
        %6114 = vmatpush.msra.mxu0 0.0
        %6115 = vmatpush.msra.mxu0 0.0
        %6116 = vmatpush.msra.mxu0 0.0
        %6117 = vmatpush.msra.mxu0 0.0
        %6118 = vmatpush.msra.mxu0 0.0
        %6119 = vmatpush.msra.mxu0 0.0
        %6120 = vmatpush.msra.mxu0 0.0
        %6121 = vmatpush.msra.mxu0 0.0
        %6122 = vmatpush.msra.mxu0 0.0
        %6123 = vmatpush.msra.mxu0 0.0
        %6124 = vmatpush.msra.mxu0 0.0
        %6125 = vmatpush.msra.mxu0 0.0
        %6126 = vmatpush.msra.mxu0 0.0
        %6127 = vmatpush.msra.mxu0 0.0
        %6128 = vmatpush.msra.mxu0 %v5683
        %6129 = vmatmul.f32.gmra.mxu0 %v5878
        %v6130 = vpop.f32.mrf.mxu0
        %v6131 = vadd.f32 0.0, %v6130
        %6132 = vmatmul.f32.gmra.mxu0 %v5881
        %v6133 = vpop.f32.mrf.mxu0
        %v6134 = vadd.f32 0.0, %v6133
        %6135 = vdwg.mxu0
        %6136 = vmatpush.msra.mxu0 0.0
        %6137 = vmatpush.msra.mxu0 0.0
        %6138 = vmatpush.msra.mxu0 0.0
        %6139 = vmatpush.msra.mxu0 0.0
        %6140 = vmatpush.msra.mxu0 0.0
        %6141 = vmatpush.msra.mxu0 0.0
        %6142 = vmatpush.msra.mxu0 0.0
        %6143 = vmatpush.msra.mxu0 0.0
        %6144 = vmatpush.msra.mxu0 0.0
        %6145 = vmatpush.msra.mxu0 0.0
        %6146 = vmatpush.msra.mxu0 0.0
        %6147 = vmatpush.msra.mxu0 0.0
        %6148 = vmatpush.msra.mxu0 0.0
        %6149 = vmatpush.msra.mxu0 0.0
        %6150 = vmatpush.msra.mxu0 0.0
        %6151 = vmatpush.msra.mxu0 %v5684
        %6152 = vmatmul.f32.gmra.mxu0 %v5878
        %v6153 = vpop.f32.mrf.mxu0
        %v6154 = vadd.f32 0.0, %v6153
        %6155 = vmatmul.f32.gmra.mxu0 %v5881
        %v6156 = vpop.f32.mrf.mxu0
        %v6157 = vadd.f32 0.0, %v6156
        %6158 = vdwg.mxu0
        %6159 = vmatpush.msra.mxu0 0.0
        %6160 = vmatpush.msra.mxu0 0.0
        %6161 = vmatpush.msra.mxu0 0.0
        %6162 = vmatpush.msra.mxu0 0.0
        %6163 = vmatpush.msra.mxu0 0.0
        %6164 = vmatpush.msra.mxu0 0.0
        %6165 = vmatpush.msra.mxu0 0.0
        %6166 = vmatpush.msra.mxu0 0.0
        %6167 = vmatpush.msra.mxu0 0.0
        %6168 = vmatpush.msra.mxu0 0.0
        %6169 = vmatpush.msra.mxu0 0.0
        %6170 = vmatpush.msra.mxu0 0.0
        %6171 = vmatpush.msra.mxu0 0.0
        %6172 = vmatpush.msra.mxu0 0.0
        %6173 = vmatpush.msra.mxu0 0.0
        %6174 = vmatpush.msra.mxu0 %v5685
        %6175 = vmatmul.f32.gmra.mxu0 %v5878
        %v6176 = vpop.f32.mrf.mxu0
        %v6177 = vadd.f32 0.0, %v6176
        %6178 = vmatmul.f32.gmra.mxu0 %v5881
        %v6179 = vpop.f32.mrf.mxu0
        %v6180 = vadd.f32 0.0, %v6179
        %6181 = vdwg.mxu0
        %6182 = vmatpush.msra.mxu0 0.0
        %6183 = vmatpush.msra.mxu0 0.0
        %6184 = vmatpush.msra.mxu0 0.0
        %6185 = vmatpush.msra.mxu0 0.0
        %6186 = vmatpush.msra.mxu0 0.0
        %6187 = vmatpush.msra.mxu0 0.0
        %6188 = vmatpush.msra.mxu0 0.0
        %6189 = vmatpush.msra.mxu0 0.0
        %6190 = vmatpush.msra.mxu0 0.0
        %6191 = vmatpush.msra.mxu0 0.0
        %6192 = vmatpush.msra.mxu0 0.0
        %6193 = vmatpush.msra.mxu0 0.0
        %6194 = vmatpush.msra.mxu0 0.0
        %6195 = vmatpush.msra.mxu0 0.0
        %6196 = vmatpush.msra.mxu0 0.0
        %6197 = vmatpush.msra.mxu0 %v5686
        %6198 = vmatmul.f32.gmra.mxu0 %v5878
        %v6199 = vpop.f32.mrf.mxu0
        %v6200 = vadd.f32 0.0, %v6199
        %6201 = vmatmul.f32.gmra.mxu0 %v5881
        %v6202 = vpop.f32.mrf.mxu0
        %v6203 = vadd.f32 0.0, %v6202
        %6204 = vdwg.mxu0
        %6205 = vmatpush.msra.mxu0 0.0
        %6206 = vmatpush.msra.mxu0 0.0
        %6207 = vmatpush.msra.mxu0 0.0
        %6208 = vmatpush.msra.mxu0 0.0
        %6209 = vmatpush.msra.mxu0 0.0
        %6210 = vmatpush.msra.mxu0 0.0
        %6211 = vmatpush.msra.mxu0 0.0
        %6212 = vmatpush.msra.mxu0 0.0
        %6213 = vmatpush.msra.mxu0 0.0
        %6214 = vmatpush.msra.mxu0 0.0
        %6215 = vmatpush.msra.mxu0 0.0
        %6216 = vmatpush.msra.mxu0 0.0
        %6217 = vmatpush.msra.mxu0 0.0
        %6218 = vmatpush.msra.mxu0 0.0
        %6219 = vmatpush.msra.mxu0 0.0
        %6220 = vmatpush.msra.mxu0 %v5687
        %6221 = vmatmul.f32.gmra.mxu0 %v5878
        %v6222 = vpop.f32.mrf.mxu0
        %v6223 = vadd.f32 0.0, %v6222
        %6224 = vmatmul.f32.gmra.mxu0 %v5881
        %v6225 = vpop.f32.mrf.mxu0
        %v6226 = vadd.f32 0.0, %v6225
        %6227 = vdwg.mxu0
        %6228 = vmatpush.msra.mxu0 0.0
        %6229 = vmatpush.msra.mxu0 0.0
        %6230 = vmatpush.msra.mxu0 0.0
        %6231 = vmatpush.msra.mxu0 0.0
        %6232 = vmatpush.msra.mxu0 0.0
        %6233 = vmatpush.msra.mxu0 0.0
        %6234 = vmatpush.msra.mxu0 0.0
        %6235 = vmatpush.msra.mxu0 0.0
        %6236 = vmatpush.msra.mxu0 0.0
        %6237 = vmatpush.msra.mxu0 0.0
        %6238 = vmatpush.msra.mxu0 0.0
        %6239 = vmatpush.msra.mxu0 0.0
        %6240 = vmatpush.msra.mxu0 0.0
        %6241 = vmatpush.msra.mxu0 0.0
        %6242 = vmatpush.msra.mxu0 0.0
        %6243 = vmatpush.msra.mxu0 %v5688
        %6244 = vmatmul.f32.gmra.mxu0 %v5878
        %v6245 = vpop.f32.mrf.mxu0
        %v6246 = vadd.f32 0.0, %v6245
        %6247 = vmatmul.f32.gmra.mxu0 %v5881
        %v6248 = vpop.f32.mrf.mxu0
        %v6249 = vadd.f32 0.0, %v6248
        %6250 = vdwg.mxu0
        %6251 = vmatpush.msra.mxu0 0.0
        %6252 = vmatpush.msra.mxu0 0.0
        %6253 = vmatpush.msra.mxu0 0.0
        %6254 = vmatpush.msra.mxu0 0.0
        %6255 = vmatpush.msra.mxu0 0.0
        %6256 = vmatpush.msra.mxu0 0.0
        %6257 = vmatpush.msra.mxu0 0.0
        %6258 = vmatpush.msra.mxu0 0.0
        %6259 = vmatpush.msra.mxu0 0.0
        %6260 = vmatpush.msra.mxu0 0.0
        %6261 = vmatpush.msra.mxu0 0.0
        %6262 = vmatpush.msra.mxu0 0.0
        %6263 = vmatpush.msra.mxu0 0.0
        %6264 = vmatpush.msra.mxu0 0.0
        %6265 = vmatpush.msra.mxu0 0.0
        %6266 = vmatpush.msra.mxu0 %v5689
        %6267 = vmatmul.f32.gmra.mxu0 %v5878
        %v6268 = vpop.f32.mrf.mxu0
        %v6269 = vadd.f32 0.0, %v6268
        %6270 = vmatmul.f32.gmra.mxu0 %v5881
        %v6271 = vpop.f32.mrf.mxu0
        %v6272 = vadd.f32 0.0, %v6271
        %6273 = vdwg.mxu0
        %6274 = vmatpush.msra.mxu0 0.0
        %6275 = vmatpush.msra.mxu0 0.0
        %6276 = vmatpush.msra.mxu0 0.0
        %6277 = vmatpush.msra.mxu0 0.0
        %6278 = vmatpush.msra.mxu0 0.0
        %6279 = vmatpush.msra.mxu0 0.0
        %6280 = vmatpush.msra.mxu0 0.0
        %6281 = vmatpush.msra.mxu0 0.0
        %6282 = vmatpush.msra.mxu0 0.0
        %6283 = vmatpush.msra.mxu0 0.0
        %6284 = vmatpush.msra.mxu0 0.0
        %6285 = vmatpush.msra.mxu0 0.0
        %6286 = vmatpush.msra.mxu0 0.0
        %6287 = vmatpush.msra.mxu0 0.0
        %6288 = vmatpush.msra.mxu0 0.0
        %6289 = vmatpush.msra.mxu0 %v5690
        %6290 = vmatmul.f32.gmra.mxu0 %v5878
        %v6291 = vpop.f32.mrf.mxu0
        %v6292 = vadd.f32 0.0, %v6291
        %6293 = vmatmul.f32.gmra.mxu0 %v5881
        %v6294 = vpop.f32.mrf.mxu0
        %v6295 = vadd.f32 0.0, %v6294
        %6296 = vdwg.mxu0
        %6297 = vmatpush.msra.mxu0 0.0
        %6298 = vmatpush.msra.mxu0 0.0
        %6299 = vmatpush.msra.mxu0 0.0
        %6300 = vmatpush.msra.mxu0 0.0
        %6301 = vmatpush.msra.mxu0 0.0
        %6302 = vmatpush.msra.mxu0 0.0
        %6303 = vmatpush.msra.mxu0 0.0
        %6304 = vmatpush.msra.mxu0 0.0
        %6305 = vmatpush.msra.mxu0 0.0
        %6306 = vmatpush.msra.mxu0 0.0
        %6307 = vmatpush.msra.mxu0 0.0
        %6308 = vmatpush.msra.mxu0 0.0
        %6309 = vmatpush.msra.mxu0 0.0
        %6310 = vmatpush.msra.mxu0 0.0
        %6311 = vmatpush.msra.mxu0 0.0
        %6312 = vmatpush.msra.mxu0 %v5691
        %6313 = vmatmul.f32.gmra.mxu0 %v5878
        %v6314 = vpop.f32.mrf.mxu0
        %v6315 = vadd.f32 0.0, %v6314
        %6316 = vmatmul.f32.gmra.mxu0 %v5881
        %v6317 = vpop.f32.mrf.mxu0
        %v6318 = vadd.f32 0.0, %v6317
        %6319 = vdwg.mxu0
        %6320 = vmatpush.msra.mxu0 0.0
        %6321 = vmatpush.msra.mxu0 0.0
        %6322 = vmatpush.msra.mxu0 0.0
        %6323 = vmatpush.msra.mxu0 0.0
        %6324 = vmatpush.msra.mxu0 0.0
        %6325 = vmatpush.msra.mxu0 0.0
        %6326 = vmatpush.msra.mxu0 0.0
        %6327 = vmatpush.msra.mxu0 0.0
        %6328 = vmatpush.msra.mxu0 0.0
        %6329 = vmatpush.msra.mxu0 0.0
        %6330 = vmatpush.msra.mxu0 0.0
        %6331 = vmatpush.msra.mxu0 0.0
        %6332 = vmatpush.msra.mxu0 0.0
        %6333 = vmatpush.msra.mxu0 0.0
        %6334 = vmatpush.msra.mxu0 0.0
        %6335 = vmatpush.msra.mxu0 %v5692
        %6336 = vmatmul.f32.gmra.mxu0 %v5878
        %v6337 = vpop.f32.mrf.mxu0
        %v6338 = vadd.f32 0.0, %v6337
        %6339 = vmatmul.f32.gmra.mxu0 %v5881
        %v6340 = vpop.f32.mrf.mxu0
        %v6341 = vadd.f32 0.0, %v6340
        %6342 = vdwg.mxu0
        %6343 = vmatpush.msra.mxu0 0.0
        %6344 = vmatpush.msra.mxu0 0.0
        %6345 = vmatpush.msra.mxu0 0.0
        %6346 = vmatpush.msra.mxu0 0.0
        %6347 = vmatpush.msra.mxu0 0.0
        %6348 = vmatpush.msra.mxu0 0.0
        %6349 = vmatpush.msra.mxu0 0.0
        %6350 = vmatpush.msra.mxu0 0.0
        %6351 = vmatpush.msra.mxu0 0.0
        %6352 = vmatpush.msra.mxu0 0.0
        %6353 = vmatpush.msra.mxu0 0.0
        %6354 = vmatpush.msra.mxu0 0.0
        %6355 = vmatpush.msra.mxu0 0.0
        %6356 = vmatpush.msra.mxu0 0.0
        %6357 = vmatpush.msra.mxu0 0.0
        %6358 = vmatpush.msra.mxu0 %v5693
        %6359 = vmatmul.f32.gmra.mxu0 %v5878
        %v6360 = vpop.f32.mrf.mxu0
        %v6361 = vadd.f32 0.0, %v6360
        %6362 = vmatmul.f32.gmra.mxu0 %v5881
        %v6363 = vpop.f32.mrf.mxu0
        %v6364 = vadd.f32 0.0, %v6363
        %6365 = vdwg.mxu0
        %6366 = vmatpush.msra.mxu0 0.0
        %6367 = vmatpush.msra.mxu0 0.0
        %6368 = vmatpush.msra.mxu0 0.0
        %6369 = vmatpush.msra.mxu0 0.0
        %6370 = vmatpush.msra.mxu0 0.0
        %6371 = vmatpush.msra.mxu0 0.0
        %6372 = vmatpush.msra.mxu0 0.0
        %6373 = vmatpush.msra.mxu0 0.0
        %6374 = vmatpush.msra.mxu0 0.0
        %6375 = vmatpush.msra.mxu0 0.0
        %6376 = vmatpush.msra.mxu0 0.0
        %6377 = vmatpush.msra.mxu0 0.0
        %6378 = vmatpush.msra.mxu0 0.0
        %6379 = vmatpush.msra.mxu0 0.0
        %6380 = vmatpush.msra.mxu0 0.0
        %6381 = vmatpush.msra.mxu0 %v5694
        %6382 = vmatmul.f32.gmra.mxu0 %v5878
        %v6383 = vpop.f32.mrf.mxu0
        %v6384 = vadd.f32 0.0, %v6383
        %6385 = vmatmul.f32.gmra.mxu0 %v5881
        %v6386 = vpop.f32.mrf.mxu0
        %v6387 = vadd.f32 0.0, %v6386
        %6388 = vdwg.mxu0
        %6389 = vmatpush.msra.mxu0 0.0
        %6390 = vmatpush.msra.mxu0 0.0
        %6391 = vmatpush.msra.mxu0 0.0
        %6392 = vmatpush.msra.mxu0 0.0
        %6393 = vmatpush.msra.mxu0 0.0
        %6394 = vmatpush.msra.mxu0 0.0
        %6395 = vmatpush.msra.mxu0 0.0
        %6396 = vmatpush.msra.mxu0 0.0
        %6397 = vmatpush.msra.mxu0 0.0
        %6398 = vmatpush.msra.mxu0 0.0
        %6399 = vmatpush.msra.mxu0 0.0
        %6400 = vmatpush.msra.mxu0 0.0
        %6401 = vmatpush.msra.mxu0 0.0
        %6402 = vmatpush.msra.mxu0 0.0
        %6403 = vmatpush.msra.mxu0 0.0
        %6404 = vmatpush.msra.mxu0 %v5695
        %6405 = vmatmul.f32.gmra.mxu0 %v5878
        %v6406 = vpop.f32.mrf.mxu0
        %v6407 = vadd.f32 0.0, %v6406
        %6408 = vmatmul.f32.gmra.mxu0 %v5881
        %v6409 = vpop.f32.mrf.mxu0
        %v6410 = vadd.f32 0.0, %v6409
        %6411 = vdwg.mxu0
        %6412 = vmatpush.msra.mxu0 0.0
        %6413 = vmatpush.msra.mxu0 0.0
        %6414 = vmatpush.msra.mxu0 0.0
        %6415 = vmatpush.msra.mxu0 0.0
        %6416 = vmatpush.msra.mxu0 0.0
        %6417 = vmatpush.msra.mxu0 0.0
        %6418 = vmatpush.msra.mxu0 0.0
        %6419 = vmatpush.msra.mxu0 0.0
        %6420 = vmatpush.msra.mxu0 0.0
        %6421 = vmatpush.msra.mxu0 0.0
        %6422 = vmatpush.msra.mxu0 0.0
        %6423 = vmatpush.msra.mxu0 0.0
        %6424 = vmatpush.msra.mxu0 0.0
        %6425 = vmatpush.msra.mxu0 0.0
        %6426 = vmatpush.msra.mxu0 0.0
        %6427 = vmatpush.msra.mxu0 %v5696
        %6428 = vmatmul.f32.gmra.mxu0 %v5878
        %v6429 = vpop.f32.mrf.mxu0
        %v6430 = vadd.f32 0.0, %v6429
        %6431 = vmatmul.f32.gmra.mxu0 %v5881
        %v6432 = vpop.f32.mrf.mxu0
        %v6433 = vadd.f32 0.0, %v6432
        %6434 = vdwg.mxu0
        %v6436 = vsel %vm5876, %v5871, 0
        %v6439 = vsel %vm5876, %v5872, 0
        %6441 = vmatpush.msra.mxu0 0.0
        %6442 = vmatpush.msra.mxu0 0.0
        %6443 = vmatpush.msra.mxu0 0.0
        %6444 = vmatpush.msra.mxu0 0.0
        %6445 = vmatpush.msra.mxu0 0.0
        %6446 = vmatpush.msra.mxu0 0.0
        %6447 = vmatpush.msra.mxu0 0.0
        %6448 = vmatpush.msra.mxu0 0.0
        %6449 = vmatpush.msra.mxu0 0.0
        %6450 = vmatpush.msra.mxu0 0.0
        %6451 = vmatpush.msra.mxu0 0.0
        %6452 = vmatpush.msra.mxu0 0.0
        %6453 = vmatpush.msra.mxu0 0.0
        %6454 = vmatpush.msra.mxu0 0.0
        %6455 = vmatpush.msra.mxu0 0.0
        %6456 = vmatpush.msra.mxu0 %v5847
        %6457 = vmatmul.f32.gmra.mxu0 %v6436
        %v6458 = vpop.f32.mrf.mxu0
        %v6459 = vadd.f32 %v5901, %v6458
        %6460 = vmatmul.f32.gmra.mxu0 %v6439
        %v6461 = vpop.f32.mrf.mxu0
        %v6462 = vadd.f32 %v5904, %v6461
        %6463 = vdwg.mxu0
        %6464 = vmatpush.msra.mxu0 0.0
        %6465 = vmatpush.msra.mxu0 0.0
        %6466 = vmatpush.msra.mxu0 0.0
        %6467 = vmatpush.msra.mxu0 0.0
        %6468 = vmatpush.msra.mxu0 0.0
        %6469 = vmatpush.msra.mxu0 0.0
        %6470 = vmatpush.msra.mxu0 0.0
        %6471 = vmatpush.msra.mxu0 0.0
        %6472 = vmatpush.msra.mxu0 0.0
        %6473 = vmatpush.msra.mxu0 0.0
        %6474 = vmatpush.msra.mxu0 0.0
        %6475 = vmatpush.msra.mxu0 0.0
        %6476 = vmatpush.msra.mxu0 0.0
        %6477 = vmatpush.msra.mxu0 0.0
        %6478 = vmatpush.msra.mxu0 0.0
        %6479 = vmatpush.msra.mxu0 %v5848
        %6480 = vmatmul.f32.gmra.mxu0 %v6436
        %v6481 = vpop.f32.mrf.mxu0
        %v6482 = vadd.f32 %v5924, %v6481
        %6483 = vmatmul.f32.gmra.mxu0 %v6439
        %v6484 = vpop.f32.mrf.mxu0
        %v6485 = vadd.f32 %v5927, %v6484
        %6486 = vdwg.mxu0
        %6487 = vmatpush.msra.mxu0 0.0
        %6488 = vmatpush.msra.mxu0 0.0
        %6489 = vmatpush.msra.mxu0 0.0
        %6490 = vmatpush.msra.mxu0 0.0
        %6491 = vmatpush.msra.mxu0 0.0
        %6492 = vmatpush.msra.mxu0 0.0
        %6493 = vmatpush.msra.mxu0 0.0
        %6494 = vmatpush.msra.mxu0 0.0
        %6495 = vmatpush.msra.mxu0 0.0
        %6496 = vmatpush.msra.mxu0 0.0
        %6497 = vmatpush.msra.mxu0 0.0
        %6498 = vmatpush.msra.mxu0 0.0
        %6499 = vmatpush.msra.mxu0 0.0
        %6500 = vmatpush.msra.mxu0 0.0
        %6501 = vmatpush.msra.mxu0 0.0
        %6502 = vmatpush.msra.mxu0 %v5849
        %6503 = vmatmul.f32.gmra.mxu0 %v6436
        %v6504 = vpop.f32.mrf.mxu0
        %v6505 = vadd.f32 %v5947, %v6504
        %6506 = vmatmul.f32.gmra.mxu0 %v6439
        %v6507 = vpop.f32.mrf.mxu0
        %v6508 = vadd.f32 %v5950, %v6507
        %6509 = vdwg.mxu0
        %6510 = vmatpush.msra.mxu0 0.0
        %6511 = vmatpush.msra.mxu0 0.0
        %6512 = vmatpush.msra.mxu0 0.0
        %6513 = vmatpush.msra.mxu0 0.0
        %6514 = vmatpush.msra.mxu0 0.0
        %6515 = vmatpush.msra.mxu0 0.0
        %6516 = vmatpush.msra.mxu0 0.0
        %6517 = vmatpush.msra.mxu0 0.0
        %6518 = vmatpush.msra.mxu0 0.0
        %6519 = vmatpush.msra.mxu0 0.0
        %6520 = vmatpush.msra.mxu0 0.0
        %6521 = vmatpush.msra.mxu0 0.0
        %6522 = vmatpush.msra.mxu0 0.0
        %6523 = vmatpush.msra.mxu0 0.0
        %6524 = vmatpush.msra.mxu0 0.0
        %6525 = vmatpush.msra.mxu0 %v5850
        %6526 = vmatmul.f32.gmra.mxu0 %v6436
        %v6527 = vpop.f32.mrf.mxu0
        %v6528 = vadd.f32 %v5970, %v6527
        %6529 = vmatmul.f32.gmra.mxu0 %v6439
        %v6530 = vpop.f32.mrf.mxu0
        %v6531 = vadd.f32 %v5973, %v6530
        %6532 = vdwg.mxu0
        %6533 = vmatpush.msra.mxu0 0.0
        %6534 = vmatpush.msra.mxu0 0.0
        %6535 = vmatpush.msra.mxu0 0.0
        %6536 = vmatpush.msra.mxu0 0.0
        %6537 = vmatpush.msra.mxu0 0.0
        %6538 = vmatpush.msra.mxu0 0.0
        %6539 = vmatpush.msra.mxu0 0.0
        %6540 = vmatpush.msra.mxu0 0.0
        %6541 = vmatpush.msra.mxu0 0.0
        %6542 = vmatpush.msra.mxu0 0.0
        %6543 = vmatpush.msra.mxu0 0.0
        %6544 = vmatpush.msra.mxu0 0.0
        %6545 = vmatpush.msra.mxu0 0.0
        %6546 = vmatpush.msra.mxu0 0.0
        %6547 = vmatpush.msra.mxu0 0.0
        %6548 = vmatpush.msra.mxu0 %v5851
        %6549 = vmatmul.f32.gmra.mxu0 %v6436
        %v6550 = vpop.f32.mrf.mxu0
        %v6551 = vadd.f32 %v5993, %v6550
        %6552 = vmatmul.f32.gmra.mxu0 %v6439
        %v6553 = vpop.f32.mrf.mxu0
        %v6554 = vadd.f32 %v5996, %v6553
        %6555 = vdwg.mxu0
        %6556 = vmatpush.msra.mxu0 0.0
        %6557 = vmatpush.msra.mxu0 0.0
        %6558 = vmatpush.msra.mxu0 0.0
        %6559 = vmatpush.msra.mxu0 0.0
        %6560 = vmatpush.msra.mxu0 0.0
        %6561 = vmatpush.msra.mxu0 0.0
        %6562 = vmatpush.msra.mxu0 0.0
        %6563 = vmatpush.msra.mxu0 0.0
        %6564 = vmatpush.msra.mxu0 0.0
        %6565 = vmatpush.msra.mxu0 0.0
        %6566 = vmatpush.msra.mxu0 0.0
        %6567 = vmatpush.msra.mxu0 0.0
        %6568 = vmatpush.msra.mxu0 0.0
        %6569 = vmatpush.msra.mxu0 0.0
        %6570 = vmatpush.msra.mxu0 0.0
        %6571 = vmatpush.msra.mxu0 %v5852
        %6572 = vmatmul.f32.gmra.mxu0 %v6436
        %v6573 = vpop.f32.mrf.mxu0
        %v6574 = vadd.f32 %v6016, %v6573
        %6575 = vmatmul.f32.gmra.mxu0 %v6439
        %v6576 = vpop.f32.mrf.mxu0
        %v6577 = vadd.f32 %v6019, %v6576
        %6578 = vdwg.mxu0
        %6579 = vmatpush.msra.mxu0 0.0
        %6580 = vmatpush.msra.mxu0 0.0
        %6581 = vmatpush.msra.mxu0 0.0
        %6582 = vmatpush.msra.mxu0 0.0
        %6583 = vmatpush.msra.mxu0 0.0
        %6584 = vmatpush.msra.mxu0 0.0
        %6585 = vmatpush.msra.mxu0 0.0
        %6586 = vmatpush.msra.mxu0 0.0
        %6587 = vmatpush.msra.mxu0 0.0
        %6588 = vmatpush.msra.mxu0 0.0
        %6589 = vmatpush.msra.mxu0 0.0
        %6590 = vmatpush.msra.mxu0 0.0
        %6591 = vmatpush.msra.mxu0 0.0
        %6592 = vmatpush.msra.mxu0 0.0
        %6593 = vmatpush.msra.mxu0 0.0
        %6594 = vmatpush.msra.mxu0 %v5853
        %6595 = vmatmul.f32.gmra.mxu0 %v6436
        %v6596 = vpop.f32.mrf.mxu0
        %v6597 = vadd.f32 %v6039, %v6596
        %6598 = vmatmul.f32.gmra.mxu0 %v6439
        %v6599 = vpop.f32.mrf.mxu0
        %v6600 = vadd.f32 %v6042, %v6599
        %6601 = vdwg.mxu0
        %6602 = vmatpush.msra.mxu0 0.0
        %6603 = vmatpush.msra.mxu0 0.0
        %6604 = vmatpush.msra.mxu0 0.0
        %6605 = vmatpush.msra.mxu0 0.0
        %6606 = vmatpush.msra.mxu0 0.0
        %6607 = vmatpush.msra.mxu0 0.0
        %6608 = vmatpush.msra.mxu0 0.0
        %6609 = vmatpush.msra.mxu0 0.0
        %6610 = vmatpush.msra.mxu0 0.0
        %6611 = vmatpush.msra.mxu0 0.0
        %6612 = vmatpush.msra.mxu0 0.0
        %6613 = vmatpush.msra.mxu0 0.0
        %6614 = vmatpush.msra.mxu0 0.0
        %6615 = vmatpush.msra.mxu0 0.0
        %6616 = vmatpush.msra.mxu0 0.0
        %6617 = vmatpush.msra.mxu0 %v5854
        %6618 = vmatmul.f32.gmra.mxu0 %v6436
        %v6619 = vpop.f32.mrf.mxu0
        %v6620 = vadd.f32 %v6062, %v6619
        %6621 = vmatmul.f32.gmra.mxu0 %v6439
        %v6622 = vpop.f32.mrf.mxu0
        %v6623 = vadd.f32 %v6065, %v6622
        %6624 = vdwg.mxu0
        %6625 = vmatpush.msra.mxu0 0.0
        %6626 = vmatpush.msra.mxu0 0.0
        %6627 = vmatpush.msra.mxu0 0.0
        %6628 = vmatpush.msra.mxu0 0.0
        %6629 = vmatpush.msra.mxu0 0.0
        %6630 = vmatpush.msra.mxu0 0.0
        %6631 = vmatpush.msra.mxu0 0.0
        %6632 = vmatpush.msra.mxu0 0.0
        %6633 = vmatpush.msra.mxu0 0.0
        %6634 = vmatpush.msra.mxu0 0.0
        %6635 = vmatpush.msra.mxu0 0.0
        %6636 = vmatpush.msra.mxu0 0.0
        %6637 = vmatpush.msra.mxu0 0.0
        %6638 = vmatpush.msra.mxu0 0.0
        %6639 = vmatpush.msra.mxu0 0.0
        %6640 = vmatpush.msra.mxu0 %v5855
        %6641 = vmatmul.f32.gmra.mxu0 %v6436
        %v6642 = vpop.f32.mrf.mxu0
        %v6643 = vadd.f32 %v6085, %v6642
        %6644 = vmatmul.f32.gmra.mxu0 %v6439
        %v6645 = vpop.f32.mrf.mxu0
        %v6646 = vadd.f32 %v6088, %v6645
        %6647 = vdwg.mxu0
        %6648 = vmatpush.msra.mxu0 0.0
        %6649 = vmatpush.msra.mxu0 0.0
        %6650 = vmatpush.msra.mxu0 0.0
        %6651 = vmatpush.msra.mxu0 0.0
        %6652 = vmatpush.msra.mxu0 0.0
        %6653 = vmatpush.msra.mxu0 0.0
        %6654 = vmatpush.msra.mxu0 0.0
        %6655 = vmatpush.msra.mxu0 0.0
        %6656 = vmatpush.msra.mxu0 0.0
        %6657 = vmatpush.msra.mxu0 0.0
        %6658 = vmatpush.msra.mxu0 0.0
        %6659 = vmatpush.msra.mxu0 0.0
        %6660 = vmatpush.msra.mxu0 0.0
        %6661 = vmatpush.msra.mxu0 0.0
        %6662 = vmatpush.msra.mxu0 0.0
        %6663 = vmatpush.msra.mxu0 %v5856
        %6664 = vmatmul.f32.gmra.mxu0 %v6436
        %v6665 = vpop.f32.mrf.mxu0
        %v6666 = vadd.f32 %v6108, %v6665
        %6667 = vmatmul.f32.gmra.mxu0 %v6439
        %v6668 = vpop.f32.mrf.mxu0
        %v6669 = vadd.f32 %v6111, %v6668
        %6670 = vdwg.mxu0
        %6671 = vmatpush.msra.mxu0 0.0
        %6672 = vmatpush.msra.mxu0 0.0
        %6673 = vmatpush.msra.mxu0 0.0
        %6674 = vmatpush.msra.mxu0 0.0
        %6675 = vmatpush.msra.mxu0 0.0
        %6676 = vmatpush.msra.mxu0 0.0
        %6677 = vmatpush.msra.mxu0 0.0
        %6678 = vmatpush.msra.mxu0 0.0
        %6679 = vmatpush.msra.mxu0 0.0
        %6680 = vmatpush.msra.mxu0 0.0
        %6681 = vmatpush.msra.mxu0 0.0
        %6682 = vmatpush.msra.mxu0 0.0
        %6683 = vmatpush.msra.mxu0 0.0
        %6684 = vmatpush.msra.mxu0 0.0
        %6685 = vmatpush.msra.mxu0 0.0
        %6686 = vmatpush.msra.mxu0 %v5857
        %6687 = vmatmul.f32.gmra.mxu0 %v6436
        %v6688 = vpop.f32.mrf.mxu0
        %v6689 = vadd.f32 %v6131, %v6688
        %6690 = vmatmul.f32.gmra.mxu0 %v6439
        %v6691 = vpop.f32.mrf.mxu0
        %v6692 = vadd.f32 %v6134, %v6691
        %6693 = vdwg.mxu0
        %6694 = vmatpush.msra.mxu0 0.0
        %6695 = vmatpush.msra.mxu0 0.0
        %6696 = vmatpush.msra.mxu0 0.0
        %6697 = vmatpush.msra.mxu0 0.0
        %6698 = vmatpush.msra.mxu0 0.0
        %6699 = vmatpush.msra.mxu0 0.0
        %6700 = vmatpush.msra.mxu0 0.0
        %6701 = vmatpush.msra.mxu0 0.0
        %6702 = vmatpush.msra.mxu0 0.0
        %6703 = vmatpush.msra.mxu0 0.0
        %6704 = vmatpush.msra.mxu0 0.0
        %6705 = vmatpush.msra.mxu0 0.0
        %6706 = vmatpush.msra.mxu0 0.0
        %6707 = vmatpush.msra.mxu0 0.0
        %6708 = vmatpush.msra.mxu0 0.0
        %6709 = vmatpush.msra.mxu0 %v5858
        %6710 = vmatmul.f32.gmra.mxu0 %v6436
        %v6711 = vpop.f32.mrf.mxu0
        %v6712 = vadd.f32 %v6154, %v6711
        %6713 = vmatmul.f32.gmra.mxu0 %v6439
        %v6714 = vpop.f32.mrf.mxu0
        %v6715 = vadd.f32 %v6157, %v6714
        %6716 = vdwg.mxu0
        %6717 = vmatpush.msra.mxu0 0.0
        %6718 = vmatpush.msra.mxu0 0.0
        %6719 = vmatpush.msra.mxu0 0.0
        %6720 = vmatpush.msra.mxu0 0.0
        %6721 = vmatpush.msra.mxu0 0.0
        %6722 = vmatpush.msra.mxu0 0.0
        %6723 = vmatpush.msra.mxu0 0.0
        %6724 = vmatpush.msra.mxu0 0.0
        %6725 = vmatpush.msra.mxu0 0.0
        %6726 = vmatpush.msra.mxu0 0.0
        %6727 = vmatpush.msra.mxu0 0.0
        %6728 = vmatpush.msra.mxu0 0.0
        %6729 = vmatpush.msra.mxu0 0.0
        %6730 = vmatpush.msra.mxu0 0.0
        %6731 = vmatpush.msra.mxu0 0.0
        %6732 = vmatpush.msra.mxu0 %v5859
        %6733 = vmatmul.f32.gmra.mxu0 %v6436
        %v6734 = vpop.f32.mrf.mxu0
        %v6735 = vadd.f32 %v6177, %v6734
        %6736 = vmatmul.f32.gmra.mxu0 %v6439
        %v6737 = vpop.f32.mrf.mxu0
        %v6738 = vadd.f32 %v6180, %v6737
        %6739 = vdwg.mxu0
        %6740 = vmatpush.msra.mxu0 0.0
        %6741 = vmatpush.msra.mxu0 0.0
        %6742 = vmatpush.msra.mxu0 0.0
        %6743 = vmatpush.msra.mxu0 0.0
        %6744 = vmatpush.msra.mxu0 0.0
        %6745 = vmatpush.msra.mxu0 0.0
        %6746 = vmatpush.msra.mxu0 0.0
        %6747 = vmatpush.msra.mxu0 0.0
        %6748 = vmatpush.msra.mxu0 0.0
        %6749 = vmatpush.msra.mxu0 0.0
        %6750 = vmatpush.msra.mxu0 0.0
        %6751 = vmatpush.msra.mxu0 0.0
        %6752 = vmatpush.msra.mxu0 0.0
        %6753 = vmatpush.msra.mxu0 0.0
        %6754 = vmatpush.msra.mxu0 0.0
        %6755 = vmatpush.msra.mxu0 %v5860
        %6756 = vmatmul.f32.gmra.mxu0 %v6436
        %v6757 = vpop.f32.mrf.mxu0
        %v6758 = vadd.f32 %v6200, %v6757
        %6759 = vmatmul.f32.gmra.mxu0 %v6439
        %v6760 = vpop.f32.mrf.mxu0
        %v6761 = vadd.f32 %v6203, %v6760
        %6762 = vdwg.mxu0
        %6763 = vmatpush.msra.mxu0 0.0
        %6764 = vmatpush.msra.mxu0 0.0
        %6765 = vmatpush.msra.mxu0 0.0
        %6766 = vmatpush.msra.mxu0 0.0
        %6767 = vmatpush.msra.mxu0 0.0
        %6768 = vmatpush.msra.mxu0 0.0
        %6769 = vmatpush.msra.mxu0 0.0
        %6770 = vmatpush.msra.mxu0 0.0
        %6771 = vmatpush.msra.mxu0 0.0
        %6772 = vmatpush.msra.mxu0 0.0
        %6773 = vmatpush.msra.mxu0 0.0
        %6774 = vmatpush.msra.mxu0 0.0
        %6775 = vmatpush.msra.mxu0 0.0
        %6776 = vmatpush.msra.mxu0 0.0
        %6777 = vmatpush.msra.mxu0 0.0
        %6778 = vmatpush.msra.mxu0 %v5861
        %6779 = vmatmul.f32.gmra.mxu0 %v6436
        %v6780 = vpop.f32.mrf.mxu0
        %v6781 = vadd.f32 %v6223, %v6780
        %6782 = vmatmul.f32.gmra.mxu0 %v6439
        %v6783 = vpop.f32.mrf.mxu0
        %v6784 = vadd.f32 %v6226, %v6783
        %6785 = vdwg.mxu0
        %6786 = vmatpush.msra.mxu0 0.0
        %6787 = vmatpush.msra.mxu0 0.0
        %6788 = vmatpush.msra.mxu0 0.0
        %6789 = vmatpush.msra.mxu0 0.0
        %6790 = vmatpush.msra.mxu0 0.0
        %6791 = vmatpush.msra.mxu0 0.0
        %6792 = vmatpush.msra.mxu0 0.0
        %6793 = vmatpush.msra.mxu0 0.0
        %6794 = vmatpush.msra.mxu0 0.0
        %6795 = vmatpush.msra.mxu0 0.0
        %6796 = vmatpush.msra.mxu0 0.0
        %6797 = vmatpush.msra.mxu0 0.0
        %6798 = vmatpush.msra.mxu0 0.0
        %6799 = vmatpush.msra.mxu0 0.0
        %6800 = vmatpush.msra.mxu0 0.0
        %6801 = vmatpush.msra.mxu0 %v5862
        %6802 = vmatmul.f32.gmra.mxu0 %v6436
        %v6803 = vpop.f32.mrf.mxu0
        %v6804 = vadd.f32 %v6246, %v6803
        %6805 = vmatmul.f32.gmra.mxu0 %v6439
        %v6806 = vpop.f32.mrf.mxu0
        %v6807 = vadd.f32 %v6249, %v6806
        %6808 = vdwg.mxu0
        %6809 = vmatpush.msra.mxu0 0.0
        %6810 = vmatpush.msra.mxu0 0.0
        %6811 = vmatpush.msra.mxu0 0.0
        %6812 = vmatpush.msra.mxu0 0.0
        %6813 = vmatpush.msra.mxu0 0.0
        %6814 = vmatpush.msra.mxu0 0.0
        %6815 = vmatpush.msra.mxu0 0.0
        %6816 = vmatpush.msra.mxu0 0.0
        %6817 = vmatpush.msra.mxu0 0.0
        %6818 = vmatpush.msra.mxu0 0.0
        %6819 = vmatpush.msra.mxu0 0.0
        %6820 = vmatpush.msra.mxu0 0.0
        %6821 = vmatpush.msra.mxu0 0.0
        %6822 = vmatpush.msra.mxu0 0.0
        %6823 = vmatpush.msra.mxu0 0.0
        %6824 = vmatpush.msra.mxu0 %v5863
        %6825 = vmatmul.f32.gmra.mxu0 %v6436
        %v6826 = vpop.f32.mrf.mxu0
        %v6827 = vadd.f32 %v6269, %v6826
        %6828 = vmatmul.f32.gmra.mxu0 %v6439
        %v6829 = vpop.f32.mrf.mxu0
        %v6830 = vadd.f32 %v6272, %v6829
        %6831 = vdwg.mxu0
        %6832 = vmatpush.msra.mxu0 0.0
        %6833 = vmatpush.msra.mxu0 0.0
        %6834 = vmatpush.msra.mxu0 0.0
        %6835 = vmatpush.msra.mxu0 0.0
        %6836 = vmatpush.msra.mxu0 0.0
        %6837 = vmatpush.msra.mxu0 0.0
        %6838 = vmatpush.msra.mxu0 0.0
        %6839 = vmatpush.msra.mxu0 0.0
        %6840 = vmatpush.msra.mxu0 0.0
        %6841 = vmatpush.msra.mxu0 0.0
        %6842 = vmatpush.msra.mxu0 0.0
        %6843 = vmatpush.msra.mxu0 0.0
        %6844 = vmatpush.msra.mxu0 0.0
        %6845 = vmatpush.msra.mxu0 0.0
        %6846 = vmatpush.msra.mxu0 0.0
        %6847 = vmatpush.msra.mxu0 %v5864
        %6848 = vmatmul.f32.gmra.mxu0 %v6436
        %v6849 = vpop.f32.mrf.mxu0
        %v6850 = vadd.f32 %v6292, %v6849
        %6851 = vmatmul.f32.gmra.mxu0 %v6439
        %v6852 = vpop.f32.mrf.mxu0
        %v6853 = vadd.f32 %v6295, %v6852
        %6854 = vdwg.mxu0
        %6855 = vmatpush.msra.mxu0 0.0
        %6856 = vmatpush.msra.mxu0 0.0
        %6857 = vmatpush.msra.mxu0 0.0
        %6858 = vmatpush.msra.mxu0 0.0
        %6859 = vmatpush.msra.mxu0 0.0
        %6860 = vmatpush.msra.mxu0 0.0
        %6861 = vmatpush.msra.mxu0 0.0
        %6862 = vmatpush.msra.mxu0 0.0
        %6863 = vmatpush.msra.mxu0 0.0
        %6864 = vmatpush.msra.mxu0 0.0
        %6865 = vmatpush.msra.mxu0 0.0
        %6866 = vmatpush.msra.mxu0 0.0
        %6867 = vmatpush.msra.mxu0 0.0
        %6868 = vmatpush.msra.mxu0 0.0
        %6869 = vmatpush.msra.mxu0 0.0
        %6870 = vmatpush.msra.mxu0 %v5865
        %6871 = vmatmul.f32.gmra.mxu0 %v6436
        %v6872 = vpop.f32.mrf.mxu0
        %v6873 = vadd.f32 %v6315, %v6872
        %6874 = vmatmul.f32.gmra.mxu0 %v6439
        %v6875 = vpop.f32.mrf.mxu0
        %v6876 = vadd.f32 %v6318, %v6875
        %6877 = vdwg.mxu0
        %6878 = vmatpush.msra.mxu0 0.0
        %6879 = vmatpush.msra.mxu0 0.0
        %6880 = vmatpush.msra.mxu0 0.0
        %6881 = vmatpush.msra.mxu0 0.0
        %6882 = vmatpush.msra.mxu0 0.0
        %6883 = vmatpush.msra.mxu0 0.0
        %6884 = vmatpush.msra.mxu0 0.0
        %6885 = vmatpush.msra.mxu0 0.0
        %6886 = vmatpush.msra.mxu0 0.0
        %6887 = vmatpush.msra.mxu0 0.0
        %6888 = vmatpush.msra.mxu0 0.0
        %6889 = vmatpush.msra.mxu0 0.0
        %6890 = vmatpush.msra.mxu0 0.0
        %6891 = vmatpush.msra.mxu0 0.0
        %6892 = vmatpush.msra.mxu0 0.0
        %6893 = vmatpush.msra.mxu0 %v5866
        %6894 = vmatmul.f32.gmra.mxu0 %v6436
        %v6895 = vpop.f32.mrf.mxu0
        %v6896 = vadd.f32 %v6338, %v6895
        %6897 = vmatmul.f32.gmra.mxu0 %v6439
        %v6898 = vpop.f32.mrf.mxu0
        %v6899 = vadd.f32 %v6341, %v6898
        %6900 = vdwg.mxu0
        %6901 = vmatpush.msra.mxu0 0.0
        %6902 = vmatpush.msra.mxu0 0.0
        %6903 = vmatpush.msra.mxu0 0.0
        %6904 = vmatpush.msra.mxu0 0.0
        %6905 = vmatpush.msra.mxu0 0.0
        %6906 = vmatpush.msra.mxu0 0.0
        %6907 = vmatpush.msra.mxu0 0.0
        %6908 = vmatpush.msra.mxu0 0.0
        %6909 = vmatpush.msra.mxu0 0.0
        %6910 = vmatpush.msra.mxu0 0.0
        %6911 = vmatpush.msra.mxu0 0.0
        %6912 = vmatpush.msra.mxu0 0.0
        %6913 = vmatpush.msra.mxu0 0.0
        %6914 = vmatpush.msra.mxu0 0.0
        %6915 = vmatpush.msra.mxu0 0.0
        %6916 = vmatpush.msra.mxu0 %v5867
        %6917 = vmatmul.f32.gmra.mxu0 %v6436
        %v6918 = vpop.f32.mrf.mxu0
        %v6919 = vadd.f32 %v6361, %v6918
        %6920 = vmatmul.f32.gmra.mxu0 %v6439
        %v6921 = vpop.f32.mrf.mxu0
        %v6922 = vadd.f32 %v6364, %v6921
        %6923 = vdwg.mxu0
        %6924 = vmatpush.msra.mxu0 0.0
        %6925 = vmatpush.msra.mxu0 0.0
        %6926 = vmatpush.msra.mxu0 0.0
        %6927 = vmatpush.msra.mxu0 0.0
        %6928 = vmatpush.msra.mxu0 0.0
        %6929 = vmatpush.msra.mxu0 0.0
        %6930 = vmatpush.msra.mxu0 0.0
        %6931 = vmatpush.msra.mxu0 0.0
        %6932 = vmatpush.msra.mxu0 0.0
        %6933 = vmatpush.msra.mxu0 0.0
        %6934 = vmatpush.msra.mxu0 0.0
        %6935 = vmatpush.msra.mxu0 0.0
        %6936 = vmatpush.msra.mxu0 0.0
        %6937 = vmatpush.msra.mxu0 0.0
        %6938 = vmatpush.msra.mxu0 0.0
        %6939 = vmatpush.msra.mxu0 %v5868
        %6940 = vmatmul.f32.gmra.mxu0 %v6436
        %v6941 = vpop.f32.mrf.mxu0
        %v6942 = vadd.f32 %v6384, %v6941
        %6943 = vmatmul.f32.gmra.mxu0 %v6439
        %v6944 = vpop.f32.mrf.mxu0
        %v6945 = vadd.f32 %v6387, %v6944
        %6946 = vdwg.mxu0
        %6947 = vmatpush.msra.mxu0 0.0
        %6948 = vmatpush.msra.mxu0 0.0
        %6949 = vmatpush.msra.mxu0 0.0
        %6950 = vmatpush.msra.mxu0 0.0
        %6951 = vmatpush.msra.mxu0 0.0
        %6952 = vmatpush.msra.mxu0 0.0
        %6953 = vmatpush.msra.mxu0 0.0
        %6954 = vmatpush.msra.mxu0 0.0
        %6955 = vmatpush.msra.mxu0 0.0
        %6956 = vmatpush.msra.mxu0 0.0
        %6957 = vmatpush.msra.mxu0 0.0
        %6958 = vmatpush.msra.mxu0 0.0
        %6959 = vmatpush.msra.mxu0 0.0
        %6960 = vmatpush.msra.mxu0 0.0
        %6961 = vmatpush.msra.mxu0 0.0
        %6962 = vmatpush.msra.mxu0 %v5869
        %6963 = vmatmul.f32.gmra.mxu0 %v6436
        %v6964 = vpop.f32.mrf.mxu0
        %v6965 = vadd.f32 %v6407, %v6964
        %6966 = vmatmul.f32.gmra.mxu0 %v6439
        %v6967 = vpop.f32.mrf.mxu0
        %v6968 = vadd.f32 %v6410, %v6967
        %6969 = vdwg.mxu0
        %6970 = vmatpush.msra.mxu0 0.0
        %6971 = vmatpush.msra.mxu0 0.0
        %6972 = vmatpush.msra.mxu0 0.0
        %6973 = vmatpush.msra.mxu0 0.0
        %6974 = vmatpush.msra.mxu0 0.0
        %6975 = vmatpush.msra.mxu0 0.0
        %6976 = vmatpush.msra.mxu0 0.0
        %6977 = vmatpush.msra.mxu0 0.0
        %6978 = vmatpush.msra.mxu0 0.0
        %6979 = vmatpush.msra.mxu0 0.0
        %6980 = vmatpush.msra.mxu0 0.0
        %6981 = vmatpush.msra.mxu0 0.0
        %6982 = vmatpush.msra.mxu0 0.0
        %6983 = vmatpush.msra.mxu0 0.0
        %6984 = vmatpush.msra.mxu0 0.0
        %6985 = vmatpush.msra.mxu0 %v5870
        %6986 = vmatmul.f32.gmra.mxu0 %v6436
        %v6987 = vpop.f32.mrf.mxu0
        %v6988 = vadd.f32 %v6430, %v6987
        %6989 = vmatmul.f32.gmra.mxu0 %v6439
        %v6990 = vpop.f32.mrf.mxu0
        %v6991 = vadd.f32 %v6433, %v6990
        %6992 = vdwg.mxu0
        %s6993 = scalar_lea.vmem %s2, 32
        %v6994 = vld [vmem:[%s6993] sm:$0xff]
        %v6995 = vld [vmem:[%s6993 + $0x8] sm:$0xff]
        %v6997 = vsel %vm5876, %v6994, 0
        %v7000 = vsel %vm5876, %v6995, 0
        %7002 = vmatpush.msra.mxu0 0.0
        %7003 = vmatpush.msra.mxu0 0.0
        %7004 = vmatpush.msra.mxu0 0.0
        %7005 = vmatpush.msra.mxu0 0.0
        %7006 = vmatpush.msra.mxu0 0.0
        %7007 = vmatpush.msra.mxu0 0.0
        %7008 = vmatpush.msra.mxu0 0.0
        %7009 = vmatpush.msra.mxu0 0.0
        %7010 = vmatpush.msra.mxu0 0.0
        %7011 = vmatpush.msra.mxu0 0.0
        %7012 = vmatpush.msra.mxu0 0.0
        %7013 = vmatpush.msra.mxu0 0.0
        %7014 = vmatpush.msra.mxu0 0.0
        %7015 = vmatpush.msra.mxu0 0.0
        %7016 = vmatpush.msra.mxu0 0.0
        %7017 = vmatpush.msra.mxu0 %v5721
        %7018 = vmatmul.f32.gmra.mxu0 %v6997
        %v7019 = vpop.f32.mrf.mxu0
        %v7020 = vadd.f32 0.0, %v7019
        %7021 = vmatmul.f32.gmra.mxu0 %v7000
        %v7022 = vpop.f32.mrf.mxu0
        %v7023 = vadd.f32 0.0, %v7022
        %7024 = vdwg.mxu0
        %7025 = vmatpush.msra.mxu0 0.0
        %7026 = vmatpush.msra.mxu0 0.0
        %7027 = vmatpush.msra.mxu0 0.0
        %7028 = vmatpush.msra.mxu0 0.0
        %7029 = vmatpush.msra.mxu0 0.0
        %7030 = vmatpush.msra.mxu0 0.0
        %7031 = vmatpush.msra.mxu0 0.0
        %7032 = vmatpush.msra.mxu0 0.0
        %7033 = vmatpush.msra.mxu0 0.0
        %7034 = vmatpush.msra.mxu0 0.0
        %7035 = vmatpush.msra.mxu0 0.0
        %7036 = vmatpush.msra.mxu0 0.0
        %7037 = vmatpush.msra.mxu0 0.0
        %7038 = vmatpush.msra.mxu0 0.0
        %7039 = vmatpush.msra.mxu0 0.0
        %7040 = vmatpush.msra.mxu0 %v5722
        %7041 = vmatmul.f32.gmra.mxu0 %v6997
        %v7042 = vpop.f32.mrf.mxu0
        %v7043 = vadd.f32 0.0, %v7042
        %7044 = vmatmul.f32.gmra.mxu0 %v7000
        %v7045 = vpop.f32.mrf.mxu0
        %v7046 = vadd.f32 0.0, %v7045
        %7047 = vdwg.mxu0
        %7048 = vmatpush.msra.mxu0 0.0
        %7049 = vmatpush.msra.mxu0 0.0
        %7050 = vmatpush.msra.mxu0 0.0
        %7051 = vmatpush.msra.mxu0 0.0
        %7052 = vmatpush.msra.mxu0 0.0
        %7053 = vmatpush.msra.mxu0 0.0
        %7054 = vmatpush.msra.mxu0 0.0
        %7055 = vmatpush.msra.mxu0 0.0
        %7056 = vmatpush.msra.mxu0 0.0
        %7057 = vmatpush.msra.mxu0 0.0
        %7058 = vmatpush.msra.mxu0 0.0
        %7059 = vmatpush.msra.mxu0 0.0
        %7060 = vmatpush.msra.mxu0 0.0
        %7061 = vmatpush.msra.mxu0 0.0
        %7062 = vmatpush.msra.mxu0 0.0
        %7063 = vmatpush.msra.mxu0 %v5723
        %7064 = vmatmul.f32.gmra.mxu0 %v6997
        %v7065 = vpop.f32.mrf.mxu0
        %v7066 = vadd.f32 0.0, %v7065
        %7067 = vmatmul.f32.gmra.mxu0 %v7000
        %v7068 = vpop.f32.mrf.mxu0
        %v7069 = vadd.f32 0.0, %v7068
        %7070 = vdwg.mxu0
        %7071 = vmatpush.msra.mxu0 0.0
        %7072 = vmatpush.msra.mxu0 0.0
        %7073 = vmatpush.msra.mxu0 0.0
        %7074 = vmatpush.msra.mxu0 0.0
        %7075 = vmatpush.msra.mxu0 0.0
        %7076 = vmatpush.msra.mxu0 0.0
        %7077 = vmatpush.msra.mxu0 0.0
        %7078 = vmatpush.msra.mxu0 0.0
        %7079 = vmatpush.msra.mxu0 0.0
        %7080 = vmatpush.msra.mxu0 0.0
        %7081 = vmatpush.msra.mxu0 0.0
        %7082 = vmatpush.msra.mxu0 0.0
        %7083 = vmatpush.msra.mxu0 0.0
        %7084 = vmatpush.msra.mxu0 0.0
        %7085 = vmatpush.msra.mxu0 0.0
        %7086 = vmatpush.msra.mxu0 %v5724
        %7087 = vmatmul.f32.gmra.mxu0 %v6997
        %v7088 = vpop.f32.mrf.mxu0
        %v7089 = vadd.f32 0.0, %v7088
        %7090 = vmatmul.f32.gmra.mxu0 %v7000
        %v7091 = vpop.f32.mrf.mxu0
        %v7092 = vadd.f32 0.0, %v7091
        %7093 = vdwg.mxu0
        %7094 = vmatpush.msra.mxu0 0.0
        %7095 = vmatpush.msra.mxu0 0.0
        %7096 = vmatpush.msra.mxu0 0.0
        %7097 = vmatpush.msra.mxu0 0.0
        %7098 = vmatpush.msra.mxu0 0.0
        %7099 = vmatpush.msra.mxu0 0.0
        %7100 = vmatpush.msra.mxu0 0.0
        %7101 = vmatpush.msra.mxu0 0.0
        %7102 = vmatpush.msra.mxu0 0.0
        %7103 = vmatpush.msra.mxu0 0.0
        %7104 = vmatpush.msra.mxu0 0.0
        %7105 = vmatpush.msra.mxu0 0.0
        %7106 = vmatpush.msra.mxu0 0.0
        %7107 = vmatpush.msra.mxu0 0.0
        %7108 = vmatpush.msra.mxu0 0.0
        %7109 = vmatpush.msra.mxu0 %v5725
        %7110 = vmatmul.f32.gmra.mxu0 %v6997
        %v7111 = vpop.f32.mrf.mxu0
        %v7112 = vadd.f32 0.0, %v7111
        %7113 = vmatmul.f32.gmra.mxu0 %v7000
        %v7114 = vpop.f32.mrf.mxu0
        %v7115 = vadd.f32 0.0, %v7114
        %7116 = vdwg.mxu0
        %7117 = vmatpush.msra.mxu0 0.0
        %7118 = vmatpush.msra.mxu0 0.0
        %7119 = vmatpush.msra.mxu0 0.0
        %7120 = vmatpush.msra.mxu0 0.0
        %7121 = vmatpush.msra.mxu0 0.0
        %7122 = vmatpush.msra.mxu0 0.0
        %7123 = vmatpush.msra.mxu0 0.0
        %7124 = vmatpush.msra.mxu0 0.0
        %7125 = vmatpush.msra.mxu0 0.0
        %7126 = vmatpush.msra.mxu0 0.0
        %7127 = vmatpush.msra.mxu0 0.0
        %7128 = vmatpush.msra.mxu0 0.0
        %7129 = vmatpush.msra.mxu0 0.0
        %7130 = vmatpush.msra.mxu0 0.0
        %7131 = vmatpush.msra.mxu0 0.0
        %7132 = vmatpush.msra.mxu0 %v5726
        %7133 = vmatmul.f32.gmra.mxu0 %v6997
        %v7134 = vpop.f32.mrf.mxu0
        %v7135 = vadd.f32 0.0, %v7134
        %7136 = vmatmul.f32.gmra.mxu0 %v7000
        %v7137 = vpop.f32.mrf.mxu0
        %v7138 = vadd.f32 0.0, %v7137
        %7139 = vdwg.mxu0
        %7140 = vmatpush.msra.mxu0 0.0
        %7141 = vmatpush.msra.mxu0 0.0
        %7142 = vmatpush.msra.mxu0 0.0
        %7143 = vmatpush.msra.mxu0 0.0
        %7144 = vmatpush.msra.mxu0 0.0
        %7145 = vmatpush.msra.mxu0 0.0
        %7146 = vmatpush.msra.mxu0 0.0
        %7147 = vmatpush.msra.mxu0 0.0
        %7148 = vmatpush.msra.mxu0 0.0
        %7149 = vmatpush.msra.mxu0 0.0
        %7150 = vmatpush.msra.mxu0 0.0
        %7151 = vmatpush.msra.mxu0 0.0
        %7152 = vmatpush.msra.mxu0 0.0
        %7153 = vmatpush.msra.mxu0 0.0
        %7154 = vmatpush.msra.mxu0 0.0
        %7155 = vmatpush.msra.mxu0 %v5727
        %7156 = vmatmul.f32.gmra.mxu0 %v6997
        %v7157 = vpop.f32.mrf.mxu0
        %v7158 = vadd.f32 0.0, %v7157
        %7159 = vmatmul.f32.gmra.mxu0 %v7000
        %v7160 = vpop.f32.mrf.mxu0
        %v7161 = vadd.f32 0.0, %v7160
        %7162 = vdwg.mxu0
        %7163 = vmatpush.msra.mxu0 0.0
        %7164 = vmatpush.msra.mxu0 0.0
        %7165 = vmatpush.msra.mxu0 0.0
        %7166 = vmatpush.msra.mxu0 0.0
        %7167 = vmatpush.msra.mxu0 0.0
        %7168 = vmatpush.msra.mxu0 0.0
        %7169 = vmatpush.msra.mxu0 0.0
        %7170 = vmatpush.msra.mxu0 0.0
        %7171 = vmatpush.msra.mxu0 0.0
        %7172 = vmatpush.msra.mxu0 0.0
        %7173 = vmatpush.msra.mxu0 0.0
        %7174 = vmatpush.msra.mxu0 0.0
        %7175 = vmatpush.msra.mxu0 0.0
        %7176 = vmatpush.msra.mxu0 0.0
        %7177 = vmatpush.msra.mxu0 0.0
        %7178 = vmatpush.msra.mxu0 %v5728
        %7179 = vmatmul.f32.gmra.mxu0 %v6997
        %v7180 = vpop.f32.mrf.mxu0
        %v7181 = vadd.f32 0.0, %v7180
        %7182 = vmatmul.f32.gmra.mxu0 %v7000
        %v7183 = vpop.f32.mrf.mxu0
        %v7184 = vadd.f32 0.0, %v7183
        %7185 = vdwg.mxu0
        %7186 = vmatpush.msra.mxu0 0.0
        %7187 = vmatpush.msra.mxu0 0.0
        %7188 = vmatpush.msra.mxu0 0.0
        %7189 = vmatpush.msra.mxu0 0.0
        %7190 = vmatpush.msra.mxu0 0.0
        %7191 = vmatpush.msra.mxu0 0.0
        %7192 = vmatpush.msra.mxu0 0.0
        %7193 = vmatpush.msra.mxu0 0.0
        %7194 = vmatpush.msra.mxu0 0.0
        %7195 = vmatpush.msra.mxu0 0.0
        %7196 = vmatpush.msra.mxu0 0.0
        %7197 = vmatpush.msra.mxu0 0.0
        %7198 = vmatpush.msra.mxu0 0.0
        %7199 = vmatpush.msra.mxu0 0.0
        %7200 = vmatpush.msra.mxu0 0.0
        %7201 = vmatpush.msra.mxu0 %v5729
        %7202 = vmatmul.f32.gmra.mxu0 %v6997
        %v7203 = vpop.f32.mrf.mxu0
        %v7204 = vadd.f32 0.0, %v7203
        %7205 = vmatmul.f32.gmra.mxu0 %v7000
        %v7206 = vpop.f32.mrf.mxu0
        %v7207 = vadd.f32 0.0, %v7206
        %7208 = vdwg.mxu0
        %7209 = vmatpush.msra.mxu0 0.0
        %7210 = vmatpush.msra.mxu0 0.0
        %7211 = vmatpush.msra.mxu0 0.0
        %7212 = vmatpush.msra.mxu0 0.0
        %7213 = vmatpush.msra.mxu0 0.0
        %7214 = vmatpush.msra.mxu0 0.0
        %7215 = vmatpush.msra.mxu0 0.0
        %7216 = vmatpush.msra.mxu0 0.0
        %7217 = vmatpush.msra.mxu0 0.0
        %7218 = vmatpush.msra.mxu0 0.0
        %7219 = vmatpush.msra.mxu0 0.0
        %7220 = vmatpush.msra.mxu0 0.0
        %7221 = vmatpush.msra.mxu0 0.0
        %7222 = vmatpush.msra.mxu0 0.0
        %7223 = vmatpush.msra.mxu0 0.0
        %7224 = vmatpush.msra.mxu0 %v5730
        %7225 = vmatmul.f32.gmra.mxu0 %v6997
        %v7226 = vpop.f32.mrf.mxu0
        %v7227 = vadd.f32 0.0, %v7226
        %7228 = vmatmul.f32.gmra.mxu0 %v7000
        %v7229 = vpop.f32.mrf.mxu0
        %v7230 = vadd.f32 0.0, %v7229
        %7231 = vdwg.mxu0
        %7232 = vmatpush.msra.mxu0 0.0
        %7233 = vmatpush.msra.mxu0 0.0
        %7234 = vmatpush.msra.mxu0 0.0
        %7235 = vmatpush.msra.mxu0 0.0
        %7236 = vmatpush.msra.mxu0 0.0
        %7237 = vmatpush.msra.mxu0 0.0
        %7238 = vmatpush.msra.mxu0 0.0
        %7239 = vmatpush.msra.mxu0 0.0
        %7240 = vmatpush.msra.mxu0 0.0
        %7241 = vmatpush.msra.mxu0 0.0
        %7242 = vmatpush.msra.mxu0 0.0
        %7243 = vmatpush.msra.mxu0 0.0
        %7244 = vmatpush.msra.mxu0 0.0
        %7245 = vmatpush.msra.mxu0 0.0
        %7246 = vmatpush.msra.mxu0 0.0
        %7247 = vmatpush.msra.mxu0 %v5731
        %7248 = vmatmul.f32.gmra.mxu0 %v6997
        %v7249 = vpop.f32.mrf.mxu0
        %v7250 = vadd.f32 0.0, %v7249
        %7251 = vmatmul.f32.gmra.mxu0 %v7000
        %v7252 = vpop.f32.mrf.mxu0
        %v7253 = vadd.f32 0.0, %v7252
        %7254 = vdwg.mxu0
        %7255 = vmatpush.msra.mxu0 0.0
        %7256 = vmatpush.msra.mxu0 0.0
        %7257 = vmatpush.msra.mxu0 0.0
        %7258 = vmatpush.msra.mxu0 0.0
        %7259 = vmatpush.msra.mxu0 0.0
        %7260 = vmatpush.msra.mxu0 0.0
        %7261 = vmatpush.msra.mxu0 0.0
        %7262 = vmatpush.msra.mxu0 0.0
        %7263 = vmatpush.msra.mxu0 0.0
        %7264 = vmatpush.msra.mxu0 0.0
        %7265 = vmatpush.msra.mxu0 0.0
        %7266 = vmatpush.msra.mxu0 0.0
        %7267 = vmatpush.msra.mxu0 0.0
        %7268 = vmatpush.msra.mxu0 0.0
        %7269 = vmatpush.msra.mxu0 0.0
        %7270 = vmatpush.msra.mxu0 %v5732
        %7271 = vmatmul.f32.gmra.mxu0 %v6997
        %v7272 = vpop.f32.mrf.mxu0
        %v7273 = vadd.f32 0.0, %v7272
        %7274 = vmatmul.f32.gmra.mxu0 %v7000
        %v7275 = vpop.f32.mrf.mxu0
        %v7276 = vadd.f32 0.0, %v7275
        %7277 = vdwg.mxu0
        %7278 = vmatpush.msra.mxu0 0.0
        %7279 = vmatpush.msra.mxu0 0.0
        %7280 = vmatpush.msra.mxu0 0.0
        %7281 = vmatpush.msra.mxu0 0.0
        %7282 = vmatpush.msra.mxu0 0.0
        %7283 = vmatpush.msra.mxu0 0.0
        %7284 = vmatpush.msra.mxu0 0.0
        %7285 = vmatpush.msra.mxu0 0.0
        %7286 = vmatpush.msra.mxu0 0.0
        %7287 = vmatpush.msra.mxu0 0.0
        %7288 = vmatpush.msra.mxu0 0.0
        %7289 = vmatpush.msra.mxu0 0.0
        %7290 = vmatpush.msra.mxu0 0.0
        %7291 = vmatpush.msra.mxu0 0.0
        %7292 = vmatpush.msra.mxu0 0.0
        %7293 = vmatpush.msra.mxu0 %v5733
        %7294 = vmatmul.f32.gmra.mxu0 %v6997
        %v7295 = vpop.f32.mrf.mxu0
        %v7296 = vadd.f32 0.0, %v7295
        %7297 = vmatmul.f32.gmra.mxu0 %v7000
        %v7298 = vpop.f32.mrf.mxu0
        %v7299 = vadd.f32 0.0, %v7298
        %7300 = vdwg.mxu0
        %7301 = vmatpush.msra.mxu0 0.0
        %7302 = vmatpush.msra.mxu0 0.0
        %7303 = vmatpush.msra.mxu0 0.0
        %7304 = vmatpush.msra.mxu0 0.0
        %7305 = vmatpush.msra.mxu0 0.0
        %7306 = vmatpush.msra.mxu0 0.0
        %7307 = vmatpush.msra.mxu0 0.0
        %7308 = vmatpush.msra.mxu0 0.0
        %7309 = vmatpush.msra.mxu0 0.0
        %7310 = vmatpush.msra.mxu0 0.0
        %7311 = vmatpush.msra.mxu0 0.0
        %7312 = vmatpush.msra.mxu0 0.0
        %7313 = vmatpush.msra.mxu0 0.0
        %7314 = vmatpush.msra.mxu0 0.0
        %7315 = vmatpush.msra.mxu0 0.0
        %7316 = vmatpush.msra.mxu0 %v5734
        %7317 = vmatmul.f32.gmra.mxu0 %v6997
        %v7318 = vpop.f32.mrf.mxu0
        %v7319 = vadd.f32 0.0, %v7318
        %7320 = vmatmul.f32.gmra.mxu0 %v7000
        %v7321 = vpop.f32.mrf.mxu0
        %v7322 = vadd.f32 0.0, %v7321
        %7323 = vdwg.mxu0
        %7324 = vmatpush.msra.mxu0 0.0
        %7325 = vmatpush.msra.mxu0 0.0
        %7326 = vmatpush.msra.mxu0 0.0
        %7327 = vmatpush.msra.mxu0 0.0
        %7328 = vmatpush.msra.mxu0 0.0
        %7329 = vmatpush.msra.mxu0 0.0
        %7330 = vmatpush.msra.mxu0 0.0
        %7331 = vmatpush.msra.mxu0 0.0
        %7332 = vmatpush.msra.mxu0 0.0
        %7333 = vmatpush.msra.mxu0 0.0
        %7334 = vmatpush.msra.mxu0 0.0
        %7335 = vmatpush.msra.mxu0 0.0
        %7336 = vmatpush.msra.mxu0 0.0
        %7337 = vmatpush.msra.mxu0 0.0
        %7338 = vmatpush.msra.mxu0 0.0
        %7339 = vmatpush.msra.mxu0 %v5735
        %7340 = vmatmul.f32.gmra.mxu0 %v6997
        %v7341 = vpop.f32.mrf.mxu0
        %v7342 = vadd.f32 0.0, %v7341
        %7343 = vmatmul.f32.gmra.mxu0 %v7000
        %v7344 = vpop.f32.mrf.mxu0
        %v7345 = vadd.f32 0.0, %v7344
        %7346 = vdwg.mxu0
        %7347 = vmatpush.msra.mxu0 0.0
        %7348 = vmatpush.msra.mxu0 0.0
        %7349 = vmatpush.msra.mxu0 0.0
        %7350 = vmatpush.msra.mxu0 0.0
        %7351 = vmatpush.msra.mxu0 0.0
        %7352 = vmatpush.msra.mxu0 0.0
        %7353 = vmatpush.msra.mxu0 0.0
        %7354 = vmatpush.msra.mxu0 0.0
        %7355 = vmatpush.msra.mxu0 0.0
        %7356 = vmatpush.msra.mxu0 0.0
        %7357 = vmatpush.msra.mxu0 0.0
        %7358 = vmatpush.msra.mxu0 0.0
        %7359 = vmatpush.msra.mxu0 0.0
        %7360 = vmatpush.msra.mxu0 0.0
        %7361 = vmatpush.msra.mxu0 0.0
        %7362 = vmatpush.msra.mxu0 %v5736
        %7363 = vmatmul.f32.gmra.mxu0 %v6997
        %v7364 = vpop.f32.mrf.mxu0
        %v7365 = vadd.f32 0.0, %v7364
        %7366 = vmatmul.f32.gmra.mxu0 %v7000
        %v7367 = vpop.f32.mrf.mxu0
        %v7368 = vadd.f32 0.0, %v7367
        %7369 = vdwg.mxu0
        %7370 = vmatpush.msra.mxu0 0.0
        %7371 = vmatpush.msra.mxu0 0.0
        %7372 = vmatpush.msra.mxu0 0.0
        %7373 = vmatpush.msra.mxu0 0.0
        %7374 = vmatpush.msra.mxu0 0.0
        %7375 = vmatpush.msra.mxu0 0.0
        %7376 = vmatpush.msra.mxu0 0.0
        %7377 = vmatpush.msra.mxu0 0.0
        %7378 = vmatpush.msra.mxu0 0.0
        %7379 = vmatpush.msra.mxu0 0.0
        %7380 = vmatpush.msra.mxu0 0.0
        %7381 = vmatpush.msra.mxu0 0.0
        %7382 = vmatpush.msra.mxu0 0.0
        %7383 = vmatpush.msra.mxu0 0.0
        %7384 = vmatpush.msra.mxu0 0.0
        %7385 = vmatpush.msra.mxu0 %v5737
        %7386 = vmatmul.f32.gmra.mxu0 %v6997
        %v7387 = vpop.f32.mrf.mxu0
        %v7388 = vadd.f32 0.0, %v7387
        %7389 = vmatmul.f32.gmra.mxu0 %v7000
        %v7390 = vpop.f32.mrf.mxu0
        %v7391 = vadd.f32 0.0, %v7390
        %7392 = vdwg.mxu0
        %7393 = vmatpush.msra.mxu0 0.0
        %7394 = vmatpush.msra.mxu0 0.0
        %7395 = vmatpush.msra.mxu0 0.0
        %7396 = vmatpush.msra.mxu0 0.0
        %7397 = vmatpush.msra.mxu0 0.0
        %7398 = vmatpush.msra.mxu0 0.0
        %7399 = vmatpush.msra.mxu0 0.0
        %7400 = vmatpush.msra.mxu0 0.0
        %7401 = vmatpush.msra.mxu0 0.0
        %7402 = vmatpush.msra.mxu0 0.0
        %7403 = vmatpush.msra.mxu0 0.0
        %7404 = vmatpush.msra.mxu0 0.0
        %7405 = vmatpush.msra.mxu0 0.0
        %7406 = vmatpush.msra.mxu0 0.0
        %7407 = vmatpush.msra.mxu0 0.0
        %7408 = vmatpush.msra.mxu0 %v5738
        %7409 = vmatmul.f32.gmra.mxu0 %v6997
        %v7410 = vpop.f32.mrf.mxu0
        %v7411 = vadd.f32 0.0, %v7410
        %7412 = vmatmul.f32.gmra.mxu0 %v7000
        %v7413 = vpop.f32.mrf.mxu0
        %v7414 = vadd.f32 0.0, %v7413
        %7415 = vdwg.mxu0
        %7416 = vmatpush.msra.mxu0 0.0
        %7417 = vmatpush.msra.mxu0 0.0
        %7418 = vmatpush.msra.mxu0 0.0
        %7419 = vmatpush.msra.mxu0 0.0
        %7420 = vmatpush.msra.mxu0 0.0
        %7421 = vmatpush.msra.mxu0 0.0
        %7422 = vmatpush.msra.mxu0 0.0
        %7423 = vmatpush.msra.mxu0 0.0
        %7424 = vmatpush.msra.mxu0 0.0
        %7425 = vmatpush.msra.mxu0 0.0
        %7426 = vmatpush.msra.mxu0 0.0
        %7427 = vmatpush.msra.mxu0 0.0
        %7428 = vmatpush.msra.mxu0 0.0
        %7429 = vmatpush.msra.mxu0 0.0
        %7430 = vmatpush.msra.mxu0 0.0
        %7431 = vmatpush.msra.mxu0 %v5739
        %7432 = vmatmul.f32.gmra.mxu0 %v6997
        %v7433 = vpop.f32.mrf.mxu0
        %v7434 = vadd.f32 0.0, %v7433
        %7435 = vmatmul.f32.gmra.mxu0 %v7000
        %v7436 = vpop.f32.mrf.mxu0
        %v7437 = vadd.f32 0.0, %v7436
        %7438 = vdwg.mxu0
        %7439 = vmatpush.msra.mxu0 0.0
        %7440 = vmatpush.msra.mxu0 0.0
        %7441 = vmatpush.msra.mxu0 0.0
        %7442 = vmatpush.msra.mxu0 0.0
        %7443 = vmatpush.msra.mxu0 0.0
        %7444 = vmatpush.msra.mxu0 0.0
        %7445 = vmatpush.msra.mxu0 0.0
        %7446 = vmatpush.msra.mxu0 0.0
        %7447 = vmatpush.msra.mxu0 0.0
        %7448 = vmatpush.msra.mxu0 0.0
        %7449 = vmatpush.msra.mxu0 0.0
        %7450 = vmatpush.msra.mxu0 0.0
        %7451 = vmatpush.msra.mxu0 0.0
        %7452 = vmatpush.msra.mxu0 0.0
        %7453 = vmatpush.msra.mxu0 0.0
        %7454 = vmatpush.msra.mxu0 %v5740
        %7455 = vmatmul.f32.gmra.mxu0 %v6997
        %v7456 = vpop.f32.mrf.mxu0
        %v7457 = vadd.f32 0.0, %v7456
        %7458 = vmatmul.f32.gmra.mxu0 %v7000
        %v7459 = vpop.f32.mrf.mxu0
        %v7460 = vadd.f32 0.0, %v7459
        %7461 = vdwg.mxu0
        %7462 = vmatpush.msra.mxu0 0.0
        %7463 = vmatpush.msra.mxu0 0.0
        %7464 = vmatpush.msra.mxu0 0.0
        %7465 = vmatpush.msra.mxu0 0.0
        %7466 = vmatpush.msra.mxu0 0.0
        %7467 = vmatpush.msra.mxu0 0.0
        %7468 = vmatpush.msra.mxu0 0.0
        %7469 = vmatpush.msra.mxu0 0.0
        %7470 = vmatpush.msra.mxu0 0.0
        %7471 = vmatpush.msra.mxu0 0.0
        %7472 = vmatpush.msra.mxu0 0.0
        %7473 = vmatpush.msra.mxu0 0.0
        %7474 = vmatpush.msra.mxu0 0.0
        %7475 = vmatpush.msra.mxu0 0.0
        %7476 = vmatpush.msra.mxu0 0.0
        %7477 = vmatpush.msra.mxu0 %v5741
        %7478 = vmatmul.f32.gmra.mxu0 %v6997
        %v7479 = vpop.f32.mrf.mxu0
        %v7480 = vadd.f32 0.0, %v7479
        %7481 = vmatmul.f32.gmra.mxu0 %v7000
        %v7482 = vpop.f32.mrf.mxu0
        %v7483 = vadd.f32 0.0, %v7482
        %7484 = vdwg.mxu0
        %7485 = vmatpush.msra.mxu0 0.0
        %7486 = vmatpush.msra.mxu0 0.0
        %7487 = vmatpush.msra.mxu0 0.0
        %7488 = vmatpush.msra.mxu0 0.0
        %7489 = vmatpush.msra.mxu0 0.0
        %7490 = vmatpush.msra.mxu0 0.0
        %7491 = vmatpush.msra.mxu0 0.0
        %7492 = vmatpush.msra.mxu0 0.0
        %7493 = vmatpush.msra.mxu0 0.0
        %7494 = vmatpush.msra.mxu0 0.0
        %7495 = vmatpush.msra.mxu0 0.0
        %7496 = vmatpush.msra.mxu0 0.0
        %7497 = vmatpush.msra.mxu0 0.0
        %7498 = vmatpush.msra.mxu0 0.0
        %7499 = vmatpush.msra.mxu0 0.0
        %7500 = vmatpush.msra.mxu0 %v5742
        %7501 = vmatmul.f32.gmra.mxu0 %v6997
        %v7502 = vpop.f32.mrf.mxu0
        %v7503 = vadd.f32 0.0, %v7502
        %7504 = vmatmul.f32.gmra.mxu0 %v7000
        %v7505 = vpop.f32.mrf.mxu0
        %v7506 = vadd.f32 0.0, %v7505
        %7507 = vdwg.mxu0
        %7508 = vmatpush.msra.mxu0 0.0
        %7509 = vmatpush.msra.mxu0 0.0
        %7510 = vmatpush.msra.mxu0 0.0
        %7511 = vmatpush.msra.mxu0 0.0
        %7512 = vmatpush.msra.mxu0 0.0
        %7513 = vmatpush.msra.mxu0 0.0
        %7514 = vmatpush.msra.mxu0 0.0
        %7515 = vmatpush.msra.mxu0 0.0
        %7516 = vmatpush.msra.mxu0 0.0
        %7517 = vmatpush.msra.mxu0 0.0
        %7518 = vmatpush.msra.mxu0 0.0
        %7519 = vmatpush.msra.mxu0 0.0
        %7520 = vmatpush.msra.mxu0 0.0
        %7521 = vmatpush.msra.mxu0 0.0
        %7522 = vmatpush.msra.mxu0 0.0
        %7523 = vmatpush.msra.mxu0 %v5743
        %7524 = vmatmul.f32.gmra.mxu0 %v6997
        %v7525 = vpop.f32.mrf.mxu0
        %v7526 = vadd.f32 0.0, %v7525
        %7527 = vmatmul.f32.gmra.mxu0 %v7000
        %v7528 = vpop.f32.mrf.mxu0
        %v7529 = vadd.f32 0.0, %v7528
        %7530 = vdwg.mxu0
        %7531 = vmatpush.msra.mxu0 0.0
        %7532 = vmatpush.msra.mxu0 0.0
        %7533 = vmatpush.msra.mxu0 0.0
        %7534 = vmatpush.msra.mxu0 0.0
        %7535 = vmatpush.msra.mxu0 0.0
        %7536 = vmatpush.msra.mxu0 0.0
        %7537 = vmatpush.msra.mxu0 0.0
        %7538 = vmatpush.msra.mxu0 0.0
        %7539 = vmatpush.msra.mxu0 0.0
        %7540 = vmatpush.msra.mxu0 0.0
        %7541 = vmatpush.msra.mxu0 0.0
        %7542 = vmatpush.msra.mxu0 0.0
        %7543 = vmatpush.msra.mxu0 0.0
        %7544 = vmatpush.msra.mxu0 0.0
        %7545 = vmatpush.msra.mxu0 0.0
        %7546 = vmatpush.msra.mxu0 %v5744
        %7547 = vmatmul.f32.gmra.mxu0 %v6997
        %v7548 = vpop.f32.mrf.mxu0
        %v7549 = vadd.f32 0.0, %v7548
        %7550 = vmatmul.f32.gmra.mxu0 %v7000
        %v7551 = vpop.f32.mrf.mxu0
        %v7552 = vadd.f32 0.0, %v7551
        %7553 = vdwg.mxu0
        %v7554 = vadd.f32 %v6459, %v7020
        %v7555 = vadd.f32 %v6482, %v7043
        %v7556 = vadd.f32 %v6505, %v7066
        %v7557 = vadd.f32 %v6528, %v7089
        %v7558 = vadd.f32 %v6551, %v7112
        %v7559 = vadd.f32 %v6574, %v7135
        %v7560 = vadd.f32 %v6597, %v7158
        %v7561 = vadd.f32 %v6620, %v7181
        %v7562 = vadd.f32 %v6643, %v7204
        %v7563 = vadd.f32 %v6666, %v7227
        %v7564 = vadd.f32 %v6689, %v7250
        %v7565 = vadd.f32 %v6712, %v7273
        %v7566 = vadd.f32 %v6735, %v7296
        %v7567 = vadd.f32 %v6758, %v7319
        %v7568 = vadd.f32 %v6781, %v7342
        %v7569 = vadd.f32 %v6804, %v7365
        %v7570 = vadd.f32 %v6827, %v7388
        %v7571 = vadd.f32 %v6850, %v7411
        %v7572 = vadd.f32 %v6873, %v7434
        %v7573 = vadd.f32 %v6896, %v7457
        %v7574 = vadd.f32 %v6919, %v7480
        %v7575 = vadd.f32 %v6942, %v7503
        %v7576 = vadd.f32 %v6965, %v7526
        %v7577 = vadd.f32 %v6988, %v7549
        %v7578 = vadd.f32 %v6462, %v7023
        %v7579 = vadd.f32 %v6485, %v7046
        %v7580 = vadd.f32 %v6508, %v7069
        %v7581 = vadd.f32 %v6531, %v7092
        %v7582 = vadd.f32 %v6554, %v7115
        %v7583 = vadd.f32 %v6577, %v7138
        %v7584 = vadd.f32 %v6600, %v7161
        %v7585 = vadd.f32 %v6623, %v7184
        %v7586 = vadd.f32 %v6646, %v7207
        %v7587 = vadd.f32 %v6669, %v7230
        %v7588 = vadd.f32 %v6692, %v7253
        %v7589 = vadd.f32 %v6715, %v7276
        %v7590 = vadd.f32 %v6738, %v7299
        %v7591 = vadd.f32 %v6761, %v7322
        %v7592 = vadd.f32 %v6784, %v7345
        %v7593 = vadd.f32 %v6807, %v7368
        %v7594 = vadd.f32 %v6830, %v7391
        %v7595 = vadd.f32 %v6853, %v7414
        %v7596 = vadd.f32 %v6876, %v7437
        %v7597 = vadd.f32 %v6899, %v7460
        %v7598 = vadd.f32 %v6922, %v7483
        %v7599 = vadd.f32 %v6945, %v7506
        %v7600 = vadd.f32 %v6968, %v7529
        %v7601 = vadd.f32 %v6991, %v7552
        %7603 = vset.pattern.permute.xlu0 0
        %7604 = vperm.xlu0 %7603, %v391
        %v7605 = vpop.permute.xlu0 %7604
        %7608 = vset.pattern.permute.xlu0 0
        %7609 = vperm.xlu0 %7608, %v392
        %v7610 = vpop.permute.xlu0 %7609
        %v7612 = vadd.f32 %v7554, %v7605
        %v7613 = vadd.f32 %v7555, %v7605
        %v7614 = vadd.f32 %v7556, %v7605
        %v7615 = vadd.f32 %v7557, %v7605
        %v7616 = vadd.f32 %v7558, %v7605
        %v7617 = vadd.f32 %v7559, %v7605
        %v7618 = vadd.f32 %v7560, %v7605
        %v7619 = vadd.f32 %v7561, %v7605
        %v7620 = vadd.f32 %v7562, %v7605
        %v7621 = vadd.f32 %v7563, %v7605
        %v7622 = vadd.f32 %v7564, %v7605
        %v7623 = vadd.f32 %v7565, %v7605
        %v7624 = vadd.f32 %v7566, %v7605
        %v7625 = vadd.f32 %v7567, %v7605
        %v7626 = vadd.f32 %v7568, %v7605
        %v7627 = vadd.f32 %v7569, %v7605
        %v7628 = vadd.f32 %v7570, %v7605
        %v7629 = vadd.f32 %v7571, %v7605
        %v7630 = vadd.f32 %v7572, %v7605
        %v7631 = vadd.f32 %v7573, %v7605
        %v7632 = vadd.f32 %v7574, %v7605
        %v7633 = vadd.f32 %v7575, %v7605
        %v7634 = vadd.f32 %v7576, %v7605
        %v7635 = vadd.f32 %v7577, %v7605
        %v7636 = vadd.f32 %v7578, %v7610
        %v7637 = vadd.f32 %v7579, %v7610
        %v7638 = vadd.f32 %v7580, %v7610
        %v7639 = vadd.f32 %v7581, %v7610
        %v7640 = vadd.f32 %v7582, %v7610
        %v7641 = vadd.f32 %v7583, %v7610
        %v7642 = vadd.f32 %v7584, %v7610
        %v7643 = vadd.f32 %v7585, %v7610
        %v7644 = vadd.f32 %v7586, %v7610
        %v7645 = vadd.f32 %v7587, %v7610
        %v7646 = vadd.f32 %v7588, %v7610
        %v7647 = vadd.f32 %v7589, %v7610
        %v7648 = vadd.f32 %v7590, %v7610
        %v7649 = vadd.f32 %v7591, %v7610
        %v7650 = vadd.f32 %v7592, %v7610
        %v7651 = vadd.f32 %v7593, %v7610
        %v7652 = vadd.f32 %v7594, %v7610
        %v7653 = vadd.f32 %v7595, %v7610
        %v7654 = vadd.f32 %v7596, %v7610
        %v7655 = vadd.f32 %v7597, %v7610
        %v7656 = vadd.f32 %v7598, %v7610
        %v7657 = vadd.f32 %v7599, %v7610
        %v7658 = vadd.f32 %v7600, %v7610
        %v7659 = vadd.f32 %v7601, %v7610
        %v7660 = vmax.f32 %v7612, 0.0
        %v7661 = vmax.f32 %v7613, 0.0
        %v7662 = vmax.f32 %v7614, 0.0
        %v7663 = vmax.f32 %v7615, 0.0
        %v7664 = vmax.f32 %v7616, 0.0
        %v7665 = vmax.f32 %v7617, 0.0
        %v7666 = vmax.f32 %v7618, 0.0
        %v7667 = vmax.f32 %v7619, 0.0
        %v7668 = vmax.f32 %v7620, 0.0
        %v7669 = vmax.f32 %v7621, 0.0
        %v7670 = vmax.f32 %v7622, 0.0
        %v7671 = vmax.f32 %v7623, 0.0
        %v7672 = vmax.f32 %v7624, 0.0
        %v7673 = vmax.f32 %v7625, 0.0
        %v7674 = vmax.f32 %v7626, 0.0
        %v7675 = vmax.f32 %v7627, 0.0
        %v7676 = vmax.f32 %v7628, 0.0
        %v7677 = vmax.f32 %v7629, 0.0
        %v7678 = vmax.f32 %v7630, 0.0
        %v7679 = vmax.f32 %v7631, 0.0
        %v7680 = vmax.f32 %v7632, 0.0
        %v7681 = vmax.f32 %v7633, 0.0
        %v7682 = vmax.f32 %v7634, 0.0
        %v7683 = vmax.f32 %v7635, 0.0
        %v7684 = vmax.f32 %v7636, 0.0
        %v7685 = vmax.f32 %v7637, 0.0
        %v7686 = vmax.f32 %v7638, 0.0
        %v7687 = vmax.f32 %v7639, 0.0
        %v7688 = vmax.f32 %v7640, 0.0
        %v7689 = vmax.f32 %v7641, 0.0
        %v7690 = vmax.f32 %v7642, 0.0
        %v7691 = vmax.f32 %v7643, 0.0
        %v7692 = vmax.f32 %v7644, 0.0
        %v7693 = vmax.f32 %v7645, 0.0
        %v7694 = vmax.f32 %v7646, 0.0
        %v7695 = vmax.f32 %v7647, 0.0
        %v7696 = vmax.f32 %v7648, 0.0
        %v7697 = vmax.f32 %v7649, 0.0
        %v7698 = vmax.f32 %v7650, 0.0
        %v7699 = vmax.f32 %v7651, 0.0
        %v7700 = vmax.f32 %v7652, 0.0
        %v7701 = vmax.f32 %v7653, 0.0
        %v7702 = vmax.f32 %v7654, 0.0
        %v7703 = vmax.f32 %v7655, 0.0
        %v7704 = vmax.f32 %v7656, 0.0
        %v7705 = vmax.f32 %v7657, 0.0
        %v7706 = vmax.f32 %v7658, 0.0
        %v7707 = vmax.f32 %v7659, 0.0
        %v7708 = vadd.f32 %v7660, %v7661
        %v7709 = vadd.f32 %v7708, %v7662
        %v7710 = vadd.f32 %v7709, %v7663
        %v7711 = vadd.f32 %v7710, %v7664
        %v7712 = vadd.f32 %v7711, %v7665
        %v7713 = vadd.f32 %v7712, %v7666
        %v7714 = vadd.f32 %v7713, %v7667
        %v7715 = vadd.f32 %v7714, %v7668
        %v7716 = vadd.f32 %v7715, %v7669
        %v7717 = vadd.f32 %v7716, %v7670
        %v7718 = vadd.f32 %v7717, %v7671
        %v7719 = vadd.f32 %v7718, %v7672
        %v7720 = vadd.f32 %v7719, %v7673
        %v7721 = vadd.f32 %v7720, %v7674
        %v7722 = vadd.f32 %v7721, %v7675
        %v7723 = vadd.f32 %v7722, %v7676
        %v7724 = vadd.f32 %v7723, %v7677
        %v7725 = vadd.f32 %v7724, %v7678
        %v7726 = vadd.f32 %v7725, %v7679
        %v7727 = vadd.f32 %v7726, %v7680
        %v7728 = vadd.f32 %v7727, %v7681
        %v7729 = vadd.f32 %v7728, %v7682
        %vm7730 = vcmask 457728
        %v7731 = vsel %vm7730, %v7683, 0.0
        %v7732 = vadd.f32 %v7729, %v7731
        %7733 = vadd.xlane.f32.xlu0 %v7732
        %v7734 = vpop.xlane.xlu0 %7733
        %v7735 = vadd.f32 %v7684, %v7685
        %v7736 = vadd.f32 %v7735, %v7686
        %v7737 = vadd.f32 %v7736, %v7687
        %v7738 = vadd.f32 %v7737, %v7688
        %v7739 = vadd.f32 %v7738, %v7689
        %v7740 = vadd.f32 %v7739, %v7690
        %v7741 = vadd.f32 %v7740, %v7691
        %v7742 = vadd.f32 %v7741, %v7692
        %v7743 = vadd.f32 %v7742, %v7693
        %v7744 = vadd.f32 %v7743, %v7694
        %v7745 = vadd.f32 %v7744, %v7695
        %v7746 = vadd.f32 %v7745, %v7696
        %v7747 = vadd.f32 %v7746, %v7697
        %v7748 = vadd.f32 %v7747, %v7698
        %v7749 = vadd.f32 %v7748, %v7699
        %v7750 = vadd.f32 %v7749, %v7700
        %v7751 = vadd.f32 %v7750, %v7701
        %v7752 = vadd.f32 %v7751, %v7702
        %v7753 = vadd.f32 %v7752, %v7703
        %v7754 = vadd.f32 %v7753, %v7704
        %v7755 = vadd.f32 %v7754, %v7705
        %v7756 = vadd.f32 %v7755, %v7706
        %v7757 = vsel %vm7730, %v7707, 0.0
        %v7758 = vadd.f32 %v7756, %v7757
        %7759 = vadd.xlane.f32.xlu0 %v7758
        %v7760 = vpop.xlane.xlu0 %7759
        %v7761 = vrcp.pop 3000.0
        %v7762 = vmul.f32 3000.0, %v7761
        %v7763 = vsub.f32 1.0, %v7762
        %v7764 = vmul.f32 %v7761, %v7763
        %v7765 = vadd.f32 %v7761, %v7764
        %vm7766 = vweird.f32 %v7761
        %v7767 = vsel %vm7766, %v7761, %v7765
        %v7768 = vmul.f32 %v7734, %v7767
        %v7769 = vmul.f32 %v7760, %v7767
        %v7770 = vld [vmem:[%s5] sm:$0xff]
        %v7771 = vld [vmem:[%s5 + $0x8] sm:$0xff]
        %v7772 = vmul.f32 %v7770, %v7768
        %v7773 = vmul.f32 %v7771, %v7769
        %vm7774 = vcmask 7168
        %v7775 = vsel %vm7774, %v7772, 0.0
        %v7776 = vsel %vm7774, %v7773, 0.0
        %v7777 = vadd.f32 %v7775, %v7776
        %v7778 = vrot.slane %v7777, 4
        %v7779 = vadd.f32 %v7777, %v7778
        %v7780 = vrot.slane %v7779, 2
        %v7781 = vadd.f32 %v7779, %v7780
        %v7782 = vrot.slane %v7781, 1
        %v7783 = vadd.f32 %v7781, %v7782
        %v7784 = vmax.f32 %v7783, 0.0
        %v7785 = vld [vmem:[%s6] sm:$0xff]
        %v7786 = vld [vmem:[%s6 + $0x8] sm:$0xff]
        %v7787 = vmul.f32 %v7785, %v7784
        %v7788 = vmul.f32 %v7786, %v7784
        %v7789 = vxor.u32 %v7787, 2147483648
        %v7790 = vxor.u32 %v7788, 2147483648
        %v7791 = vmul.f32 %v7789, 1.442695
        %v7792 = vpow.pop %v7791
        %v7793 = vmul.f32 %v7790, 1.442695
        %v7794 = vpow.pop %v7793
        %v7795 = vadd.f32 %v7792, 1.0
        %v7796 = vadd.f32 %v7794, 1.0
        %v7797 = vrcp.pop %v7795
        %v7798 = vmul.f32 %v7795, %v7797
        %v7799 = vsub.f32 1.0, %v7798
        %v7800 = vmul.f32 %v7797, %v7799
        %v7801 = vadd.f32 %v7797, %v7800
        %vm7802 = vweird.f32 %v7795
        %vm7803 = vweird.f32 %v7797
        %vm7804 = vmor %vm7802, %vm7803
        %v7805 = vsel %vm7804, %v7797, %v7801
        %v7806 = vand.u32 2147483647, %v7795
        %vm7807 = vcmp.eq.f32.partialorder %v7806, 8.507059e+37
        %v7808 = vand.u32 %v7795, 2147483648
        %v7809 = vor.u32 1.1754944e-38, %v7808
        %v7810 = vsel %vm7807, %v7809, %v7805
        %v7811 = vmul.f32 1.0, %v7810
        %v7812 = vrcp.pop %v7796
        %v7813 = vmul.f32 %v7796, %v7812
        %v7814 = vsub.f32 1.0, %v7813
        %v7815 = vmul.f32 %v7812, %v7814
        %v7816 = vadd.f32 %v7812, %v7815
        %vm7817 = vweird.f32 %v7796
        %vm7818 = vweird.f32 %v7812
        %vm7819 = vmor %vm7817, %vm7818
        %v7820 = vsel %vm7819, %v7812, %v7816
        %v7821 = vand.u32 2147483647, %v7796
        %vm7822 = vcmp.eq.f32.partialorder %v7821, 8.507059e+37
        %v7823 = vand.u32 %v7796, 2147483648
        %v7824 = vor.u32 1.1754944e-38, %v7823
        %v7825 = vsel %vm7822, %v7824, %v7820
        %v7826 = vmul.f32 1.0, %v7825
        %7828 = vset.pattern.permute.xlu0 0
        %7829 = vperm.xlu0 %7828, %v7811
        %v7830 = vpop.permute.xlu0 %7829
        %7833 = vset.pattern.permute.xlu0 0
        %7834 = vperm.xlu0 %7833, %v7826
        %v7835 = vpop.permute.xlu0 %7834
        %v7837 = vmul.f32 %v7660, %v7830
        %v7838 = vmul.f32 %v7661, %v7830
        %v7839 = vmul.f32 %v7662, %v7830
        %v7840 = vmul.f32 %v7663, %v7830
        %v7841 = vmul.f32 %v7664, %v7830
        %v7842 = vmul.f32 %v7665, %v7830
        %v7843 = vmul.f32 %v7666, %v7830
        %v7844 = vmul.f32 %v7667, %v7830
        %v7845 = vmul.f32 %v7668, %v7830
        %v7846 = vmul.f32 %v7669, %v7830
        %v7847 = vmul.f32 %v7670, %v7830
        %v7848 = vmul.f32 %v7671, %v7830
        %v7849 = vmul.f32 %v7672, %v7830
        %v7850 = vmul.f32 %v7673, %v7830
        %v7851 = vmul.f32 %v7674, %v7830
        %v7852 = vmul.f32 %v7675, %v7830
        %v7853 = vmul.f32 %v7676, %v7830
        %v7854 = vmul.f32 %v7677, %v7830
        %v7855 = vmul.f32 %v7678, %v7830
        %v7856 = vmul.f32 %v7679, %v7830
        %v7857 = vmul.f32 %v7680, %v7830
        %v7858 = vmul.f32 %v7681, %v7830
        %v7859 = vmul.f32 %v7682, %v7830
        %v7860 = vmul.f32 %v7683, %v7830
        %v7861 = vmul.f32 %v7684, %v7835
        %v7862 = vmul.f32 %v7685, %v7835
        %v7863 = vmul.f32 %v7686, %v7835
        %v7864 = vmul.f32 %v7687, %v7835
        %v7865 = vmul.f32 %v7688, %v7835
        %v7866 = vmul.f32 %v7689, %v7835
        %v7867 = vmul.f32 %v7690, %v7835
        %v7868 = vmul.f32 %v7691, %v7835
        %v7869 = vmul.f32 %v7692, %v7835
        %v7870 = vmul.f32 %v7693, %v7835
        %v7871 = vmul.f32 %v7694, %v7835
        %v7872 = vmul.f32 %v7695, %v7835
        %v7873 = vmul.f32 %v7696, %v7835
        %v7874 = vmul.f32 %v7697, %v7835
        %v7875 = vmul.f32 %v7698, %v7835
        %v7876 = vmul.f32 %v7699, %v7835
        %v7877 = vmul.f32 %v7700, %v7835
        %v7878 = vmul.f32 %v7701, %v7835
        %v7879 = vmul.f32 %v7702, %v7835
        %v7880 = vmul.f32 %v7703, %v7835
        %v7881 = vmul.f32 %v7704, %v7835
        %v7882 = vmul.f32 %v7705, %v7835
        %v7883 = vmul.f32 %v7706, %v7835
        %v7884 = vmul.f32 %v7707, %v7835
        %v7885 = vpack.c.bf16 %v7838, %v7837
        %v7886 = vpack.c.bf16 %v7840, %v7839
        %v7887 = vpack.c.bf16 %v7842, %v7841
        %v7888 = vpack.c.bf16 %v7844, %v7843
        %v7889 = vpack.c.bf16 %v7846, %v7845
        %v7890 = vpack.c.bf16 %v7848, %v7847
        %v7891 = vpack.c.bf16 %v7850, %v7849
        %v7892 = vpack.c.bf16 %v7852, %v7851
        %v7893 = vpack.c.bf16 %v7854, %v7853
        %v7894 = vpack.c.bf16 %v7856, %v7855
        %v7895 = vpack.c.bf16 %v7858, %v7857
        %v7896 = vpack.c.bf16 %v7860, %v7859
        %v7897 = vpack.c.bf16 %v7862, %v7861
        %v7898 = vpack.c.bf16 %v7864, %v7863
        %v7899 = vpack.c.bf16 %v7866, %v7865
        %v7900 = vpack.c.bf16 %v7868, %v7867
        %v7901 = vpack.c.bf16 %v7870, %v7869
        %v7902 = vpack.c.bf16 %v7872, %v7871
        %v7903 = vpack.c.bf16 %v7874, %v7873
        %v7904 = vpack.c.bf16 %v7876, %v7875
        %v7905 = vpack.c.bf16 %v7878, %v7877
        %v7906 = vpack.c.bf16 %v7880, %v7879
        %v7907 = vpack.c.bf16 %v7882, %v7881
        %v7908 = vpack.c.bf16 %v7884, %v7883
        %7909 = vst [vmem:[%s325] sm:$0xff] %v7885
        %7910 = vst [vmem:[%s325 + $0x8] sm:$0xff] %v7886
        %7911 = vst [vmem:[%s325 + $0x10] sm:$0xff] %v7887
        %7912 = vst [vmem:[%s325 + $0x18] sm:$0xff] %v7888
        %7913 = vst [vmem:[%s325 + $0x20] sm:$0xff] %v7889
        %7914 = vst [vmem:[%s325 + $0x28] sm:$0xff] %v7890
        %7915 = vst [vmem:[%s325 + $0x30] sm:$0xff] %v7891
        %7916 = vst [vmem:[%s325 + $0x38] sm:$0xff] %v7892
        %7917 = vst [vmem:[%s325 + $0x40] sm:$0xff] %v7893
        %7918 = vst [vmem:[%s325 + $0x48] sm:$0xff] %v7894
        %7919 = vst [vmem:[%s325 + $0x50] sm:$0xff] %v7895
        %vm7920 = vcmask 457732
        %vm7921 = vmor %vm7920, %vm451
        %7922 = vst.msk [vmem:[%s325 + $0x58] sm:$0xff] %vm7921, %v7896
        %7923 = vst [vmem:[%s325 + $0x60] sm:$0xff] %v7897
        %7924 = vst [vmem:[%s325 + $0x68] sm:$0xff] %v7898
        %7925 = vst [vmem:[%s325 + $0x70] sm:$0xff] %v7899
        %7926 = vst [vmem:[%s325 + $0x78] sm:$0xff] %v7900
        %7927 = vst [vmem:[%s325 + $0x80] sm:$0xff] %v7901
        %7928 = vst [vmem:[%s325 + $0x88] sm:$0xff] %v7902
        %7929 = vst [vmem:[%s325 + $0x90] sm:$0xff] %v7903
        %7930 = vst [vmem:[%s325 + $0x98] sm:$0xff] %v7904
        %7931 = vst [vmem:[%s325 + $0xa0] sm:$0xff] %v7905
        %7932 = vst [vmem:[%s325 + $0xa8] sm:$0xff] %v7906
        %7933 = vst [vmem:[%s325 + $0xb0] sm:$0xff] %v7907
        %7934 = vst.msk [vmem:[%s325 + $0xb8] sm:$0xff] %vm7921, %v7908
        %s7935 = sand.u32 %s206, 1
        %s7936 = scalar_lea.sflag [#allocation4], %s7935
        %s7937 = sand.u32 %s206, 1
        %s7938 = smul.addr %s7937, 192
        %s7939 = scalar_lea.vmem [#allocation5], %s7938
        // Predicated region
        $region57: #{tpu_custom_call.1} parent=51 // pred_check
          %p7940 = pneg %p216
        $region58: #{tpu_custom_call.1} parent=51 // pred_check_branch
          %7942 = sbr.rel (%p7940) target = $region60
        $region59: #{tpu_custom_call.1} parent=51 // pred_region
          %7944 = vsyncadd %s7936, 0
          %s7945 = smul.addr %s25, 48
          %s7946 = smul.addr %s7945, 4
          %s7947 = scalar_lea.hbm %s8, %s7946
          %s7948 = sshll.u32 %s7939, 4
          %s7949 = int_to_ptr.vmem [resolvable:$true] %s7948
          %s7950 = sshll.u32 %s7947, 4
          %s7951 = int_to_ptr.hbm [resolvable:$true] %s7950
          %7956 = dma.vmem_to_hbm [thread:$0]  %s7949, 3072, %s7951, %s7936, 1536, 1536, 96
        $region60: #{tpu_custom_call.1} parent=51 // pred_fallthru
          _
      $region52: #{tpu_custom_call.1} parent=5 // pred_fallthru
        _
      %p7957 = scmp.le.s32.totalorder 2, %s20
      // Predicated region
      $region61: #{tpu_custom_call.1} parent=5 // pred_check
        %p7958 = pneg %p7957
      $region62: #{tpu_custom_call.1} parent=5 // pred_check_branch
        %7960 = sbr.rel (%p7958) target = $region64
      $region63: #{tpu_custom_call.1} parent=5 // pred_region
        %s7961 = ssub.s32 %s20, 2
        // Predicated region
        $region65: #{tpu_custom_call.1} parent=63 // pred_check
          %p7962 = pneg %p222
        $region66: #{tpu_custom_call.1} parent=63 // pred_check_branch
          %7964 = sbr.rel (%p7962) target = $region68
        $region67: #{tpu_custom_call.1} parent=63 // pred_region
          %s7965 = sand.u32 %s207, 1
          %s7966 = scalar_lea.sflag [#allocation4], %s7965
          %s7967 = sand.u32 %s207, 1
          %s7968 = smul.addr %s7967, 192
          %s7969 = scalar_lea.vmem [#allocation5], %s7968
          %7971 = dma.done %s7966, 3072
        $region68: #{tpu_custom_call.1} parent=63 // pred_fallthru
          _
      $region64: #{tpu_custom_call.1} parent=5 // pred_fallthru
        _
    $region6: #{tpu_custom_call.1} parent=1 // loop_footer
      %s24 = sadd.s32 1, %s20
    $region7: #{tpu_custom_call.1} parent=1 // loop_footer_branch
      %19 = sbr.rel target = $region3
    $region8: #{tpu_custom_call.1} parent=1 // loop_exit
      _
    %7972 = vsyncpa [#allocation3], 1
    %s7973 = scalar_lea.sflag [#allocation3], 1
    %7974 = vsyncpa %s7973, 1
    %7975 = vsyncpa [#allocation4], 1
    %s7976 = scalar_lea.sflag [#allocation4], 1
    %7977 = vsyncpa %s7976, 1

</llo_original>
